<compile_context>
chip_gen: v7x
topology: tpu7x:2x2x1
jax: 0.10.0
libtpu: 0.0.40
codegen_flags: <defaults>
</compile_context>

<pallas_src>
import functools

import jax
import jax.numpy as jnp
from jax.experimental import pallas as pl
from jax.experimental.pallas import tpu as pltpu

BN_EPS = 1e-5
LANE = 128                      # channel dims padded to a multiple of this

_VMEM_LIMIT_CACHE = None


def _vmem_limit_bytes():
    """Per-generation scoped-VMEM cap: ~3/4 of physical VMEM, capped at 100 MiB."""
    global _VMEM_LIMIT_CACHE
    if _VMEM_LIMIT_CACHE is None:
        try:
            cap = int(pltpu.get_tpu_info().vmem_capacity_bytes)
        except Exception:
            cap = 128 * 1024 * 1024
        _VMEM_LIMIT_CACHE = min((cap * 3) // 4, 100 * 1024 * 1024)
    return _VMEM_LIMIT_CACHE


def _round_up(x, m):
    return (x + m - 1) // m * m


def _pick_band_h(H, W, c_max, requested=None):
    """Pick a row-band height that divides H and keeps the band working set small."""
    if requested is not None:
        band_h = max(1, min(int(requested), H))
    else:
        budget_elems = (2 * 1024 * 1024) // 4      # ~2 MiB f32 accumulator / band
        band_h = max(1, min(H, budget_elems // max(W * c_max, 1)))
    while H % band_h != 0:
        band_h -= 1
    return band_h


# ---------------------------------------------------------------------------
# Kernel A: 3x3 conv on one (image, row-band) tile as 9 accumulated MXU
# matmuls over a bf16 zero-padded band, + per-band partial BN statistics.
# Optionally fuses the previous block's BN+ReLU ("prelude") onto the input.
# ---------------------------------------------------------------------------
def _conv3x3_stats_kernel(xb_ref, xt_ref, xbot_ref, w_ref, scale_ref, shift_ref,
                          y_ref, stats_ref, xpad_ref, *, apply_prelude):
    # xb_ref:    (1, Hb, W, Cin)          band of the input image
    # xt_ref:    (1, 1, W, Cin)           row above the band (clamped at edge)
    # xbot_ref:  (1, 1, W, Cin)           row below the band (clamped at edge)
    # w_ref:     (9, Cin, Cout)   bf16    conv weights, tap-major
    # scale/shift: (1, Cin)       f32     folded BN of the previous block
    # y_ref:     (1, Hb, W, Cout) bf16    raw conv output (pre-BN)
    # stats_ref: (1, 1, 2, Cout)  f32     per-band [sum, sum_sq]
    # xpad_ref:  (Hb+2, W+2, Cin) bf16    zero-padded band staging buffer
    Hb, W = y_ref.shape[1], y_ref.shape[2]
    Cin = xb_ref.shape[3]
    Cout = y_ref.shape[3]
    b = pl.program_id(1)
    nb = pl.num_programs(1)

    if apply_prelude:
        scale = scale_ref[...].reshape(1, 1, Cin)
        shift = shift_ref[...].reshape(1, 1, Cin)

    def process(rows):
        rows = rows.astype(jnp.float32)
        if apply_prelude:
            rows = jnp.maximum(rows * scale + shift, 0.0)   # fused BN + ReLU
        return rows.astype(jnp.bfloat16)

    # Halo rows: conv zero-padding applies at the image edges.
    top = process(xt_ref[0])                                 # (1, W, Cin)
    bot = process(xbot_ref[0])
    top = jnp.where(b == 0, jnp.zeros_like(top), top)
    bot = jnp.where(b == nb - 1, jnp.zeros_like(bot), bot)

    # Build the padded band in bf16.  Only the halo BORDER is zero-filled; the
    # interior is fully overwritten each step, so no stale data survives even
    # when grid steps run on different TensorCores.
    zcol = jnp.zeros((Hb + 2, 1, Cin), jnp.bfloat16)
    xpad_ref[:, 0:1, :] = zcol
    xpad_ref[:, W + 1:W + 2, :] = zcol
    xpad_ref[0:1, 1:W + 1, :] = top
    xpad_ref[Hb + 1:Hb + 2, 1:W + 1, :] = bot
    xpad_ref[1:Hb + 1, 1:W + 1, :] = process(xb_ref[0])

    # 3x3 conv = 9 accumulated matmuls over shifted bf16 views (no im2col patch).
    acc = None
    for k in range(9):
        dy, dx = divmod(k, 3)
        tap = xpad_ref[dy:dy + Hb, dx:dx + W, :].reshape(Hb * W, Cin)
        part = jnp.dot(tap, w_ref[k], preferred_element_type=jnp.float32)
        acc = part if acc is None else acc + part            # (Hb*W, Cout) f32

    # One-pass BN statistics for this band, taken from the f32 accumulator.
    s = jnp.sum(acc, axis=0, keepdims=True)
    ss = jnp.sum(acc * acc, axis=0, keepdims=True)
    stats_ref[0, 0] = jnp.concatenate([s, ss], axis=0)

    y_ref[0] = acc.reshape(Hb, W, Cout).astype(y_ref.dtype)


# ---------------------------------------------------------------------------
# Kernel B: final BN + ReLU (elementwise, band-tiled, lane-dense channels).
# ---------------------------------------------------------------------------
def _bn_relu_kernel(y_ref, scale_ref, shift_ref, o_ref):
    C = o_ref.shape[3]
    scale = scale_ref[...].reshape(1, 1, C)
    shift = shift_ref[...].reshape(1, 1, C)
    y = y_ref[0].astype(jnp.float32)
    o_ref[0] = jnp.maximum(y * scale + shift, 0.0).astype(o_ref.dtype)


# ---------------------------------------------------------------------------
# pallas_call wrappers
# ---------------------------------------------------------------------------
def _conv3x3_bn_stats(x, w9, scale_in, shift_in, *, apply_prelude, band_h):
    N, H, W, Cin = x.shape
    Cout = w9.shape[2]
    nb = H // band_h
    kernel = functools.partial(_conv3x3_stats_kernel, apply_prelude=apply_prelude)
    grid_spec = pltpu.PrefetchScalarGridSpec(
        num_scalar_prefetch=0,
        grid=(N, nb),
        in_specs=[
            pl.BlockSpec((1, band_h, W, Cin), lambda n, b: (n, b, 0, 0)),
            pl.BlockSpec((1, 1, W, Cin),
                         lambda n, b: (n, jnp.maximum(b * band_h - 1, 0), 0, 0)),
            pl.BlockSpec((1, 1, W, Cin),
                         lambda n, b: (n, jnp.minimum((b + 1) * band_h, H - 1), 0, 0)),
            pl.BlockSpec((9, Cin, Cout), lambda n, b: (0, 0, 0)),
            pl.BlockSpec((1, Cin), lambda n, b: (0, 0)),
            pl.BlockSpec((1, Cin), lambda n, b: (0, 0)),
        ],
        out_specs=[
            pl.BlockSpec((1, band_h, W, Cout), lambda n, b: (n, b, 0, 0)),
            pl.BlockSpec((1, 1, 2, Cout), lambda n, b: (n, b, 0, 0)),
        ],
        scratch_shapes=[pltpu.VMEM((band_h + 2, W + 2, Cin), jnp.bfloat16)],
    )
    return pl.pallas_call(
        kernel,
        out_shape=(jax.ShapeDtypeStruct((N, H, W, Cout), jnp.bfloat16),
                   jax.ShapeDtypeStruct((N, nb, 2, Cout), jnp.float32)),
        grid_spec=grid_spec,
        compiler_params=pltpu.CompilerParams(
            dimension_semantics=("parallel", "parallel"),
            vmem_limit_bytes=_vmem_limit_bytes()),
    )(x, x, x, w9, scale_in, shift_in)


def _bn_relu(y_raw, scale, shift, *, band_h):
    N, H, W, C = y_raw.shape
    nb = H // band_h
    grid_spec = pltpu.PrefetchScalarGridSpec(
        num_scalar_prefetch=0,
        grid=(N, nb),
        in_specs=[
            pl.BlockSpec((1, band_h, W, C), lambda n, b: (n, b, 0, 0)),
            pl.BlockSpec((1, C), lambda n, b: (0, 0)),
            pl.BlockSpec((1, C), lambda n, b: (0, 0)),
        ],
        out_specs=pl.BlockSpec((1, band_h, W, C), lambda n, b: (n, b, 0, 0)),
    )
    return pl.pallas_call(
        _bn_relu_kernel,
        out_shape=jax.ShapeDtypeStruct((N, H, W, C), jnp.float32),
        grid_spec=grid_spec,
        compiler_params=pltpu.CompilerParams(
            dimension_semantics=("parallel", "parallel"),
            vmem_limit_bytes=_vmem_limit_bytes()),
    )(y_raw, scale, shift)


def _finalize_bn(stats, gamma_p, beta_p, count):
    """Reduce per-band [sum, sum_sq] stats and fold BN into (scale, shift)."""
    s = jnp.sum(stats, axis=(0, 1))                  # (2, C)
    mean = s[0] / count
    var = jnp.maximum(s[1] / count - mean * mean, 0.0)
    scale = gamma_p * jax.lax.rsqrt(var + BN_EPS)
    shift = beta_p - mean * scale
    return scale.reshape(1, -1), shift.reshape(1, -1)


def pack_params(params):
    """Pad channels to LANE multiples, split taps out as leading dim, cast to bf16."""
    w1, g1, b1, w2, g2, b2 = params

    def pack(w, g, bch):
        _, _, cin, cout = w.shape
        cin_p, cout_p = _round_up(cin, LANE), _round_up(cout, LANE)
        wp = jnp.pad(w, ((0, 0), (0, 0), (0, cin_p - cin), (0, cout_p - cout)))
        w9 = wp.reshape(9, cin_p, cout_p).astype(jnp.bfloat16)
        gp = jnp.pad(g, (0, cout_p - cout), constant_values=1.0)
        bp = jnp.pad(bch, (0, cout_p - cout))
        return w9, gp, bp

    return pack(w1, g1, b1), pack(w2, g2, b2)


def double_conv_nhwc(x_nhwc, packed, *, band_h=None):
    """x_nhwc: (N, H, W, Cin_padded) f32.  Returns (N, H, W, Cout_padded) f32."""
    (w1_9, g1p, b1p), (w2_9, g2p, b2p) = packed
    N, H, W, cin_p = x_nhwc.shape
    mid_p, cout_p = w1_9.shape[2], w2_9.shape[2]
    bh = _pick_band_h(H, W, max(cin_p, mid_p, cout_p), band_h)
    count = N * H * W
    ones = jnp.ones((1, cin_p), jnp.float32)      # dummy prelude for block 1
    zeros = jnp.zeros((1, cin_p), jnp.float32)

    # block 1: conv1 (bf16 out) + partial stats from the f32 accumulator
    y1_raw, stats1 = _conv3x3_bn_stats(x_nhwc, w1_9, ones, zeros,
                                       apply_prelude=False, band_h=bh)
    scale1, shift1 = _finalize_bn(stats1, g1p, b1p, count)

    # block 2: BN1+ReLU1 fused as prelude into conv2, + partial stats
    y2_raw, stats2 = _conv3x3_bn_stats(y1_raw, w2_9, scale1, shift1,
                                       apply_prelude=True, band_h=bh)
    scale2, shift2 = _finalize_bn(stats2, g2p, b2p, count)

    # final BN2 + ReLU2 (band-tiled elementwise pass)
    return _bn_relu(y2_raw, scale2, shift2, band_h=bh)


def double_conv(x_nchw, params, *, band_h=None):
    """DoubleConv.forward: (N, Cin, H, W) -> (N, Cout, H, W)."""
    cin = params[0].shape[2]
    cout = params[3].shape[3]
    packed = pack_params(params)
    cin_p = packed[0][0].shape[1]
    # NCHW -> NHWC + zero channel padding.  If this module lives inside a
    # larger NHWC model, keep activations NHWC/padded end-to-end and skip this.
    x = jnp.transpose(x_nchw, (0, 2, 3, 1)).astype(jnp.float32)
    x = jnp.pad(x, ((0, 0), (0, 0), (0, 0), (0, cin_p - cin)))
    y = double_conv_nhwc(x, packed, band_h=band_h)
    return jnp.transpose(y[..., :cout], (0, 3, 1, 2))


def init_params(key, in_channels, out_channels, mid_channels=None):
    if not mid_channels:
        mid_channels = out_channels
    k1, k2 = jax.random.split(key)
    w1 = 0.1 * jax.random.normal(k1, (3, 3, in_channels, mid_channels), jnp.float32)
    w2 = 0.1 * jax.random.normal(k2, (3, 3, mid_channels, out_channels), jnp.float32)
    g1 = jnp.ones((mid_channels,), jnp.float32)
    b1 = jnp.zeros((mid_channels,), jnp.float32)
    g2 = jnp.ones((out_channels,), jnp.float32)
    b2 = jnp.zeros((out_channels,), jnp.float32)
    return (w1, g1, b1, w2, g2, b2)


# ---------------------------------------------------------------------------
# Pure-JAX reference (same semantics: bf16 conv inputs, f32 accumulation,
# training-mode BatchNorm over (N, H, W) with biased variance, ReLU).
# ---------------------------------------------------------------------------
def _ref_block(x_nhwc, w_hwio, gamma, beta):
    y = jax.lax.conv_general_dilated(
        x_nhwc.astype(jnp.bfloat16), w_hwio.astype(jnp.bfloat16),
        window_strides=(1, 1), padding="SAME",
        dimension_numbers=("NHWC", "HWIO", "NHWC"),
        preferred_element_type=jnp.float32)
    mean = jnp.mean(y, axis=(0, 1, 2), keepdims=True)
    var = jnp.mean((y - mean) ** 2, axis=(0, 1, 2), keepdims=True)
    y = (y - mean) * jax.lax.rsqrt(var + BN_EPS)
    y = y * gamma.reshape(1, 1, 1, -1) + beta.reshape(1, 1, 1, -1)
    return jnp.maximum(y, 0.0)


def _ref_double_conv(x_nchw, params):
    w1, g1, b1, w2, g2, b2 = params
    x = jnp.transpose(x_nchw, (0, 2, 3, 1))
    y = _ref_block(x, w1, g1, b1)
    y = _ref_block(y, w2, g2, b2)
    return jnp.transpose(y, (0, 3, 1, 2))


if __name__ == "__main__":
    key = jax.random.PRNGKey(0)
    kx, kp = jax.random.split(key)

    N, Cin, H, W = 2, 4, 16, 16
    Cout = 8
    x = jax.random.normal(kx, (N, Cin, H, W), jnp.float32)
    params = init_params(kp, Cin, Cout)

    # band_h=8 -> 2 row bands per image: exercises the halo path at demo size.
    fn = jax.jit(functools.partial(double_conv, band_h=8))
    out = jax.block_until_ready(fn(x, params))
    assert out.shape == (N, Cout, H, W), out.shape

    ref = jax.block_until_ready(_ref_double_conv(x, params))
    # bf16 MXU inputs + bf16 intermediate activations (with f32 accumulation
    # and f32 BN stats) bound the agreement with the bf16-input XLA reference
    # to a couple of bf16 ulps of the intermediate activations.
    assert jnp.allclose(out, ref, atol=2e-2, rtol=2e-2), (
        float(jnp.max(jnp.abs(out - ref))))

    print("KERNEL_OK")
</pallas_src>

<mosaic_0001>
module attributes {stable_mosaic.version = 11 : i64} {
  func.func @_conv3x3_stats_kernel(%arg0: i32, %arg1: i32, %arg2: memref<1x8x16x128xf32, #tpu.memory_space<vmem>>, %arg3: memref<1x1x16x128xf32, #tpu.memory_space<vmem>>, %arg4: memref<1x1x16x128xf32, #tpu.memory_space<vmem>>, %arg5: memref<9x128x128xbf16, #tpu.memory_space<vmem>>, %arg6: memref<1x128xf32, #tpu.memory_space<vmem>>, %arg7: memref<1x128xf32, #tpu.memory_space<vmem>>, %arg8: memref<1x8x16x128xbf16, #tpu.memory_space<vmem>>, %arg9: memref<1x1x2x128xf32, #tpu.memory_space<vmem>>, %arg10: memref<10x18x128xbf16, #tpu.memory_space<vmem>>) attributes {dimension_semantics = [#tpu.dimension_semantics<parallel>, #tpu.dimension_semantics<parallel>], iteration_bounds = array<i64: 2, 2>, scalar_prefetch = 0 : i64, scratch_operands = 1 : i64, tpu.core_type = #tpu.core_type<tc>, window_params = [{transform_indices = @transform_0, window_bounds = array<i64: 1, 8, 16, 128>}, {transform_indices = @transform_1, window_bounds = array<i64: 1, 1, 16, 128>}, {transform_indices = @transform_2, window_bounds = array<i64: 1, 1, 16, 128>}, {pipeline_mode = #tpu.pipeline_mode<synchronous>, transform_indices = @transform_3, window_bounds = array<i64: 9, 128, 128>}, {pipeline_mode = #tpu.pipeline_mode<synchronous>, transform_indices = @transform_4, window_bounds = array<i64: 1, 128>}, {pipeline_mode = #tpu.pipeline_mode<synchronous>, transform_indices = @transform_5, window_bounds = array<i64: 1, 128>}, {transform_indices = @transform_6, window_bounds = array<i64: 1, 8, 16, 128>}, {transform_indices = @transform_7, window_bounds = array<i64: 1, 1, 2, 128>}]} {
    %c0 = arith.constant 0 : index
    %c0_0 = arith.constant 0 : index
    %c0_1 = arith.constant 0 : index
    %c0_2 = arith.constant 0 : index
    %0 = vector.load %arg3[%c0, %c0_0, %c0_1, %c0_2] : memref<1x1x16x128xf32, #tpu.memory_space<vmem>>, vector<1x1x16x128xf32>
    %1 = vector.shape_cast %0 : vector<1x1x16x128xf32> to vector<1x16x128xf32>
    %2 = arith.truncf %1 : vector<1x16x128xf32> to vector<1x16x128xbf16>
    %c0_3 = arith.constant 0 : index
    %c0_4 = arith.constant 0 : index
    %c0_5 = arith.constant 0 : index
    %c0_6 = arith.constant 0 : index
    %3 = vector.load %arg4[%c0_3, %c0_4, %c0_5, %c0_6] : memref<1x1x16x128xf32, #tpu.memory_space<vmem>>, vector<1x1x16x128xf32>
    %4 = vector.shape_cast %3 : vector<1x1x16x128xf32> to vector<1x16x128xf32>
    %5 = arith.truncf %4 : vector<1x16x128xf32> to vector<1x16x128xbf16>
    %c0_i32 = arith.constant 0 : i32
    %6 = arith.cmpi eq, %arg1, %c0_i32 : i32
    %cst = arith.constant 0.000000e+00 : bf16
    %7 = vector.broadcast %cst : bf16 to vector<1x16x128xbf16>
    %8 = arith.select %6, %7, %2 : vector<1x16x128xbf16>
    %c1_i32 = arith.constant 1 : i32
    %9 = arith.cmpi eq, %arg1, %c1_i32 : i32
    %cst_7 = arith.constant 0.000000e+00 : bf16
    %10 = vector.broadcast %cst_7 : bf16 to vector<1x16x128xbf16>
    %11 = arith.select %9, %10, %5 : vector<1x16x128xbf16>
    %cst_8 = arith.constant 0.000000e+00 : bf16
    %12 = vector.broadcast %cst_8 : bf16 to vector<10x1x128xbf16>
    %c0_9 = arith.constant 0 : index
    %c0_10 = arith.constant 0 : index
    %c0_11 = arith.constant 0 : index
    %13 = vector.load %arg10[%c0_9, %c0_10, %c0_11] : memref<10x18x128xbf16, #tpu.memory_space<vmem>>, vector<10x1x128xbf16>
    tpu.vector_store %arg10[%c0_9, %c0_10, %c0_11], %12 {strides = array<i32>} : memref<10x18x128xbf16, #tpu.memory_space<vmem>>, vector<10x1x128xbf16>,
    %c0_12 = arith.constant 0 : index
    %c17 = arith.constant 17 : index
    %c0_13 = arith.constant 0 : index
    %14 = vector.load %arg10[%c0_12, %c17, %c0_13] : memref<10x18x128xbf16, #tpu.memory_space<vmem>>, vector<10x1x128xbf16>
    tpu.vector_store %arg10[%c0_12, %c17, %c0_13], %12 {strides = array<i32>} : memref<10x18x128xbf16, #tpu.memory_space<vmem>>, vector<10x1x128xbf16>,
    %c0_14 = arith.constant 0 : index
    %c1 = arith.constant 1 : index
    %c0_15 = arith.constant 0 : index
    %15 = vector.load %arg10[%c0_14, %c1, %c0_15] : memref<10x18x128xbf16, #tpu.memory_space<vmem>>, vector<1x16x128xbf16>
    tpu.vector_store %arg10[%c0_14, %c1, %c0_15], %8 {strides = array<i32>} : memref<10x18x128xbf16, #tpu.memory_space<vmem>>, vector<1x16x128xbf16>,
    %c9 = arith.constant 9 : index
    %c1_16 = arith.constant 1 : index
    %c0_17 = arith.constant 0 : index
    %16 = vector.load %arg10[%c9, %c1_16, %c0_17] : memref<10x18x128xbf16, #tpu.memory_space<vmem>>, vector<1x16x128xbf16>
    tpu.vector_store %arg10[%c9, %c1_16, %c0_17], %11 {strides = array<i32>} : memref<10x18x128xbf16, #tpu.memory_space<vmem>>, vector<1x16x128xbf16>,
    %c0_18 = arith.constant 0 : index
    %c0_19 = arith.constant 0 : index
    %c0_20 = arith.constant 0 : index
    %c0_21 = arith.constant 0 : index
    %17 = vector.load %arg2[%c0_18, %c0_19, %c0_20, %c0_21] : memref<1x8x16x128xf32, #tpu.memory_space<vmem>>, vector<1x8x16x128xf32>
    %18 = vector.shape_cast %17 : vector<1x8x16x128xf32> to vector<8x16x128xf32>
    %19 = arith.truncf %18 : vector<8x16x128xf32> to vector<8x16x128xbf16>
    %c1_22 = arith.constant 1 : index
    %c1_23 = arith.constant 1 : index
    %c0_24 = arith.constant 0 : index
    %20 = vector.load %arg10[%c1_22, %c1_23, %c0_24] : memref<10x18x128xbf16, #tpu.memory_space<vmem>>, vector<8x16x128xbf16>
    tpu.vector_store %arg10[%c1_22, %c1_23, %c0_24], %19 {strides = array<i32>} : memref<10x18x128xbf16, #tpu.memory_space<vmem>>, vector<8x16x128xbf16>,
    %c0_25 = arith.constant 0 : index
    %c0_26 = arith.constant 0 : index
    %c0_27 = arith.constant 0 : index
    %21 = vector.load %arg10[%c0_25, %c0_26, %c0_27] : memref<10x18x128xbf16, #tpu.memory_space<vmem>>, vector<8x16x128xbf16>
    %22 = vector.shape_cast %21 : vector<8x16x128xbf16> to vector<128x128xbf16>
    %c0_28 = arith.constant 0 : index
    %c0_29 = arith.constant 0 : index
    %c0_30 = arith.constant 0 : index
    %23 = vector.load %arg5[%c0_28, %c0_29, %c0_30] : memref<9x128x128xbf16, #tpu.memory_space<vmem>>, vector<1x128x128xbf16>
    %24 = vector.shape_cast %23 : vector<1x128x128xbf16> to vector<128x128xbf16>
    %cst_31 = arith.constant dense<0.000000e+00> : vector<128x128xf32>
    %25 = tpu.matmul %22, %24, %cst_31 {dimension_numbers = #tpu.dot_dimension_numbers<[1], [0], [0], [1], [0, 0, 1, 1], [], []>} : vector<128x128xbf16>, vector<128x128xbf16>, vector<128x128xf32> -> vector<128x128xf32>
    %c0_32 = arith.constant 0 : index
    %c1_33 = arith.constant 1 : index
    %c0_34 = arith.constant 0 : index
    %26 = vector.load %arg10[%c0_32, %c1_33, %c0_34] : memref<10x18x128xbf16, #tpu.memory_space<vmem>>, vector<8x16x128xbf16>
    %27 = vector.shape_cast %26 : vector<8x16x128xbf16> to vector<128x128xbf16>
    %c1_35 = arith.constant 1 : index
    %c0_36 = arith.constant 0 : index
    %c0_37 = arith.constant 0 : index
    %28 = vector.load %arg5[%c1_35, %c0_36, %c0_37] : memref<9x128x128xbf16, #tpu.memory_space<vmem>>, vector<1x128x128xbf16>
    %29 = vector.shape_cast %28 : vector<1x128x128xbf16> to vector<128x128xbf16>
    %cst_38 = arith.constant dense<0.000000e+00> : vector<128x128xf32>
    %30 = tpu.matmul %27, %29, %cst_38 {dimension_numbers = #tpu.dot_dimension_numbers<[1], [0], [0], [1], [0, 0, 1, 1], [], []>} : vector<128x128xbf16>, vector<128x128xbf16>, vector<128x128xf32> -> vector<128x128xf32>
    %31 = arith.addf %25, %30 : vector<128x128xf32>
    %c0_39 = arith.constant 0 : index
    %c2 = arith.constant 2 : index
    %c0_40 = arith.constant 0 : index
    %32 = vector.load %arg10[%c0_39, %c2, %c0_40] : memref<10x18x128xbf16, #tpu.memory_space<vmem>>, vector<8x16x128xbf16>
    %33 = vector.shape_cast %32 : vector<8x16x128xbf16> to vector<128x128xbf16>
    %c2_41 = arith.constant 2 : index
    %c0_42 = arith.constant 0 : index
    %c0_43 = arith.constant 0 : index
    %34 = vector.load %arg5[%c2_41, %c0_42, %c0_43] : memref<9x128x128xbf16, #tpu.memory_space<vmem>>, vector<1x128x128xbf16>
    %35 = vector.shape_cast %34 : vector<1x128x128xbf16> to vector<128x128xbf16>
    %cst_44 = arith.constant dense<0.000000e+00> : vector<128x128xf32>
    %36 = tpu.matmul %33, %35, %cst_44 {dimension_numbers = #tpu.dot_dimension_numbers<[1], [0], [0], [1], [0, 0, 1, 1], [], []>} : vector<128x128xbf16>, vector<128x128xbf16>, vector<128x128xf32> -> vector<128x128xf32>
    %37 = arith.addf %31, %36 : vector<128x128xf32>
    %c1_45 = arith.constant 1 : index
    %c0_46 = arith.constant 0 : index
    %c0_47 = arith.constant 0 : index
    %38 = vector.load %arg10[%c1_45, %c0_46, %c0_47] : memref<10x18x128xbf16, #tpu.memory_space<vmem>>, vector<8x16x128xbf16>
    %39 = vector.shape_cast %38 : vector<8x16x128xbf16> to vector<128x128xbf16>
    %c3 = arith.constant 3 : index
    %c0_48 = arith.constant 0 : index
    %c0_49 = arith.constant 0 : index
    %40 = vector.load %arg5[%c3, %c0_48, %c0_49] : memref<9x128x128xbf16, #tpu.memory_space<vmem>>, vector<1x128x128xbf16>
    %41 = vector.shape_cast %40 : vector<1x128x128xbf16> to vector<128x128xbf16>
    %cst_50 = arith.constant dense<0.000000e+00> : vector<128x128xf32>
    %42 = tpu.matmul %39, %41, %cst_50 {dimension_numbers = #tpu.dot_dimension_numbers<[1], [0], [0], [1], [0, 0, 1, 1], [], []>} : vector<128x128xbf16>, vector<128x128xbf16>, vector<128x128xf32> -> vector<128x128xf32>
    %43 = arith.addf %37, %42 : vector<128x128xf32>
    %c1_51 = arith.constant 1 : index
    %c1_52 = arith.constant 1 : index
    %c0_53 = arith.constant 0 : index
    %44 = vector.load %arg10[%c1_51, %c1_52, %c0_53] : memref<10x18x128xbf16, #tpu.memory_space<vmem>>, vector<8x16x128xbf16>
    %45 = vector.shape_cast %44 : vector<8x16x128xbf16> to vector<128x128xbf16>
    %c4 = arith.constant 4 : index
    %c0_54 = arith.constant 0 : index
    %c0_55 = arith.constant 0 : index
    %46 = vector.load %arg5[%c4, %c0_54, %c0_55] : memref<9x128x128xbf16, #tpu.memory_space<vmem>>, vector<1x128x128xbf16>
    %47 = vector.shape_cast %46 : vector<1x128x128xbf16> to vector<128x128xbf16>
    %cst_56 = arith.constant dense<0.000000e+00> : vector<128x128xf32>
    %48 = tpu.matmul %45, %47, %cst_56 {dimension_numbers = #tpu.dot_dimension_numbers<[1], [0], [0], [1], [0, 0, 1, 1], [], []>} : vector<128x128xbf16>, vector<128x128xbf16>, vector<128x128xf32> -> vector<128x128xf32>
    %49 = arith.addf %43, %48 : vector<128x128xf32>
    %c1_57 = arith.constant 1 : index
    %c2_58 = arith.constant 2 : index
    %c0_59 = arith.constant 0 : index
    %50 = vector.load %arg10[%c1_57, %c2_58, %c0_59] : memref<10x18x128xbf16, #tpu.memory_space<vmem>>, vector<8x16x128xbf16>
    %51 = vector.shape_cast %50 : vector<8x16x128xbf16> to vector<128x128xbf16>
    %c5 = arith.constant 5 : index
    %c0_60 = arith.constant 0 : index
    %c0_61 = arith.constant 0 : index
    %52 = vector.load %arg5[%c5, %c0_60, %c0_61] : memref<9x128x128xbf16, #tpu.memory_space<vmem>>, vector<1x128x128xbf16>
    %53 = vector.shape_cast %52 : vector<1x128x128xbf16> to vector<128x128xbf16>
    %cst_62 = arith.constant dense<0.000000e+00> : vector<128x128xf32>
    %54 = tpu.matmul %51, %53, %cst_62 {dimension_numbers = #tpu.dot_dimension_numbers<[1], [0], [0], [1], [0, 0, 1, 1], [], []>} : vector<128x128xbf16>, vector<128x128xbf16>, vector<128x128xf32> -> vector<128x128xf32>
    %55 = arith.addf %49, %54 : vector<128x128xf32>
    %c2_63 = arith.constant 2 : index
    %c0_64 = arith.constant 0 : index
    %c0_65 = arith.constant 0 : index
    %56 = vector.load %arg10[%c2_63, %c0_64, %c0_65] : memref<10x18x128xbf16, #tpu.memory_space<vmem>>, vector<8x16x128xbf16>
    %57 = vector.shape_cast %56 : vector<8x16x128xbf16> to vector<128x128xbf16>
    %c6 = arith.constant 6 : index
    %c0_66 = arith.constant 0 : index
    %c0_67 = arith.constant 0 : index
    %58 = vector.load %arg5[%c6, %c0_66, %c0_67] : memref<9x128x128xbf16, #tpu.memory_space<vmem>>, vector<1x128x128xbf16>
    %59 = vector.shape_cast %58 : vector<1x128x128xbf16> to vector<128x128xbf16>
    %cst_68 = arith.constant dense<0.000000e+00> : vector<128x128xf32>
    %60 = tpu.matmul %57, %59, %cst_68 {dimension_numbers = #tpu.dot_dimension_numbers<[1], [0], [0], [1], [0, 0, 1, 1], [], []>} : vector<128x128xbf16>, vector<128x128xbf16>, vector<128x128xf32> -> vector<128x128xf32>
    %61 = arith.addf %55, %60 : vector<128x128xf32>
    %c2_69 = arith.constant 2 : index
    %c1_70 = arith.constant 1 : index
    %c0_71 = arith.constant 0 : index
    %62 = vector.load %arg10[%c2_69, %c1_70, %c0_71] : memref<10x18x128xbf16, #tpu.memory_space<vmem>>, vector<8x16x128xbf16>
    %63 = vector.shape_cast %62 : vector<8x16x128xbf16> to vector<128x128xbf16>
    %c7 = arith.constant 7 : index
    %c0_72 = arith.constant 0 : index
    %c0_73 = arith.constant 0 : index
    %64 = vector.load %arg5[%c7, %c0_72, %c0_73] : memref<9x128x128xbf16, #tpu.memory_space<vmem>>, vector<1x128x128xbf16>
    %65 = vector.shape_cast %64 : vector<1x128x128xbf16> to vector<128x128xbf16>
    %cst_74 = arith.constant dense<0.000000e+00> : vector<128x128xf32>
    %66 = tpu.matmul %63, %65, %cst_74 {dimension_numbers = #tpu.dot_dimension_numbers<[1], [0], [0], [1], [0, 0, 1, 1], [], []>} : vector<128x128xbf16>, vector<128x128xbf16>, vector<128x128xf32> -> vector<128x128xf32>
    %67 = arith.addf %61, %66 : vector<128x128xf32>
    %c2_75 = arith.constant 2 : index
    %c2_76 = arith.constant 2 : index
    %c0_77 = arith.constant 0 : index
    %68 = vector.load %arg10[%c2_75, %c2_76, %c0_77] : memref<10x18x128xbf16, #tpu.memory_space<vmem>>, vector<8x16x128xbf16>
    %69 = vector.shape_cast %68 : vector<8x16x128xbf16> to vector<128x128xbf16>
    %c8 = arith.constant 8 : index
    %c0_78 = arith.constant 0 : index
    %c0_79 = arith.constant 0 : index
    %70 = vector.load %arg5[%c8, %c0_78, %c0_79] : memref<9x128x128xbf16, #tpu.memory_space<vmem>>, vector<1x128x128xbf16>
    %71 = vector.shape_cast %70 : vector<1x128x128xbf16> to vector<128x128xbf16>
    %cst_80 = arith.constant dense<0.000000e+00> : vector<128x128xf32>
    %72 = tpu.matmul %69, %71, %cst_80 {dimension_numbers = #tpu.dot_dimension_numbers<[1], [0], [0], [1], [0, 0, 1, 1], [], []>} : vector<128x128xbf16>, vector<128x128xbf16>, vector<128x128xf32> -> vector<128x128xf32>
    %73 = arith.addf %67, %72 : vector<128x128xf32>
    %cst_81 = arith.constant dense<0.000000e+00> : vector<128xf32>
    %74 = vector.multi_reduction <add>, %73, %cst_81 [0] : vector<128x128xf32> to vector<128xf32>
    %75 = vector.shape_cast %74 : vector<128xf32> to vector<1x128xf32>
    %76 = arith.mulf %73, %73 : vector<128x128xf32>
    %cst_82 = arith.constant dense<0.000000e+00> : vector<128xf32>
    %77 = vector.multi_reduction <add>, %76, %cst_82 [0] : vector<128x128xf32> to vector<128xf32>
    %78 = vector.shape_cast %77 : vector<128xf32> to vector<1x128xf32>
    %79 = tpu.concatenate %75, %78 in 0 : vector<1x128xf32>, vector<1x128xf32> -> vector<2x128xf32>
    %c0_83 = arith.constant 0 : index
    %c0_84 = arith.constant 0 : index
    %c0_85 = arith.constant 0 : index
    %c0_86 = arith.constant 0 : index
    %80 = vector.load %arg9[%c0_83, %c0_84, %c0_85, %c0_86] : memref<1x1x2x128xf32, #tpu.memory_space<vmem>>, vector<1x1x2x128xf32>
    %81 = vector.shape_cast %80 : vector<1x1x2x128xf32> to vector<2x128xf32>
    %82 = vector.shape_cast %79 : vector<2x128xf32> to vector<1x1x2x128xf32>
    tpu.vector_store %arg9[%c0_83, %c0_84, %c0_85, %c0_86], %82 {strides = array<i32>} : memref<1x1x2x128xf32, #tpu.memory_space<vmem>>, vector<1x1x2x128xf32>,
    %83 = vector.shape_cast %73 : vector<128x128xf32> to vector<8x16x128xf32>
    %84 = arith.truncf %83 : vector<8x16x128xf32> to vector<8x16x128xbf16>
    %c0_87 = arith.constant 0 : index
    %c0_88 = arith.constant 0 : index
    %c0_89 = arith.constant 0 : index
    %c0_90 = arith.constant 0 : index
    %85 = vector.load %arg8[%c0_87, %c0_88, %c0_89, %c0_90] : memref<1x8x16x128xbf16, #tpu.memory_space<vmem>>, vector<1x8x16x128xbf16>
    %86 = vector.shape_cast %85 : vector<1x8x16x128xbf16> to vector<8x16x128xbf16>
    %87 = vector.shape_cast %84 : vector<8x16x128xbf16> to vector<1x8x16x128xbf16>
    tpu.vector_store %arg8[%c0_87, %c0_88, %c0_89, %c0_90], %87 {strides = array<i32>} : memref<1x8x16x128xbf16, #tpu.memory_space<vmem>>, vector<1x8x16x128xbf16>,
    return
  }
  func.func @transform_0(%arg0: i32, %arg1: i32) -> (i32, i32, i32, i32) {
    %c0_i32 = arith.constant 0 : i32
    %c0_i32_0 = arith.constant 0 : i32
    %c0_i32_1 = arith.constant 0 : i32
    return %arg0, %arg1, %c0_i32, %c0_i32_0 : i32, i32, i32, i32
  }
  func.func @transform_1(%arg0: i32, %arg1: i32) -> (i32, i32, i32, i32) {
    %c8_i32 = arith.constant 8 : i32
    %0 = arith.muli %arg1, %c8_i32 : i32
    %c1_i32 = arith.constant 1 : i32
    %1 = arith.subi %0, %c1_i32 : i32
    %c0_i32 = arith.constant 0 : i32
    %2 = arith.maxsi %1, %c0_i32 : i32
    %c0_i32_0 = arith.constant 0 : i32
    %c0_i32_1 = arith.constant 0 : i32
    %c0_i32_2 = arith.constant 0 : i32
    return %arg0, %2, %c0_i32_0, %c0_i32_1 : i32, i32, i32, i32
  }
  func.func @transform_2(%arg0: i32, %arg1: i32) -> (i32, i32, i32, i32) {
    %c1_i32 = arith.constant 1 : i32
    %0 = arith.addi %arg1, %c1_i32 : i32
    %c8_i32 = arith.constant 8 : i32
    %1 = arith.muli %0, %c8_i32 : i32
    %c15_i32 = arith.constant 15 : i32
    %2 = arith.minsi %1, %c15_i32 : i32
    %c0_i32 = arith.constant 0 : i32
    %c0_i32_0 = arith.constant 0 : i32
    %c0_i32_1 = arith.constant 0 : i32
    return %arg0, %2, %c0_i32, %c0_i32_0 : i32, i32, i32, i32
  }
  func.func @transform_3(%arg0: i32, %arg1: i32) -> (i32, i32, i32) {
    %c0_i32 = arith.constant 0 : i32
    %c0_i32_0 = arith.constant 0 : i32
    %c0_i32_1 = arith.constant 0 : i32
    %c0_i32_2 = arith.constant 0 : i32
    return %c0_i32, %c0_i32_0, %c0_i32_1 : i32, i32, i32
  }
  func.func @transform_4(%arg0: i32, %arg1: i32) -> (i32, i32) {
    %c0_i32 = arith.constant 0 : i32
    %c0_i32_0 = arith.constant 0 : i32
    %c0_i32_1 = arith.constant 0 : i32
    return %c0_i32, %c0_i32_0 : i32, i32
  }
  func.func @transform_5(%arg0: i32, %arg1: i32) -> (i32, i32) {
    %c0_i32 = arith.constant 0 : i32
    %c0_i32_0 = arith.constant 0 : i32
    %c0_i32_1 = arith.constant 0 : i32
    return %c0_i32, %c0_i32_0 : i32, i32
  }
  func.func @transform_6(%arg0: i32, %arg1: i32) -> (i32, i32, i32, i32) {
    %c0_i32 = arith.constant 0 : i32
    %c0_i32_0 = arith.constant 0 : i32
    %c0_i32_1 = arith.constant 0 : i32
    return %arg0, %arg1, %c0_i32, %c0_i32_0 : i32, i32, i32, i32
  }
  func.func @transform_7(%arg0: i32, %arg1: i32) -> (i32, i32, i32, i32) {
    %c0_i32 = arith.constant 0 : i32
    %c0_i32_0 = arith.constant 0 : i32
    %c0_i32_1 = arith.constant 0 : i32
    return %arg0, %arg1, %c0_i32, %c0_i32_0 : i32, i32, i32, i32
  }
}

module attributes {stable_mosaic.version = 11 : i64} {
  func.func @_bn_relu_kernel(%arg0: i32, %arg1: i32, %arg2: memref<1x8x16x128xbf16, #tpu.memory_space<vmem>>, %arg3: memref<1x128xf32, #tpu.memory_space<vmem>>, %arg4: memref<1x128xf32, #tpu.memory_space<vmem>>, %arg5: memref<1x8x16x128xf32, #tpu.memory_space<vmem>>) attributes {dimension_semantics = [#tpu.dimension_semantics<parallel>, #tpu.dimension_semantics<parallel>], iteration_bounds = array<i64: 2, 2>, scalar_prefetch = 0 : i64, scratch_operands = 0 : i64, tpu.core_type = #tpu.core_type<tc>, window_params = [{transform_indices = @transform_0, window_bounds = array<i64: 1, 8, 16, 128>}, {pipeline_mode = #tpu.pipeline_mode<synchronous>, transform_indices = @transform_1, window_bounds = array<i64: 1, 128>}, {pipeline_mode = #tpu.pipeline_mode<synchronous>, transform_indices = @transform_2, window_bounds = array<i64: 1, 128>}, {transform_indices = @transform_3, window_bounds = array<i64: 1, 8, 16, 128>}]} {
    %c0 = arith.constant 0 : index
    %c0_0 = arith.constant 0 : index
    %0 = vector.load %arg3[%c0, %c0_0] : memref<1x128xf32, #tpu.memory_space<vmem>>, vector<1x128xf32>
    %1 = vector.shape_cast %0 : vector<1x128xf32> to vector<1x1x128xf32>
    %c0_1 = arith.constant 0 : index
    %c0_2 = arith.constant 0 : index
    %2 = vector.load %arg4[%c0_1, %c0_2] : memref<1x128xf32, #tpu.memory_space<vmem>>, vector<1x128xf32>
    %3 = vector.shape_cast %2 : vector<1x128xf32> to vector<1x1x128xf32>
    %c0_3 = arith.constant 0 : index
    %c0_4 = arith.constant 0 : index
    %c0_5 = arith.constant 0 : index
    %c0_6 = arith.constant 0 : index
    %4 = vector.load %arg2[%c0_3, %c0_4, %c0_5, %c0_6] : memref<1x8x16x128xbf16, #tpu.memory_space<vmem>>, vector<1x8x16x128xbf16>
    %5 = vector.shape_cast %4 : vector<1x8x16x128xbf16> to vector<8x16x128xbf16>
    %6 = arith.extf %5 : vector<8x16x128xbf16> to vector<8x16x128xf32>
    %7 = vector.broadcast %1 : vector<1x1x128xf32> to vector<8x16x128xf32>
    %8 = arith.mulf %6, %7 : vector<8x16x128xf32>
    %9 = vector.broadcast %3 : vector<1x1x128xf32> to vector<8x16x128xf32>
    %10 = arith.addf %8, %9 : vector<8x16x128xf32>
    %cst = arith.constant 0.000000e+00 : f32
    %11 = vector.broadcast %cst : f32 to vector<8x16x128xf32>
    %12 = arith.maximumf %10, %11 : vector<8x16x128xf32>
    %c0_7 = arith.constant 0 : index
    %c0_8 = arith.constant 0 : index
    %c0_9 = arith.constant 0 : index
    %c0_10 = arith.constant 0 : index
    %13 = vector.load %arg5[%c0_7, %c0_8, %c0_9, %c0_10] : memref<1x8x16x128xf32, #tpu.memory_space<vmem>>, vector<1x8x16x128xf32>
    %14 = vector.shape_cast %13 : vector<1x8x16x128xf32> to vector<8x16x128xf32>
    %15 = vector.shape_cast %12 : vector<8x16x128xf32> to vector<1x8x16x128xf32>
    tpu.vector_store %arg5[%c0_7, %c0_8, %c0_9, %c0_10], %15 {strides = array<i32>} : memref<1x8x16x128xf32, #tpu.memory_space<vmem>>, vector<1x8x16x128xf32>,
    return
  }
  func.func @transform_0(%arg0: i32, %arg1: i32) -> (i32, i32, i32, i32) {
    %c0_i32 = arith.constant 0 : i32
    %c0_i32_0 = arith.constant 0 : i32
    %c0_i32_1 = arith.constant 0 : i32
    return %arg0, %arg1, %c0_i32, %c0_i32_0 : i32, i32, i32, i32
  }
  func.func @transform_1(%arg0: i32, %arg1: i32) -> (i32, i32) {
    %c0_i32 = arith.constant 0 : i32
    %c0_i32_0 = arith.constant 0 : i32
    %c0_i32_1 = arith.constant 0 : i32
    return %c0_i32, %c0_i32_0 : i32, i32
  }
  func.func @transform_2(%arg0: i32, %arg1: i32) -> (i32, i32) {
    %c0_i32 = arith.constant 0 : i32
    %c0_i32_0 = arith.constant 0 : i32
    %c0_i32_1 = arith.constant 0 : i32
    return %c0_i32, %c0_i32_0 : i32, i32
  }
  func.func @transform_3(%arg0: i32, %arg1: i32) -> (i32, i32, i32, i32) {
    %c0_i32 = arith.constant 0 : i32
    %c0_i32_0 = arith.constant 0 : i32
    %c0_i32_1 = arith.constant 0 : i32
    return %arg0, %arg1, %c0_i32, %c0_i32_0 : i32, i32, i32, i32
  }
}

module attributes {stable_mosaic.version = 11 : i64} {
  func.func @_conv3x3_stats_kernel(%arg0: i32, %arg1: i32, %arg2: memref<1x8x16x128xbf16, #tpu.memory_space<vmem>>, %arg3: memref<1x1x16x128xbf16, #tpu.memory_space<vmem>>, %arg4: memref<1x1x16x128xbf16, #tpu.memory_space<vmem>>, %arg5: memref<9x128x128xbf16, #tpu.memory_space<vmem>>, %arg6: memref<1x128xf32, #tpu.memory_space<vmem>>, %arg7: memref<1x128xf32, #tpu.memory_space<vmem>>, %arg8: memref<1x8x16x128xbf16, #tpu.memory_space<vmem>>, %arg9: memref<1x1x2x128xf32, #tpu.memory_space<vmem>>, %arg10: memref<10x18x128xbf16, #tpu.memory_space<vmem>>) attributes {dimension_semantics = [#tpu.dimension_semantics<parallel>, #tpu.dimension_semantics<parallel>], iteration_bounds = array<i64: 2, 2>, scalar_prefetch = 0 : i64, scratch_operands = 1 : i64, tpu.core_type = #tpu.core_type<tc>, window_params = [{transform_indices = @transform_0, window_bounds = array<i64: 1, 8, 16, 128>}, {transform_indices = @transform_1, window_bounds = array<i64: 1, 1, 16, 128>}, {transform_indices = @transform_2, window_bounds = array<i64: 1, 1, 16, 128>}, {pipeline_mode = #tpu.pipeline_mode<synchronous>, transform_indices = @transform_3, window_bounds = array<i64: 9, 128, 128>}, {pipeline_mode = #tpu.pipeline_mode<synchronous>, transform_indices = @transform_4, window_bounds = array<i64: 1, 128>}, {pipeline_mode = #tpu.pipeline_mode<synchronous>, transform_indices = @transform_5, window_bounds = array<i64: 1, 128>}, {transform_indices = @transform_6, window_bounds = array<i64: 1, 8, 16, 128>}, {transform_indices = @transform_7, window_bounds = array<i64: 1, 1, 2, 128>}]} {
    %c0 = arith.constant 0 : index
    %c0_0 = arith.constant 0 : index
    %0 = vector.load %arg6[%c0, %c0_0] : memref<1x128xf32, #tpu.memory_space<vmem>>, vector<1x128xf32>
    %1 = vector.shape_cast %0 : vector<1x128xf32> to vector<1x1x128xf32>
    %c0_1 = arith.constant 0 : index
    %c0_2 = arith.constant 0 : index
    %2 = vector.load %arg7[%c0_1, %c0_2] : memref<1x128xf32, #tpu.memory_space<vmem>>, vector<1x128xf32>
    %3 = vector.shape_cast %2 : vector<1x128xf32> to vector<1x1x128xf32>
    %c0_3 = arith.constant 0 : index
    %c0_4 = arith.constant 0 : index
    %c0_5 = arith.constant 0 : index
    %c0_6 = arith.constant 0 : index
    %4 = vector.load %arg3[%c0_3, %c0_4, %c0_5, %c0_6] : memref<1x1x16x128xbf16, #tpu.memory_space<vmem>>, vector<1x1x16x128xbf16>
    %5 = vector.shape_cast %4 : vector<1x1x16x128xbf16> to vector<1x16x128xbf16>
    %6 = arith.extf %5 : vector<1x16x128xbf16> to vector<1x16x128xf32>
    %7 = vector.broadcast %1 : vector<1x1x128xf32> to vector<1x16x128xf32>
    %8 = arith.mulf %6, %7 : vector<1x16x128xf32>
    %9 = vector.broadcast %3 : vector<1x1x128xf32> to vector<1x16x128xf32>
    %10 = arith.addf %8, %9 : vector<1x16x128xf32>
    %cst = arith.constant 0.000000e+00 : f32
    %11 = vector.broadcast %cst : f32 to vector<1x16x128xf32>
    %12 = arith.maximumf %10, %11 : vector<1x16x128xf32>
    %13 = arith.truncf %12 : vector<1x16x128xf32> to vector<1x16x128xbf16>
    %c0_7 = arith.constant 0 : index
    %c0_8 = arith.constant 0 : index
    %c0_9 = arith.constant 0 : index
    %c0_10 = arith.constant 0 : index
    %14 = vector.load %arg4[%c0_7, %c0_8, %c0_9, %c0_10] : memref<1x1x16x128xbf16, #tpu.memory_space<vmem>>, vector<1x1x16x128xbf16>
    %15 = vector.shape_cast %14 : vector<1x1x16x128xbf16> to vector<1x16x128xbf16>
    %16 = arith.extf %15 : vector<1x16x128xbf16> to vector<1x16x128xf32>
    %17 = vector.broadcast %1 : vector<1x1x128xf32> to vector<1x16x128xf32>
    %18 = arith.mulf %16, %17 : vector<1x16x128xf32>
    %19 = vector.broadcast %3 : vector<1x1x128xf32> to vector<1x16x128xf32>
    %20 = arith.addf %18, %19 : vector<1x16x128xf32>
    %cst_11 = arith.constant 0.000000e+00 : f32
    %21 = vector.broadcast %cst_11 : f32 to vector<1x16x128xf32>
    %22 = arith.maximumf %20, %21 : vector<1x16x128xf32>
    %23 = arith.truncf %22 : vector<1x16x128xf32> to vector<1x16x128xbf16>
    %c0_i32 = arith.constant 0 : i32
    %24 = arith.cmpi eq, %arg1, %c0_i32 : i32
    %cst_12 = arith.constant 0.000000e+00 : bf16
    %25 = vector.broadcast %cst_12 : bf16 to vector<1x16x128xbf16>
    %26 = arith.select %24, %25, %13 : vector<1x16x128xbf16>
    %c1_i32 = arith.constant 1 : i32
    %27 = arith.cmpi eq, %arg1, %c1_i32 : i32
    %cst_13 = arith.constant 0.000000e+00 : bf16
    %28 = vector.broadcast %cst_13 : bf16 to vector<1x16x128xbf16>
    %29 = arith.select %27, %28, %23 : vector<1x16x128xbf16>
    %cst_14 = arith.constant 0.000000e+00 : bf16
    %30 = vector.broadcast %cst_14 : bf16 to vector<10x1x128xbf16>
    %c0_15 = arith.constant 0 : index
    %c0_16 = arith.constant 0 : index
    %c0_17 = arith.constant 0 : index
    %31 = vector.load %arg10[%c0_15, %c0_16, %c0_17] : memref<10x18x128xbf16, #tpu.memory_space<vmem>>, vector<10x1x128xbf16>
    tpu.vector_store %arg10[%c0_15, %c0_16, %c0_17], %30 {strides = array<i32>} : memref<10x18x128xbf16, #tpu.memory_space<vmem>>, vector<10x1x128xbf16>,
    %c0_18 = arith.constant 0 : index
    %c17 = arith.constant 17 : index
    %c0_19 = arith.constant 0 : index
    %32 = vector.load %arg10[%c0_18, %c17, %c0_19] : memref<10x18x128xbf16, #tpu.memory_space<vmem>>, vector<10x1x128xbf16>
    tpu.vector_store %arg10[%c0_18, %c17, %c0_19], %30 {strides = array<i32>} : memref<10x18x128xbf16, #tpu.memory_space<vmem>>, vector<10x1x128xbf16>,
    %c0_20 = arith.constant 0 : index
    %c1 = arith.constant 1 : index
    %c0_21 = arith.constant 0 : index
    %33 = vector.load %arg10[%c0_20, %c1, %c0_21] : memref<10x18x128xbf16, #tpu.memory_space<vmem>>, vector<1x16x128xbf16>
    tpu.vector_store %arg10[%c0_20, %c1, %c0_21], %26 {strides = array<i32>} : memref<10x18x128xbf16, #tpu.memory_space<vmem>>, vector<1x16x128xbf16>,
    %c9 = arith.constant 9 : index
    %c1_22 = arith.constant 1 : index
    %c0_23 = arith.constant 0 : index
    %34 = vector.load %arg10[%c9, %c1_22, %c0_23] : memref<10x18x128xbf16, #tpu.memory_space<vmem>>, vector<1x16x128xbf16>
    tpu.vector_store %arg10[%c9, %c1_22, %c0_23], %29 {strides = array<i32>} : memref<10x18x128xbf16, #tpu.memory_space<vmem>>, vector<1x16x128xbf16>,
    %c0_24 = arith.constant 0 : index
    %c0_25 = arith.constant 0 : index
    %c0_26 = arith.constant 0 : index
    %c0_27 = arith.constant 0 : index
    %35 = vector.load %arg2[%c0_24, %c0_25, %c0_26, %c0_27] : memref<1x8x16x128xbf16, #tpu.memory_space<vmem>>, vector<1x8x16x128xbf16>
    %36 = vector.shape_cast %35 : vector<1x8x16x128xbf16> to vector<8x16x128xbf16>
    %37 = arith.extf %36 : vector<8x16x128xbf16> to vector<8x16x128xf32>
    %38 = vector.broadcast %1 : vector<1x1x128xf32> to vector<8x16x128xf32>
    %39 = arith.mulf %37, %38 : vector<8x16x128xf32>
    %40 = vector.broadcast %3 : vector<1x1x128xf32> to vector<8x16x128xf32>
    %41 = arith.addf %39, %40 : vector<8x16x128xf32>
    %cst_28 = arith.constant 0.000000e+00 : f32
    %42 = vector.broadcast %cst_28 : f32 to vector<8x16x128xf32>
    %43 = arith.maximumf %41, %42 : vector<8x16x128xf32>
    %44 = arith.truncf %43 : vector<8x16x128xf32> to vector<8x16x128xbf16>
    %c1_29 = arith.constant 1 : index
    %c1_30 = arith.constant 1 : index
    %c0_31 = arith.constant 0 : index
    %45 = vector.load %arg10[%c1_29, %c1_30, %c0_31] : memref<10x18x128xbf16, #tpu.memory_space<vmem>>, vector<8x16x128xbf16>
    tpu.vector_store %arg10[%c1_29, %c1_30, %c0_31], %44 {strides = array<i32>} : memref<10x18x128xbf16, #tpu.memory_space<vmem>>, vector<8x16x128xbf16>,
    %c0_32 = arith.constant 0 : index
    %c0_33 = arith.constant 0 : index
    %c0_34 = arith.constant 0 : index
    %46 = vector.load %arg10[%c0_32, %c0_33, %c0_34] : memref<10x18x128xbf16, #tpu.memory_space<vmem>>, vector<8x16x128xbf16>
    %47 = vector.shape_cast %46 : vector<8x16x128xbf16> to vector<128x128xbf16>
    %c0_35 = arith.constant 0 : index
    %c0_36 = arith.constant 0 : index
    %c0_37 = arith.constant 0 : index
    %48 = vector.load %arg5[%c0_35, %c0_36, %c0_37] : memref<9x128x128xbf16, #tpu.memory_space<vmem>>, vector<1x128x128xbf16>
    %49 = vector.shape_cast %48 : vector<1x128x128xbf16> to vector<128x128xbf16>
    %cst_38 = arith.constant dense<0.000000e+00> : vector<128x128xf32>
    %50 = tpu.matmul %47, %49, %cst_38 {dimension_numbers = #tpu.dot_dimension_numbers<[1], [0], [0], [1], [0, 0, 1, 1], [], []>} : vector<128x128xbf16>, vector<128x128xbf16>, vector<128x128xf32> -> vector<128x128xf32>
    %c0_39 = arith.constant 0 : index
    %c1_40 = arith.constant 1 : index
    %c0_41 = arith.constant 0 : index
    %51 = vector.load %arg10[%c0_39, %c1_40, %c0_41] : memref<10x18x128xbf16, #tpu.memory_space<vmem>>, vector<8x16x128xbf16>
    %52 = vector.shape_cast %51 : vector<8x16x128xbf16> to vector<128x128xbf16>
    %c1_42 = arith.constant 1 : index
    %c0_43 = arith.constant 0 : index
    %c0_44 = arith.constant 0 : index
    %53 = vector.load %arg5[%c1_42, %c0_43, %c0_44] : memref<9x128x128xbf16, #tpu.memory_space<vmem>>, vector<1x128x128xbf16>
    %54 = vector.shape_cast %53 : vector<1x128x128xbf16> to vector<128x128xbf16>
    %cst_45 = arith.constant dense<0.000000e+00> : vector<128x128xf32>
    %55 = tpu.matmul %52, %54, %cst_45 {dimension_numbers = #tpu.dot_dimension_numbers<[1], [0], [0], [1], [0, 0, 1, 1], [], []>} : vector<128x128xbf16>, vector<128x128xbf16>, vector<128x128xf32> -> vector<128x128xf32>
    %56 = arith.addf %50, %55 : vector<128x128xf32>
    %c0_46 = arith.constant 0 : index
    %c2 = arith.constant 2 : index
    %c0_47 = arith.constant 0 : index
    %57 = vector.load %arg10[%c0_46, %c2, %c0_47] : memref<10x18x128xbf16, #tpu.memory_space<vmem>>, vector<8x16x128xbf16>
    %58 = vector.shape_cast %57 : vector<8x16x128xbf16> to vector<128x128xbf16>
    %c2_48 = arith.constant 2 : index
    %c0_49 = arith.constant 0 : index
    %c0_50 = arith.constant 0 : index
    %59 = vector.load %arg5[%c2_48, %c0_49, %c0_50] : memref<9x128x128xbf16, #tpu.memory_space<vmem>>, vector<1x128x128xbf16>
    %60 = vector.shape_cast %59 : vector<1x128x128xbf16> to vector<128x128xbf16>
    %cst_51 = arith.constant dense<0.000000e+00> : vector<128x128xf32>
    %61 = tpu.matmul %58, %60, %cst_51 {dimension_numbers = #tpu.dot_dimension_numbers<[1], [0], [0], [1], [0, 0, 1, 1], [], []>} : vector<128x128xbf16>, vector<128x128xbf16>, vector<128x128xf32> -> vector<128x128xf32>
    %62 = arith.addf %56, %61 : vector<128x128xf32>
    %c1_52 = arith.constant 1 : index
    %c0_53 = arith.constant 0 : index
    %c0_54 = arith.constant 0 : index
    %63 = vector.load %arg10[%c1_52, %c0_53, %c0_54] : memref<10x18x128xbf16, #tpu.memory_space<vmem>>, vector<8x16x128xbf16>
    %64 = vector.shape_cast %63 : vector<8x16x128xbf16> to vector<128x128xbf16>
    %c3 = arith.constant 3 : index
    %c0_55 = arith.constant 0 : index
    %c0_56 = arith.constant 0 : index
    %65 = vector.load %arg5[%c3, %c0_55, %c0_56] : memref<9x128x128xbf16, #tpu.memory_space<vmem>>, vector<1x128x128xbf16>
    %66 = vector.shape_cast %65 : vector<1x128x128xbf16> to vector<128x128xbf16>
    %cst_57 = arith.constant dense<0.000000e+00> : vector<128x128xf32>
    %67 = tpu.matmul %64, %66, %cst_57 {dimension_numbers = #tpu.dot_dimension_numbers<[1], [0], [0], [1], [0, 0, 1, 1], [], []>} : vector<128x128xbf16>, vector<128x128xbf16>, vector<128x128xf32> -> vector<128x128xf32>
    %68 = arith.addf %62, %67 : vector<128x128xf32>
    %c1_58 = arith.constant 1 : index
    %c1_59 = arith.constant 1 : index
    %c0_60 = arith.constant 0 : index
    %69 = vector.load %arg10[%c1_58, %c1_59, %c0_60] : memref<10x18x128xbf16, #tpu.memory_space<vmem>>, vector<8x16x128xbf16>
    %70 = vector.shape_cast %69 : vector<8x16x128xbf16> to vector<128x128xbf16>
    %c4 = arith.constant 4 : index
    %c0_61 = arith.constant 0 : index
    %c0_62 = arith.constant 0 : index
    %71 = vector.load %arg5[%c4, %c0_61, %c0_62] : memref<9x128x128xbf16, #tpu.memory_space<vmem>>, vector<1x128x128xbf16>
    %72 = vector.shape_cast %71 : vector<1x128x128xbf16> to vector<128x128xbf16>
    %cst_63 = arith.constant dense<0.000000e+00> : vector<128x128xf32>
    %73 = tpu.matmul %70, %72, %cst_63 {dimension_numbers = #tpu.dot_dimension_numbers<[1], [0], [0], [1], [0, 0, 1, 1], [], []>} : vector<128x128xbf16>, vector<128x128xbf16>, vector<128x128xf32> -> vector<128x128xf32>
    %74 = arith.addf %68, %73 : vector<128x128xf32>
    %c1_64 = arith.constant 1 : index
    %c2_65 = arith.constant 2 : index
    %c0_66 = arith.constant 0 : index
    %75 = vector.load %arg10[%c1_64, %c2_65, %c0_66] : memref<10x18x128xbf16, #tpu.memory_space<vmem>>, vector<8x16x128xbf16>
    %76 = vector.shape_cast %75 : vector<8x16x128xbf16> to vector<128x128xbf16>
    %c5 = arith.constant 5 : index
    %c0_67 = arith.constant 0 : index
    %c0_68 = arith.constant 0 : index
    %77 = vector.load %arg5[%c5, %c0_67, %c0_68] : memref<9x128x128xbf16, #tpu.memory_space<vmem>>, vector<1x128x128xbf16>
    %78 = vector.shape_cast %77 : vector<1x128x128xbf16> to vector<128x128xbf16>
    %cst_69 = arith.constant dense<0.000000e+00> : vector<128x128xf32>
    %79 = tpu.matmul %76, %78, %cst_69 {dimension_numbers = #tpu.dot_dimension_numbers<[1], [0], [0], [1], [0, 0, 1, 1], [], []>} : vector<128x128xbf16>, vector<128x128xbf16>, vector<128x128xf32> -> vector<128x128xf32>
    %80 = arith.addf %74, %79 : vector<128x128xf32>
    %c2_70 = arith.constant 2 : index
    %c0_71 = arith.constant 0 : index
    %c0_72 = arith.constant 0 : index
    %81 = vector.load %arg10[%c2_70, %c0_71, %c0_72] : memref<10x18x128xbf16, #tpu.memory_space<vmem>>, vector<8x16x128xbf16>
    %82 = vector.shape_cast %81 : vector<8x16x128xbf16> to vector<128x128xbf16>
    %c6 = arith.constant 6 : index
    %c0_73 = arith.constant 0 : index
    %c0_74 = arith.constant 0 : index
    %83 = vector.load %arg5[%c6, %c0_73, %c0_74] : memref<9x128x128xbf16, #tpu.memory_space<vmem>>, vector<1x128x128xbf16>
    %84 = vector.shape_cast %83 : vector<1x128x128xbf16> to vector<128x128xbf16>
    %cst_75 = arith.constant dense<0.000000e+00> : vector<128x128xf32>
    %85 = tpu.matmul %82, %84, %cst_75 {dimension_numbers = #tpu.dot_dimension_numbers<[1], [0], [0], [1], [0, 0, 1, 1], [], []>} : vector<128x128xbf16>, vector<128x128xbf16>, vector<128x128xf32> -> vector<128x128xf32>
    %86 = arith.addf %80, %85 : vector<128x128xf32>
    %c2_76 = arith.constant 2 : index
    %c1_77 = arith.constant 1 : index
    %c0_78 = arith.constant 0 : index
    %87 = vector.load %arg10[%c2_76, %c1_77, %c0_78] : memref<10x18x128xbf16, #tpu.memory_space<vmem>>, vector<8x16x128xbf16>
    %88 = vector.shape_cast %87 : vector<8x16x128xbf16> to vector<128x128xbf16>
    %c7 = arith.constant 7 : index
    %c0_79 = arith.constant 0 : index
    %c0_80 = arith.constant 0 : index
    %89 = vector.load %arg5[%c7, %c0_79, %c0_80] : memref<9x128x128xbf16, #tpu.memory_space<vmem>>, vector<1x128x128xbf16>
    %90 = vector.shape_cast %89 : vector<1x128x128xbf16> to vector<128x128xbf16>
    %cst_81 = arith.constant dense<0.000000e+00> : vector<128x128xf32>
    %91 = tpu.matmul %88, %90, %cst_81 {dimension_numbers = #tpu.dot_dimension_numbers<[1], [0], [0], [1], [0, 0, 1, 1], [], []>} : vector<128x128xbf16>, vector<128x128xbf16>, vector<128x128xf32> -> vector<128x128xf32>
    %92 = arith.addf %86, %91 : vector<128x128xf32>
    %c2_82 = arith.constant 2 : index
    %c2_83 = arith.constant 2 : index
    %c0_84 = arith.constant 0 : index
    %93 = vector.load %arg10[%c2_82, %c2_83, %c0_84] : memref<10x18x128xbf16, #tpu.memory_space<vmem>>, vector<8x16x128xbf16>
    %94 = vector.shape_cast %93 : vector<8x16x128xbf16> to vector<128x128xbf16>
    %c8 = arith.constant 8 : index
    %c0_85 = arith.constant 0 : index
    %c0_86 = arith.constant 0 : index
    %95 = vector.load %arg5[%c8, %c0_85, %c0_86] : memref<9x128x128xbf16, #tpu.memory_space<vmem>>, vector<1x128x128xbf16>
    %96 = vector.shape_cast %95 : vector<1x128x128xbf16> to vector<128x128xbf16>
    %cst_87 = arith.constant dense<0.000000e+00> : vector<128x128xf32>
    %97 = tpu.matmul %94, %96, %cst_87 {dimension_numbers = #tpu.dot_dimension_numbers<[1], [0], [0], [1], [0, 0, 1, 1], [], []>} : vector<128x128xbf16>, vector<128x128xbf16>, vector<128x128xf32> -> vector<128x128xf32>
    %98 = arith.addf %92, %97 : vector<128x128xf32>
    %cst_88 = arith.constant dense<0.000000e+00> : vector<128xf32>
    %99 = vector.multi_reduction <add>, %98, %cst_88 [0] : vector<128x128xf32> to vector<128xf32>
    %100 = vector.shape_cast %99 : vector<128xf32> to vector<1x128xf32>
    %101 = arith.mulf %98, %98 : vector<128x128xf32>
    %cst_89 = arith.constant dense<0.000000e+00> : vector<128xf32>
    %102 = vector.multi_reduction <add>, %101, %cst_89 [0] : vector<128x128xf32> to vector<128xf32>
    %103 = vector.shape_cast %102 : vector<128xf32> to vector<1x128xf32>
    %104 = tpu.concatenate %100, %103 in 0 : vector<1x128xf32>, vector<1x128xf32> -> vector<2x128xf32>
    %c0_90 = arith.constant 0 : index
    %c0_91 = arith.constant 0 : index
    %c0_92 = arith.constant 0 : index
    %c0_93 = arith.constant 0 : index
    %105 = vector.load %arg9[%c0_90, %c0_91, %c0_92, %c0_93] : memref<1x1x2x128xf32, #tpu.memory_space<vmem>>, vector<1x1x2x128xf32>
    %106 = vector.shape_cast %105 : vector<1x1x2x128xf32> to vector<2x128xf32>
    %107 = vector.shape_cast %104 : vector<2x128xf32> to vector<1x1x2x128xf32>
    tpu.vector_store %arg9[%c0_90, %c0_91, %c0_92, %c0_93], %107 {strides = array<i32>} : memref<1x1x2x128xf32, #tpu.memory_space<vmem>>, vector<1x1x2x128xf32>,
    %108 = vector.shape_cast %98 : vector<128x128xf32> to vector<8x16x128xf32>
    %109 = arith.truncf %108 : vector<8x16x128xf32> to vector<8x16x128xbf16>
    %c0_94 = arith.constant 0 : index
    %c0_95 = arith.constant 0 : index
    %c0_96 = arith.constant 0 : index
    %c0_97 = arith.constant 0 : index
    %110 = vector.load %arg8[%c0_94, %c0_95, %c0_96, %c0_97] : memref<1x8x16x128xbf16, #tpu.memory_space<vmem>>, vector<1x8x16x128xbf16>
    %111 = vector.shape_cast %110 : vector<1x8x16x128xbf16> to vector<8x16x128xbf16>
    %112 = vector.shape_cast %109 : vector<8x16x128xbf16> to vector<1x8x16x128xbf16>
    tpu.vector_store %arg8[%c0_94, %c0_95, %c0_96, %c0_97], %112 {strides = array<i32>} : memref<1x8x16x128xbf16, #tpu.memory_space<vmem>>, vector<1x8x16x128xbf16>,
    return
  }
  func.func @transform_0(%arg0: i32, %arg1: i32) -> (i32, i32, i32, i32) {
    %c0_i32 = arith.constant 0 : i32
    %c0_i32_0 = arith.constant 0 : i32
    %c0_i32_1 = arith.constant 0 : i32
    return %arg0, %arg1, %c0_i32, %c0_i32_0 : i32, i32, i32, i32
  }
  func.func @transform_1(%arg0: i32, %arg1: i32) -> (i32, i32, i32, i32) {
    %c8_i32 = arith.constant 8 : i32
    %0 = arith.muli %arg1, %c8_i32 : i32
    %c1_i32 = arith.constant 1 : i32
    %1 = arith.subi %0, %c1_i32 : i32
    %c0_i32 = arith.constant 0 : i32
    %2 = arith.maxsi %1, %c0_i32 : i32
    %c0_i32_0 = arith.constant 0 : i32
    %c0_i32_1 = arith.constant 0 : i32
    %c0_i32_2 = arith.constant 0 : i32
    return %arg0, %2, %c0_i32_0, %c0_i32_1 : i32, i32, i32, i32
  }
  func.func @transform_2(%arg0: i32, %arg1: i32) -> (i32, i32, i32, i32) {
    %c1_i32 = arith.constant 1 : i32
    %0 = arith.addi %arg1, %c1_i32 : i32
    %c8_i32 = arith.constant 8 : i32
    %1 = arith.muli %0, %c8_i32 : i32
    %c15_i32 = arith.constant 15 : i32
    %2 = arith.minsi %1, %c15_i32 : i32
    %c0_i32 = arith.constant 0 : i32
    %c0_i32_0 = arith.constant 0 : i32
    %c0_i32_1 = arith.constant 0 : i32
    return %arg0, %2, %c0_i32, %c0_i32_0 : i32, i32, i32, i32
  }
  func.func @transform_3(%arg0: i32, %arg1: i32) -> (i32, i32, i32) {
    %c0_i32 = arith.constant 0 : i32
    %c0_i32_0 = arith.constant 0 : i32
    %c0_i32_1 = arith.constant 0 : i32
    %c0_i32_2 = arith.constant 0 : i32
    return %c0_i32, %c0_i32_0, %c0_i32_1 : i32, i32, i32
  }
  func.func @transform_4(%arg0: i32, %arg1: i32) -> (i32, i32) {
    %c0_i32 = arith.constant 0 : i32
    %c0_i32_0 = arith.constant 0 : i32
    %c0_i32_1 = arith.constant 0 : i32
    return %c0_i32, %c0_i32_0 : i32, i32
  }
  func.func @transform_5(%arg0: i32, %arg1: i32) -> (i32, i32) {
    %c0_i32 = arith.constant 0 : i32
    %c0_i32_0 = arith.constant 0 : i32
    %c0_i32_1 = arith.constant 0 : i32
    return %c0_i32, %c0_i32_0 : i32, i32
  }
  func.func @transform_6(%arg0: i32, %arg1: i32) -> (i32, i32, i32, i32) {
    %c0_i32 = arith.constant 0 : i32
    %c0_i32_0 = arith.constant 0 : i32
    %c0_i32_1 = arith.constant 0 : i32
    return %arg0, %arg1, %c0_i32, %c0_i32_0 : i32, i32, i32, i32
  }
  func.func @transform_7(%arg0: i32, %arg1: i32) -> (i32, i32, i32, i32) {
    %c0_i32 = arith.constant 0 : i32
    %c0_i32_0 = arith.constant 0 : i32
    %c0_i32_1 = arith.constant 0 : i32
    return %arg0, %arg1, %c0_i32, %c0_i32_0 : i32, i32, i32, i32
  }
}

</mosaic_0001>

<llo_original>
// kernel: double_conv.5
$region0: #{double_conv.5}
  #allocation0 [shape = 'u32[]', space=smem, size = 0x4, offset = 0x4, fixed_abs, tag = 'smem constant byte address 0x4 - core index']
  #allocation1 [shape = 'u32[144,128]{1,0:T(1,128)}', space=vmem, size = 0x12000, scoped, tag = 'internal scratch']
  %s0 = inlined_call_operand.hbm [shape: bf16[2,16,16,128], index: 0, kind: input, shape index: {}]
  %s1 = inlined_call_operand.hbm [shape: f32[1,128], index: 1, kind: input, shape index: {}]
  %s2 = inlined_call_operand.hbm [shape: f32[1,128], index: 2, kind: input, shape index: {}]
  %s3 = inlined_call_operand.hbm [shape: f32[2,16,16,128], index: 3, kind: output, shape index: {}]
  %s4 = sld [smem:[#allocation0]]
  $region57: #{double_conv.5} parent=0
    _
  %s6 = ssub.s32 1, %s4
  %s7 = scalar_select 0, %s6, %s4
  $region1: #{double_conv.5} parent=0
    #allocation2 [shape = 'u8[65536]{0}', space=vmem, size = 0x10000, scoped, tag = 'input window, operand 0']
    #allocation3 [shape = 's32[2]{0}', space=sflag, size = 0x8, scoped, tag = 'scoped memory for double_conv.5']
    #allocation4 [shape = 's32[2]{0}', space=sflag, size = 0x8, scoped, tag = 'scoped memory for double_conv.5']
    #allocation5 [shape = 'u8[512]{0}', space=vmem, size = 0x400, scoped, tag = 'input window, operand 1, single buffered']
    #allocation6 [shape = 's32[1]{0}', space=sflag, size = 0x4, scoped, tag = 'scoped memory for double_conv.5']
    #allocation7 [shape = 'u8[512]{0}', space=vmem, size = 0x400, scoped, tag = 'input window, operand 2, single buffered']
    #allocation8 [shape = 'u8[131072]{0}', space=vmem, size = 0x20000, scoped, tag = 'output window, operand 0']
    %8 = vsyncpa [#allocation3], 0
    %s9 = scalar_lea.sflag [#allocation3], 1
    %10 = vsyncpa %s9, 0
    %11 = vsyncpa [#allocation6], 0
    %12 = vsyncpa [#allocation4], 0
    %s13 = scalar_lea.sflag [#allocation4], 1
    %14 = vsyncpa %s13, 0
    loop: start=0, step=1, limit=6
    $region2: #{double_conv.5} parent=1 // loop_pre_header
      _
    $region3: #{double_conv.5} parent=1 // loop_header
      %s16 = sphi 0, %s20
      %p17 = scmp.ge.s32.totalorder %s16, 6
      %s23 = sphi 0, %s35
      %s24 = sphi 0, %s31
      %s25 = sphi 0, %s23
      %s26 = sphi 0, %s24
      %s27 = sphi 0, %s25
      %s28 = sphi 0, %s26
      %s40 = sphi 0, %s42
      %s43 = sphi 0, %s40
      %s44 = sphi 0, %s43
      %s60 = sphi 0, %s44
      %s64 = sphi 0, %s64
      %s66 = sphi 0, %s64
      %s67 = sphi 0, %s66
      %s81 = sphi 0, %s67
      %s85 = sphi 0, %s85
      %s87 = sphi 0, %s85
      %s88 = sphi 0, %s87
      %s102 = sphi 0, %s88
      %s110 = sphi 0, %s112
      %s113 = sphi 0, %s110
      %s114 = sphi 0, %s113
      %s130 = sphi 0, %s114
    $region4: #{double_conv.5} parent=1 // loop_header_branch
      %19 = sbr.rel (%p17) target = $region8
    $region5: #{double_conv.5} parent=1 // loop_body
      %s21 = ssub.s32 %s16, 1
      %s22 = ssub.s32 %s16, 2
      %s29 = sadd.s32 1, %s24
      %p30 = scmp.ge.s32.totalorder %s29, 2
      %s31 = scalar_select %p30, 0, %s29
      %s32 = sadd.s32 1, %s23
      %s33 = scalar_select %p30, %s32, %s23
      %p34 = scmp.ge.s32.totalorder %s33, 2
      %s35 = scalar_select %p34, 0, %s33
      %s36 = ssub.s32 %s23, %s35
      %s37 = ssub.s32 %s24, %s31
      %s38 = sor.u32 %s36, %s37
      %p39 = scmp.eq.s32.totalorder %s38, 0
      %s41 = sadd.s32 %s40, 1
      %s42 = scalar_select %p39, %s40, %s41
      %p45 = pneg %p39
      %p46 = scmp.eq.s32.totalorder %s16, 3
      %p47 = por %p45, %p46
      %p48 = scmp.ne.s32.totalorder %s40, %s43
      %p49 = scmp.eq.s32.totalorder %s16, 0
      %p50 = por %p48, %p49
      %p51 = scmp.ne.s32.totalorder %s40, %s43
      %p52 = scmp.eq.s32.totalorder %s21, 3
      %p53 = por %p51, %p52
      %p54 = scmp.ne.s32.totalorder %s43, %s44
      %p55 = scmp.eq.s32.totalorder %s21, 0
      %p56 = por %p54, %p55
      %p57 = scmp.ne.s32.totalorder %s43, %s44
      %p58 = scmp.eq.s32.totalorder %s22, 3
      %p59 = por %p57, %p58
      %p61 = scmp.ne.s32.totalorder %s44, %s60
      %p62 = scmp.eq.s32.totalorder %s22, 0
      %p63 = por %p61, %p62
      %s65 = sadd.s32 %s64, 1
      %p68 = scmp.eq.s32.totalorder %s16, 3
      %p69 = scmp.ne.s32.totalorder %s64, %s66
      %p70 = scmp.eq.s32.totalorder %s16, 0
      %p71 = por %p69, %p70
      %p72 = scmp.ne.s32.totalorder %s64, %s66
      %p73 = scmp.eq.s32.totalorder %s21, 3
      %p74 = por %p72, %p73
      %p75 = scmp.ne.s32.totalorder %s66, %s67
      %p76 = scmp.eq.s32.totalorder %s21, 0
      %p77 = por %p75, %p76
      %p78 = scmp.ne.s32.totalorder %s66, %s67
      %p79 = scmp.eq.s32.totalorder %s22, 3
      %p80 = por %p78, %p79
      %p82 = scmp.ne.s32.totalorder %s67, %s81
      %p83 = scmp.eq.s32.totalorder %s22, 0
      %p84 = por %p82, %p83
      %s86 = sadd.s32 %s85, 1
      %p89 = scmp.eq.s32.totalorder %s16, 3
      %p90 = scmp.ne.s32.totalorder %s85, %s87
      %p91 = scmp.eq.s32.totalorder %s16, 0
      %p92 = por %p90, %p91
      %p93 = scmp.ne.s32.totalorder %s85, %s87
      %p94 = scmp.eq.s32.totalorder %s21, 3
      %p95 = por %p93, %p94
      %p96 = scmp.ne.s32.totalorder %s87, %s88
      %p97 = scmp.eq.s32.totalorder %s21, 0
      %p98 = por %p96, %p97
      %p99 = scmp.ne.s32.totalorder %s87, %s88
      %p100 = scmp.eq.s32.totalorder %s22, 3
      %p101 = por %p99, %p100
      %p103 = scmp.ne.s32.totalorder %s88, %s102
      %p104 = scmp.eq.s32.totalorder %s22, 0
      %p105 = por %p103, %p104
      %s106 = ssub.s32 %s23, %s35
      %s107 = ssub.s32 %s24, %s31
      %s108 = sor.u32 %s106, %s107
      %p109 = scmp.eq.s32.totalorder %s108, 0
      %s111 = sadd.s32 %s110, 1
      %s112 = scalar_select %p109, %s110, %s111
      %p115 = pneg %p109
      %p116 = scmp.eq.s32.totalorder %s16, 3
      %p117 = por %p115, %p116
      %p118 = scmp.ne.s32.totalorder %s110, %s113
      %p119 = scmp.eq.s32.totalorder %s16, 0
      %p120 = por %p118, %p119
      %p121 = scmp.ne.s32.totalorder %s110, %s113
      %p122 = scmp.eq.s32.totalorder %s21, 3
      %p123 = por %p121, %p122
      %p124 = scmp.ne.s32.totalorder %s113, %s114
      %p125 = scmp.eq.s32.totalorder %s21, 0
      %p126 = por %p124, %p125
      %p127 = scmp.ne.s32.totalorder %s113, %s114
      %p128 = scmp.eq.s32.totalorder %s22, 3
      %p129 = por %p127, %p128
      %p131 = scmp.ne.s32.totalorder %s114, %s130
      %p132 = scmp.eq.s32.totalorder %s22, 0
      %p133 = por %p131, %p132
      %p134 = scmp.le.s32.totalorder 1, %s16
      %p135 = scmp.lt.s32.totalorder %s16, 5
      %p136 = pnand %p134, %p135
      %p137 = pneg %p136
      // Predicated region
      $region9: #{double_conv.5} parent=5 // pred_check
        _
      $region10: #{double_conv.5} parent=5 // pred_check_branch
        %139 = sbr.rel (%p136) target = $region12
      $region11: #{double_conv.5} parent=5 // pred_region
        %s140 = ssub.s32 %s16, 1
        // Predicated region
        $region13: #{double_conv.5} parent=11 // pred_check
          %p141 = pneg %p77
        $region14: #{double_conv.5} parent=11 // pred_check_branch
          %143 = sbr.rel (%p141) target = $region16
        $region15: #{double_conv.5} parent=11 // pred_region
          %s145 = ssub.s32 16, 16
          %146 = vsyncadd [#allocation6], %s145
          %s148 = sshll.u32 [#allocation5], 4
          %s149 = int_to_ptr.vmem [resolvable:$true] %s148
          %151 = dma.hbm_to_vmem [thread:$0]  %s1, 16, %s149, [#allocation6]
        $region16: #{double_conv.5} parent=11 // pred_fallthru
          _
        // Predicated region
        $region17: #{double_conv.5} parent=11 // pred_check
          %p152 = pneg %p98
        $region18: #{double_conv.5} parent=11 // pred_check_branch
          %154 = sbr.rel (%p152) target = $region20
        $region19: #{double_conv.5} parent=11 // pred_region
          %s156 = ssub.s32 16, 16
          %157 = vsyncadd [#allocation6], %s156
          %s159 = sshll.u32 [#allocation7], 4
          %s160 = int_to_ptr.vmem [resolvable:$true] %s159
          %162 = dma.hbm_to_vmem [thread:$0]  %s2, 16, %s160, [#allocation6]
        $region20: #{double_conv.5} parent=11 // pred_fallthru
          _
      $region12: #{double_conv.5} parent=5 // pred_fallthru
        _
      %p163 = scmp.lt.s32.totalorder %s16, 4
      // Predicated region
      $region21: #{double_conv.5} parent=5 // pred_check
        %p164 = pneg %p163
      $region22: #{double_conv.5} parent=5 // pred_check_branch
        %166 = sbr.rel (%p164) target = $region24
      $region23: #{double_conv.5} parent=5 // pred_region
        // Predicated region
        $region25: #{double_conv.5} parent=23 // pred_check
          %p167 = pneg %p50
        $region26: #{double_conv.5} parent=23 // pred_check_branch
          %169 = sbr.rel (%p167) target = $region28
        $region27: #{double_conv.5} parent=23 // pred_region
          %s170 = sand.u32 %s40, 1
          %s171 = scalar_lea.sflag [#allocation3], %s170
          %s172 = sand.u32 %s40, 1
          %s173 = smul.addr %s172, 64
          %s174 = scalar_lea.vmem [#allocation2], %s173
          %s175 = smul.u32 8, %s24
          %s177 = ssub.s32 1024, 1024
          %178 = vsyncadd %s171, %s177
          %s179 = smul.addr %s175, 2
          %s180 = smul.addr %s23, 32
          %s181 = sadd.s32 %s179, %s180
          %s182 = smul.addr %s181, 64
          %s183 = scalar_lea.hbm %s0, %s182
          %s184 = sshll.u32 %s174, 4
          %s185 = int_to_ptr.vmem [resolvable:$true] %s184
          %190 = dma.hbm_to_vmem [thread:$0]  %s183, 1024, %s185, %s171, 64, 64, 4
        $region28: #{double_conv.5} parent=23 // pred_fallthru
          _
      $region24: #{double_conv.5} parent=5 // pred_fallthru
        _
      %p191 = scmp.le.s32.totalorder 1, %s16
      %p192 = scmp.lt.s32.totalorder %s16, 5
      %p193 = pnand %p191, %p192
      %p194 = pneg %p193
      // Predicated region
      $region29: #{double_conv.5} parent=5 // pred_check
        _
      $region30: #{double_conv.5} parent=5 // pred_check_branch
        %196 = sbr.rel (%p193) target = $region32
      $region31: #{double_conv.5} parent=5 // pred_region
        %s197 = ssub.s32 %s16, 1
        %s198 = sand.u32 %s43, 1
        %s199 = scalar_lea.sflag [#allocation3], %s198
        %s200 = sand.u32 %s43, 1
        %s201 = smul.addr %s200, 64
        %s202 = scalar_lea.vmem [#allocation2], %s201
        // Predicated region
        $region33: #{double_conv.5} parent=31 // pred_check
          %p203 = pneg %p56
        $region34: #{double_conv.5} parent=31 // pred_check_branch
          %205 = sbr.rel (%p203) target = $region36
        $region35: #{double_conv.5} parent=31 // pred_region
          %206 = dma.done %s199, 1024
        $region36: #{double_conv.5} parent=31 // pred_fallthru
          _
        // Predicated region
        $region37: #{double_conv.5} parent=31 // pred_check
          %p207 = pneg %p77
        $region38: #{double_conv.5} parent=31 // pred_check_branch
          %209 = sbr.rel (%p207) target = $region40
        $region39: #{double_conv.5} parent=31 // pred_region
          %210 = dma.done [#allocation6], 16
        $region40: #{double_conv.5} parent=31 // pred_fallthru
          _
        // Predicated region
        $region41: #{double_conv.5} parent=31 // pred_check
          %p211 = pneg %p98
        $region42: #{double_conv.5} parent=31 // pred_check_branch
          %213 = sbr.rel (%p211) target = $region44
        $region43: #{double_conv.5} parent=31 // pred_region
          %214 = dma.done [#allocation6], 16
        $region44: #{double_conv.5} parent=31 // pred_fallthru
          _
        %s215 = sand.u32 %s43, 1
        %s216 = scalar_lea.sflag [#allocation3], %s215
        %s217 = sand.u32 %s43, 1
        %s218 = smul.addr %s217, 64
        %s219 = scalar_lea.vmem [#allocation2], %s218
        %p220 = pneg %p56
        %p221 = pneg %p53
        %p222 = pneg %p77
        %p223 = pneg %p74
        %p224 = pneg %p98
        %p225 = pneg %p95
        %p226 = pneg %p126
        %p227 = pneg %p123
        %s228 = sand.u32 %s113, 1
        %s229 = scalar_lea.sflag [#allocation4], %s228
        %s230 = sand.u32 %s113, 1
        %s231 = smul.addr %s230, 128
        %s232 = scalar_lea.vmem [#allocation8], %s231
        %s233 = smul.u32 8, %s26
        %s234 = smul.u32 8, %s26
        %v235 = vld [vmem:[#allocation5] sm:$0x1]
        %v236 = vld [vmem:[#allocation7] sm:$0x1]
        %v237 = vld [vmem:[%s202] sm:$0xf]
        %v238 = vld [vmem:[%s202 + $0x4] sm:$0xf]
        %v239 = vld [vmem:[%s202 + $0x8] sm:$0xf]
        %v240 = vld [vmem:[%s202 + $0xc] sm:$0xf]
        %v241 = vld [vmem:[%s202 + $0x10] sm:$0xf]
        %v242 = vld [vmem:[%s202 + $0x14] sm:$0xf]
        %v243 = vld [vmem:[%s202 + $0x18] sm:$0xf]
        %v244 = vld [vmem:[%s202 + $0x1c] sm:$0xf]
        %v245 = vld [vmem:[%s202 + $0x20] sm:$0xf]
        %v246 = vld [vmem:[%s202 + $0x24] sm:$0xf]
        %v247 = vld [vmem:[%s202 + $0x28] sm:$0xf]
        %v248 = vld [vmem:[%s202 + $0x2c] sm:$0xf]
        %v249 = vld [vmem:[%s202 + $0x30] sm:$0xf]
        %v250 = vld [vmem:[%s202 + $0x34] sm:$0xf]
        %v251 = vld [vmem:[%s202 + $0x38] sm:$0xf]
        %v252 = vld [vmem:[%s202 + $0x3c] sm:$0xf]
        %v253 = vunpack.c.l.bf16 %v237
        %v254 = vunpack.c.l.bf16 %v238
        %v255 = vunpack.c.l.bf16 %v239
        %v256 = vunpack.c.l.bf16 %v240
        %v257 = vunpack.c.l.bf16 %v241
        %v258 = vunpack.c.l.bf16 %v242
        %v259 = vunpack.c.l.bf16 %v243
        %v260 = vunpack.c.l.bf16 %v244
        %v261 = vunpack.c.l.bf16 %v245
        %v262 = vunpack.c.l.bf16 %v246
        %v263 = vunpack.c.l.bf16 %v247
        %v264 = vunpack.c.l.bf16 %v248
        %v265 = vunpack.c.l.bf16 %v249
        %v266 = vunpack.c.l.bf16 %v250
        %v267 = vunpack.c.l.bf16 %v251
        %v268 = vunpack.c.l.bf16 %v252
        %v270 = vlaneseq
        %v271 = vshrl.u32 %v270, 7
        %v272 = vsub.s32 0, %v271
        %v273 = vrot.slane %v235, %v272
        %v275 = vmul.f32 %v253, %v273
        %v276 = vmul.f32 %v254, %v273
        %v277 = vmul.f32 %v255, %v273
        %v278 = vmul.f32 %v256, %v273
        %v279 = vmul.f32 %v257, %v273
        %v280 = vmul.f32 %v258, %v273
        %v281 = vmul.f32 %v259, %v273
        %v282 = vmul.f32 %v260, %v273
        %v283 = vmul.f32 %v261, %v273
        %v284 = vmul.f32 %v262, %v273
        %v285 = vmul.f32 %v263, %v273
        %v286 = vmul.f32 %v264, %v273
        %v287 = vmul.f32 %v265, %v273
        %v288 = vmul.f32 %v266, %v273
        %v289 = vmul.f32 %v267, %v273
        %v290 = vmul.f32 %v268, %v273
        %v292 = vlaneseq
        %v293 = vshrl.u32 %v292, 7
        %v294 = vsub.s32 0, %v293
        %v295 = vrot.slane %v236, %v294
        %v297 = vadd.f32 %v275, %v295
        %v298 = vadd.f32 %v276, %v295
        %v299 = vadd.f32 %v277, %v295
        %v300 = vadd.f32 %v278, %v295
        %v301 = vadd.f32 %v279, %v295
        %v302 = vadd.f32 %v280, %v295
        %v303 = vadd.f32 %v281, %v295
        %v304 = vadd.f32 %v282, %v295
        %v305 = vadd.f32 %v283, %v295
        %v306 = vadd.f32 %v284, %v295
        %v307 = vadd.f32 %v285, %v295
        %v308 = vadd.f32 %v286, %v295
        %v309 = vadd.f32 %v287, %v295
        %v310 = vadd.f32 %v288, %v295
        %v311 = vadd.f32 %v289, %v295
        %v312 = vadd.f32 %v290, %v295
        %v313 = vmax.f32 %v297, 0.0
        %v314 = vmax.f32 %v298, 0.0
        %v315 = vmax.f32 %v299, 0.0
        %v316 = vmax.f32 %v300, 0.0
        %v317 = vmax.f32 %v301, 0.0
        %v318 = vmax.f32 %v302, 0.0
        %v319 = vmax.f32 %v303, 0.0
        %v320 = vmax.f32 %v304, 0.0
        %v321 = vmax.f32 %v305, 0.0
        %v322 = vmax.f32 %v306, 0.0
        %v323 = vmax.f32 %v307, 0.0
        %v324 = vmax.f32 %v308, 0.0
        %v325 = vmax.f32 %v309, 0.0
        %v326 = vmax.f32 %v310, 0.0
        %v327 = vmax.f32 %v311, 0.0
        %v328 = vmax.f32 %v312, 0.0
        %329 = vst [vmem:[%s232] sm:$0xff] %v313
        %330 = vst [vmem:[%s232 + $0x8] sm:$0xff] %v314
        %331 = vst [vmem:[%s232 + $0x10] sm:$0xff] %v315
        %332 = vst [vmem:[%s232 + $0x18] sm:$0xff] %v316
        %333 = vst [vmem:[%s232 + $0x20] sm:$0xff] %v317
        %334 = vst [vmem:[%s232 + $0x28] sm:$0xff] %v318
        %335 = vst [vmem:[%s232 + $0x30] sm:$0xff] %v319
        %336 = vst [vmem:[%s232 + $0x38] sm:$0xff] %v320
        %337 = vst [vmem:[%s232 + $0x40] sm:$0xff] %v321
        %338 = vst [vmem:[%s232 + $0x48] sm:$0xff] %v322
        %339 = vst [vmem:[%s232 + $0x50] sm:$0xff] %v323
        %340 = vst [vmem:[%s232 + $0x58] sm:$0xff] %v324
        %341 = vst [vmem:[%s232 + $0x60] sm:$0xff] %v325
        %342 = vst [vmem:[%s232 + $0x68] sm:$0xff] %v326
        %343 = vst [vmem:[%s232 + $0x70] sm:$0xff] %v327
        %344 = vst [vmem:[%s232 + $0x78] sm:$0xff] %v328
        %s345 = sand.u32 %s113, 1
        %s346 = scalar_lea.sflag [#allocation4], %s345
        %s347 = sand.u32 %s113, 1
        %s348 = smul.addr %s347, 128
        %s349 = scalar_lea.vmem [#allocation8], %s348
        // Predicated region
        $region45: #{double_conv.5} parent=31 // pred_check
          %p350 = pneg %p123
        $region46: #{double_conv.5} parent=31 // pred_check_branch
          %352 = sbr.rel (%p350) target = $region48
        $region47: #{double_conv.5} parent=31 // pred_region
          %s353 = smul.u32 8, %s26
          %s355 = ssub.s32 2048, 2048
          %356 = vsyncadd %s346, %s355
          %s357 = smul.addr %s353, 2
          %s358 = smul.addr %s25, 32
          %s359 = sadd.s32 %s357, %s358
          %s360 = smul.addr %s359, 128
          %s361 = scalar_lea.hbm %s3, %s360
          %s362 = sshll.u32 %s349, 4
          %s363 = int_to_ptr.vmem [resolvable:$true] %s362
          %368 = dma.vmem_to_hbm [thread:$0]  %s363, 2048, %s361, %s346, 128, 128, 8
        $region48: #{double_conv.5} parent=31 // pred_fallthru
          _
      $region32: #{double_conv.5} parent=5 // pred_fallthru
        _
      %p369 = scmp.le.s32.totalorder 2, %s16
      // Predicated region
      $region49: #{double_conv.5} parent=5 // pred_check
        %p370 = pneg %p369
      $region50: #{double_conv.5} parent=5 // pred_check_branch
        %372 = sbr.rel (%p370) target = $region52
      $region51: #{double_conv.5} parent=5 // pred_region
        %s373 = ssub.s32 %s16, 2
        // Predicated region
        $region53: #{double_conv.5} parent=51 // pred_check
          %p374 = pneg %p129
        $region54: #{double_conv.5} parent=51 // pred_check_branch
          %376 = sbr.rel (%p374) target = $region56
        $region55: #{double_conv.5} parent=51 // pred_region
          %s377 = sand.u32 %s114, 1
          %s378 = scalar_lea.sflag [#allocation4], %s377
          %s379 = sand.u32 %s114, 1
          %s380 = smul.addr %s379, 128
          %s381 = scalar_lea.vmem [#allocation8], %s380
          %382 = dma.done %s378, 2048
        $region56: #{double_conv.5} parent=51 // pred_fallthru
          _
      $region52: #{double_conv.5} parent=5 // pred_fallthru
        _
    $region6: #{double_conv.5} parent=1 // loop_footer
      %s20 = sadd.s32 1, %s16
    $region7: #{double_conv.5} parent=1 // loop_footer_branch
      %15 = sbr.rel target = $region3
    $region8: #{double_conv.5} parent=1 // loop_exit
      _
    %383 = vsyncpa [#allocation3], 1
    %s384 = scalar_lea.sflag [#allocation3], 1
    %385 = vsyncpa %s384, 1
    %386 = vsyncpa [#allocation6], 1
    %387 = vsyncpa [#allocation4], 1
    %s388 = scalar_lea.sflag [#allocation4], 1
    %389 = vsyncpa %s388, 1

// kernel: double_conv.3
$region0: #{double_conv.3}
  #allocation0 [shape = 'u32[]', space=smem, size = 0x4, offset = 0x4, fixed_abs, tag = 'smem constant byte address 0x4 - core index']
  #allocation1 [shape = 'u32[144,128]{1,0:T(1,128)}', space=vmem, size = 0x12000, scoped, tag = 'internal scratch']
  #allocation2 [shape = 'bf16[10,18,128]{2,1,0:T(8,128)(2,1)}', space=vmem, size = 0xf000, scoped, tag = 'scratch operand']
  %s0 = inlined_call_operand.hbm [shape: f32[2,16,16,128], index: 0, kind: input, shape index: {}, may-alias: {0,1,2}]
  %s1 = inlined_call_operand.hbm [shape: f32[2,16,16,128], index: 1, kind: input, shape index: {}, may-alias: {0,1,2}]
  %s2 = inlined_call_operand.hbm [shape: f32[2,16,16,128], index: 2, kind: input, shape index: {}, may-alias: {0,1,2}]
  %s3 = inlined_call_operand.hbm [shape: bf16[9,128,128], index: 3, kind: input, shape index: {}]
  %s4 = inlined_call_operand.hbm [shape: f32[1,128], index: 4, kind: input, shape index: {}]
  %s5 = inlined_call_operand.hbm [shape: f32[1,128], index: 5, kind: input, shape index: {}]
  %s6 = inlined_call_operand.hbm [shape: bf16[2,16,16,128], index: 6, kind: output, shape index: {0}]
  %s7 = inlined_call_operand.hbm [shape: f32[2,2,2,128], index: 7, kind: output, shape index: {1}]
  %8 = xla_tuple %s6, %s7
  %s9 = sld [smem:[#allocation0]]
  $region89: #{double_conv.3} parent=0
    _
  %s11 = ssub.s32 1, %s9
  %s12 = scalar_select 0, %s11, %s9
  $region1: #{double_conv.3} parent=0
    #allocation3 [shape = 'u8[131072]{0}', space=vmem, size = 0x20000, scoped, tag = 'input window, operand 0']
    #allocation4 [shape = 's32[2]{0}', space=sflag, size = 0x8, scoped, tag = 'scoped memory for double_conv.3']
    #allocation5 [shape = 's32[2]{0}', space=sflag, size = 0x8, scoped, tag = 'scoped memory for double_conv.3']
    #allocation6 [shape = 'u8[16384]{0}', space=vmem, size = 0x4000, scoped, tag = 'input window, operand 1']
    #allocation7 [shape = 's32[2]{0}', space=sflag, size = 0x8, scoped, tag = 'scoped memory for double_conv.3']
    #allocation8 [shape = 'u8[16384]{0}', space=vmem, size = 0x4000, scoped, tag = 'input window, operand 2']
    #allocation9 [shape = 'u8[294912]{0}', space=vmem, size = 0x48000, scoped, tag = 'input window, operand 3, single buffered']
    #allocation10 [shape = 's32[1]{0}', space=sflag, size = 0x4, scoped, tag = 'scoped memory for double_conv.3']
    #allocation11 [shape = 'u8[512]{0}', space=vmem, size = 0x400, scoped, tag = 'input window, operand 4, single buffered']
    #allocation12 [shape = 'u8[512]{0}', space=vmem, size = 0x400, scoped, tag = 'input window, operand 5, single buffered']
    #allocation13 [shape = 's32[1]{0}', space=sflag, size = 0x4, scoped, tag = 'scoped memory for double_conv.3']
    #allocation14 [shape = 'u8[65536]{0}', space=vmem, size = 0x10000, scoped, tag = 'output window, operand 0']
    #allocation15 [shape = 'u8[2048]{0}', space=vmem, size = 0x800, scoped, tag = 'output window, operand 1']
    #allocation16 [shape = 's32[2]{0}', space=sflag, size = 0x8, scoped, tag = 'scoped memory for double_conv.3']
    %13 = vsyncpa [#allocation4], 0
    %s14 = scalar_lea.sflag [#allocation4], 1
    %15 = vsyncpa %s14, 0
    %16 = vsyncpa [#allocation7], 0
    %s17 = scalar_lea.sflag [#allocation7], 1
    %18 = vsyncpa %s17, 0
    %19 = vsyncpa [#allocation10], 0
    %20 = vsyncpa [#allocation13], 0
    %21 = vsyncpa [#allocation5], 0
    %s22 = scalar_lea.sflag [#allocation5], 1
    %23 = vsyncpa %s22, 0
    %24 = vsyncpa [#allocation16], 0
    %s25 = scalar_lea.sflag [#allocation16], 1
    %26 = vsyncpa %s25, 0
    loop: start=0, step=1, limit=6
    $region2: #{double_conv.3} parent=1 // loop_pre_header
      _
    $region3: #{double_conv.3} parent=1 // loop_header
      %s28 = sphi 0, %s32
      %p29 = scmp.ge.s32.totalorder %s28, 6
      %s35 = sphi 0, %s47
      %s36 = sphi 0, %s43
      %s37 = sphi 0, %s35
      %s38 = sphi 0, %s36
      %s39 = sphi 0, %s37
      %s40 = sphi 0, %s38
      %s52 = sphi 0, %s54
      %s55 = sphi 0, %s52
      %s56 = sphi 0, %s55
      %s72 = sphi 0, %s56
      %s88 = sphi 0, %s90
      %s91 = sphi 0, %s88
      %s92 = sphi 0, %s91
      %s108 = sphi 0, %s92
      %s124 = sphi 0, %s126
      %s127 = sphi 0, %s124
      %s128 = sphi 0, %s127
      %s144 = sphi 0, %s128
      %s148 = sphi 0, %s148
      %s150 = sphi 0, %s148
      %s151 = sphi 0, %s150
      %s165 = sphi 0, %s151
      %s169 = sphi 0, %s169
      %s171 = sphi 0, %s169
      %s172 = sphi 0, %s171
      %s186 = sphi 0, %s172
      %s190 = sphi 0, %s190
      %s192 = sphi 0, %s190
      %s193 = sphi 0, %s192
      %s207 = sphi 0, %s193
      %s215 = sphi 0, %s217
      %s218 = sphi 0, %s215
      %s219 = sphi 0, %s218
      %s235 = sphi 0, %s219
      %s243 = sphi 0, %s245
      %s246 = sphi 0, %s243
      %s247 = sphi 0, %s246
      %s263 = sphi 0, %s247
    $region4: #{double_conv.3} parent=1 // loop_header_branch
      %31 = sbr.rel (%p29) target = $region8
    $region5: #{double_conv.3} parent=1 // loop_body
      %s33 = ssub.s32 %s28, 1
      %s34 = ssub.s32 %s28, 2
      %s41 = sadd.s32 1, %s36
      %p42 = scmp.ge.s32.totalorder %s41, 2
      %s43 = scalar_select %p42, 0, %s41
      %s44 = sadd.s32 1, %s35
      %s45 = scalar_select %p42, %s44, %s35
      %p46 = scmp.ge.s32.totalorder %s45, 2
      %s47 = scalar_select %p46, 0, %s45
      %s48 = ssub.s32 %s35, %s47
      %s49 = ssub.s32 %s36, %s43
      %s50 = sor.u32 %s48, %s49
      %p51 = scmp.eq.s32.totalorder %s50, 0
      %s53 = sadd.s32 %s52, 1
      %s54 = scalar_select %p51, %s52, %s53
      %p57 = pneg %p51
      %p58 = scmp.eq.s32.totalorder %s28, 3
      %p59 = por %p57, %p58
      %p60 = scmp.ne.s32.totalorder %s52, %s55
      %p61 = scmp.eq.s32.totalorder %s28, 0
      %p62 = por %p60, %p61
      %p63 = scmp.ne.s32.totalorder %s52, %s55
      %p64 = scmp.eq.s32.totalorder %s33, 3
      %p65 = por %p63, %p64
      %p66 = scmp.ne.s32.totalorder %s55, %s56
      %p67 = scmp.eq.s32.totalorder %s33, 0
      %p68 = por %p66, %p67
      %p69 = scmp.ne.s32.totalorder %s55, %s56
      %p70 = scmp.eq.s32.totalorder %s34, 3
      %p71 = por %p69, %p70
      %p73 = scmp.ne.s32.totalorder %s56, %s72
      %p74 = scmp.eq.s32.totalorder %s34, 0
      %p75 = por %p73, %p74
      %s76 = smul.u32 %s36, 8
      %s77 = ssub.s32 %s76, 1
      %p78 = scmp.gt.s32.totalorder %s77, 0
      %s79 = scalar_select %p78, %s77, 0
      %s80 = smul.u32 %s43, 8
      %s81 = ssub.s32 %s80, 1
      %p82 = scmp.gt.s32.totalorder %s81, 0
      %s83 = scalar_select %p82, %s81, 0
      %s84 = ssub.s32 %s35, %s47
      %s85 = ssub.s32 %s79, %s83
      %s86 = sor.u32 %s84, %s85
      %p87 = scmp.eq.s32.totalorder %s86, 0
      %s89 = sadd.s32 %s88, 1
      %s90 = scalar_select %p87, %s88, %s89
      %p93 = pneg %p87
      %p94 = scmp.eq.s32.totalorder %s28, 3
      %p95 = por %p93, %p94
      %p96 = scmp.ne.s32.totalorder %s88, %s91
      %p97 = scmp.eq.s32.totalorder %s28, 0
      %p98 = por %p96, %p97
      %p99 = scmp.ne.s32.totalorder %s88, %s91
      %p100 = scmp.eq.s32.totalorder %s33, 3
      %p101 = por %p99, %p100
      %p102 = scmp.ne.s32.totalorder %s91, %s92
      %p103 = scmp.eq.s32.totalorder %s33, 0
      %p104 = por %p102, %p103
      %p105 = scmp.ne.s32.totalorder %s91, %s92
      %p106 = scmp.eq.s32.totalorder %s34, 3
      %p107 = por %p105, %p106
      %p109 = scmp.ne.s32.totalorder %s92, %s108
      %p110 = scmp.eq.s32.totalorder %s34, 0
      %p111 = por %p109, %p110
      %s112 = sadd.s32 %s36, 1
      %s113 = smul.u32 %s112, 8
      %p114 = scmp.lt.s32.totalorder %s113, 15
      %s115 = scalar_select %p114, %s113, 15
      %s116 = sadd.s32 %s43, 1
      %s117 = smul.u32 %s116, 8
      %p118 = scmp.lt.s32.totalorder %s117, 15
      %s119 = scalar_select %p118, %s117, 15
      %s120 = ssub.s32 %s35, %s47
      %s121 = ssub.s32 %s115, %s119
      %s122 = sor.u32 %s120, %s121
      %p123 = scmp.eq.s32.totalorder %s122, 0
      %s125 = sadd.s32 %s124, 1
      %s126 = scalar_select %p123, %s124, %s125
      %p129 = pneg %p123
      %p130 = scmp.eq.s32.totalorder %s28, 3
      %p131 = por %p129, %p130
      %p132 = scmp.ne.s32.totalorder %s124, %s127
      %p133 = scmp.eq.s32.totalorder %s28, 0
      %p134 = por %p132, %p133
      %p135 = scmp.ne.s32.totalorder %s124, %s127
      %p136 = scmp.eq.s32.totalorder %s33, 3
      %p137 = por %p135, %p136
      %p138 = scmp.ne.s32.totalorder %s127, %s128
      %p139 = scmp.eq.s32.totalorder %s33, 0
      %p140 = por %p138, %p139
      %p141 = scmp.ne.s32.totalorder %s127, %s128
      %p142 = scmp.eq.s32.totalorder %s34, 3
      %p143 = por %p141, %p142
      %p145 = scmp.ne.s32.totalorder %s128, %s144
      %p146 = scmp.eq.s32.totalorder %s34, 0
      %p147 = por %p145, %p146
      %s149 = sadd.s32 %s148, 1
      %p152 = scmp.eq.s32.totalorder %s28, 3
      %p153 = scmp.ne.s32.totalorder %s148, %s150
      %p154 = scmp.eq.s32.totalorder %s28, 0
      %p155 = por %p153, %p154
      %p156 = scmp.ne.s32.totalorder %s148, %s150
      %p157 = scmp.eq.s32.totalorder %s33, 3
      %p158 = por %p156, %p157
      %p159 = scmp.ne.s32.totalorder %s150, %s151
      %p160 = scmp.eq.s32.totalorder %s33, 0
      %p161 = por %p159, %p160
      %p162 = scmp.ne.s32.totalorder %s150, %s151
      %p163 = scmp.eq.s32.totalorder %s34, 3
      %p164 = por %p162, %p163
      %p166 = scmp.ne.s32.totalorder %s151, %s165
      %p167 = scmp.eq.s32.totalorder %s34, 0
      %p168 = por %p166, %p167
      %s170 = sadd.s32 %s169, 1
      %p173 = scmp.eq.s32.totalorder %s28, 3
      %p174 = scmp.ne.s32.totalorder %s169, %s171
      %p175 = scmp.eq.s32.totalorder %s28, 0
      %p176 = por %p174, %p175
      %p177 = scmp.ne.s32.totalorder %s169, %s171
      %p178 = scmp.eq.s32.totalorder %s33, 3
      %p179 = por %p177, %p178
      %p180 = scmp.ne.s32.totalorder %s171, %s172
      %p181 = scmp.eq.s32.totalorder %s33, 0
      %p182 = por %p180, %p181
      %p183 = scmp.ne.s32.totalorder %s171, %s172
      %p184 = scmp.eq.s32.totalorder %s34, 3
      %p185 = por %p183, %p184
      %p187 = scmp.ne.s32.totalorder %s172, %s186
      %p188 = scmp.eq.s32.totalorder %s34, 0
      %p189 = por %p187, %p188
      %s191 = sadd.s32 %s190, 1
      %p194 = scmp.eq.s32.totalorder %s28, 3
      %p195 = scmp.ne.s32.totalorder %s190, %s192
      %p196 = scmp.eq.s32.totalorder %s28, 0
      %p197 = por %p195, %p196
      %p198 = scmp.ne.s32.totalorder %s190, %s192
      %p199 = scmp.eq.s32.totalorder %s33, 3
      %p200 = por %p198, %p199
      %p201 = scmp.ne.s32.totalorder %s192, %s193
      %p202 = scmp.eq.s32.totalorder %s33, 0
      %p203 = por %p201, %p202
      %p204 = scmp.ne.s32.totalorder %s192, %s193
      %p205 = scmp.eq.s32.totalorder %s34, 3
      %p206 = por %p204, %p205
      %p208 = scmp.ne.s32.totalorder %s193, %s207
      %p209 = scmp.eq.s32.totalorder %s34, 0
      %p210 = por %p208, %p209
      %s211 = ssub.s32 %s35, %s47
      %s212 = ssub.s32 %s36, %s43
      %s213 = sor.u32 %s211, %s212
      %p214 = scmp.eq.s32.totalorder %s213, 0
      %s216 = sadd.s32 %s215, 1
      %s217 = scalar_select %p214, %s215, %s216
      %p220 = pneg %p214
      %p221 = scmp.eq.s32.totalorder %s28, 3
      %p222 = por %p220, %p221
      %p223 = scmp.ne.s32.totalorder %s215, %s218
      %p224 = scmp.eq.s32.totalorder %s28, 0
      %p225 = por %p223, %p224
      %p226 = scmp.ne.s32.totalorder %s215, %s218
      %p227 = scmp.eq.s32.totalorder %s33, 3
      %p228 = por %p226, %p227
      %p229 = scmp.ne.s32.totalorder %s218, %s219
      %p230 = scmp.eq.s32.totalorder %s33, 0
      %p231 = por %p229, %p230
      %p232 = scmp.ne.s32.totalorder %s218, %s219
      %p233 = scmp.eq.s32.totalorder %s34, 3
      %p234 = por %p232, %p233
      %p236 = scmp.ne.s32.totalorder %s219, %s235
      %p237 = scmp.eq.s32.totalorder %s34, 0
      %p238 = por %p236, %p237
      %s239 = ssub.s32 %s35, %s47
      %s240 = ssub.s32 %s36, %s43
      %s241 = sor.u32 %s239, %s240
      %p242 = scmp.eq.s32.totalorder %s241, 0
      %s244 = sadd.s32 %s243, 1
      %s245 = scalar_select %p242, %s243, %s244
      %p248 = pneg %p242
      %p249 = scmp.eq.s32.totalorder %s28, 3
      %p250 = por %p248, %p249
      %p251 = scmp.ne.s32.totalorder %s243, %s246
      %p252 = scmp.eq.s32.totalorder %s28, 0
      %p253 = por %p251, %p252
      %p254 = scmp.ne.s32.totalorder %s243, %s246
      %p255 = scmp.eq.s32.totalorder %s33, 3
      %p256 = por %p254, %p255
      %p257 = scmp.ne.s32.totalorder %s246, %s247
      %p258 = scmp.eq.s32.totalorder %s33, 0
      %p259 = por %p257, %p258
      %p260 = scmp.ne.s32.totalorder %s246, %s247
      %p261 = scmp.eq.s32.totalorder %s34, 3
      %p262 = por %p260, %p261
      %p264 = scmp.ne.s32.totalorder %s247, %s263
      %p265 = scmp.eq.s32.totalorder %s34, 0
      %p266 = por %p264, %p265
      %p267 = scmp.le.s32.totalorder 1, %s28
      %p268 = scmp.lt.s32.totalorder %s28, 5
      %p269 = pnand %p267, %p268
      %p270 = pneg %p269
      // Predicated region
      $region9: #{double_conv.3} parent=5 // pred_check
        _
      $region10: #{double_conv.3} parent=5 // pred_check_branch
        %272 = sbr.rel (%p269) target = $region12
      $region11: #{double_conv.3} parent=5 // pred_region
        %s273 = ssub.s32 %s28, 1
        // Predicated region
        $region13: #{double_conv.3} parent=11 // pred_check
          %p274 = pneg %p161
        $region14: #{double_conv.3} parent=11 // pred_check_branch
          %276 = sbr.rel (%p274) target = $region16
        $region15: #{double_conv.3} parent=11 // pred_region
          %s278 = ssub.s32 9216, 9216
          %279 = vsyncadd [#allocation10], %s278
          %s280 = sshll.u32 [#allocation9], 4
          %s281 = int_to_ptr.vmem [resolvable:$true] %s280
          %286 = dma.hbm_to_vmem [thread:$0]  %s3, 9216, %s281, [#allocation10], 64, 64, 4
        $region16: #{double_conv.3} parent=11 // pred_fallthru
          _
        // Predicated region
        $region17: #{double_conv.3} parent=11 // pred_check
          %p287 = pneg %p182
        $region18: #{double_conv.3} parent=11 // pred_check_branch
          %289 = sbr.rel (%p287) target = $region20
        $region19: #{double_conv.3} parent=11 // pred_region
          %s291 = ssub.s32 16, 16
          %292 = vsyncadd [#allocation10], %s291
          %s294 = sshll.u32 [#allocation11], 4
          %s295 = int_to_ptr.vmem [resolvable:$true] %s294
          %297 = dma.hbm_to_vmem [thread:$0]  %s4, 16, %s295, [#allocation10]
        $region20: #{double_conv.3} parent=11 // pred_fallthru
          _
        // Predicated region
        $region21: #{double_conv.3} parent=11 // pred_check
          %p298 = pneg %p203
        $region22: #{double_conv.3} parent=11 // pred_check_branch
          %300 = sbr.rel (%p298) target = $region24
        $region23: #{double_conv.3} parent=11 // pred_region
          %s302 = ssub.s32 16, 16
          %303 = vsyncadd [#allocation13], %s302
          %s305 = sshll.u32 [#allocation12], 4
          %s306 = int_to_ptr.vmem [resolvable:$true] %s305
          %308 = dma.hbm_to_vmem [thread:$0]  %s5, 16, %s306, [#allocation13]
        $region24: #{double_conv.3} parent=11 // pred_fallthru
          _
      $region12: #{double_conv.3} parent=5 // pred_fallthru
        _
      %p309 = scmp.lt.s32.totalorder %s28, 4
      // Predicated region
      $region25: #{double_conv.3} parent=5 // pred_check
        %p310 = pneg %p309
      $region26: #{double_conv.3} parent=5 // pred_check_branch
        %312 = sbr.rel (%p310) target = $region28
      $region27: #{double_conv.3} parent=5 // pred_region
        // Predicated region
        $region29: #{double_conv.3} parent=27 // pred_check
          %p313 = pneg %p62
        $region30: #{double_conv.3} parent=27 // pred_check_branch
          %315 = sbr.rel (%p313) target = $region32
        $region31: #{double_conv.3} parent=27 // pred_region
          %s316 = sand.u32 %s52, 1
          %s317 = scalar_lea.sflag [#allocation4], %s316
          %s318 = sand.u32 %s52, 1
          %s319 = smul.addr %s318, 128
          %s320 = scalar_lea.vmem [#allocation3], %s319
          %s321 = smul.u32 8, %s36
          %s323 = ssub.s32 2048, 2048
          %324 = vsyncadd %s317, %s323
          %s325 = smul.addr %s321, 2
          %s326 = smul.addr %s35, 32
          %s327 = sadd.s32 %s325, %s326
          %s328 = smul.addr %s327, 128
          %s329 = scalar_lea.hbm %s0, %s328
          %s330 = sshll.u32 %s320, 4
          %s331 = int_to_ptr.vmem [resolvable:$true] %s330
          %336 = dma.hbm_to_vmem [thread:$0]  %s329, 2048, %s331, %s317, 128, 128, 8
        $region32: #{double_conv.3} parent=27 // pred_fallthru
          _
        // Predicated region
        $region33: #{double_conv.3} parent=27 // pred_check
          %p337 = pneg %p98
        $region34: #{double_conv.3} parent=27 // pred_check_branch
          %339 = sbr.rel (%p337) target = $region36
        $region35: #{double_conv.3} parent=27 // pred_region
          %s340 = sand.u32 %s28, 1
          %s341 = scalar_lea.sflag [#allocation7], %s340
          %s342 = sand.u32 %s88, 1
          %s343 = smul.addr %s342, 16
          %s344 = scalar_lea.vmem [#allocation6], %s343
          %s345 = smul.u32 %s36, 8
          %s346 = ssub.s32 %s345, 1
          %p347 = scmp.gt.s32.totalorder %s346, 0
          %s348 = scalar_select %p347, %s346, 0
          %s350 = ssub.s32 256, 256
          %351 = vsyncadd %s341, %s350
          %s352 = smul.addr %s348, 2
          %s353 = smul.addr %s35, 32
          %s354 = sadd.s32 %s352, %s353
          %s355 = smul.addr %s354, 128
          %s356 = scalar_lea.hbm %s1, %s355
          %s357 = sshll.u32 %s344, 4
          %s358 = int_to_ptr.vmem [resolvable:$true] %s357
          %363 = dma.hbm_to_vmem [thread:$0]  %s356, 256, %s358, %s341, 128, 128, 8
        $region36: #{double_conv.3} parent=27 // pred_fallthru
          _
        // Predicated region
        $region37: #{double_conv.3} parent=27 // pred_check
          %p364 = pneg %p134
        $region38: #{double_conv.3} parent=27 // pred_check_branch
          %366 = sbr.rel (%p364) target = $region40
        $region39: #{double_conv.3} parent=27 // pred_region
          %s367 = sand.u32 %s28, 1
          %s368 = scalar_lea.sflag [#allocation7], %s367
          %s369 = sand.u32 %s124, 1
          %s370 = smul.addr %s369, 16
          %s371 = scalar_lea.vmem [#allocation8], %s370
          %s372 = sadd.s32 %s36, 1
          %s373 = smul.u32 %s372, 8
          %p374 = scmp.lt.s32.totalorder %s373, 15
          %s375 = scalar_select %p374, %s373, 15
          %s377 = ssub.s32 256, 256
          %378 = vsyncadd %s368, %s377
          %s379 = smul.addr %s375, 2
          %s380 = smul.addr %s35, 32
          %s381 = sadd.s32 %s379, %s380
          %s382 = smul.addr %s381, 128
          %s383 = scalar_lea.hbm %s2, %s382
          %s384 = sshll.u32 %s371, 4
          %s385 = int_to_ptr.vmem [resolvable:$true] %s384
          %390 = dma.hbm_to_vmem [thread:$0]  %s383, 256, %s385, %s368, 128, 128, 8
        $region40: #{double_conv.3} parent=27 // pred_fallthru
          _
      $region28: #{double_conv.3} parent=5 // pred_fallthru
        _
      %p391 = scmp.le.s32.totalorder 1, %s28
      %p392 = scmp.lt.s32.totalorder %s28, 5
      %p393 = pnand %p391, %p392
      %p394 = pneg %p393
      // Predicated region
      $region41: #{double_conv.3} parent=5 // pred_check
        _
      $region42: #{double_conv.3} parent=5 // pred_check_branch
        %396 = sbr.rel (%p393) target = $region44
      $region43: #{double_conv.3} parent=5 // pred_region
        %s397 = ssub.s32 %s28, 1
        %s398 = sand.u32 %s55, 1
        %s399 = scalar_lea.sflag [#allocation4], %s398
        %s400 = sand.u32 %s55, 1
        %s401 = smul.addr %s400, 128
        %s402 = scalar_lea.vmem [#allocation3], %s401
        // Predicated region
        $region45: #{double_conv.3} parent=43 // pred_check
          %p403 = pneg %p68
        $region46: #{double_conv.3} parent=43 // pred_check_branch
          %405 = sbr.rel (%p403) target = $region48
        $region47: #{double_conv.3} parent=43 // pred_region
          %406 = dma.done %s399, 2048
        $region48: #{double_conv.3} parent=43 // pred_fallthru
          _
        %s407 = sand.u32 %s33, 1
        %s408 = scalar_lea.sflag [#allocation7], %s407
        %s409 = sand.u32 %s91, 1
        %s410 = smul.addr %s409, 16
        %s411 = scalar_lea.vmem [#allocation6], %s410
        // Predicated region
        $region49: #{double_conv.3} parent=43 // pred_check
          %p412 = pneg %p104
        $region50: #{double_conv.3} parent=43 // pred_check_branch
          %414 = sbr.rel (%p412) target = $region52
        $region51: #{double_conv.3} parent=43 // pred_region
          %415 = dma.done %s408, 256
        $region52: #{double_conv.3} parent=43 // pred_fallthru
          _
        %s416 = sand.u32 %s33, 1
        %s417 = scalar_lea.sflag [#allocation7], %s416
        %s418 = sand.u32 %s127, 1
        %s419 = smul.addr %s418, 16
        %s420 = scalar_lea.vmem [#allocation8], %s419
        // Predicated region
        $region53: #{double_conv.3} parent=43 // pred_check
          %p421 = pneg %p140
        $region54: #{double_conv.3} parent=43 // pred_check_branch
          %423 = sbr.rel (%p421) target = $region56
        $region55: #{double_conv.3} parent=43 // pred_region
          %424 = dma.done %s417, 256
        $region56: #{double_conv.3} parent=43 // pred_fallthru
          _
        // Predicated region
        $region57: #{double_conv.3} parent=43 // pred_check
          %p425 = pneg %p161
        $region58: #{double_conv.3} parent=43 // pred_check_branch
          %427 = sbr.rel (%p425) target = $region60
        $region59: #{double_conv.3} parent=43 // pred_region
          %428 = dma.done [#allocation10], 9216
        $region60: #{double_conv.3} parent=43 // pred_fallthru
          _
        // Predicated region
        $region61: #{double_conv.3} parent=43 // pred_check
          %p429 = pneg %p182
        $region62: #{double_conv.3} parent=43 // pred_check_branch
          %431 = sbr.rel (%p429) target = $region64
        $region63: #{double_conv.3} parent=43 // pred_region
          %432 = dma.done [#allocation10], 16
        $region64: #{double_conv.3} parent=43 // pred_fallthru
          _
        // Predicated region
        $region65: #{double_conv.3} parent=43 // pred_check
          %p433 = pneg %p203
        $region66: #{double_conv.3} parent=43 // pred_check_branch
          %435 = sbr.rel (%p433) target = $region68
        $region67: #{double_conv.3} parent=43 // pred_region
          %436 = dma.done [#allocation13], 16
        $region68: #{double_conv.3} parent=43 // pred_fallthru
          _
        %s437 = sand.u32 %s55, 1
        %s438 = scalar_lea.sflag [#allocation4], %s437
        %s439 = sand.u32 %s55, 1
        %s440 = smul.addr %s439, 128
        %s441 = scalar_lea.vmem [#allocation3], %s440
        %p442 = pneg %p68
        %p443 = pneg %p65
        %s444 = sand.u32 %s33, 1
        %s445 = scalar_lea.sflag [#allocation7], %s444
        %s446 = sand.u32 %s91, 1
        %s447 = smul.addr %s446, 16
        %s448 = scalar_lea.vmem [#allocation6], %s447
        %p449 = pneg %p104
        %p450 = pneg %p101
        %s451 = sand.u32 %s33, 1
        %s452 = scalar_lea.sflag [#allocation7], %s451
        %s453 = sand.u32 %s127, 1
        %s454 = smul.addr %s453, 16
        %s455 = scalar_lea.vmem [#allocation8], %s454
        %p456 = pneg %p140
        %p457 = pneg %p137
        %p458 = pneg %p161
        %p459 = pneg %p158
        %p460 = pneg %p182
        %p461 = pneg %p179
        %p462 = pneg %p203
        %p463 = pneg %p200
        %p464 = pneg %p231
        %p465 = pneg %p228
        %s466 = sand.u32 %s218, 1
        %s467 = scalar_lea.sflag [#allocation5], %s466
        %s468 = sand.u32 %s218, 1
        %s469 = smul.addr %s468, 64
        %s470 = scalar_lea.vmem [#allocation14], %s469
        %p471 = pneg %p259
        %p472 = pneg %p256
        %s473 = sand.u32 %s246, 1
        %s474 = scalar_lea.sflag [#allocation16], %s473
        %s475 = sand.u32 %s246, 1
        %s476 = smul.addr %s475, 2
        %s477 = scalar_lea.vmem [#allocation15], %s476
        %s478 = smul.u32 8, %s38
        %s479 = smul.u32 %s38, 8
        %s480 = ssub.s32 %s479, 1
        %p481 = scmp.gt.s32.totalorder %s480, 0
        %s482 = scalar_select %p481, %s480, 0
        %s483 = sadd.s32 %s38, 1
        %s484 = smul.u32 %s483, 8
        %p485 = scmp.lt.s32.totalorder %s484, 15
        %s486 = scalar_select %p485, %s484, 15
        %s487 = smul.u32 8, %s38
        %v489 = vld [vmem:[%s411] sm:$0xff]
        %v490 = vld [vmem:[%s411 + $0x8] sm:$0xff]
        %v491 = vpack.c.bf16 %v490, %v489
        %v492 = vld [vmem:[%s420] sm:$0xff]
        %v493 = vld [vmem:[%s420 + $0x8] sm:$0xff]
        %v494 = vpack.c.bf16 %v493, %v492
        %p495 = scmp.eq.s32.totalorder %s38, 0
        %s496 = scalar_select %p495, 1, 0
        %v497 = vstv %s496
        %vm498 = vcmp.eq.s32.totalorder %v497, 1
        %v499 = vsel %vm498, 0, %v491
        %p500 = scmp.eq.s32.totalorder %s38, 1
        %s501 = scalar_select %p500, 1, 0
        %v502 = vstv %s501
        %vm503 = vcmp.eq.s32.totalorder %v502, 1
        %v504 = vsel %vm503, 0, %v494
        %vm505 = vcmask 1040384
        %vm506 = vsmask.f32 256
        %vm507 = vmand %vm505, %vm506
        %v508 = vld [vmem:[#allocation2] sm:$0x1]
        %v509 = vsel %vm507, 0, %v508
        %510 = vst [vmem:[#allocation2] sm:$0x1] %v509
        %v511 = vld [vmem:[#allocation2 + $0xc] sm:$0x1]
        %v512 = vsel %vm507, 0, %v511
        %513 = vst [vmem:[#allocation2 + $0xc] sm:$0x1] %v512
        %v514 = vld [vmem:[#allocation2 + $0x18] sm:$0x1]
        %v515 = vsel %vm507, 0, %v514
        %516 = vst [vmem:[#allocation2 + $0x18] sm:$0x1] %v515
        %v517 = vld [vmem:[#allocation2 + $0x24] sm:$0x1]
        %v518 = vsel %vm507, 0, %v517
        %519 = vst [vmem:[#allocation2 + $0x24] sm:$0x1] %v518
        %v520 = vld [vmem:[#allocation2 + $0x30] sm:$0x1]
        %v521 = vsel %vm507, 0, %v520
        %522 = vst [vmem:[#allocation2 + $0x30] sm:$0x1] %v521
        %v523 = vld [vmem:[#allocation2 + $0x3c] sm:$0x1]
        %v524 = vsel %vm507, 0, %v523
        %525 = vst [vmem:[#allocation2 + $0x3c] sm:$0x1] %v524
        %v526 = vld [vmem:[#allocation2 + $0x48] sm:$0x1]
        %v527 = vsel %vm507, 0, %v526
        %528 = vst [vmem:[#allocation2 + $0x48] sm:$0x1] %v527
        %v529 = vld [vmem:[#allocation2 + $0x54] sm:$0x1]
        %v530 = vsel %vm507, 0, %v529
        %531 = vst [vmem:[#allocation2 + $0x54] sm:$0x1] %v530
        %v532 = vld [vmem:[#allocation2 + $0x60] sm:$0x1]
        %v533 = vsel %vm507, 0, %v532
        %534 = vst [vmem:[#allocation2 + $0x60] sm:$0x1] %v533
        %v535 = vld [vmem:[#allocation2 + $0x6c] sm:$0x1]
        %v536 = vsel %vm507, 0, %v535
        %537 = vst [vmem:[#allocation2 + $0x6c] sm:$0x1] %v536
        %vm538 = vsmask.f32 7938
        %vm539 = vmand %vm505, %vm538
        %v540 = vld [vmem:[#allocation2 + $0x8] sm:$0x1]
        %v541 = vsel %vm539, 0, %v540
        %542 = vst [vmem:[#allocation2 + $0x8] sm:$0x1] %v541
        %v543 = vld [vmem:[#allocation2 + $0x14] sm:$0x1]
        %v544 = vsel %vm539, 0, %v543
        %545 = vst [vmem:[#allocation2 + $0x14] sm:$0x1] %v544
        %v546 = vld [vmem:[#allocation2 + $0x20] sm:$0x1]
        %v547 = vsel %vm539, 0, %v546
        %548 = vst [vmem:[#allocation2 + $0x20] sm:$0x1] %v547
        %v549 = vld [vmem:[#allocation2 + $0x2c] sm:$0x1]
        %v550 = vsel %vm539, 0, %v549
        %551 = vst [vmem:[#allocation2 + $0x2c] sm:$0x1] %v550
        %v552 = vld [vmem:[#allocation2 + $0x38] sm:$0x1]
        %v553 = vsel %vm539, 0, %v552
        %554 = vst [vmem:[#allocation2 + $0x38] sm:$0x1] %v553
        %v555 = vld [vmem:[#allocation2 + $0x44] sm:$0x1]
        %v556 = vsel %vm539, 0, %v555
        %557 = vst [vmem:[#allocation2 + $0x44] sm:$0x1] %v556
        %v558 = vld [vmem:[#allocation2 + $0x50] sm:$0x1]
        %v559 = vsel %vm539, 0, %v558
        %560 = vst [vmem:[#allocation2 + $0x50] sm:$0x1] %v559
        %v561 = vld [vmem:[#allocation2 + $0x5c] sm:$0x1]
        %v562 = vsel %vm539, 0, %v561
        %563 = vst [vmem:[#allocation2 + $0x5c] sm:$0x1] %v562
        %v564 = vld [vmem:[#allocation2 + $0x68] sm:$0x1]
        %v565 = vsel %vm539, 0, %v564
        %566 = vst [vmem:[#allocation2 + $0x68] sm:$0x1] %v565
        %v567 = vld [vmem:[#allocation2 + $0x74] sm:$0x1]
        %v568 = vsel %vm539, 0, %v567
        %569 = vst [vmem:[#allocation2 + $0x74] sm:$0x1] %v568
        %v571 = vunpack.c.l.b16 %v499
        %v572 = vunpack.c.h.b16 %v499
        %v573 = vpack.c.b16 %v571, %v571
        %v574 = vpack.c.b16 %v572, %v572
        %vm575 = vsmask.f32 4368
        %vm576 = vmor %vm506, %vm575
        %v578 = vshrl.u32 %v573, 16
        %v580 = vrot.slane %v578, 7
        %v581 = vshll.u32 %v573, 16
        %v583 = vor.u32 %v580, %v581
        %v584 = vrot.slane %v580, 4
        %v586 = vshrl.u32 %v574, 16
        %v588 = vrot.slane %v586, 7
        %v589 = vshll.u32 %v574, 16
        %v591 = vor.u32 %v588, %v589
        %v592 = vsel %vm576, %v584, %v591
        %v593 = vrot.slane %v588, 4
        %vm597 = vcmask 1043456
        %vm598 = vmand %vm597, %vm538
        %v599 = vld [vmem:[#allocation2] sm:$0xf]
        %v600 = vsel %vm598, %v583, %v599
        %601 = vst [vmem:[#allocation2] sm:$0xf] %v600
        %602 = vst [vmem:[#allocation2 + $0x4] sm:$0xf] %v592
        %v603 = vld [vmem:[#allocation2 + $0x8] sm:$0x1]
        %v604 = vsel %vm507, %v593, %v603
        %605 = vst [vmem:[#allocation2 + $0x8] sm:$0x1] %v604
        %v607 = vunpack.c.l.b16 %v504
        %v608 = vunpack.c.h.b16 %v504
        %v609 = vpack.c.b16 %v607, %v607
        %v610 = vpack.c.b16 %v608, %v608
        %v612 = vshrl.u32 %v609, 16
        %v614 = vrot.slane %v612, 7
        %v615 = vshll.u32 %v609, 16
        %v617 = vor.u32 %v614, %v615
        %v618 = vrot.slane %v614, 4
        %v620 = vshrl.u32 %v610, 16
        %v622 = vrot.slane %v620, 7
        %v623 = vshll.u32 %v610, 16
        %v625 = vor.u32 %v622, %v623
        %v626 = vsel %vm576, %v618, %v625
        %v627 = vrot.slane %v622, 4
        %s631 = scalar_lea.vmem [#allocation2], 108
        %v632 = vld [vmem:[%s631] sm:$0xf]
        %v633 = vsel %vm598, %v617, %v632
        %634 = vst [vmem:[%s631] sm:$0xf] %v633
        %635 = vst [vmem:[%s631 + $0x4] sm:$0xf] %v626
        %v636 = vld [vmem:[%s631 + $0x8] sm:$0x1]
        %v637 = vsel %vm507, %v627, %v636
        %638 = vst [vmem:[%s631 + $0x8] sm:$0x1] %v637
        %v639 = vld [vmem:[%s402] sm:$0xff]
        %v640 = vld [vmem:[%s402 + $0x8] sm:$0xff]
        %v641 = vld [vmem:[%s402 + $0x10] sm:$0xff]
        %v642 = vld [vmem:[%s402 + $0x18] sm:$0xff]
        %v643 = vld [vmem:[%s402 + $0x20] sm:$0xff]
        %v644 = vld [vmem:[%s402 + $0x28] sm:$0xff]
        %v645 = vld [vmem:[%s402 + $0x30] sm:$0xff]
        %v646 = vld [vmem:[%s402 + $0x38] sm:$0xff]
        %v647 = vld [vmem:[%s402 + $0x40] sm:$0xff]
        %v648 = vld [vmem:[%s402 + $0x48] sm:$0xff]
        %v649 = vld [vmem:[%s402 + $0x50] sm:$0xff]
        %v650 = vld [vmem:[%s402 + $0x58] sm:$0xff]
        %v651 = vld [vmem:[%s402 + $0x60] sm:$0xff]
        %v652 = vld [vmem:[%s402 + $0x68] sm:$0xff]
        %v653 = vld [vmem:[%s402 + $0x70] sm:$0xff]
        %v654 = vld [vmem:[%s402 + $0x78] sm:$0xff]
        %v655 = vpack.c.bf16 %v640, %v639
        %v656 = vpack.c.bf16 %v642, %v641
        %v657 = vpack.c.bf16 %v644, %v643
        %v658 = vpack.c.bf16 %v646, %v645
        %v659 = vpack.c.bf16 %v648, %v647
        %v660 = vpack.c.bf16 %v650, %v649
        %v661 = vpack.c.bf16 %v652, %v651
        %v662 = vpack.c.bf16 %v654, %v653
        %v671 = vunpack.c.l.b16 %v655
        %v672 = vunpack.c.h.b16 %v655
        %v673 = vunpack.c.l.b16 %v656
        %v674 = vunpack.c.h.b16 %v656
        %v675 = vunpack.c.l.b16 %v657
        %v676 = vunpack.c.h.b16 %v657
        %v677 = vunpack.c.l.b16 %v658
        %v678 = vunpack.c.h.b16 %v658
        %v679 = vunpack.c.l.b16 %v659
        %v680 = vunpack.c.h.b16 %v659
        %v681 = vunpack.c.l.b16 %v660
        %v682 = vunpack.c.h.b16 %v660
        %v683 = vunpack.c.l.b16 %v661
        %v684 = vunpack.c.h.b16 %v661
        %v685 = vunpack.c.l.b16 %v662
        %v686 = vunpack.c.h.b16 %v662
        %v687 = vpack.c.b16 %v671, %v671
        %v688 = vpack.c.b16 %v672, %v672
        %v689 = vpack.c.b16 %v673, %v673
        %v690 = vpack.c.b16 %v674, %v674
        %v691 = vpack.c.b16 %v675, %v675
        %v692 = vpack.c.b16 %v676, %v676
        %v693 = vpack.c.b16 %v677, %v677
        %v694 = vpack.c.b16 %v678, %v678
        %v695 = vpack.c.b16 %v679, %v679
        %v696 = vpack.c.b16 %v680, %v680
        %v697 = vpack.c.b16 %v681, %v681
        %v698 = vpack.c.b16 %v682, %v682
        %v699 = vpack.c.b16 %v683, %v683
        %v700 = vpack.c.b16 %v684, %v684
        %v701 = vpack.c.b16 %v685, %v685
        %v702 = vpack.c.b16 %v686, %v686
        %v704 = vshrl.u32 %v687, 16
        %v706 = vrot.slane %v704, 7
        %v707 = vshll.u32 %v687, 16
        %v709 = vor.u32 %v706, %v707
        %v710 = vrot.slane %v706, 4
        %v712 = vshrl.u32 %v688, 16
        %v714 = vrot.slane %v712, 7
        %v715 = vshll.u32 %v688, 16
        %v717 = vor.u32 %v714, %v715
        %v718 = vsel %vm576, %v710, %v717
        %v719 = vrot.slane %v714, 4
        %v721 = vshrl.u32 %v689, 16
        %v723 = vrot.slane %v721, 7
        %v724 = vshll.u32 %v689, 16
        %v726 = vor.u32 %v723, %v724
        %v727 = vrot.slane %v723, 4
        %v729 = vshrl.u32 %v690, 16
        %v731 = vrot.slane %v729, 7
        %v732 = vshll.u32 %v690, 16
        %v734 = vor.u32 %v731, %v732
        %v735 = vsel %vm576, %v727, %v734
        %v736 = vrot.slane %v731, 4
        %v738 = vshrl.u32 %v691, 16
        %v740 = vrot.slane %v738, 7
        %v741 = vshll.u32 %v691, 16
        %v743 = vor.u32 %v740, %v741
        %v744 = vrot.slane %v740, 4
        %v746 = vshrl.u32 %v692, 16
        %v748 = vrot.slane %v746, 7
        %v749 = vshll.u32 %v692, 16
        %v751 = vor.u32 %v748, %v749
        %v752 = vsel %vm576, %v744, %v751
        %v753 = vrot.slane %v748, 4
        %v755 = vshrl.u32 %v693, 16
        %v757 = vrot.slane %v755, 7
        %v758 = vshll.u32 %v693, 16
        %v760 = vor.u32 %v757, %v758
        %v761 = vrot.slane %v757, 4
        %v763 = vshrl.u32 %v694, 16
        %v765 = vrot.slane %v763, 7
        %v766 = vshll.u32 %v694, 16
        %v768 = vor.u32 %v765, %v766
        %v769 = vsel %vm576, %v761, %v768
        %v770 = vrot.slane %v765, 4
        %v772 = vshrl.u32 %v695, 16
        %v774 = vrot.slane %v772, 7
        %v775 = vshll.u32 %v695, 16
        %v777 = vor.u32 %v774, %v775
        %v778 = vrot.slane %v774, 4
        %v780 = vshrl.u32 %v696, 16
        %v782 = vrot.slane %v780, 7
        %v783 = vshll.u32 %v696, 16
        %v785 = vor.u32 %v782, %v783
        %v786 = vsel %vm576, %v778, %v785
        %v787 = vrot.slane %v782, 4
        %v789 = vshrl.u32 %v697, 16
        %v791 = vrot.slane %v789, 7
        %v792 = vshll.u32 %v697, 16
        %v794 = vor.u32 %v791, %v792
        %v795 = vrot.slane %v791, 4
        %v797 = vshrl.u32 %v698, 16
        %v799 = vrot.slane %v797, 7
        %v800 = vshll.u32 %v698, 16
        %v802 = vor.u32 %v799, %v800
        %v803 = vsel %vm576, %v795, %v802
        %v804 = vrot.slane %v799, 4
        %v806 = vshrl.u32 %v699, 16
        %v808 = vrot.slane %v806, 7
        %v809 = vshll.u32 %v699, 16
        %v811 = vor.u32 %v808, %v809
        %v812 = vrot.slane %v808, 4
        %v814 = vshrl.u32 %v700, 16
        %v816 = vrot.slane %v814, 7
        %v817 = vshll.u32 %v700, 16
        %v819 = vor.u32 %v816, %v817
        %v820 = vsel %vm576, %v812, %v819
        %v821 = vrot.slane %v816, 4
        %v823 = vshrl.u32 %v701, 16
        %v825 = vrot.slane %v823, 7
        %v826 = vshll.u32 %v701, 16
        %v828 = vor.u32 %v825, %v826
        %v829 = vrot.slane %v825, 4
        %v831 = vshrl.u32 %v702, 16
        %v833 = vrot.slane %v831, 7
        %v834 = vshll.u32 %v702, 16
        %v836 = vor.u32 %v833, %v834
        %v837 = vsel %vm576, %v829, %v836
        %v838 = vrot.slane %v833, 4
        %s863 = scalar_lea.vmem [#allocation2], 12
        %v864 = vld [vmem:[%s863] sm:$0xf]
        %v865 = vsel %vm598, %v709, %v864
        %866 = vst [vmem:[%s863] sm:$0xf] %v865
        %867 = vst [vmem:[%s863 + $0x4] sm:$0xf] %v718
        %v868 = vld [vmem:[%s863 + $0x8] sm:$0x1]
        %v869 = vsel %vm507, %v719, %v868
        %870 = vst [vmem:[%s863 + $0x8] sm:$0x1] %v869
        %v871 = vld [vmem:[%s863 + $0xc] sm:$0xf]
        %v872 = vsel %vm598, %v726, %v871
        %873 = vst [vmem:[%s863 + $0xc] sm:$0xf] %v872
        %874 = vst [vmem:[%s863 + $0x10] sm:$0xf] %v735
        %v875 = vld [vmem:[%s863 + $0x14] sm:$0x1]
        %v876 = vsel %vm507, %v736, %v875
        %877 = vst [vmem:[%s863 + $0x14] sm:$0x1] %v876
        %v878 = vld [vmem:[%s863 + $0x18] sm:$0xf]
        %v879 = vsel %vm598, %v743, %v878
        %880 = vst [vmem:[%s863 + $0x18] sm:$0xf] %v879
        %881 = vst [vmem:[%s863 + $0x1c] sm:$0xf] %v752
        %v882 = vld [vmem:[%s863 + $0x20] sm:$0x1]
        %v883 = vsel %vm507, %v753, %v882
        %884 = vst [vmem:[%s863 + $0x20] sm:$0x1] %v883
        %v885 = vld [vmem:[%s863 + $0x24] sm:$0xf]
        %v886 = vsel %vm598, %v760, %v885
        %887 = vst [vmem:[%s863 + $0x24] sm:$0xf] %v886
        %888 = vst [vmem:[%s863 + $0x28] sm:$0xf] %v769
        %v889 = vld [vmem:[%s863 + $0x2c] sm:$0x1]
        %v890 = vsel %vm507, %v770, %v889
        %891 = vst [vmem:[%s863 + $0x2c] sm:$0x1] %v890
        %v892 = vld [vmem:[%s863 + $0x30] sm:$0xf]
        %v893 = vsel %vm598, %v777, %v892
        %894 = vst [vmem:[%s863 + $0x30] sm:$0xf] %v893
        %895 = vst [vmem:[%s863 + $0x34] sm:$0xf] %v786
        %v896 = vld [vmem:[%s863 + $0x38] sm:$0x1]
        %v897 = vsel %vm507, %v787, %v896
        %898 = vst [vmem:[%s863 + $0x38] sm:$0x1] %v897
        %v899 = vld [vmem:[%s863 + $0x3c] sm:$0xf]
        %v900 = vsel %vm598, %v794, %v899
        %901 = vst [vmem:[%s863 + $0x3c] sm:$0xf] %v900
        %902 = vst [vmem:[%s863 + $0x40] sm:$0xf] %v803
        %v903 = vld [vmem:[%s863 + $0x44] sm:$0x1]
        %v904 = vsel %vm507, %v804, %v903
        %905 = vst [vmem:[%s863 + $0x44] sm:$0x1] %v904
        %v906 = vld [vmem:[%s863 + $0x48] sm:$0xf]
        %v907 = vsel %vm598, %v811, %v906
        %908 = vst [vmem:[%s863 + $0x48] sm:$0xf] %v907
        %909 = vst [vmem:[%s863 + $0x4c] sm:$0xf] %v820
        %v910 = vld [vmem:[%s863 + $0x50] sm:$0x1]
        %v911 = vsel %vm507, %v821, %v910
        %912 = vst [vmem:[%s863 + $0x50] sm:$0x1] %v911
        %v913 = vld [vmem:[%s863 + $0x54] sm:$0xf]
        %v914 = vsel %vm598, %v828, %v913
        %915 = vst [vmem:[%s863 + $0x54] sm:$0xf] %v914
        %916 = vst [vmem:[%s863 + $0x58] sm:$0xf] %v837
        %v917 = vld [vmem:[%s863 + $0x5c] sm:$0x1]
        %v918 = vsel %vm507, %v838, %v917
        %919 = vst [vmem:[%s863 + $0x5c] sm:$0x1] %v918
        %v920 = vld [vmem:[#allocation2] sm:$0xf]
        %v921 = vld [vmem:[#allocation2 + $0x4] sm:$0xf]
        %v922 = vld [vmem:[#allocation2 + $0xc] sm:$0xf]
        %v923 = vld [vmem:[#allocation2 + $0x10] sm:$0xf]
        %v924 = vld [vmem:[#allocation2 + $0x18] sm:$0xf]
        %v925 = vld [vmem:[#allocation2 + $0x1c] sm:$0xf]
        %v926 = vld [vmem:[#allocation2 + $0x24] sm:$0xf]
        %v927 = vld [vmem:[#allocation2 + $0x28] sm:$0xf]
        %v928 = vld [vmem:[#allocation2 + $0x30] sm:$0xf]
        %v929 = vld [vmem:[#allocation2 + $0x34] sm:$0xf]
        %v930 = vld [vmem:[#allocation2 + $0x3c] sm:$0xf]
        %v931 = vld [vmem:[#allocation2 + $0x40] sm:$0xf]
        %v932 = vld [vmem:[#allocation2 + $0x48] sm:$0xf]
        %v933 = vld [vmem:[#allocation2 + $0x4c] sm:$0xf]
        %v934 = vld [vmem:[#allocation2 + $0x54] sm:$0xf]
        %v935 = vld [vmem:[#allocation2 + $0x58] sm:$0xf]
        %v936 = vld [vmem:[#allocation9] sm:$0xf]
        %v937 = vld [vmem:[#allocation9 + $0x4] sm:$0xf]
        %v938 = vld [vmem:[#allocation9 + $0x8] sm:$0xf]
        %v939 = vld [vmem:[#allocation9 + $0xc] sm:$0xf]
        %v940 = vld [vmem:[#allocation9 + $0x10] sm:$0xf]
        %v941 = vld [vmem:[#allocation9 + $0x14] sm:$0xf]
        %v942 = vld [vmem:[#allocation9 + $0x18] sm:$0xf]
        %v943 = vld [vmem:[#allocation9 + $0x1c] sm:$0xf]
        %v944 = vld [vmem:[#allocation9 + $0x20] sm:$0xf]
        %v945 = vld [vmem:[#allocation9 + $0x24] sm:$0xf]
        %v946 = vld [vmem:[#allocation9 + $0x28] sm:$0xf]
        %v947 = vld [vmem:[#allocation9 + $0x2c] sm:$0xf]
        %v948 = vld [vmem:[#allocation9 + $0x30] sm:$0xf]
        %v949 = vld [vmem:[#allocation9 + $0x34] sm:$0xf]
        %v950 = vld [vmem:[#allocation9 + $0x38] sm:$0xf]
        %v951 = vld [vmem:[#allocation9 + $0x3c] sm:$0xf]
        %v952 = vld [vmem:[#allocation2 + $0x8] sm:$0x1]
        %v953 = vld [vmem:[#allocation2 + $0x14] sm:$0x1]
        %v954 = vld [vmem:[#allocation2 + $0x20] sm:$0x1]
        %v955 = vld [vmem:[#allocation2 + $0x2c] sm:$0x1]
        %v956 = vld [vmem:[#allocation2 + $0x38] sm:$0x1]
        %v957 = vld [vmem:[#allocation2 + $0x44] sm:$0x1]
        %v958 = vld [vmem:[#allocation2 + $0x50] sm:$0x1]
        %v959 = vld [vmem:[#allocation2 + $0x5c] sm:$0x1]
        %vm960 = vsmask.f32 3328
        %vm961 = vsmask.f32 7440
        %vm962 = vmor %vm960, %vm961
        %v964 = vshrl.u32 %v920, 16
        %v966 = vrot.slane %v964, 4
        %v967 = vshll.u32 %v920, 16
        %v969 = vrot.slane %v967, 5
        %v970 = vor.u32 %v966, %v969
        %v971 = vrot.slane %v970, 4
        %v973 = vshll.u32 %v921, 16
        %v975 = vrot.slane %v973, 5
        %v976 = vsel %vm962, %v971, %v975
        %v977 = vshrl.u32 %v921, 16
        %v979 = vrot.slane %v977, 4
        %v980 = vor.u32 %v979, %v975
        %v981 = vrot.slane %v980, 4
        %v983 = vshll.u32 %v952, 16
        %v985 = vrot.slane %v983, 5
        %v986 = vsel %vm962, %v981, %v985
        %v988 = vshrl.u32 %v922, 16
        %v990 = vrot.slane %v988, 4
        %v991 = vshll.u32 %v922, 16
        %v993 = vrot.slane %v991, 5
        %v994 = vor.u32 %v990, %v993
        %v995 = vrot.slane %v994, 4
        %v997 = vshll.u32 %v923, 16
        %v999 = vrot.slane %v997, 5
        %v1000 = vsel %vm962, %v995, %v999
        %v1001 = vshrl.u32 %v923, 16
        %v1003 = vrot.slane %v1001, 4
        %v1004 = vor.u32 %v1003, %v999
        %v1005 = vrot.slane %v1004, 4
        %v1007 = vshll.u32 %v953, 16
        %v1009 = vrot.slane %v1007, 5
        %v1010 = vsel %vm962, %v1005, %v1009
        %v1012 = vshrl.u32 %v924, 16
        %v1014 = vrot.slane %v1012, 4
        %v1015 = vshll.u32 %v924, 16
        %v1017 = vrot.slane %v1015, 5
        %v1018 = vor.u32 %v1014, %v1017
        %v1019 = vrot.slane %v1018, 4
        %v1021 = vshll.u32 %v925, 16
        %v1023 = vrot.slane %v1021, 5
        %v1024 = vsel %vm962, %v1019, %v1023
        %v1025 = vshrl.u32 %v925, 16
        %v1027 = vrot.slane %v1025, 4
        %v1028 = vor.u32 %v1027, %v1023
        %v1029 = vrot.slane %v1028, 4
        %v1031 = vshll.u32 %v954, 16
        %v1033 = vrot.slane %v1031, 5
        %v1034 = vsel %vm962, %v1029, %v1033
        %v1036 = vshrl.u32 %v926, 16
        %v1038 = vrot.slane %v1036, 4
        %v1039 = vshll.u32 %v926, 16
        %v1041 = vrot.slane %v1039, 5
        %v1042 = vor.u32 %v1038, %v1041
        %v1043 = vrot.slane %v1042, 4
        %v1045 = vshll.u32 %v927, 16
        %v1047 = vrot.slane %v1045, 5
        %v1048 = vsel %vm962, %v1043, %v1047
        %v1049 = vshrl.u32 %v927, 16
        %v1051 = vrot.slane %v1049, 4
        %v1052 = vor.u32 %v1051, %v1047
        %v1053 = vrot.slane %v1052, 4
        %v1055 = vshll.u32 %v955, 16
        %v1057 = vrot.slane %v1055, 5
        %v1058 = vsel %vm962, %v1053, %v1057
        %v1060 = vshrl.u32 %v928, 16
        %v1062 = vrot.slane %v1060, 4
        %v1063 = vshll.u32 %v928, 16
        %v1065 = vrot.slane %v1063, 5
        %v1066 = vor.u32 %v1062, %v1065
        %v1067 = vrot.slane %v1066, 4
        %v1069 = vshll.u32 %v929, 16
        %v1071 = vrot.slane %v1069, 5
        %v1072 = vsel %vm962, %v1067, %v1071
        %v1073 = vshrl.u32 %v929, 16
        %v1075 = vrot.slane %v1073, 4
        %v1076 = vor.u32 %v1075, %v1071
        %v1077 = vrot.slane %v1076, 4
        %v1079 = vshll.u32 %v956, 16
        %v1081 = vrot.slane %v1079, 5
        %v1082 = vsel %vm962, %v1077, %v1081
        %v1084 = vshrl.u32 %v930, 16
        %v1086 = vrot.slane %v1084, 4
        %v1087 = vshll.u32 %v930, 16
        %v1089 = vrot.slane %v1087, 5
        %v1090 = vor.u32 %v1086, %v1089
        %v1091 = vrot.slane %v1090, 4
        %v1093 = vshll.u32 %v931, 16
        %v1095 = vrot.slane %v1093, 5
        %v1096 = vsel %vm962, %v1091, %v1095
        %v1097 = vshrl.u32 %v931, 16
        %v1099 = vrot.slane %v1097, 4
        %v1100 = vor.u32 %v1099, %v1095
        %v1101 = vrot.slane %v1100, 4
        %v1103 = vshll.u32 %v957, 16
        %v1105 = vrot.slane %v1103, 5
        %v1106 = vsel %vm962, %v1101, %v1105
        %v1108 = vshrl.u32 %v932, 16
        %v1110 = vrot.slane %v1108, 4
        %v1111 = vshll.u32 %v932, 16
        %v1113 = vrot.slane %v1111, 5
        %v1114 = vor.u32 %v1110, %v1113
        %v1115 = vrot.slane %v1114, 4
        %v1117 = vshll.u32 %v933, 16
        %v1119 = vrot.slane %v1117, 5
        %v1120 = vsel %vm962, %v1115, %v1119
        %v1121 = vshrl.u32 %v933, 16
        %v1123 = vrot.slane %v1121, 4
        %v1124 = vor.u32 %v1123, %v1119
        %v1125 = vrot.slane %v1124, 4
        %v1127 = vshll.u32 %v958, 16
        %v1129 = vrot.slane %v1127, 5
        %v1130 = vsel %vm962, %v1125, %v1129
        %v1132 = vshrl.u32 %v934, 16
        %v1134 = vrot.slane %v1132, 4
        %v1135 = vshll.u32 %v934, 16
        %v1137 = vrot.slane %v1135, 5
        %v1138 = vor.u32 %v1134, %v1137
        %v1139 = vrot.slane %v1138, 4
        %v1141 = vshll.u32 %v935, 16
        %v1143 = vrot.slane %v1141, 5
        %v1144 = vsel %vm962, %v1139, %v1143
        %v1145 = vshrl.u32 %v935, 16
        %v1147 = vrot.slane %v1145, 4
        %v1148 = vor.u32 %v1147, %v1143
        %v1149 = vrot.slane %v1148, 4
        %v1151 = vshll.u32 %v959, 16
        %v1153 = vrot.slane %v1151, 5
        %v1154 = vsel %vm962, %v1149, %v1153
        %s1155 = scalar_lea.vmem [#allocation9], 64
        %v1156 = vld [vmem:[%s1155] sm:$0xf]
        %v1157 = vld [vmem:[%s1155 + $0x4] sm:$0xf]
        %v1158 = vld [vmem:[%s1155 + $0x8] sm:$0xf]
        %v1159 = vld [vmem:[%s1155 + $0xc] sm:$0xf]
        %v1160 = vld [vmem:[%s1155 + $0x10] sm:$0xf]
        %v1161 = vld [vmem:[%s1155 + $0x14] sm:$0xf]
        %v1162 = vld [vmem:[%s1155 + $0x18] sm:$0xf]
        %v1163 = vld [vmem:[%s1155 + $0x1c] sm:$0xf]
        %v1164 = vld [vmem:[%s1155 + $0x20] sm:$0xf]
        %v1165 = vld [vmem:[%s1155 + $0x24] sm:$0xf]
        %v1166 = vld [vmem:[%s1155 + $0x28] sm:$0xf]
        %v1167 = vld [vmem:[%s1155 + $0x2c] sm:$0xf]
        %v1168 = vld [vmem:[%s1155 + $0x30] sm:$0xf]
        %v1169 = vld [vmem:[%s1155 + $0x34] sm:$0xf]
        %v1170 = vld [vmem:[%s1155 + $0x38] sm:$0xf]
        %v1171 = vld [vmem:[%s1155 + $0x3c] sm:$0xf]
        %v1172 = vunpack.c.l.b16 %v976
        %v1173 = vunpack.c.l.b16 %v986
        %v1174 = vunpack.c.l.b16 %v1000
        %v1175 = vunpack.c.l.b16 %v1010
        %v1176 = vunpack.c.l.b16 %v1024
        %v1177 = vunpack.c.l.b16 %v1034
        %v1178 = vunpack.c.l.b16 %v1048
        %v1179 = vunpack.c.l.b16 %v1058
        %v1180 = vunpack.c.l.b16 %v1072
        %v1181 = vunpack.c.l.b16 %v1082
        %v1182 = vunpack.c.l.b16 %v1096
        %v1183 = vunpack.c.l.b16 %v1106
        %v1184 = vunpack.c.l.b16 %v1120
        %v1185 = vunpack.c.l.b16 %v1130
        %v1186 = vunpack.c.l.b16 %v1144
        %v1187 = vunpack.c.l.b16 %v1154
        %v1188 = vpack.c.b16 %v1173, %v1172
        %v1189 = vpack.c.b16 %v1175, %v1174
        %v1190 = vpack.c.b16 %v1177, %v1176
        %v1191 = vpack.c.b16 %v1179, %v1178
        %v1192 = vpack.c.b16 %v1181, %v1180
        %v1193 = vpack.c.b16 %v1183, %v1182
        %v1194 = vpack.c.b16 %v1185, %v1184
        %v1195 = vpack.c.b16 %v1187, %v1186
        %v1220 = vunpack.c.l.b16 %v1156
        %v1221 = vunpack.c.l.b16 %v1157
        %v1222 = vunpack.c.l.b16 %v1158
        %v1223 = vunpack.c.l.b16 %v1159
        %v1224 = vunpack.c.l.b16 %v1160
        %v1225 = vunpack.c.l.b16 %v1161
        %v1226 = vunpack.c.l.b16 %v1162
        %v1227 = vunpack.c.l.b16 %v1163
        %v1228 = vunpack.c.l.b16 %v1164
        %v1229 = vunpack.c.l.b16 %v1165
        %v1230 = vunpack.c.l.b16 %v1166
        %v1231 = vunpack.c.l.b16 %v1167
        %v1232 = vunpack.c.l.b16 %v1168
        %v1233 = vunpack.c.l.b16 %v1169
        %v1234 = vunpack.c.l.b16 %v1170
        %v1235 = vunpack.c.l.b16 %v1171
        %v1236 = vpack.c.b16 %v1221, %v1220
        %v1237 = vpack.c.b16 %v1223, %v1222
        %v1238 = vpack.c.b16 %v1225, %v1224
        %v1239 = vpack.c.b16 %v1227, %v1226
        %v1240 = vpack.c.b16 %v1229, %v1228
        %v1241 = vpack.c.b16 %v1231, %v1230
        %v1242 = vpack.c.b16 %v1233, %v1232
        %v1243 = vpack.c.b16 %v1235, %v1234
        %1252 = vmatprep.subr.bf16.mxu0 0
        %1253 = vmatpush1.bf16.msra.mxu0 %v1236
        %1254 = vmatprep.subr.bf16.mxu0 0
        %1255 = vmatpush1.bf16.msra.mxu0 %v1237
        %1256 = vmatprep.subr.bf16.mxu0 0
        %1257 = vmatpush1.bf16.msra.mxu0 %v1238
        %1258 = vmatprep.subr.bf16.mxu0 0
        %1259 = vmatpush1.bf16.msra.mxu0 %v1239
        %1260 = vmatprep.subr.bf16.mxu0 0
        %1261 = vmatpush1.bf16.msra.mxu0 %v1240
        %1262 = vmatprep.subr.bf16.mxu0 0
        %1263 = vmatpush1.bf16.msra.mxu0 %v1241
        %1264 = vmatprep.subr.bf16.mxu0 0
        %1265 = vmatpush1.bf16.msra.mxu0 %v1242
        %1266 = vmatprep.subr.bf16.mxu0 0
        %1267 = vmatpush1.bf16.msra.mxu0 %v1243
        %1268 = vmatprep.subr.bf16.mxu0 0
        %1269 = vmatpush1.bf16.msra.mxu0 0
        %1270 = vmatprep.subr.bf16.mxu0 0
        %1271 = vmatpush1.bf16.msra.mxu0 0
        %1272 = vmatprep.subr.bf16.mxu0 0
        %1273 = vmatpush1.bf16.msra.mxu0 0
        %1274 = vmatprep.subr.bf16.mxu0 0
        %1275 = vmatpush1.bf16.msra.mxu0 0
        %1276 = vmatprep.subr.bf16.mxu0 0
        %1277 = vmatpush1.bf16.msra.mxu0 0
        %1278 = vmatprep.subr.bf16.mxu0 0
        %1279 = vmatpush1.bf16.msra.mxu0 0
        %1280 = vmatprep.subr.bf16.mxu0 0
        %1281 = vmatpush1.bf16.msra.mxu0 0
        %1282 = vmatprep.subr.bf16.mxu0 0
        %1283 = vmatpush1.bf16.msra.mxu0 0
        %1284 = vmatprep.mubr.bf16.mxu0 0
        %1285 = vmatmul.mubr.bf16.gmra.mrb[0].mxu0 %v1188
        %v1286 = vpop.f32.mrb[0].mxu0
        %v1287 = vadd.f32 0.0, %v1286
        %v1288 = vpop.f32.mrb[0].mxu0
        %v1289 = vpop.f32.mrb[0].mxu0
        %v1290 = vadd.f32 0.0, %v1289
        %v1291 = vpop.f32.mrb[0].mxu0
        %1292 = vmatprep.mubr.bf16.mxu0 0
        %1293 = vmatmul.mubr.bf16.gmra.mrb[0].mxu0 %v1189
        %v1294 = vpop.f32.mrb[0].mxu0
        %v1295 = vadd.f32 0.0, %v1294
        %v1296 = vpop.f32.mrb[0].mxu0
        %v1297 = vpop.f32.mrb[0].mxu0
        %v1298 = vadd.f32 0.0, %v1297
        %v1299 = vpop.f32.mrb[0].mxu0
        %1300 = vmatprep.mubr.bf16.mxu0 0
        %1301 = vmatmul.mubr.bf16.gmra.mrb[0].mxu0 %v1190
        %v1302 = vpop.f32.mrb[0].mxu0
        %v1303 = vadd.f32 0.0, %v1302
        %v1304 = vpop.f32.mrb[0].mxu0
        %v1305 = vpop.f32.mrb[0].mxu0
        %v1306 = vadd.f32 0.0, %v1305
        %v1307 = vpop.f32.mrb[0].mxu0
        %1308 = vmatprep.mubr.bf16.mxu0 0
        %1309 = vmatmul.mubr.bf16.gmra.mrb[0].mxu0 %v1191
        %v1310 = vpop.f32.mrb[0].mxu0
        %v1311 = vadd.f32 0.0, %v1310
        %v1312 = vpop.f32.mrb[0].mxu0
        %v1313 = vpop.f32.mrb[0].mxu0
        %v1314 = vadd.f32 0.0, %v1313
        %v1315 = vpop.f32.mrb[0].mxu0
        %1316 = vmatprep.mubr.bf16.mxu0 0
        %1317 = vmatmul.mubr.bf16.gmra.mrb[0].mxu0 %v1192
        %v1318 = vpop.f32.mrb[0].mxu0
        %v1319 = vadd.f32 0.0, %v1318
        %v1320 = vpop.f32.mrb[0].mxu0
        %v1321 = vpop.f32.mrb[0].mxu0
        %v1322 = vadd.f32 0.0, %v1321
        %v1323 = vpop.f32.mrb[0].mxu0
        %1324 = vmatprep.mubr.bf16.mxu0 0
        %1325 = vmatmul.mubr.bf16.gmra.mrb[0].mxu0 %v1193
        %v1326 = vpop.f32.mrb[0].mxu0
        %v1327 = vadd.f32 0.0, %v1326
        %v1328 = vpop.f32.mrb[0].mxu0
        %v1329 = vpop.f32.mrb[0].mxu0
        %v1330 = vadd.f32 0.0, %v1329
        %v1331 = vpop.f32.mrb[0].mxu0
        %1332 = vmatprep.mubr.bf16.mxu0 0
        %1333 = vmatmul.mubr.bf16.gmra.mrb[0].mxu0 %v1194
        %v1334 = vpop.f32.mrb[0].mxu0
        %v1335 = vadd.f32 0.0, %v1334
        %v1336 = vpop.f32.mrb[0].mxu0
        %v1337 = vpop.f32.mrb[0].mxu0
        %v1338 = vadd.f32 0.0, %v1337
        %v1339 = vpop.f32.mrb[0].mxu0
        %1340 = vmatprep.mubr.bf16.mxu0 0
        %1341 = vmatmul.mubr.bf16.gmra.mrb[0].mxu0 %v1195
        %v1342 = vpop.f32.mrb[0].mxu0
        %v1343 = vadd.f32 0.0, %v1342
        %v1344 = vpop.f32.mrb[0].mxu0
        %v1345 = vpop.f32.mrb[0].mxu0
        %v1346 = vadd.f32 0.0, %v1345
        %v1347 = vpop.f32.mrb[0].mxu0
        %1348 = vdwg.mxu0
        %v1365 = vunpack.c.l.b16 %v920
        %v1366 = vunpack.c.l.b16 %v921
        %v1367 = vunpack.c.l.b16 %v922
        %v1368 = vunpack.c.l.b16 %v923
        %v1369 = vunpack.c.l.b16 %v924
        %v1370 = vunpack.c.l.b16 %v925
        %v1371 = vunpack.c.l.b16 %v926
        %v1372 = vunpack.c.l.b16 %v927
        %v1373 = vunpack.c.l.b16 %v928
        %v1374 = vunpack.c.l.b16 %v929
        %v1375 = vunpack.c.l.b16 %v930
        %v1376 = vunpack.c.l.b16 %v931
        %v1377 = vunpack.c.l.b16 %v932
        %v1378 = vunpack.c.l.b16 %v933
        %v1379 = vunpack.c.l.b16 %v934
        %v1380 = vunpack.c.l.b16 %v935
        %v1381 = vpack.c.b16 %v1366, %v1365
        %v1382 = vpack.c.b16 %v1368, %v1367
        %v1383 = vpack.c.b16 %v1370, %v1369
        %v1384 = vpack.c.b16 %v1372, %v1371
        %v1385 = vpack.c.b16 %v1374, %v1373
        %v1386 = vpack.c.b16 %v1376, %v1375
        %v1387 = vpack.c.b16 %v1378, %v1377
        %v1388 = vpack.c.b16 %v1380, %v1379
        %v1413 = vunpack.c.l.b16 %v936
        %v1414 = vunpack.c.l.b16 %v937
        %v1415 = vunpack.c.l.b16 %v938
        %v1416 = vunpack.c.l.b16 %v939
        %v1417 = vunpack.c.l.b16 %v940
        %v1418 = vunpack.c.l.b16 %v941
        %v1419 = vunpack.c.l.b16 %v942
        %v1420 = vunpack.c.l.b16 %v943
        %v1421 = vunpack.c.l.b16 %v944
        %v1422 = vunpack.c.l.b16 %v945
        %v1423 = vunpack.c.l.b16 %v946
        %v1424 = vunpack.c.l.b16 %v947
        %v1425 = vunpack.c.l.b16 %v948
        %v1426 = vunpack.c.l.b16 %v949
        %v1427 = vunpack.c.l.b16 %v950
        %v1428 = vunpack.c.l.b16 %v951
        %v1429 = vpack.c.b16 %v1414, %v1413
        %v1430 = vpack.c.b16 %v1416, %v1415
        %v1431 = vpack.c.b16 %v1418, %v1417
        %v1432 = vpack.c.b16 %v1420, %v1419
        %v1433 = vpack.c.b16 %v1422, %v1421
        %v1434 = vpack.c.b16 %v1424, %v1423
        %v1435 = vpack.c.b16 %v1426, %v1425
        %v1436 = vpack.c.b16 %v1428, %v1427
        %1445 = vmatprep.subr.bf16.mxu0 0
        %1446 = vmatpush1.bf16.msra.mxu0 %v1429
        %1447 = vmatprep.subr.bf16.mxu0 0
        %1448 = vmatpush1.bf16.msra.mxu0 %v1430
        %1449 = vmatprep.subr.bf16.mxu0 0
        %1450 = vmatpush1.bf16.msra.mxu0 %v1431
        %1451 = vmatprep.subr.bf16.mxu0 0
        %1452 = vmatpush1.bf16.msra.mxu0 %v1432
        %1453 = vmatprep.subr.bf16.mxu0 0
        %1454 = vmatpush1.bf16.msra.mxu0 %v1433
        %1455 = vmatprep.subr.bf16.mxu0 0
        %1456 = vmatpush1.bf16.msra.mxu0 %v1434
        %1457 = vmatprep.subr.bf16.mxu0 0
        %1458 = vmatpush1.bf16.msra.mxu0 %v1435
        %1459 = vmatprep.subr.bf16.mxu0 0
        %1460 = vmatpush1.bf16.msra.mxu0 %v1436
        %1461 = vmatprep.subr.bf16.mxu0 0
        %1462 = vmatpush1.bf16.msra.mxu0 0
        %1463 = vmatprep.subr.bf16.mxu0 0
        %1464 = vmatpush1.bf16.msra.mxu0 0
        %1465 = vmatprep.subr.bf16.mxu0 0
        %1466 = vmatpush1.bf16.msra.mxu0 0
        %1467 = vmatprep.subr.bf16.mxu0 0
        %1468 = vmatpush1.bf16.msra.mxu0 0
        %1469 = vmatprep.subr.bf16.mxu0 0
        %1470 = vmatpush1.bf16.msra.mxu0 0
        %1471 = vmatprep.subr.bf16.mxu0 0
        %1472 = vmatpush1.bf16.msra.mxu0 0
        %1473 = vmatprep.subr.bf16.mxu0 0
        %1474 = vmatpush1.bf16.msra.mxu0 0
        %1475 = vmatprep.subr.bf16.mxu0 0
        %1476 = vmatpush1.bf16.msra.mxu0 0
        %1477 = vmatprep.mubr.bf16.mxu0 0
        %1478 = vmatmul.mubr.bf16.gmra.mrb[0].mxu0 %v1381
        %v1479 = vpop.f32.mrb[0].mxu0
        %v1480 = vadd.f32 %v1287, %v1479
        %v1481 = vpop.f32.mrb[0].mxu0
        %v1482 = vpop.f32.mrb[0].mxu0
        %v1483 = vadd.f32 %v1290, %v1482
        %v1484 = vpop.f32.mrb[0].mxu0
        %1485 = vmatprep.mubr.bf16.mxu0 0
        %1486 = vmatmul.mubr.bf16.gmra.mrb[0].mxu0 %v1382
        %v1487 = vpop.f32.mrb[0].mxu0
        %v1488 = vadd.f32 %v1295, %v1487
        %v1489 = vpop.f32.mrb[0].mxu0
        %v1490 = vpop.f32.mrb[0].mxu0
        %v1491 = vadd.f32 %v1298, %v1490
        %v1492 = vpop.f32.mrb[0].mxu0
        %1493 = vmatprep.mubr.bf16.mxu0 0
        %1494 = vmatmul.mubr.bf16.gmra.mrb[0].mxu0 %v1383
        %v1495 = vpop.f32.mrb[0].mxu0
        %v1496 = vadd.f32 %v1303, %v1495
        %v1497 = vpop.f32.mrb[0].mxu0
        %v1498 = vpop.f32.mrb[0].mxu0
        %v1499 = vadd.f32 %v1306, %v1498
        %v1500 = vpop.f32.mrb[0].mxu0
        %1501 = vmatprep.mubr.bf16.mxu0 0
        %1502 = vmatmul.mubr.bf16.gmra.mrb[0].mxu0 %v1384
        %v1503 = vpop.f32.mrb[0].mxu0
        %v1504 = vadd.f32 %v1311, %v1503
        %v1505 = vpop.f32.mrb[0].mxu0
        %v1506 = vpop.f32.mrb[0].mxu0
        %v1507 = vadd.f32 %v1314, %v1506
        %v1508 = vpop.f32.mrb[0].mxu0
        %1509 = vmatprep.mubr.bf16.mxu0 0
        %1510 = vmatmul.mubr.bf16.gmra.mrb[0].mxu0 %v1385
        %v1511 = vpop.f32.mrb[0].mxu0
        %v1512 = vadd.f32 %v1319, %v1511
        %v1513 = vpop.f32.mrb[0].mxu0
        %v1514 = vpop.f32.mrb[0].mxu0
        %v1515 = vadd.f32 %v1322, %v1514
        %v1516 = vpop.f32.mrb[0].mxu0
        %1517 = vmatprep.mubr.bf16.mxu0 0
        %1518 = vmatmul.mubr.bf16.gmra.mrb[0].mxu0 %v1386
        %v1519 = vpop.f32.mrb[0].mxu0
        %v1520 = vadd.f32 %v1327, %v1519
        %v1521 = vpop.f32.mrb[0].mxu0
        %v1522 = vpop.f32.mrb[0].mxu0
        %v1523 = vadd.f32 %v1330, %v1522
        %v1524 = vpop.f32.mrb[0].mxu0
        %1525 = vmatprep.mubr.bf16.mxu0 0
        %1526 = vmatmul.mubr.bf16.gmra.mrb[0].mxu0 %v1387
        %v1527 = vpop.f32.mrb[0].mxu0
        %v1528 = vadd.f32 %v1335, %v1527
        %v1529 = vpop.f32.mrb[0].mxu0
        %v1530 = vpop.f32.mrb[0].mxu0
        %v1531 = vadd.f32 %v1338, %v1530
        %v1532 = vpop.f32.mrb[0].mxu0
        %1533 = vmatprep.mubr.bf16.mxu0 0
        %1534 = vmatmul.mubr.bf16.gmra.mrb[0].mxu0 %v1388
        %v1535 = vpop.f32.mrb[0].mxu0
        %v1536 = vadd.f32 %v1343, %v1535
        %v1537 = vpop.f32.mrb[0].mxu0
        %v1538 = vpop.f32.mrb[0].mxu0
        %v1539 = vadd.f32 %v1346, %v1538
        %v1540 = vpop.f32.mrb[0].mxu0
        %1541 = vdwg.mxu0
        %v1542 = vld [vmem:[#allocation2] sm:$0xe]
        %v1543 = vld [vmem:[#allocation2 + $0xc] sm:$0xe]
        %v1544 = vld [vmem:[#allocation2 + $0x18] sm:$0xe]
        %v1545 = vld [vmem:[#allocation2 + $0x24] sm:$0xe]
        %v1546 = vld [vmem:[#allocation2 + $0x30] sm:$0xe]
        %v1547 = vld [vmem:[#allocation2 + $0x3c] sm:$0xe]
        %v1548 = vld [vmem:[#allocation2 + $0x48] sm:$0xe]
        %v1549 = vld [vmem:[#allocation2 + $0x54] sm:$0xe]
        %vm1566 = vcmask 1042432
        %vm1567 = vcmask 1046532
        %vm1568 = vmor %vm1566, %vm1567
        %v1569 = vrot.slane %v1542, 5
        %v1570 = vrot.slane %v1569, 4
        %v1571 = vrot.slane %v921, 5
        %v1572 = vsel %vm1568, %v1570, %v1571
        %v1573 = vrot.slane %v1571, 4
        %v1574 = vrot.slane %v952, 5
        %v1575 = vsel %vm1568, %v1573, %v1574
        %v1576 = vrot.slane %v1543, 5
        %v1577 = vrot.slane %v1576, 4
        %v1578 = vrot.slane %v923, 5
        %v1579 = vsel %vm1568, %v1577, %v1578
        %v1580 = vrot.slane %v1578, 4
        %v1581 = vrot.slane %v953, 5
        %v1582 = vsel %vm1568, %v1580, %v1581
        %v1583 = vrot.slane %v1544, 5
        %v1584 = vrot.slane %v1583, 4
        %v1585 = vrot.slane %v925, 5
        %v1586 = vsel %vm1568, %v1584, %v1585
        %v1587 = vrot.slane %v1585, 4
        %v1588 = vrot.slane %v954, 5
        %v1589 = vsel %vm1568, %v1587, %v1588
        %v1590 = vrot.slane %v1545, 5
        %v1591 = vrot.slane %v1590, 4
        %v1592 = vrot.slane %v927, 5
        %v1593 = vsel %vm1568, %v1591, %v1592
        %v1594 = vrot.slane %v1592, 4
        %v1595 = vrot.slane %v955, 5
        %v1596 = vsel %vm1568, %v1594, %v1595
        %v1597 = vrot.slane %v1546, 5
        %v1598 = vrot.slane %v1597, 4
        %v1599 = vrot.slane %v929, 5
        %v1600 = vsel %vm1568, %v1598, %v1599
        %v1601 = vrot.slane %v1599, 4
        %v1602 = vrot.slane %v956, 5
        %v1603 = vsel %vm1568, %v1601, %v1602
        %v1604 = vrot.slane %v1547, 5
        %v1605 = vrot.slane %v1604, 4
        %v1606 = vrot.slane %v931, 5
        %v1607 = vsel %vm1568, %v1605, %v1606
        %v1608 = vrot.slane %v1606, 4
        %v1609 = vrot.slane %v957, 5
        %v1610 = vsel %vm1568, %v1608, %v1609
        %v1611 = vrot.slane %v1548, 5
        %v1612 = vrot.slane %v1611, 4
        %v1613 = vrot.slane %v933, 5
        %v1614 = vsel %vm1568, %v1612, %v1613
        %v1615 = vrot.slane %v1613, 4
        %v1616 = vrot.slane %v958, 5
        %v1617 = vsel %vm1568, %v1615, %v1616
        %v1618 = vrot.slane %v1549, 5
        %v1619 = vrot.slane %v1618, 4
        %v1620 = vrot.slane %v935, 5
        %v1621 = vsel %vm1568, %v1619, %v1620
        %v1622 = vrot.slane %v1620, 4
        %v1623 = vrot.slane %v959, 5
        %v1624 = vsel %vm1568, %v1622, %v1623
        %s1625 = scalar_lea.vmem [#allocation9], 128
        %v1626 = vld [vmem:[%s1625] sm:$0xf]
        %v1627 = vld [vmem:[%s1625 + $0x4] sm:$0xf]
        %v1628 = vld [vmem:[%s1625 + $0x8] sm:$0xf]
        %v1629 = vld [vmem:[%s1625 + $0xc] sm:$0xf]
        %v1630 = vld [vmem:[%s1625 + $0x10] sm:$0xf]
        %v1631 = vld [vmem:[%s1625 + $0x14] sm:$0xf]
        %v1632 = vld [vmem:[%s1625 + $0x18] sm:$0xf]
        %v1633 = vld [vmem:[%s1625 + $0x1c] sm:$0xf]
        %v1634 = vld [vmem:[%s1625 + $0x20] sm:$0xf]
        %v1635 = vld [vmem:[%s1625 + $0x24] sm:$0xf]
        %v1636 = vld [vmem:[%s1625 + $0x28] sm:$0xf]
        %v1637 = vld [vmem:[%s1625 + $0x2c] sm:$0xf]
        %v1638 = vld [vmem:[%s1625 + $0x30] sm:$0xf]
        %v1639 = vld [vmem:[%s1625 + $0x34] sm:$0xf]
        %v1640 = vld [vmem:[%s1625 + $0x38] sm:$0xf]
        %v1641 = vld [vmem:[%s1625 + $0x3c] sm:$0xf]
        %v1642 = vunpack.c.l.b16 %v1572
        %v1643 = vunpack.c.l.b16 %v1575
        %v1644 = vunpack.c.l.b16 %v1579
        %v1645 = vunpack.c.l.b16 %v1582
        %v1646 = vunpack.c.l.b16 %v1586
        %v1647 = vunpack.c.l.b16 %v1589
        %v1648 = vunpack.c.l.b16 %v1593
        %v1649 = vunpack.c.l.b16 %v1596
        %v1650 = vunpack.c.l.b16 %v1600
        %v1651 = vunpack.c.l.b16 %v1603
        %v1652 = vunpack.c.l.b16 %v1607
        %v1653 = vunpack.c.l.b16 %v1610
        %v1654 = vunpack.c.l.b16 %v1614
        %v1655 = vunpack.c.l.b16 %v1617
        %v1656 = vunpack.c.l.b16 %v1621
        %v1657 = vunpack.c.l.b16 %v1624
        %v1658 = vpack.c.b16 %v1643, %v1642
        %v1659 = vpack.c.b16 %v1645, %v1644
        %v1660 = vpack.c.b16 %v1647, %v1646
        %v1661 = vpack.c.b16 %v1649, %v1648
        %v1662 = vpack.c.b16 %v1651, %v1650
        %v1663 = vpack.c.b16 %v1653, %v1652
        %v1664 = vpack.c.b16 %v1655, %v1654
        %v1665 = vpack.c.b16 %v1657, %v1656
        %v1690 = vunpack.c.l.b16 %v1626
        %v1691 = vunpack.c.l.b16 %v1627
        %v1692 = vunpack.c.l.b16 %v1628
        %v1693 = vunpack.c.l.b16 %v1629
        %v1694 = vunpack.c.l.b16 %v1630
        %v1695 = vunpack.c.l.b16 %v1631
        %v1696 = vunpack.c.l.b16 %v1632
        %v1697 = vunpack.c.l.b16 %v1633
        %v1698 = vunpack.c.l.b16 %v1634
        %v1699 = vunpack.c.l.b16 %v1635
        %v1700 = vunpack.c.l.b16 %v1636
        %v1701 = vunpack.c.l.b16 %v1637
        %v1702 = vunpack.c.l.b16 %v1638
        %v1703 = vunpack.c.l.b16 %v1639
        %v1704 = vunpack.c.l.b16 %v1640
        %v1705 = vunpack.c.l.b16 %v1641
        %v1706 = vpack.c.b16 %v1691, %v1690
        %v1707 = vpack.c.b16 %v1693, %v1692
        %v1708 = vpack.c.b16 %v1695, %v1694
        %v1709 = vpack.c.b16 %v1697, %v1696
        %v1710 = vpack.c.b16 %v1699, %v1698
        %v1711 = vpack.c.b16 %v1701, %v1700
        %v1712 = vpack.c.b16 %v1703, %v1702
        %v1713 = vpack.c.b16 %v1705, %v1704
        %1722 = vmatprep.subr.bf16.mxu0 0
        %1723 = vmatpush1.bf16.msra.mxu0 %v1706
        %1724 = vmatprep.subr.bf16.mxu0 0
        %1725 = vmatpush1.bf16.msra.mxu0 %v1707
        %1726 = vmatprep.subr.bf16.mxu0 0
        %1727 = vmatpush1.bf16.msra.mxu0 %v1708
        %1728 = vmatprep.subr.bf16.mxu0 0
        %1729 = vmatpush1.bf16.msra.mxu0 %v1709
        %1730 = vmatprep.subr.bf16.mxu0 0
        %1731 = vmatpush1.bf16.msra.mxu0 %v1710
        %1732 = vmatprep.subr.bf16.mxu0 0
        %1733 = vmatpush1.bf16.msra.mxu0 %v1711
        %1734 = vmatprep.subr.bf16.mxu0 0
        %1735 = vmatpush1.bf16.msra.mxu0 %v1712
        %1736 = vmatprep.subr.bf16.mxu0 0
        %1737 = vmatpush1.bf16.msra.mxu0 %v1713
        %1738 = vmatprep.subr.bf16.mxu0 0
        %1739 = vmatpush1.bf16.msra.mxu0 0
        %1740 = vmatprep.subr.bf16.mxu0 0
        %1741 = vmatpush1.bf16.msra.mxu0 0
        %1742 = vmatprep.subr.bf16.mxu0 0
        %1743 = vmatpush1.bf16.msra.mxu0 0
        %1744 = vmatprep.subr.bf16.mxu0 0
        %1745 = vmatpush1.bf16.msra.mxu0 0
        %1746 = vmatprep.subr.bf16.mxu0 0
        %1747 = vmatpush1.bf16.msra.mxu0 0
        %1748 = vmatprep.subr.bf16.mxu0 0
        %1749 = vmatpush1.bf16.msra.mxu0 0
        %1750 = vmatprep.subr.bf16.mxu0 0
        %1751 = vmatpush1.bf16.msra.mxu0 0
        %1752 = vmatprep.subr.bf16.mxu0 0
        %1753 = vmatpush1.bf16.msra.mxu0 0
        %1754 = vmatprep.mubr.bf16.mxu0 0
        %1755 = vmatmul.mubr.bf16.gmra.mrb[0].mxu0 %v1658
        %v1756 = vpop.f32.mrb[0].mxu0
        %v1757 = vadd.f32 0.0, %v1756
        %v1758 = vpop.f32.mrb[0].mxu0
        %v1759 = vpop.f32.mrb[0].mxu0
        %v1760 = vadd.f32 0.0, %v1759
        %v1761 = vpop.f32.mrb[0].mxu0
        %1762 = vmatprep.mubr.bf16.mxu0 0
        %1763 = vmatmul.mubr.bf16.gmra.mrb[0].mxu0 %v1659
        %v1764 = vpop.f32.mrb[0].mxu0
        %v1765 = vadd.f32 0.0, %v1764
        %v1766 = vpop.f32.mrb[0].mxu0
        %v1767 = vpop.f32.mrb[0].mxu0
        %v1768 = vadd.f32 0.0, %v1767
        %v1769 = vpop.f32.mrb[0].mxu0
        %1770 = vmatprep.mubr.bf16.mxu0 0
        %1771 = vmatmul.mubr.bf16.gmra.mrb[0].mxu0 %v1660
        %v1772 = vpop.f32.mrb[0].mxu0
        %v1773 = vadd.f32 0.0, %v1772
        %v1774 = vpop.f32.mrb[0].mxu0
        %v1775 = vpop.f32.mrb[0].mxu0
        %v1776 = vadd.f32 0.0, %v1775
        %v1777 = vpop.f32.mrb[0].mxu0
        %1778 = vmatprep.mubr.bf16.mxu0 0
        %1779 = vmatmul.mubr.bf16.gmra.mrb[0].mxu0 %v1661
        %v1780 = vpop.f32.mrb[0].mxu0
        %v1781 = vadd.f32 0.0, %v1780
        %v1782 = vpop.f32.mrb[0].mxu0
        %v1783 = vpop.f32.mrb[0].mxu0
        %v1784 = vadd.f32 0.0, %v1783
        %v1785 = vpop.f32.mrb[0].mxu0
        %1786 = vmatprep.mubr.bf16.mxu0 0
        %1787 = vmatmul.mubr.bf16.gmra.mrb[0].mxu0 %v1662
        %v1788 = vpop.f32.mrb[0].mxu0
        %v1789 = vadd.f32 0.0, %v1788
        %v1790 = vpop.f32.mrb[0].mxu0
        %v1791 = vpop.f32.mrb[0].mxu0
        %v1792 = vadd.f32 0.0, %v1791
        %v1793 = vpop.f32.mrb[0].mxu0
        %1794 = vmatprep.mubr.bf16.mxu0 0
        %1795 = vmatmul.mubr.bf16.gmra.mrb[0].mxu0 %v1663
        %v1796 = vpop.f32.mrb[0].mxu0
        %v1797 = vadd.f32 0.0, %v1796
        %v1798 = vpop.f32.mrb[0].mxu0
        %v1799 = vpop.f32.mrb[0].mxu0
        %v1800 = vadd.f32 0.0, %v1799
        %v1801 = vpop.f32.mrb[0].mxu0
        %1802 = vmatprep.mubr.bf16.mxu0 0
        %1803 = vmatmul.mubr.bf16.gmra.mrb[0].mxu0 %v1664
        %v1804 = vpop.f32.mrb[0].mxu0
        %v1805 = vadd.f32 0.0, %v1804
        %v1806 = vpop.f32.mrb[0].mxu0
        %v1807 = vpop.f32.mrb[0].mxu0
        %v1808 = vadd.f32 0.0, %v1807
        %v1809 = vpop.f32.mrb[0].mxu0
        %1810 = vmatprep.mubr.bf16.mxu0 0
        %1811 = vmatmul.mubr.bf16.gmra.mrb[0].mxu0 %v1665
        %v1812 = vpop.f32.mrb[0].mxu0
        %v1813 = vadd.f32 0.0, %v1812
        %v1814 = vpop.f32.mrb[0].mxu0
        %v1815 = vpop.f32.mrb[0].mxu0
        %v1816 = vadd.f32 0.0, %v1815
        %v1817 = vpop.f32.mrb[0].mxu0
        %1818 = vdwg.mxu0
        %v1819 = vadd.f32 %v1480, %v1757
        %v1820 = vadd.f32 %v1483, %v1760
        %v1821 = vadd.f32 %v1488, %v1765
        %v1822 = vadd.f32 %v1491, %v1768
        %v1823 = vadd.f32 %v1496, %v1773
        %v1824 = vadd.f32 %v1499, %v1776
        %v1825 = vadd.f32 %v1504, %v1781
        %v1826 = vadd.f32 %v1507, %v1784
        %v1827 = vadd.f32 %v1512, %v1789
        %v1828 = vadd.f32 %v1515, %v1792
        %v1829 = vadd.f32 %v1520, %v1797
        %v1830 = vadd.f32 %v1523, %v1800
        %v1831 = vadd.f32 %v1528, %v1805
        %v1832 = vadd.f32 %v1531, %v1808
        %v1833 = vadd.f32 %v1536, %v1813
        %v1834 = vadd.f32 %v1539, %v1816
        %v1835 = vld [vmem:[%s863] sm:$0xf]
        %v1836 = vld [vmem:[%s863 + $0x4] sm:$0xf]
        %v1837 = vld [vmem:[%s863 + $0xc] sm:$0xf]
        %v1838 = vld [vmem:[%s863 + $0x10] sm:$0xf]
        %v1839 = vld [vmem:[%s863 + $0x18] sm:$0xf]
        %v1840 = vld [vmem:[%s863 + $0x1c] sm:$0xf]
        %v1841 = vld [vmem:[%s863 + $0x24] sm:$0xf]
        %v1842 = vld [vmem:[%s863 + $0x28] sm:$0xf]
        %v1843 = vld [vmem:[%s863 + $0x30] sm:$0xf]
        %v1844 = vld [vmem:[%s863 + $0x34] sm:$0xf]
        %v1845 = vld [vmem:[%s863 + $0x3c] sm:$0xf]
        %v1846 = vld [vmem:[%s863 + $0x40] sm:$0xf]
        %v1847 = vld [vmem:[%s863 + $0x48] sm:$0xf]
        %v1848 = vld [vmem:[%s863 + $0x4c] sm:$0xf]
        %v1849 = vld [vmem:[%s863 + $0x54] sm:$0xf]
        %v1850 = vld [vmem:[%s863 + $0x58] sm:$0xf]
        %s1851 = scalar_lea.vmem [#allocation9], 192
        %v1852 = vld [vmem:[%s1851] sm:$0xf]
        %v1853 = vld [vmem:[%s1851 + $0x4] sm:$0xf]
        %v1854 = vld [vmem:[%s1851 + $0x8] sm:$0xf]
        %v1855 = vld [vmem:[%s1851 + $0xc] sm:$0xf]
        %v1856 = vld [vmem:[%s1851 + $0x10] sm:$0xf]
        %v1857 = vld [vmem:[%s1851 + $0x14] sm:$0xf]
        %v1858 = vld [vmem:[%s1851 + $0x18] sm:$0xf]
        %v1859 = vld [vmem:[%s1851 + $0x1c] sm:$0xf]
        %v1860 = vld [vmem:[%s1851 + $0x20] sm:$0xf]
        %v1861 = vld [vmem:[%s1851 + $0x24] sm:$0xf]
        %v1862 = vld [vmem:[%s1851 + $0x28] sm:$0xf]
        %v1863 = vld [vmem:[%s1851 + $0x2c] sm:$0xf]
        %v1864 = vld [vmem:[%s1851 + $0x30] sm:$0xf]
        %v1865 = vld [vmem:[%s1851 + $0x34] sm:$0xf]
        %v1866 = vld [vmem:[%s1851 + $0x38] sm:$0xf]
        %v1867 = vld [vmem:[%s1851 + $0x3c] sm:$0xf]
        %v1884 = vunpack.c.l.b16 %v1835
        %v1885 = vunpack.c.l.b16 %v1836
        %v1886 = vunpack.c.l.b16 %v1837
        %v1887 = vunpack.c.l.b16 %v1838
        %v1888 = vunpack.c.l.b16 %v1839
        %v1889 = vunpack.c.l.b16 %v1840
        %v1890 = vunpack.c.l.b16 %v1841
        %v1891 = vunpack.c.l.b16 %v1842
        %v1892 = vunpack.c.l.b16 %v1843
        %v1893 = vunpack.c.l.b16 %v1844
        %v1894 = vunpack.c.l.b16 %v1845
        %v1895 = vunpack.c.l.b16 %v1846
        %v1896 = vunpack.c.l.b16 %v1847
        %v1897 = vunpack.c.l.b16 %v1848
        %v1898 = vunpack.c.l.b16 %v1849
        %v1899 = vunpack.c.l.b16 %v1850
        %v1900 = vpack.c.b16 %v1885, %v1884
        %v1901 = vpack.c.b16 %v1887, %v1886
        %v1902 = vpack.c.b16 %v1889, %v1888
        %v1903 = vpack.c.b16 %v1891, %v1890
        %v1904 = vpack.c.b16 %v1893, %v1892
        %v1905 = vpack.c.b16 %v1895, %v1894
        %v1906 = vpack.c.b16 %v1897, %v1896
        %v1907 = vpack.c.b16 %v1899, %v1898
        %v1932 = vunpack.c.l.b16 %v1852
        %v1933 = vunpack.c.l.b16 %v1853
        %v1934 = vunpack.c.l.b16 %v1854
        %v1935 = vunpack.c.l.b16 %v1855
        %v1936 = vunpack.c.l.b16 %v1856
        %v1937 = vunpack.c.l.b16 %v1857
        %v1938 = vunpack.c.l.b16 %v1858
        %v1939 = vunpack.c.l.b16 %v1859
        %v1940 = vunpack.c.l.b16 %v1860
        %v1941 = vunpack.c.l.b16 %v1861
        %v1942 = vunpack.c.l.b16 %v1862
        %v1943 = vunpack.c.l.b16 %v1863
        %v1944 = vunpack.c.l.b16 %v1864
        %v1945 = vunpack.c.l.b16 %v1865
        %v1946 = vunpack.c.l.b16 %v1866
        %v1947 = vunpack.c.l.b16 %v1867
        %v1948 = vpack.c.b16 %v1933, %v1932
        %v1949 = vpack.c.b16 %v1935, %v1934
        %v1950 = vpack.c.b16 %v1937, %v1936
        %v1951 = vpack.c.b16 %v1939, %v1938
        %v1952 = vpack.c.b16 %v1941, %v1940
        %v1953 = vpack.c.b16 %v1943, %v1942
        %v1954 = vpack.c.b16 %v1945, %v1944
        %v1955 = vpack.c.b16 %v1947, %v1946
        %1964 = vmatprep.subr.bf16.mxu0 0
        %1965 = vmatpush1.bf16.msra.mxu0 %v1948
        %1966 = vmatprep.subr.bf16.mxu0 0
        %1967 = vmatpush1.bf16.msra.mxu0 %v1949
        %1968 = vmatprep.subr.bf16.mxu0 0
        %1969 = vmatpush1.bf16.msra.mxu0 %v1950
        %1970 = vmatprep.subr.bf16.mxu0 0
        %1971 = vmatpush1.bf16.msra.mxu0 %v1951
        %1972 = vmatprep.subr.bf16.mxu0 0
        %1973 = vmatpush1.bf16.msra.mxu0 %v1952
        %1974 = vmatprep.subr.bf16.mxu0 0
        %1975 = vmatpush1.bf16.msra.mxu0 %v1953
        %1976 = vmatprep.subr.bf16.mxu0 0
        %1977 = vmatpush1.bf16.msra.mxu0 %v1954
        %1978 = vmatprep.subr.bf16.mxu0 0
        %1979 = vmatpush1.bf16.msra.mxu0 %v1955
        %1980 = vmatprep.subr.bf16.mxu0 0
        %1981 = vmatpush1.bf16.msra.mxu0 0
        %1982 = vmatprep.subr.bf16.mxu0 0
        %1983 = vmatpush1.bf16.msra.mxu0 0
        %1984 = vmatprep.subr.bf16.mxu0 0
        %1985 = vmatpush1.bf16.msra.mxu0 0
        %1986 = vmatprep.subr.bf16.mxu0 0
        %1987 = vmatpush1.bf16.msra.mxu0 0
        %1988 = vmatprep.subr.bf16.mxu0 0
        %1989 = vmatpush1.bf16.msra.mxu0 0
        %1990 = vmatprep.subr.bf16.mxu0 0
        %1991 = vmatpush1.bf16.msra.mxu0 0
        %1992 = vmatprep.subr.bf16.mxu0 0
        %1993 = vmatpush1.bf16.msra.mxu0 0
        %1994 = vmatprep.subr.bf16.mxu0 0
        %1995 = vmatpush1.bf16.msra.mxu0 0
        %1996 = vmatprep.mubr.bf16.mxu0 0
        %1997 = vmatmul.mubr.bf16.gmra.mrb[0].mxu0 %v1900
        %v1998 = vpop.f32.mrb[0].mxu0
        %v1999 = vadd.f32 0.0, %v1998
        %v2000 = vpop.f32.mrb[0].mxu0
        %v2001 = vpop.f32.mrb[0].mxu0
        %v2002 = vadd.f32 0.0, %v2001
        %v2003 = vpop.f32.mrb[0].mxu0
        %2004 = vmatprep.mubr.bf16.mxu0 0
        %2005 = vmatmul.mubr.bf16.gmra.mrb[0].mxu0 %v1901
        %v2006 = vpop.f32.mrb[0].mxu0
        %v2007 = vadd.f32 0.0, %v2006
        %v2008 = vpop.f32.mrb[0].mxu0
        %v2009 = vpop.f32.mrb[0].mxu0
        %v2010 = vadd.f32 0.0, %v2009
        %v2011 = vpop.f32.mrb[0].mxu0
        %2012 = vmatprep.mubr.bf16.mxu0 0
        %2013 = vmatmul.mubr.bf16.gmra.mrb[0].mxu0 %v1902
        %v2014 = vpop.f32.mrb[0].mxu0
        %v2015 = vadd.f32 0.0, %v2014
        %v2016 = vpop.f32.mrb[0].mxu0
        %v2017 = vpop.f32.mrb[0].mxu0
        %v2018 = vadd.f32 0.0, %v2017
        %v2019 = vpop.f32.mrb[0].mxu0
        %2020 = vmatprep.mubr.bf16.mxu0 0
        %2021 = vmatmul.mubr.bf16.gmra.mrb[0].mxu0 %v1903
        %v2022 = vpop.f32.mrb[0].mxu0
        %v2023 = vadd.f32 0.0, %v2022
        %v2024 = vpop.f32.mrb[0].mxu0
        %v2025 = vpop.f32.mrb[0].mxu0
        %v2026 = vadd.f32 0.0, %v2025
        %v2027 = vpop.f32.mrb[0].mxu0
        %2028 = vmatprep.mubr.bf16.mxu0 0
        %2029 = vmatmul.mubr.bf16.gmra.mrb[0].mxu0 %v1904
        %v2030 = vpop.f32.mrb[0].mxu0
        %v2031 = vadd.f32 0.0, %v2030
        %v2032 = vpop.f32.mrb[0].mxu0
        %v2033 = vpop.f32.mrb[0].mxu0
        %v2034 = vadd.f32 0.0, %v2033
        %v2035 = vpop.f32.mrb[0].mxu0
        %2036 = vmatprep.mubr.bf16.mxu0 0
        %2037 = vmatmul.mubr.bf16.gmra.mrb[0].mxu0 %v1905
        %v2038 = vpop.f32.mrb[0].mxu0
        %v2039 = vadd.f32 0.0, %v2038
        %v2040 = vpop.f32.mrb[0].mxu0
        %v2041 = vpop.f32.mrb[0].mxu0
        %v2042 = vadd.f32 0.0, %v2041
        %v2043 = vpop.f32.mrb[0].mxu0
        %2044 = vmatprep.mubr.bf16.mxu0 0
        %2045 = vmatmul.mubr.bf16.gmra.mrb[0].mxu0 %v1906
        %v2046 = vpop.f32.mrb[0].mxu0
        %v2047 = vadd.f32 0.0, %v2046
        %v2048 = vpop.f32.mrb[0].mxu0
        %v2049 = vpop.f32.mrb[0].mxu0
        %v2050 = vadd.f32 0.0, %v2049
        %v2051 = vpop.f32.mrb[0].mxu0
        %2052 = vmatprep.mubr.bf16.mxu0 0
        %2053 = vmatmul.mubr.bf16.gmra.mrb[0].mxu0 %v1907
        %v2054 = vpop.f32.mrb[0].mxu0
        %v2055 = vadd.f32 0.0, %v2054
        %v2056 = vpop.f32.mrb[0].mxu0
        %v2057 = vpop.f32.mrb[0].mxu0
        %v2058 = vadd.f32 0.0, %v2057
        %v2059 = vpop.f32.mrb[0].mxu0
        %2060 = vdwg.mxu0
        %v2061 = vadd.f32 %v1819, %v1999
        %v2062 = vadd.f32 %v1820, %v2002
        %v2063 = vadd.f32 %v1821, %v2007
        %v2064 = vadd.f32 %v1822, %v2010
        %v2065 = vadd.f32 %v1823, %v2015
        %v2066 = vadd.f32 %v1824, %v2018
        %v2067 = vadd.f32 %v1825, %v2023
        %v2068 = vadd.f32 %v1826, %v2026
        %v2069 = vadd.f32 %v1827, %v2031
        %v2070 = vadd.f32 %v1828, %v2034
        %v2071 = vadd.f32 %v1829, %v2039
        %v2072 = vadd.f32 %v1830, %v2042
        %v2073 = vadd.f32 %v1831, %v2047
        %v2074 = vadd.f32 %v1832, %v2050
        %v2075 = vadd.f32 %v1833, %v2055
        %v2076 = vadd.f32 %v1834, %v2058
        %v2077 = vld [vmem:[%s863] sm:$0xf]
        %v2078 = vld [vmem:[%s863 + $0x4] sm:$0xf]
        %v2079 = vld [vmem:[%s863 + $0x8] sm:$0x1]
        %v2080 = vld [vmem:[%s863 + $0xc] sm:$0xf]
        %v2081 = vld [vmem:[%s863 + $0x10] sm:$0xf]
        %v2082 = vld [vmem:[%s863 + $0x14] sm:$0x1]
        %v2083 = vld [vmem:[%s863 + $0x18] sm:$0xf]
        %v2084 = vld [vmem:[%s863 + $0x1c] sm:$0xf]
        %v2085 = vld [vmem:[%s863 + $0x20] sm:$0x1]
        %v2086 = vld [vmem:[%s863 + $0x24] sm:$0xf]
        %v2087 = vld [vmem:[%s863 + $0x28] sm:$0xf]
        %v2088 = vld [vmem:[%s863 + $0x2c] sm:$0x1]
        %v2089 = vld [vmem:[%s863 + $0x30] sm:$0xf]
        %v2090 = vld [vmem:[%s863 + $0x34] sm:$0xf]
        %v2091 = vld [vmem:[%s863 + $0x38] sm:$0x1]
        %v2092 = vld [vmem:[%s863 + $0x3c] sm:$0xf]
        %v2093 = vld [vmem:[%s863 + $0x40] sm:$0xf]
        %v2094 = vld [vmem:[%s863 + $0x44] sm:$0x1]
        %v2095 = vld [vmem:[%s863 + $0x48] sm:$0xf]
        %v2096 = vld [vmem:[%s863 + $0x4c] sm:$0xf]
        %v2097 = vld [vmem:[%s863 + $0x50] sm:$0x1]
        %v2098 = vld [vmem:[%s863 + $0x54] sm:$0xf]
        %v2099 = vld [vmem:[%s863 + $0x58] sm:$0xf]
        %v2100 = vld [vmem:[%s863 + $0x5c] sm:$0x1]
        %v2102 = vshrl.u32 %v2077, 16
        %v2104 = vrot.slane %v2102, 4
        %v2105 = vshll.u32 %v2077, 16
        %v2107 = vrot.slane %v2105, 5
        %v2108 = vor.u32 %v2104, %v2107
        %v2109 = vrot.slane %v2108, 4
        %v2111 = vshll.u32 %v2078, 16
        %v2113 = vrot.slane %v2111, 5
        %v2114 = vsel %vm962, %v2109, %v2113
        %v2115 = vshrl.u32 %v2078, 16
        %v2117 = vrot.slane %v2115, 4
        %v2118 = vor.u32 %v2117, %v2113
        %v2119 = vrot.slane %v2118, 4
        %v2121 = vshll.u32 %v2079, 16
        %v2123 = vrot.slane %v2121, 5
        %v2124 = vsel %vm962, %v2119, %v2123
        %v2126 = vshrl.u32 %v2080, 16
        %v2128 = vrot.slane %v2126, 4
        %v2129 = vshll.u32 %v2080, 16
        %v2131 = vrot.slane %v2129, 5
        %v2132 = vor.u32 %v2128, %v2131
        %v2133 = vrot.slane %v2132, 4
        %v2135 = vshll.u32 %v2081, 16
        %v2137 = vrot.slane %v2135, 5
        %v2138 = vsel %vm962, %v2133, %v2137
        %v2139 = vshrl.u32 %v2081, 16
        %v2141 = vrot.slane %v2139, 4
        %v2142 = vor.u32 %v2141, %v2137
        %v2143 = vrot.slane %v2142, 4
        %v2145 = vshll.u32 %v2082, 16
        %v2147 = vrot.slane %v2145, 5
        %v2148 = vsel %vm962, %v2143, %v2147
        %v2150 = vshrl.u32 %v2083, 16
        %v2152 = vrot.slane %v2150, 4
        %v2153 = vshll.u32 %v2083, 16
        %v2155 = vrot.slane %v2153, 5
        %v2156 = vor.u32 %v2152, %v2155
        %v2157 = vrot.slane %v2156, 4
        %v2159 = vshll.u32 %v2084, 16
        %v2161 = vrot.slane %v2159, 5
        %v2162 = vsel %vm962, %v2157, %v2161
        %v2163 = vshrl.u32 %v2084, 16
        %v2165 = vrot.slane %v2163, 4
        %v2166 = vor.u32 %v2165, %v2161
        %v2167 = vrot.slane %v2166, 4
        %v2169 = vshll.u32 %v2085, 16
        %v2171 = vrot.slane %v2169, 5
        %v2172 = vsel %vm962, %v2167, %v2171
        %v2174 = vshrl.u32 %v2086, 16
        %v2176 = vrot.slane %v2174, 4
        %v2177 = vshll.u32 %v2086, 16
        %v2179 = vrot.slane %v2177, 5
        %v2180 = vor.u32 %v2176, %v2179
        %v2181 = vrot.slane %v2180, 4
        %v2183 = vshll.u32 %v2087, 16
        %v2185 = vrot.slane %v2183, 5
        %v2186 = vsel %vm962, %v2181, %v2185
        %v2187 = vshrl.u32 %v2087, 16
        %v2189 = vrot.slane %v2187, 4
        %v2190 = vor.u32 %v2189, %v2185
        %v2191 = vrot.slane %v2190, 4
        %v2193 = vshll.u32 %v2088, 16
        %v2195 = vrot.slane %v2193, 5
        %v2196 = vsel %vm962, %v2191, %v2195
        %v2198 = vshrl.u32 %v2089, 16
        %v2200 = vrot.slane %v2198, 4
        %v2201 = vshll.u32 %v2089, 16
        %v2203 = vrot.slane %v2201, 5
        %v2204 = vor.u32 %v2200, %v2203
        %v2205 = vrot.slane %v2204, 4
        %v2207 = vshll.u32 %v2090, 16
        %v2209 = vrot.slane %v2207, 5
        %v2210 = vsel %vm962, %v2205, %v2209
        %v2211 = vshrl.u32 %v2090, 16
        %v2213 = vrot.slane %v2211, 4
        %v2214 = vor.u32 %v2213, %v2209
        %v2215 = vrot.slane %v2214, 4
        %v2217 = vshll.u32 %v2091, 16
        %v2219 = vrot.slane %v2217, 5
        %v2220 = vsel %vm962, %v2215, %v2219
        %v2222 = vshrl.u32 %v2092, 16
        %v2224 = vrot.slane %v2222, 4
        %v2225 = vshll.u32 %v2092, 16
        %v2227 = vrot.slane %v2225, 5
        %v2228 = vor.u32 %v2224, %v2227
        %v2229 = vrot.slane %v2228, 4
        %v2231 = vshll.u32 %v2093, 16
        %v2233 = vrot.slane %v2231, 5
        %v2234 = vsel %vm962, %v2229, %v2233
        %v2235 = vshrl.u32 %v2093, 16
        %v2237 = vrot.slane %v2235, 4
        %v2238 = vor.u32 %v2237, %v2233
        %v2239 = vrot.slane %v2238, 4
        %v2241 = vshll.u32 %v2094, 16
        %v2243 = vrot.slane %v2241, 5
        %v2244 = vsel %vm962, %v2239, %v2243
        %v2246 = vshrl.u32 %v2095, 16
        %v2248 = vrot.slane %v2246, 4
        %v2249 = vshll.u32 %v2095, 16
        %v2251 = vrot.slane %v2249, 5
        %v2252 = vor.u32 %v2248, %v2251
        %v2253 = vrot.slane %v2252, 4
        %v2255 = vshll.u32 %v2096, 16
        %v2257 = vrot.slane %v2255, 5
        %v2258 = vsel %vm962, %v2253, %v2257
        %v2259 = vshrl.u32 %v2096, 16
        %v2261 = vrot.slane %v2259, 4
        %v2262 = vor.u32 %v2261, %v2257
        %v2263 = vrot.slane %v2262, 4
        %v2265 = vshll.u32 %v2097, 16
        %v2267 = vrot.slane %v2265, 5
        %v2268 = vsel %vm962, %v2263, %v2267
        %v2270 = vshrl.u32 %v2098, 16
        %v2272 = vrot.slane %v2270, 4
        %v2273 = vshll.u32 %v2098, 16
        %v2275 = vrot.slane %v2273, 5
        %v2276 = vor.u32 %v2272, %v2275
        %v2277 = vrot.slane %v2276, 4
        %v2279 = vshll.u32 %v2099, 16
        %v2281 = vrot.slane %v2279, 5
        %v2282 = vsel %vm962, %v2277, %v2281
        %v2283 = vshrl.u32 %v2099, 16
        %v2285 = vrot.slane %v2283, 4
        %v2286 = vor.u32 %v2285, %v2281
        %v2287 = vrot.slane %v2286, 4
        %v2289 = vshll.u32 %v2100, 16
        %v2291 = vrot.slane %v2289, 5
        %v2292 = vsel %vm962, %v2287, %v2291
        %s2293 = scalar_lea.vmem [#allocation9], 256
        %v2294 = vld [vmem:[%s2293] sm:$0xf]
        %v2295 = vld [vmem:[%s2293 + $0x4] sm:$0xf]
        %v2296 = vld [vmem:[%s2293 + $0x8] sm:$0xf]
        %v2297 = vld [vmem:[%s2293 + $0xc] sm:$0xf]
        %v2298 = vld [vmem:[%s2293 + $0x10] sm:$0xf]
        %v2299 = vld [vmem:[%s2293 + $0x14] sm:$0xf]
        %v2300 = vld [vmem:[%s2293 + $0x18] sm:$0xf]
        %v2301 = vld [vmem:[%s2293 + $0x1c] sm:$0xf]
        %v2302 = vld [vmem:[%s2293 + $0x20] sm:$0xf]
        %v2303 = vld [vmem:[%s2293 + $0x24] sm:$0xf]
        %v2304 = vld [vmem:[%s2293 + $0x28] sm:$0xf]
        %v2305 = vld [vmem:[%s2293 + $0x2c] sm:$0xf]
        %v2306 = vld [vmem:[%s2293 + $0x30] sm:$0xf]
        %v2307 = vld [vmem:[%s2293 + $0x34] sm:$0xf]
        %v2308 = vld [vmem:[%s2293 + $0x38] sm:$0xf]
        %v2309 = vld [vmem:[%s2293 + $0x3c] sm:$0xf]
        %v2310 = vunpack.c.l.b16 %v2114
        %v2311 = vunpack.c.l.b16 %v2124
        %v2312 = vunpack.c.l.b16 %v2138
        %v2313 = vunpack.c.l.b16 %v2148
        %v2314 = vunpack.c.l.b16 %v2162
        %v2315 = vunpack.c.l.b16 %v2172
        %v2316 = vunpack.c.l.b16 %v2186
        %v2317 = vunpack.c.l.b16 %v2196
        %v2318 = vunpack.c.l.b16 %v2210
        %v2319 = vunpack.c.l.b16 %v2220
        %v2320 = vunpack.c.l.b16 %v2234
        %v2321 = vunpack.c.l.b16 %v2244
        %v2322 = vunpack.c.l.b16 %v2258
        %v2323 = vunpack.c.l.b16 %v2268
        %v2324 = vunpack.c.l.b16 %v2282
        %v2325 = vunpack.c.l.b16 %v2292
        %v2326 = vpack.c.b16 %v2311, %v2310
        %v2327 = vpack.c.b16 %v2313, %v2312
        %v2328 = vpack.c.b16 %v2315, %v2314
        %v2329 = vpack.c.b16 %v2317, %v2316
        %v2330 = vpack.c.b16 %v2319, %v2318
        %v2331 = vpack.c.b16 %v2321, %v2320
        %v2332 = vpack.c.b16 %v2323, %v2322
        %v2333 = vpack.c.b16 %v2325, %v2324
        %v2358 = vunpack.c.l.b16 %v2294
        %v2359 = vunpack.c.l.b16 %v2295
        %v2360 = vunpack.c.l.b16 %v2296
        %v2361 = vunpack.c.l.b16 %v2297
        %v2362 = vunpack.c.l.b16 %v2298
        %v2363 = vunpack.c.l.b16 %v2299
        %v2364 = vunpack.c.l.b16 %v2300
        %v2365 = vunpack.c.l.b16 %v2301
        %v2366 = vunpack.c.l.b16 %v2302
        %v2367 = vunpack.c.l.b16 %v2303
        %v2368 = vunpack.c.l.b16 %v2304
        %v2369 = vunpack.c.l.b16 %v2305
        %v2370 = vunpack.c.l.b16 %v2306
        %v2371 = vunpack.c.l.b16 %v2307
        %v2372 = vunpack.c.l.b16 %v2308
        %v2373 = vunpack.c.l.b16 %v2309
        %v2374 = vpack.c.b16 %v2359, %v2358
        %v2375 = vpack.c.b16 %v2361, %v2360
        %v2376 = vpack.c.b16 %v2363, %v2362
        %v2377 = vpack.c.b16 %v2365, %v2364
        %v2378 = vpack.c.b16 %v2367, %v2366
        %v2379 = vpack.c.b16 %v2369, %v2368
        %v2380 = vpack.c.b16 %v2371, %v2370
        %v2381 = vpack.c.b16 %v2373, %v2372
        %2390 = vmatprep.subr.bf16.mxu0 0
        %2391 = vmatpush1.bf16.msra.mxu0 %v2374
        %2392 = vmatprep.subr.bf16.mxu0 0
        %2393 = vmatpush1.bf16.msra.mxu0 %v2375
        %2394 = vmatprep.subr.bf16.mxu0 0
        %2395 = vmatpush1.bf16.msra.mxu0 %v2376
        %2396 = vmatprep.subr.bf16.mxu0 0
        %2397 = vmatpush1.bf16.msra.mxu0 %v2377
        %2398 = vmatprep.subr.bf16.mxu0 0
        %2399 = vmatpush1.bf16.msra.mxu0 %v2378
        %2400 = vmatprep.subr.bf16.mxu0 0
        %2401 = vmatpush1.bf16.msra.mxu0 %v2379
        %2402 = vmatprep.subr.bf16.mxu0 0
        %2403 = vmatpush1.bf16.msra.mxu0 %v2380
        %2404 = vmatprep.subr.bf16.mxu0 0
        %2405 = vmatpush1.bf16.msra.mxu0 %v2381
        %2406 = vmatprep.subr.bf16.mxu0 0
        %2407 = vmatpush1.bf16.msra.mxu0 0
        %2408 = vmatprep.subr.bf16.mxu0 0
        %2409 = vmatpush1.bf16.msra.mxu0 0
        %2410 = vmatprep.subr.bf16.mxu0 0
        %2411 = vmatpush1.bf16.msra.mxu0 0
        %2412 = vmatprep.subr.bf16.mxu0 0
        %2413 = vmatpush1.bf16.msra.mxu0 0
        %2414 = vmatprep.subr.bf16.mxu0 0
        %2415 = vmatpush1.bf16.msra.mxu0 0
        %2416 = vmatprep.subr.bf16.mxu0 0
        %2417 = vmatpush1.bf16.msra.mxu0 0
        %2418 = vmatprep.subr.bf16.mxu0 0
        %2419 = vmatpush1.bf16.msra.mxu0 0
        %2420 = vmatprep.subr.bf16.mxu0 0
        %2421 = vmatpush1.bf16.msra.mxu0 0
        %2422 = vmatprep.mubr.bf16.mxu0 0
        %2423 = vmatmul.mubr.bf16.gmra.mrb[0].mxu0 %v2326
        %v2424 = vpop.f32.mrb[0].mxu0
        %v2425 = vadd.f32 0.0, %v2424
        %v2426 = vpop.f32.mrb[0].mxu0
        %v2427 = vpop.f32.mrb[0].mxu0
        %v2428 = vadd.f32 0.0, %v2427
        %v2429 = vpop.f32.mrb[0].mxu0
        %2430 = vmatprep.mubr.bf16.mxu0 0
        %2431 = vmatmul.mubr.bf16.gmra.mrb[0].mxu0 %v2327
        %v2432 = vpop.f32.mrb[0].mxu0
        %v2433 = vadd.f32 0.0, %v2432
        %v2434 = vpop.f32.mrb[0].mxu0
        %v2435 = vpop.f32.mrb[0].mxu0
        %v2436 = vadd.f32 0.0, %v2435
        %v2437 = vpop.f32.mrb[0].mxu0
        %2438 = vmatprep.mubr.bf16.mxu0 0
        %2439 = vmatmul.mubr.bf16.gmra.mrb[0].mxu0 %v2328
        %v2440 = vpop.f32.mrb[0].mxu0
        %v2441 = vadd.f32 0.0, %v2440
        %v2442 = vpop.f32.mrb[0].mxu0
        %v2443 = vpop.f32.mrb[0].mxu0
        %v2444 = vadd.f32 0.0, %v2443
        %v2445 = vpop.f32.mrb[0].mxu0
        %2446 = vmatprep.mubr.bf16.mxu0 0
        %2447 = vmatmul.mubr.bf16.gmra.mrb[0].mxu0 %v2329
        %v2448 = vpop.f32.mrb[0].mxu0
        %v2449 = vadd.f32 0.0, %v2448
        %v2450 = vpop.f32.mrb[0].mxu0
        %v2451 = vpop.f32.mrb[0].mxu0
        %v2452 = vadd.f32 0.0, %v2451
        %v2453 = vpop.f32.mrb[0].mxu0
        %2454 = vmatprep.mubr.bf16.mxu0 0
        %2455 = vmatmul.mubr.bf16.gmra.mrb[0].mxu0 %v2330
        %v2456 = vpop.f32.mrb[0].mxu0
        %v2457 = vadd.f32 0.0, %v2456
        %v2458 = vpop.f32.mrb[0].mxu0
        %v2459 = vpop.f32.mrb[0].mxu0
        %v2460 = vadd.f32 0.0, %v2459
        %v2461 = vpop.f32.mrb[0].mxu0
        %2462 = vmatprep.mubr.bf16.mxu0 0
        %2463 = vmatmul.mubr.bf16.gmra.mrb[0].mxu0 %v2331
        %v2464 = vpop.f32.mrb[0].mxu0
        %v2465 = vadd.f32 0.0, %v2464
        %v2466 = vpop.f32.mrb[0].mxu0
        %v2467 = vpop.f32.mrb[0].mxu0
        %v2468 = vadd.f32 0.0, %v2467
        %v2469 = vpop.f32.mrb[0].mxu0
        %2470 = vmatprep.mubr.bf16.mxu0 0
        %2471 = vmatmul.mubr.bf16.gmra.mrb[0].mxu0 %v2332
        %v2472 = vpop.f32.mrb[0].mxu0
        %v2473 = vadd.f32 0.0, %v2472
        %v2474 = vpop.f32.mrb[0].mxu0
        %v2475 = vpop.f32.mrb[0].mxu0
        %v2476 = vadd.f32 0.0, %v2475
        %v2477 = vpop.f32.mrb[0].mxu0
        %2478 = vmatprep.mubr.bf16.mxu0 0
        %2479 = vmatmul.mubr.bf16.gmra.mrb[0].mxu0 %v2333
        %v2480 = vpop.f32.mrb[0].mxu0
        %v2481 = vadd.f32 0.0, %v2480
        %v2482 = vpop.f32.mrb[0].mxu0
        %v2483 = vpop.f32.mrb[0].mxu0
        %v2484 = vadd.f32 0.0, %v2483
        %v2485 = vpop.f32.mrb[0].mxu0
        %2486 = vdwg.mxu0
        %v2487 = vadd.f32 %v2061, %v2425
        %v2488 = vadd.f32 %v2062, %v2428
        %v2489 = vadd.f32 %v2063, %v2433
        %v2490 = vadd.f32 %v2064, %v2436
        %v2491 = vadd.f32 %v2065, %v2441
        %v2492 = vadd.f32 %v2066, %v2444
        %v2493 = vadd.f32 %v2067, %v2449
        %v2494 = vadd.f32 %v2068, %v2452
        %v2495 = vadd.f32 %v2069, %v2457
        %v2496 = vadd.f32 %v2070, %v2460
        %v2497 = vadd.f32 %v2071, %v2465
        %v2498 = vadd.f32 %v2072, %v2468
        %v2499 = vadd.f32 %v2073, %v2473
        %v2500 = vadd.f32 %v2074, %v2476
        %v2501 = vadd.f32 %v2075, %v2481
        %v2502 = vadd.f32 %v2076, %v2484
        %v2503 = vld [vmem:[%s863] sm:$0xe]
        %v2504 = vld [vmem:[%s863 + $0xc] sm:$0xe]
        %v2505 = vld [vmem:[%s863 + $0x18] sm:$0xe]
        %v2506 = vld [vmem:[%s863 + $0x24] sm:$0xe]
        %v2507 = vld [vmem:[%s863 + $0x30] sm:$0xe]
        %v2508 = vld [vmem:[%s863 + $0x3c] sm:$0xe]
        %v2509 = vld [vmem:[%s863 + $0x48] sm:$0xe]
        %v2510 = vld [vmem:[%s863 + $0x54] sm:$0xe]
        %v2535 = vrot.slane %v2503, 5
        %v2536 = vrot.slane %v2535, 4
        %v2537 = vrot.slane %v2078, 5
        %v2538 = vsel %vm1568, %v2536, %v2537
        %v2539 = vrot.slane %v2537, 4
        %v2540 = vrot.slane %v2079, 5
        %v2541 = vsel %vm1568, %v2539, %v2540
        %v2542 = vrot.slane %v2504, 5
        %v2543 = vrot.slane %v2542, 4
        %v2544 = vrot.slane %v2081, 5
        %v2545 = vsel %vm1568, %v2543, %v2544
        %v2546 = vrot.slane %v2544, 4
        %v2547 = vrot.slane %v2082, 5
        %v2548 = vsel %vm1568, %v2546, %v2547
        %v2549 = vrot.slane %v2505, 5
        %v2550 = vrot.slane %v2549, 4
        %v2551 = vrot.slane %v2084, 5
        %v2552 = vsel %vm1568, %v2550, %v2551
        %v2553 = vrot.slane %v2551, 4
        %v2554 = vrot.slane %v2085, 5
        %v2555 = vsel %vm1568, %v2553, %v2554
        %v2556 = vrot.slane %v2506, 5
        %v2557 = vrot.slane %v2556, 4
        %v2558 = vrot.slane %v2087, 5
        %v2559 = vsel %vm1568, %v2557, %v2558
        %v2560 = vrot.slane %v2558, 4
        %v2561 = vrot.slane %v2088, 5
        %v2562 = vsel %vm1568, %v2560, %v2561
        %v2563 = vrot.slane %v2507, 5
        %v2564 = vrot.slane %v2563, 4
        %v2565 = vrot.slane %v2090, 5
        %v2566 = vsel %vm1568, %v2564, %v2565
        %v2567 = vrot.slane %v2565, 4
        %v2568 = vrot.slane %v2091, 5
        %v2569 = vsel %vm1568, %v2567, %v2568
        %v2570 = vrot.slane %v2508, 5
        %v2571 = vrot.slane %v2570, 4
        %v2572 = vrot.slane %v2093, 5
        %v2573 = vsel %vm1568, %v2571, %v2572
        %v2574 = vrot.slane %v2572, 4
        %v2575 = vrot.slane %v2094, 5
        %v2576 = vsel %vm1568, %v2574, %v2575
        %v2577 = vrot.slane %v2509, 5
        %v2578 = vrot.slane %v2577, 4
        %v2579 = vrot.slane %v2096, 5
        %v2580 = vsel %vm1568, %v2578, %v2579
        %v2581 = vrot.slane %v2579, 4
        %v2582 = vrot.slane %v2097, 5
        %v2583 = vsel %vm1568, %v2581, %v2582
        %v2584 = vrot.slane %v2510, 5
        %v2585 = vrot.slane %v2584, 4
        %v2586 = vrot.slane %v2099, 5
        %v2587 = vsel %vm1568, %v2585, %v2586
        %v2588 = vrot.slane %v2586, 4
        %v2589 = vrot.slane %v2100, 5
        %v2590 = vsel %vm1568, %v2588, %v2589
        %s2591 = scalar_lea.vmem [#allocation9], 320
        %v2592 = vld [vmem:[%s2591] sm:$0xf]
        %v2593 = vld [vmem:[%s2591 + $0x4] sm:$0xf]
        %v2594 = vld [vmem:[%s2591 + $0x8] sm:$0xf]
        %v2595 = vld [vmem:[%s2591 + $0xc] sm:$0xf]
        %v2596 = vld [vmem:[%s2591 + $0x10] sm:$0xf]
        %v2597 = vld [vmem:[%s2591 + $0x14] sm:$0xf]
        %v2598 = vld [vmem:[%s2591 + $0x18] sm:$0xf]
        %v2599 = vld [vmem:[%s2591 + $0x1c] sm:$0xf]
        %v2600 = vld [vmem:[%s2591 + $0x20] sm:$0xf]
        %v2601 = vld [vmem:[%s2591 + $0x24] sm:$0xf]
        %v2602 = vld [vmem:[%s2591 + $0x28] sm:$0xf]
        %v2603 = vld [vmem:[%s2591 + $0x2c] sm:$0xf]
        %v2604 = vld [vmem:[%s2591 + $0x30] sm:$0xf]
        %v2605 = vld [vmem:[%s2591 + $0x34] sm:$0xf]
        %v2606 = vld [vmem:[%s2591 + $0x38] sm:$0xf]
        %v2607 = vld [vmem:[%s2591 + $0x3c] sm:$0xf]
        %v2608 = vunpack.c.l.b16 %v2538
        %v2609 = vunpack.c.l.b16 %v2541
        %v2610 = vunpack.c.l.b16 %v2545
        %v2611 = vunpack.c.l.b16 %v2548
        %v2612 = vunpack.c.l.b16 %v2552
        %v2613 = vunpack.c.l.b16 %v2555
        %v2614 = vunpack.c.l.b16 %v2559
        %v2615 = vunpack.c.l.b16 %v2562
        %v2616 = vunpack.c.l.b16 %v2566
        %v2617 = vunpack.c.l.b16 %v2569
        %v2618 = vunpack.c.l.b16 %v2573
        %v2619 = vunpack.c.l.b16 %v2576
        %v2620 = vunpack.c.l.b16 %v2580
        %v2621 = vunpack.c.l.b16 %v2583
        %v2622 = vunpack.c.l.b16 %v2587
        %v2623 = vunpack.c.l.b16 %v2590
        %v2624 = vpack.c.b16 %v2609, %v2608
        %v2625 = vpack.c.b16 %v2611, %v2610
        %v2626 = vpack.c.b16 %v2613, %v2612
        %v2627 = vpack.c.b16 %v2615, %v2614
        %v2628 = vpack.c.b16 %v2617, %v2616
        %v2629 = vpack.c.b16 %v2619, %v2618
        %v2630 = vpack.c.b16 %v2621, %v2620
        %v2631 = vpack.c.b16 %v2623, %v2622
        %v2656 = vunpack.c.l.b16 %v2592
        %v2657 = vunpack.c.l.b16 %v2593
        %v2658 = vunpack.c.l.b16 %v2594
        %v2659 = vunpack.c.l.b16 %v2595
        %v2660 = vunpack.c.l.b16 %v2596
        %v2661 = vunpack.c.l.b16 %v2597
        %v2662 = vunpack.c.l.b16 %v2598
        %v2663 = vunpack.c.l.b16 %v2599
        %v2664 = vunpack.c.l.b16 %v2600
        %v2665 = vunpack.c.l.b16 %v2601
        %v2666 = vunpack.c.l.b16 %v2602
        %v2667 = vunpack.c.l.b16 %v2603
        %v2668 = vunpack.c.l.b16 %v2604
        %v2669 = vunpack.c.l.b16 %v2605
        %v2670 = vunpack.c.l.b16 %v2606
        %v2671 = vunpack.c.l.b16 %v2607
        %v2672 = vpack.c.b16 %v2657, %v2656
        %v2673 = vpack.c.b16 %v2659, %v2658
        %v2674 = vpack.c.b16 %v2661, %v2660
        %v2675 = vpack.c.b16 %v2663, %v2662
        %v2676 = vpack.c.b16 %v2665, %v2664
        %v2677 = vpack.c.b16 %v2667, %v2666
        %v2678 = vpack.c.b16 %v2669, %v2668
        %v2679 = vpack.c.b16 %v2671, %v2670
        %2688 = vmatprep.subr.bf16.mxu0 0
        %2689 = vmatpush1.bf16.msra.mxu0 %v2672
        %2690 = vmatprep.subr.bf16.mxu0 0
        %2691 = vmatpush1.bf16.msra.mxu0 %v2673
        %2692 = vmatprep.subr.bf16.mxu0 0
        %2693 = vmatpush1.bf16.msra.mxu0 %v2674
        %2694 = vmatprep.subr.bf16.mxu0 0
        %2695 = vmatpush1.bf16.msra.mxu0 %v2675
        %2696 = vmatprep.subr.bf16.mxu0 0
        %2697 = vmatpush1.bf16.msra.mxu0 %v2676
        %2698 = vmatprep.subr.bf16.mxu0 0
        %2699 = vmatpush1.bf16.msra.mxu0 %v2677
        %2700 = vmatprep.subr.bf16.mxu0 0
        %2701 = vmatpush1.bf16.msra.mxu0 %v2678
        %2702 = vmatprep.subr.bf16.mxu0 0
        %2703 = vmatpush1.bf16.msra.mxu0 %v2679
        %2704 = vmatprep.subr.bf16.mxu0 0
        %2705 = vmatpush1.bf16.msra.mxu0 0
        %2706 = vmatprep.subr.bf16.mxu0 0
        %2707 = vmatpush1.bf16.msra.mxu0 0
        %2708 = vmatprep.subr.bf16.mxu0 0
        %2709 = vmatpush1.bf16.msra.mxu0 0
        %2710 = vmatprep.subr.bf16.mxu0 0
        %2711 = vmatpush1.bf16.msra.mxu0 0
        %2712 = vmatprep.subr.bf16.mxu0 0
        %2713 = vmatpush1.bf16.msra.mxu0 0
        %2714 = vmatprep.subr.bf16.mxu0 0
        %2715 = vmatpush1.bf16.msra.mxu0 0
        %2716 = vmatprep.subr.bf16.mxu0 0
        %2717 = vmatpush1.bf16.msra.mxu0 0
        %2718 = vmatprep.subr.bf16.mxu0 0
        %2719 = vmatpush1.bf16.msra.mxu0 0
        %2720 = vmatprep.mubr.bf16.mxu0 0
        %2721 = vmatmul.mubr.bf16.gmra.mrb[0].mxu0 %v2624
        %v2722 = vpop.f32.mrb[0].mxu0
        %v2723 = vadd.f32 0.0, %v2722
        %v2724 = vpop.f32.mrb[0].mxu0
        %v2725 = vpop.f32.mrb[0].mxu0
        %v2726 = vadd.f32 0.0, %v2725
        %v2727 = vpop.f32.mrb[0].mxu0
        %2728 = vmatprep.mubr.bf16.mxu0 0
        %2729 = vmatmul.mubr.bf16.gmra.mrb[0].mxu0 %v2625
        %v2730 = vpop.f32.mrb[0].mxu0
        %v2731 = vadd.f32 0.0, %v2730
        %v2732 = vpop.f32.mrb[0].mxu0
        %v2733 = vpop.f32.mrb[0].mxu0
        %v2734 = vadd.f32 0.0, %v2733
        %v2735 = vpop.f32.mrb[0].mxu0
        %2736 = vmatprep.mubr.bf16.mxu0 0
        %2737 = vmatmul.mubr.bf16.gmra.mrb[0].mxu0 %v2626
        %v2738 = vpop.f32.mrb[0].mxu0
        %v2739 = vadd.f32 0.0, %v2738
        %v2740 = vpop.f32.mrb[0].mxu0
        %v2741 = vpop.f32.mrb[0].mxu0
        %v2742 = vadd.f32 0.0, %v2741
        %v2743 = vpop.f32.mrb[0].mxu0
        %2744 = vmatprep.mubr.bf16.mxu0 0
        %2745 = vmatmul.mubr.bf16.gmra.mrb[0].mxu0 %v2627
        %v2746 = vpop.f32.mrb[0].mxu0
        %v2747 = vadd.f32 0.0, %v2746
        %v2748 = vpop.f32.mrb[0].mxu0
        %v2749 = vpop.f32.mrb[0].mxu0
        %v2750 = vadd.f32 0.0, %v2749
        %v2751 = vpop.f32.mrb[0].mxu0
        %2752 = vmatprep.mubr.bf16.mxu0 0
        %2753 = vmatmul.mubr.bf16.gmra.mrb[0].mxu0 %v2628
        %v2754 = vpop.f32.mrb[0].mxu0
        %v2755 = vadd.f32 0.0, %v2754
        %v2756 = vpop.f32.mrb[0].mxu0
        %v2757 = vpop.f32.mrb[0].mxu0
        %v2758 = vadd.f32 0.0, %v2757
        %v2759 = vpop.f32.mrb[0].mxu0
        %2760 = vmatprep.mubr.bf16.mxu0 0
        %2761 = vmatmul.mubr.bf16.gmra.mrb[0].mxu0 %v2629
        %v2762 = vpop.f32.mrb[0].mxu0
        %v2763 = vadd.f32 0.0, %v2762
        %v2764 = vpop.f32.mrb[0].mxu0
        %v2765 = vpop.f32.mrb[0].mxu0
        %v2766 = vadd.f32 0.0, %v2765
        %v2767 = vpop.f32.mrb[0].mxu0
        %2768 = vmatprep.mubr.bf16.mxu0 0
        %2769 = vmatmul.mubr.bf16.gmra.mrb[0].mxu0 %v2630
        %v2770 = vpop.f32.mrb[0].mxu0
        %v2771 = vadd.f32 0.0, %v2770
        %v2772 = vpop.f32.mrb[0].mxu0
        %v2773 = vpop.f32.mrb[0].mxu0
        %v2774 = vadd.f32 0.0, %v2773
        %v2775 = vpop.f32.mrb[0].mxu0
        %2776 = vmatprep.mubr.bf16.mxu0 0
        %2777 = vmatmul.mubr.bf16.gmra.mrb[0].mxu0 %v2631
        %v2778 = vpop.f32.mrb[0].mxu0
        %v2779 = vadd.f32 0.0, %v2778
        %v2780 = vpop.f32.mrb[0].mxu0
        %v2781 = vpop.f32.mrb[0].mxu0
        %v2782 = vadd.f32 0.0, %v2781
        %v2783 = vpop.f32.mrb[0].mxu0
        %2784 = vdwg.mxu0
        %v2785 = vadd.f32 %v2487, %v2723
        %v2786 = vadd.f32 %v2488, %v2726
        %v2787 = vadd.f32 %v2489, %v2731
        %v2788 = vadd.f32 %v2490, %v2734
        %v2789 = vadd.f32 %v2491, %v2739
        %v2790 = vadd.f32 %v2492, %v2742
        %v2791 = vadd.f32 %v2493, %v2747
        %v2792 = vadd.f32 %v2494, %v2750
        %v2793 = vadd.f32 %v2495, %v2755
        %v2794 = vadd.f32 %v2496, %v2758
        %v2795 = vadd.f32 %v2497, %v2763
        %v2796 = vadd.f32 %v2498, %v2766
        %v2797 = vadd.f32 %v2499, %v2771
        %v2798 = vadd.f32 %v2500, %v2774
        %v2799 = vadd.f32 %v2501, %v2779
        %v2800 = vadd.f32 %v2502, %v2782
        %s2801 = scalar_lea.vmem [#allocation2], 24
        %v2802 = vld [vmem:[%s2801] sm:$0xf]
        %v2803 = vld [vmem:[%s2801 + $0x4] sm:$0xf]
        %v2804 = vld [vmem:[%s2801 + $0xc] sm:$0xf]
        %v2805 = vld [vmem:[%s2801 + $0x10] sm:$0xf]
        %v2806 = vld [vmem:[%s2801 + $0x18] sm:$0xf]
        %v2807 = vld [vmem:[%s2801 + $0x1c] sm:$0xf]
        %v2808 = vld [vmem:[%s2801 + $0x24] sm:$0xf]
        %v2809 = vld [vmem:[%s2801 + $0x28] sm:$0xf]
        %v2810 = vld [vmem:[%s2801 + $0x30] sm:$0xf]
        %v2811 = vld [vmem:[%s2801 + $0x34] sm:$0xf]
        %v2812 = vld [vmem:[%s2801 + $0x3c] sm:$0xf]
        %v2813 = vld [vmem:[%s2801 + $0x40] sm:$0xf]
        %v2814 = vld [vmem:[%s2801 + $0x48] sm:$0xf]
        %v2815 = vld [vmem:[%s2801 + $0x4c] sm:$0xf]
        %v2816 = vld [vmem:[%s2801 + $0x54] sm:$0xf]
        %v2817 = vld [vmem:[%s2801 + $0x58] sm:$0xf]
        %s2818 = scalar_lea.vmem [#allocation9], 384
        %v2819 = vld [vmem:[%s2818] sm:$0xf]
        %v2820 = vld [vmem:[%s2818 + $0x4] sm:$0xf]
        %v2821 = vld [vmem:[%s2818 + $0x8] sm:$0xf]
        %v2822 = vld [vmem:[%s2818 + $0xc] sm:$0xf]
        %v2823 = vld [vmem:[%s2818 + $0x10] sm:$0xf]
        %v2824 = vld [vmem:[%s2818 + $0x14] sm:$0xf]
        %v2825 = vld [vmem:[%s2818 + $0x18] sm:$0xf]
        %v2826 = vld [vmem:[%s2818 + $0x1c] sm:$0xf]
        %v2827 = vld [vmem:[%s2818 + $0x20] sm:$0xf]
        %v2828 = vld [vmem:[%s2818 + $0x24] sm:$0xf]
        %v2829 = vld [vmem:[%s2818 + $0x28] sm:$0xf]
        %v2830 = vld [vmem:[%s2818 + $0x2c] sm:$0xf]
        %v2831 = vld [vmem:[%s2818 + $0x30] sm:$0xf]
        %v2832 = vld [vmem:[%s2818 + $0x34] sm:$0xf]
        %v2833 = vld [vmem:[%s2818 + $0x38] sm:$0xf]
        %v2834 = vld [vmem:[%s2818 + $0x3c] sm:$0xf]
        %v2851 = vunpack.c.l.b16 %v2802
        %v2852 = vunpack.c.l.b16 %v2803
        %v2853 = vunpack.c.l.b16 %v2804
        %v2854 = vunpack.c.l.b16 %v2805
        %v2855 = vunpack.c.l.b16 %v2806
        %v2856 = vunpack.c.l.b16 %v2807
        %v2857 = vunpack.c.l.b16 %v2808
        %v2858 = vunpack.c.l.b16 %v2809
        %v2859 = vunpack.c.l.b16 %v2810
        %v2860 = vunpack.c.l.b16 %v2811
        %v2861 = vunpack.c.l.b16 %v2812
        %v2862 = vunpack.c.l.b16 %v2813
        %v2863 = vunpack.c.l.b16 %v2814
        %v2864 = vunpack.c.l.b16 %v2815
        %v2865 = vunpack.c.l.b16 %v2816
        %v2866 = vunpack.c.l.b16 %v2817
        %v2867 = vpack.c.b16 %v2852, %v2851
        %v2868 = vpack.c.b16 %v2854, %v2853
        %v2869 = vpack.c.b16 %v2856, %v2855
        %v2870 = vpack.c.b16 %v2858, %v2857
        %v2871 = vpack.c.b16 %v2860, %v2859
        %v2872 = vpack.c.b16 %v2862, %v2861
        %v2873 = vpack.c.b16 %v2864, %v2863
        %v2874 = vpack.c.b16 %v2866, %v2865
        %v2899 = vunpack.c.l.b16 %v2819
        %v2900 = vunpack.c.l.b16 %v2820
        %v2901 = vunpack.c.l.b16 %v2821
        %v2902 = vunpack.c.l.b16 %v2822
        %v2903 = vunpack.c.l.b16 %v2823
        %v2904 = vunpack.c.l.b16 %v2824
        %v2905 = vunpack.c.l.b16 %v2825
        %v2906 = vunpack.c.l.b16 %v2826
        %v2907 = vunpack.c.l.b16 %v2827
        %v2908 = vunpack.c.l.b16 %v2828
        %v2909 = vunpack.c.l.b16 %v2829
        %v2910 = vunpack.c.l.b16 %v2830
        %v2911 = vunpack.c.l.b16 %v2831
        %v2912 = vunpack.c.l.b16 %v2832
        %v2913 = vunpack.c.l.b16 %v2833
        %v2914 = vunpack.c.l.b16 %v2834
        %v2915 = vpack.c.b16 %v2900, %v2899
        %v2916 = vpack.c.b16 %v2902, %v2901
        %v2917 = vpack.c.b16 %v2904, %v2903
        %v2918 = vpack.c.b16 %v2906, %v2905
        %v2919 = vpack.c.b16 %v2908, %v2907
        %v2920 = vpack.c.b16 %v2910, %v2909
        %v2921 = vpack.c.b16 %v2912, %v2911
        %v2922 = vpack.c.b16 %v2914, %v2913
        %2931 = vmatprep.subr.bf16.mxu0 0
        %2932 = vmatpush1.bf16.msra.mxu0 %v2915
        %2933 = vmatprep.subr.bf16.mxu0 0
        %2934 = vmatpush1.bf16.msra.mxu0 %v2916
        %2935 = vmatprep.subr.bf16.mxu0 0
        %2936 = vmatpush1.bf16.msra.mxu0 %v2917
        %2937 = vmatprep.subr.bf16.mxu0 0
        %2938 = vmatpush1.bf16.msra.mxu0 %v2918
        %2939 = vmatprep.subr.bf16.mxu0 0
        %2940 = vmatpush1.bf16.msra.mxu0 %v2919
        %2941 = vmatprep.subr.bf16.mxu0 0
        %2942 = vmatpush1.bf16.msra.mxu0 %v2920
        %2943 = vmatprep.subr.bf16.mxu0 0
        %2944 = vmatpush1.bf16.msra.mxu0 %v2921
        %2945 = vmatprep.subr.bf16.mxu0 0
        %2946 = vmatpush1.bf16.msra.mxu0 %v2922
        %2947 = vmatprep.subr.bf16.mxu0 0
        %2948 = vmatpush1.bf16.msra.mxu0 0
        %2949 = vmatprep.subr.bf16.mxu0 0
        %2950 = vmatpush1.bf16.msra.mxu0 0
        %2951 = vmatprep.subr.bf16.mxu0 0
        %2952 = vmatpush1.bf16.msra.mxu0 0
        %2953 = vmatprep.subr.bf16.mxu0 0
        %2954 = vmatpush1.bf16.msra.mxu0 0
        %2955 = vmatprep.subr.bf16.mxu0 0
        %2956 = vmatpush1.bf16.msra.mxu0 0
        %2957 = vmatprep.subr.bf16.mxu0 0
        %2958 = vmatpush1.bf16.msra.mxu0 0
        %2959 = vmatprep.subr.bf16.mxu0 0
        %2960 = vmatpush1.bf16.msra.mxu0 0
        %2961 = vmatprep.subr.bf16.mxu0 0
        %2962 = vmatpush1.bf16.msra.mxu0 0
        %2963 = vmatprep.mubr.bf16.mxu0 0
        %2964 = vmatmul.mubr.bf16.gmra.mrb[0].mxu0 %v2867
        %v2965 = vpop.f32.mrb[0].mxu0
        %v2966 = vadd.f32 0.0, %v2965
        %v2967 = vpop.f32.mrb[0].mxu0
        %v2968 = vpop.f32.mrb[0].mxu0
        %v2969 = vadd.f32 0.0, %v2968
        %v2970 = vpop.f32.mrb[0].mxu0
        %2971 = vmatprep.mubr.bf16.mxu0 0
        %2972 = vmatmul.mubr.bf16.gmra.mrb[0].mxu0 %v2868
        %v2973 = vpop.f32.mrb[0].mxu0
        %v2974 = vadd.f32 0.0, %v2973
        %v2975 = vpop.f32.mrb[0].mxu0
        %v2976 = vpop.f32.mrb[0].mxu0
        %v2977 = vadd.f32 0.0, %v2976
        %v2978 = vpop.f32.mrb[0].mxu0
        %2979 = vmatprep.mubr.bf16.mxu0 0
        %2980 = vmatmul.mubr.bf16.gmra.mrb[0].mxu0 %v2869
        %v2981 = vpop.f32.mrb[0].mxu0
        %v2982 = vadd.f32 0.0, %v2981
        %v2983 = vpop.f32.mrb[0].mxu0
        %v2984 = vpop.f32.mrb[0].mxu0
        %v2985 = vadd.f32 0.0, %v2984
        %v2986 = vpop.f32.mrb[0].mxu0
        %2987 = vmatprep.mubr.bf16.mxu0 0
        %2988 = vmatmul.mubr.bf16.gmra.mrb[0].mxu0 %v2870
        %v2989 = vpop.f32.mrb[0].mxu0
        %v2990 = vadd.f32 0.0, %v2989
        %v2991 = vpop.f32.mrb[0].mxu0
        %v2992 = vpop.f32.mrb[0].mxu0
        %v2993 = vadd.f32 0.0, %v2992
        %v2994 = vpop.f32.mrb[0].mxu0
        %2995 = vmatprep.mubr.bf16.mxu0 0
        %2996 = vmatmul.mubr.bf16.gmra.mrb[0].mxu0 %v2871
        %v2997 = vpop.f32.mrb[0].mxu0
        %v2998 = vadd.f32 0.0, %v2997
        %v2999 = vpop.f32.mrb[0].mxu0
        %v3000 = vpop.f32.mrb[0].mxu0
        %v3001 = vadd.f32 0.0, %v3000
        %v3002 = vpop.f32.mrb[0].mxu0
        %3003 = vmatprep.mubr.bf16.mxu0 0
        %3004 = vmatmul.mubr.bf16.gmra.mrb[0].mxu0 %v2872
        %v3005 = vpop.f32.mrb[0].mxu0
        %v3006 = vadd.f32 0.0, %v3005
        %v3007 = vpop.f32.mrb[0].mxu0
        %v3008 = vpop.f32.mrb[0].mxu0
        %v3009 = vadd.f32 0.0, %v3008
        %v3010 = vpop.f32.mrb[0].mxu0
        %3011 = vmatprep.mubr.bf16.mxu0 0
        %3012 = vmatmul.mubr.bf16.gmra.mrb[0].mxu0 %v2873
        %v3013 = vpop.f32.mrb[0].mxu0
        %v3014 = vadd.f32 0.0, %v3013
        %v3015 = vpop.f32.mrb[0].mxu0
        %v3016 = vpop.f32.mrb[0].mxu0
        %v3017 = vadd.f32 0.0, %v3016
        %v3018 = vpop.f32.mrb[0].mxu0
        %3019 = vmatprep.mubr.bf16.mxu0 0
        %3020 = vmatmul.mubr.bf16.gmra.mrb[0].mxu0 %v2874
        %v3021 = vpop.f32.mrb[0].mxu0
        %v3022 = vadd.f32 0.0, %v3021
        %v3023 = vpop.f32.mrb[0].mxu0
        %v3024 = vpop.f32.mrb[0].mxu0
        %v3025 = vadd.f32 0.0, %v3024
        %v3026 = vpop.f32.mrb[0].mxu0
        %3027 = vdwg.mxu0
        %v3028 = vadd.f32 %v2785, %v2966
        %v3029 = vadd.f32 %v2786, %v2969
        %v3030 = vadd.f32 %v2787, %v2974
        %v3031 = vadd.f32 %v2788, %v2977
        %v3032 = vadd.f32 %v2789, %v2982
        %v3033 = vadd.f32 %v2790, %v2985
        %v3034 = vadd.f32 %v2791, %v2990
        %v3035 = vadd.f32 %v2792, %v2993
        %v3036 = vadd.f32 %v2793, %v2998
        %v3037 = vadd.f32 %v2794, %v3001
        %v3038 = vadd.f32 %v2795, %v3006
        %v3039 = vadd.f32 %v2796, %v3009
        %v3040 = vadd.f32 %v2797, %v3014
        %v3041 = vadd.f32 %v2798, %v3017
        %v3042 = vadd.f32 %v2799, %v3022
        %v3043 = vadd.f32 %v2800, %v3025
        %v3044 = vld [vmem:[%s2801] sm:$0xf]
        %v3045 = vld [vmem:[%s2801 + $0x4] sm:$0xf]
        %v3046 = vld [vmem:[%s2801 + $0x8] sm:$0x1]
        %v3047 = vld [vmem:[%s2801 + $0xc] sm:$0xf]
        %v3048 = vld [vmem:[%s2801 + $0x10] sm:$0xf]
        %v3049 = vld [vmem:[%s2801 + $0x14] sm:$0x1]
        %v3050 = vld [vmem:[%s2801 + $0x18] sm:$0xf]
        %v3051 = vld [vmem:[%s2801 + $0x1c] sm:$0xf]
        %v3052 = vld [vmem:[%s2801 + $0x20] sm:$0x1]
        %v3053 = vld [vmem:[%s2801 + $0x24] sm:$0xf]
        %v3054 = vld [vmem:[%s2801 + $0x28] sm:$0xf]
        %v3055 = vld [vmem:[%s2801 + $0x2c] sm:$0x1]
        %v3056 = vld [vmem:[%s2801 + $0x30] sm:$0xf]
        %v3057 = vld [vmem:[%s2801 + $0x34] sm:$0xf]
        %v3058 = vld [vmem:[%s2801 + $0x38] sm:$0x1]
        %v3059 = vld [vmem:[%s2801 + $0x3c] sm:$0xf]
        %v3060 = vld [vmem:[%s2801 + $0x40] sm:$0xf]
        %v3061 = vld [vmem:[%s2801 + $0x44] sm:$0x1]
        %v3062 = vld [vmem:[%s2801 + $0x48] sm:$0xf]
        %v3063 = vld [vmem:[%s2801 + $0x4c] sm:$0xf]
        %v3064 = vld [vmem:[%s2801 + $0x50] sm:$0x1]
        %v3065 = vld [vmem:[%s2801 + $0x54] sm:$0xf]
        %v3066 = vld [vmem:[%s2801 + $0x58] sm:$0xf]
        %v3067 = vld [vmem:[%s2801 + $0x5c] sm:$0x1]
        %v3069 = vshrl.u32 %v3044, 16
        %v3071 = vrot.slane %v3069, 4
        %v3072 = vshll.u32 %v3044, 16
        %v3074 = vrot.slane %v3072, 5
        %v3075 = vor.u32 %v3071, %v3074
        %v3076 = vrot.slane %v3075, 4
        %v3078 = vshll.u32 %v3045, 16
        %v3080 = vrot.slane %v3078, 5
        %v3081 = vsel %vm962, %v3076, %v3080
        %v3082 = vshrl.u32 %v3045, 16
        %v3084 = vrot.slane %v3082, 4
        %v3085 = vor.u32 %v3084, %v3080
        %v3086 = vrot.slane %v3085, 4
        %v3088 = vshll.u32 %v3046, 16
        %v3090 = vrot.slane %v3088, 5
        %v3091 = vsel %vm962, %v3086, %v3090
        %v3093 = vshrl.u32 %v3047, 16
        %v3095 = vrot.slane %v3093, 4
        %v3096 = vshll.u32 %v3047, 16
        %v3098 = vrot.slane %v3096, 5
        %v3099 = vor.u32 %v3095, %v3098
        %v3100 = vrot.slane %v3099, 4
        %v3102 = vshll.u32 %v3048, 16
        %v3104 = vrot.slane %v3102, 5
        %v3105 = vsel %vm962, %v3100, %v3104
        %v3106 = vshrl.u32 %v3048, 16
        %v3108 = vrot.slane %v3106, 4
        %v3109 = vor.u32 %v3108, %v3104
        %v3110 = vrot.slane %v3109, 4
        %v3112 = vshll.u32 %v3049, 16
        %v3114 = vrot.slane %v3112, 5
        %v3115 = vsel %vm962, %v3110, %v3114
        %v3117 = vshrl.u32 %v3050, 16
        %v3119 = vrot.slane %v3117, 4
        %v3120 = vshll.u32 %v3050, 16
        %v3122 = vrot.slane %v3120, 5
        %v3123 = vor.u32 %v3119, %v3122
        %v3124 = vrot.slane %v3123, 4
        %v3126 = vshll.u32 %v3051, 16
        %v3128 = vrot.slane %v3126, 5
        %v3129 = vsel %vm962, %v3124, %v3128
        %v3130 = vshrl.u32 %v3051, 16
        %v3132 = vrot.slane %v3130, 4
        %v3133 = vor.u32 %v3132, %v3128
        %v3134 = vrot.slane %v3133, 4
        %v3136 = vshll.u32 %v3052, 16
        %v3138 = vrot.slane %v3136, 5
        %v3139 = vsel %vm962, %v3134, %v3138
        %v3141 = vshrl.u32 %v3053, 16
        %v3143 = vrot.slane %v3141, 4
        %v3144 = vshll.u32 %v3053, 16
        %v3146 = vrot.slane %v3144, 5
        %v3147 = vor.u32 %v3143, %v3146
        %v3148 = vrot.slane %v3147, 4
        %v3150 = vshll.u32 %v3054, 16
        %v3152 = vrot.slane %v3150, 5
        %v3153 = vsel %vm962, %v3148, %v3152
        %v3154 = vshrl.u32 %v3054, 16
        %v3156 = vrot.slane %v3154, 4
        %v3157 = vor.u32 %v3156, %v3152
        %v3158 = vrot.slane %v3157, 4
        %v3160 = vshll.u32 %v3055, 16
        %v3162 = vrot.slane %v3160, 5
        %v3163 = vsel %vm962, %v3158, %v3162
        %v3165 = vshrl.u32 %v3056, 16
        %v3167 = vrot.slane %v3165, 4
        %v3168 = vshll.u32 %v3056, 16
        %v3170 = vrot.slane %v3168, 5
        %v3171 = vor.u32 %v3167, %v3170
        %v3172 = vrot.slane %v3171, 4
        %v3174 = vshll.u32 %v3057, 16
        %v3176 = vrot.slane %v3174, 5
        %v3177 = vsel %vm962, %v3172, %v3176
        %v3178 = vshrl.u32 %v3057, 16
        %v3180 = vrot.slane %v3178, 4
        %v3181 = vor.u32 %v3180, %v3176
        %v3182 = vrot.slane %v3181, 4
        %v3184 = vshll.u32 %v3058, 16
        %v3186 = vrot.slane %v3184, 5
        %v3187 = vsel %vm962, %v3182, %v3186
        %v3189 = vshrl.u32 %v3059, 16
        %v3191 = vrot.slane %v3189, 4
        %v3192 = vshll.u32 %v3059, 16
        %v3194 = vrot.slane %v3192, 5
        %v3195 = vor.u32 %v3191, %v3194
        %v3196 = vrot.slane %v3195, 4
        %v3198 = vshll.u32 %v3060, 16
        %v3200 = vrot.slane %v3198, 5
        %v3201 = vsel %vm962, %v3196, %v3200
        %v3202 = vshrl.u32 %v3060, 16
        %v3204 = vrot.slane %v3202, 4
        %v3205 = vor.u32 %v3204, %v3200
        %v3206 = vrot.slane %v3205, 4
        %v3208 = vshll.u32 %v3061, 16
        %v3210 = vrot.slane %v3208, 5
        %v3211 = vsel %vm962, %v3206, %v3210
        %v3213 = vshrl.u32 %v3062, 16
        %v3215 = vrot.slane %v3213, 4
        %v3216 = vshll.u32 %v3062, 16
        %v3218 = vrot.slane %v3216, 5
        %v3219 = vor.u32 %v3215, %v3218
        %v3220 = vrot.slane %v3219, 4
        %v3222 = vshll.u32 %v3063, 16
        %v3224 = vrot.slane %v3222, 5
        %v3225 = vsel %vm962, %v3220, %v3224
        %v3226 = vshrl.u32 %v3063, 16
        %v3228 = vrot.slane %v3226, 4
        %v3229 = vor.u32 %v3228, %v3224
        %v3230 = vrot.slane %v3229, 4
        %v3232 = vshll.u32 %v3064, 16
        %v3234 = vrot.slane %v3232, 5
        %v3235 = vsel %vm962, %v3230, %v3234
        %v3237 = vshrl.u32 %v3065, 16
        %v3239 = vrot.slane %v3237, 4
        %v3240 = vshll.u32 %v3065, 16
        %v3242 = vrot.slane %v3240, 5
        %v3243 = vor.u32 %v3239, %v3242
        %v3244 = vrot.slane %v3243, 4
        %v3246 = vshll.u32 %v3066, 16
        %v3248 = vrot.slane %v3246, 5
        %v3249 = vsel %vm962, %v3244, %v3248
        %v3250 = vshrl.u32 %v3066, 16
        %v3252 = vrot.slane %v3250, 4
        %v3253 = vor.u32 %v3252, %v3248
        %v3254 = vrot.slane %v3253, 4
        %v3256 = vshll.u32 %v3067, 16
        %v3258 = vrot.slane %v3256, 5
        %v3259 = vsel %vm962, %v3254, %v3258
        %s3260 = scalar_lea.vmem [#allocation9], 448
        %v3261 = vld [vmem:[%s3260] sm:$0xf]
        %v3262 = vld [vmem:[%s3260 + $0x4] sm:$0xf]
        %v3263 = vld [vmem:[%s3260 + $0x8] sm:$0xf]
        %v3264 = vld [vmem:[%s3260 + $0xc] sm:$0xf]
        %v3265 = vld [vmem:[%s3260 + $0x10] sm:$0xf]
        %v3266 = vld [vmem:[%s3260 + $0x14] sm:$0xf]
        %v3267 = vld [vmem:[%s3260 + $0x18] sm:$0xf]
        %v3268 = vld [vmem:[%s3260 + $0x1c] sm:$0xf]
        %v3269 = vld [vmem:[%s3260 + $0x20] sm:$0xf]
        %v3270 = vld [vmem:[%s3260 + $0x24] sm:$0xf]
        %v3271 = vld [vmem:[%s3260 + $0x28] sm:$0xf]
        %v3272 = vld [vmem:[%s3260 + $0x2c] sm:$0xf]
        %v3273 = vld [vmem:[%s3260 + $0x30] sm:$0xf]
        %v3274 = vld [vmem:[%s3260 + $0x34] sm:$0xf]
        %v3275 = vld [vmem:[%s3260 + $0x38] sm:$0xf]
        %v3276 = vld [vmem:[%s3260 + $0x3c] sm:$0xf]
        %v3277 = vunpack.c.l.b16 %v3081
        %v3278 = vunpack.c.l.b16 %v3091
        %v3279 = vunpack.c.l.b16 %v3105
        %v3280 = vunpack.c.l.b16 %v3115
        %v3281 = vunpack.c.l.b16 %v3129
        %v3282 = vunpack.c.l.b16 %v3139
        %v3283 = vunpack.c.l.b16 %v3153
        %v3284 = vunpack.c.l.b16 %v3163
        %v3285 = vunpack.c.l.b16 %v3177
        %v3286 = vunpack.c.l.b16 %v3187
        %v3287 = vunpack.c.l.b16 %v3201
        %v3288 = vunpack.c.l.b16 %v3211
        %v3289 = vunpack.c.l.b16 %v3225
        %v3290 = vunpack.c.l.b16 %v3235
        %v3291 = vunpack.c.l.b16 %v3249
        %v3292 = vunpack.c.l.b16 %v3259
        %v3293 = vpack.c.b16 %v3278, %v3277
        %v3294 = vpack.c.b16 %v3280, %v3279
        %v3295 = vpack.c.b16 %v3282, %v3281
        %v3296 = vpack.c.b16 %v3284, %v3283
        %v3297 = vpack.c.b16 %v3286, %v3285
        %v3298 = vpack.c.b16 %v3288, %v3287
        %v3299 = vpack.c.b16 %v3290, %v3289
        %v3300 = vpack.c.b16 %v3292, %v3291
        %v3325 = vunpack.c.l.b16 %v3261
        %v3326 = vunpack.c.l.b16 %v3262
        %v3327 = vunpack.c.l.b16 %v3263
        %v3328 = vunpack.c.l.b16 %v3264
        %v3329 = vunpack.c.l.b16 %v3265
        %v3330 = vunpack.c.l.b16 %v3266
        %v3331 = vunpack.c.l.b16 %v3267
        %v3332 = vunpack.c.l.b16 %v3268
        %v3333 = vunpack.c.l.b16 %v3269
        %v3334 = vunpack.c.l.b16 %v3270
        %v3335 = vunpack.c.l.b16 %v3271
        %v3336 = vunpack.c.l.b16 %v3272
        %v3337 = vunpack.c.l.b16 %v3273
        %v3338 = vunpack.c.l.b16 %v3274
        %v3339 = vunpack.c.l.b16 %v3275
        %v3340 = vunpack.c.l.b16 %v3276
        %v3341 = vpack.c.b16 %v3326, %v3325
        %v3342 = vpack.c.b16 %v3328, %v3327
        %v3343 = vpack.c.b16 %v3330, %v3329
        %v3344 = vpack.c.b16 %v3332, %v3331
        %v3345 = vpack.c.b16 %v3334, %v3333
        %v3346 = vpack.c.b16 %v3336, %v3335
        %v3347 = vpack.c.b16 %v3338, %v3337
        %v3348 = vpack.c.b16 %v3340, %v3339
        %3357 = vmatprep.subr.bf16.mxu0 0
        %3358 = vmatpush1.bf16.msra.mxu0 %v3341
        %3359 = vmatprep.subr.bf16.mxu0 0
        %3360 = vmatpush1.bf16.msra.mxu0 %v3342
        %3361 = vmatprep.subr.bf16.mxu0 0
        %3362 = vmatpush1.bf16.msra.mxu0 %v3343
        %3363 = vmatprep.subr.bf16.mxu0 0
        %3364 = vmatpush1.bf16.msra.mxu0 %v3344
        %3365 = vmatprep.subr.bf16.mxu0 0
        %3366 = vmatpush1.bf16.msra.mxu0 %v3345
        %3367 = vmatprep.subr.bf16.mxu0 0
        %3368 = vmatpush1.bf16.msra.mxu0 %v3346
        %3369 = vmatprep.subr.bf16.mxu0 0
        %3370 = vmatpush1.bf16.msra.mxu0 %v3347
        %3371 = vmatprep.subr.bf16.mxu0 0
        %3372 = vmatpush1.bf16.msra.mxu0 %v3348
        %3373 = vmatprep.subr.bf16.mxu0 0
        %3374 = vmatpush1.bf16.msra.mxu0 0
        %3375 = vmatprep.subr.bf16.mxu0 0
        %3376 = vmatpush1.bf16.msra.mxu0 0
        %3377 = vmatprep.subr.bf16.mxu0 0
        %3378 = vmatpush1.bf16.msra.mxu0 0
        %3379 = vmatprep.subr.bf16.mxu0 0
        %3380 = vmatpush1.bf16.msra.mxu0 0
        %3381 = vmatprep.subr.bf16.mxu0 0
        %3382 = vmatpush1.bf16.msra.mxu0 0
        %3383 = vmatprep.subr.bf16.mxu0 0
        %3384 = vmatpush1.bf16.msra.mxu0 0
        %3385 = vmatprep.subr.bf16.mxu0 0
        %3386 = vmatpush1.bf16.msra.mxu0 0
        %3387 = vmatprep.subr.bf16.mxu0 0
        %3388 = vmatpush1.bf16.msra.mxu0 0
        %3389 = vmatprep.mubr.bf16.mxu0 0
        %3390 = vmatmul.mubr.bf16.gmra.mrb[0].mxu0 %v3293
        %v3391 = vpop.f32.mrb[0].mxu0
        %v3392 = vadd.f32 0.0, %v3391
        %v3393 = vpop.f32.mrb[0].mxu0
        %v3394 = vpop.f32.mrb[0].mxu0
        %v3395 = vadd.f32 0.0, %v3394
        %v3396 = vpop.f32.mrb[0].mxu0
        %3397 = vmatprep.mubr.bf16.mxu0 0
        %3398 = vmatmul.mubr.bf16.gmra.mrb[0].mxu0 %v3294
        %v3399 = vpop.f32.mrb[0].mxu0
        %v3400 = vadd.f32 0.0, %v3399
        %v3401 = vpop.f32.mrb[0].mxu0
        %v3402 = vpop.f32.mrb[0].mxu0
        %v3403 = vadd.f32 0.0, %v3402
        %v3404 = vpop.f32.mrb[0].mxu0
        %3405 = vmatprep.mubr.bf16.mxu0 0
        %3406 = vmatmul.mubr.bf16.gmra.mrb[0].mxu0 %v3295
        %v3407 = vpop.f32.mrb[0].mxu0
        %v3408 = vadd.f32 0.0, %v3407
        %v3409 = vpop.f32.mrb[0].mxu0
        %v3410 = vpop.f32.mrb[0].mxu0
        %v3411 = vadd.f32 0.0, %v3410
        %v3412 = vpop.f32.mrb[0].mxu0
        %3413 = vmatprep.mubr.bf16.mxu0 0
        %3414 = vmatmul.mubr.bf16.gmra.mrb[0].mxu0 %v3296
        %v3415 = vpop.f32.mrb[0].mxu0
        %v3416 = vadd.f32 0.0, %v3415
        %v3417 = vpop.f32.mrb[0].mxu0
        %v3418 = vpop.f32.mrb[0].mxu0
        %v3419 = vadd.f32 0.0, %v3418
        %v3420 = vpop.f32.mrb[0].mxu0
        %3421 = vmatprep.mubr.bf16.mxu0 0
        %3422 = vmatmul.mubr.bf16.gmra.mrb[0].mxu0 %v3297
        %v3423 = vpop.f32.mrb[0].mxu0
        %v3424 = vadd.f32 0.0, %v3423
        %v3425 = vpop.f32.mrb[0].mxu0
        %v3426 = vpop.f32.mrb[0].mxu0
        %v3427 = vadd.f32 0.0, %v3426
        %v3428 = vpop.f32.mrb[0].mxu0
        %3429 = vmatprep.mubr.bf16.mxu0 0
        %3430 = vmatmul.mubr.bf16.gmra.mrb[0].mxu0 %v3298
        %v3431 = vpop.f32.mrb[0].mxu0
        %v3432 = vadd.f32 0.0, %v3431
        %v3433 = vpop.f32.mrb[0].mxu0
        %v3434 = vpop.f32.mrb[0].mxu0
        %v3435 = vadd.f32 0.0, %v3434
        %v3436 = vpop.f32.mrb[0].mxu0
        %3437 = vmatprep.mubr.bf16.mxu0 0
        %3438 = vmatmul.mubr.bf16.gmra.mrb[0].mxu0 %v3299
        %v3439 = vpop.f32.mrb[0].mxu0
        %v3440 = vadd.f32 0.0, %v3439
        %v3441 = vpop.f32.mrb[0].mxu0
        %v3442 = vpop.f32.mrb[0].mxu0
        %v3443 = vadd.f32 0.0, %v3442
        %v3444 = vpop.f32.mrb[0].mxu0
        %3445 = vmatprep.mubr.bf16.mxu0 0
        %3446 = vmatmul.mubr.bf16.gmra.mrb[0].mxu0 %v3300
        %v3447 = vpop.f32.mrb[0].mxu0
        %v3448 = vadd.f32 0.0, %v3447
        %v3449 = vpop.f32.mrb[0].mxu0
        %v3450 = vpop.f32.mrb[0].mxu0
        %v3451 = vadd.f32 0.0, %v3450
        %v3452 = vpop.f32.mrb[0].mxu0
        %3453 = vdwg.mxu0
        %v3454 = vadd.f32 %v3028, %v3392
        %v3455 = vadd.f32 %v3029, %v3395
        %v3456 = vadd.f32 %v3030, %v3400
        %v3457 = vadd.f32 %v3031, %v3403
        %v3458 = vadd.f32 %v3032, %v3408
        %v3459 = vadd.f32 %v3033, %v3411
        %v3460 = vadd.f32 %v3034, %v3416
        %v3461 = vadd.f32 %v3035, %v3419
        %v3462 = vadd.f32 %v3036, %v3424
        %v3463 = vadd.f32 %v3037, %v3427
        %v3464 = vadd.f32 %v3038, %v3432
        %v3465 = vadd.f32 %v3039, %v3435
        %v3466 = vadd.f32 %v3040, %v3440
        %v3467 = vadd.f32 %v3041, %v3443
        %v3468 = vadd.f32 %v3042, %v3448
        %v3469 = vadd.f32 %v3043, %v3451
        %v3470 = vld [vmem:[%s2801] sm:$0xe]
        %v3471 = vld [vmem:[%s2801 + $0xc] sm:$0xe]
        %v3472 = vld [vmem:[%s2801 + $0x18] sm:$0xe]
        %v3473 = vld [vmem:[%s2801 + $0x24] sm:$0xe]
        %v3474 = vld [vmem:[%s2801 + $0x30] sm:$0xe]
        %v3475 = vld [vmem:[%s2801 + $0x3c] sm:$0xe]
        %v3476 = vld [vmem:[%s2801 + $0x48] sm:$0xe]
        %v3477 = vld [vmem:[%s2801 + $0x54] sm:$0xe]
        %v3502 = vrot.slane %v3470, 5
        %v3503 = vrot.slane %v3502, 4
        %v3504 = vrot.slane %v3045, 5
        %v3505 = vsel %vm1568, %v3503, %v3504
        %v3506 = vrot.slane %v3504, 4
        %v3507 = vrot.slane %v3046, 5
        %v3508 = vsel %vm1568, %v3506, %v3507
        %v3509 = vrot.slane %v3471, 5
        %v3510 = vrot.slane %v3509, 4
        %v3511 = vrot.slane %v3048, 5
        %v3512 = vsel %vm1568, %v3510, %v3511
        %v3513 = vrot.slane %v3511, 4
        %v3514 = vrot.slane %v3049, 5
        %v3515 = vsel %vm1568, %v3513, %v3514
        %v3516 = vrot.slane %v3472, 5
        %v3517 = vrot.slane %v3516, 4
        %v3518 = vrot.slane %v3051, 5
        %v3519 = vsel %vm1568, %v3517, %v3518
        %v3520 = vrot.slane %v3518, 4
        %v3521 = vrot.slane %v3052, 5
        %v3522 = vsel %vm1568, %v3520, %v3521
        %v3523 = vrot.slane %v3473, 5
        %v3524 = vrot.slane %v3523, 4
        %v3525 = vrot.slane %v3054, 5
        %v3526 = vsel %vm1568, %v3524, %v3525
        %v3527 = vrot.slane %v3525, 4
        %v3528 = vrot.slane %v3055, 5
        %v3529 = vsel %vm1568, %v3527, %v3528
        %v3530 = vrot.slane %v3474, 5
        %v3531 = vrot.slane %v3530, 4
        %v3532 = vrot.slane %v3057, 5
        %v3533 = vsel %vm1568, %v3531, %v3532
        %v3534 = vrot.slane %v3532, 4
        %v3535 = vrot.slane %v3058, 5
        %v3536 = vsel %vm1568, %v3534, %v3535
        %v3537 = vrot.slane %v3475, 5
        %v3538 = vrot.slane %v3537, 4
        %v3539 = vrot.slane %v3060, 5
        %v3540 = vsel %vm1568, %v3538, %v3539
        %v3541 = vrot.slane %v3539, 4
        %v3542 = vrot.slane %v3061, 5
        %v3543 = vsel %vm1568, %v3541, %v3542
        %v3544 = vrot.slane %v3476, 5
        %v3545 = vrot.slane %v3544, 4
        %v3546 = vrot.slane %v3063, 5
        %v3547 = vsel %vm1568, %v3545, %v3546
        %v3548 = vrot.slane %v3546, 4
        %v3549 = vrot.slane %v3064, 5
        %v3550 = vsel %vm1568, %v3548, %v3549
        %v3551 = vrot.slane %v3477, 5
        %v3552 = vrot.slane %v3551, 4
        %v3553 = vrot.slane %v3066, 5
        %v3554 = vsel %vm1568, %v3552, %v3553
        %v3555 = vrot.slane %v3553, 4
        %v3556 = vrot.slane %v3067, 5
        %v3557 = vsel %vm1568, %v3555, %v3556
        %s3558 = scalar_lea.vmem [#allocation9], 512
        %v3559 = vld [vmem:[%s3558] sm:$0xf]
        %v3560 = vld [vmem:[%s3558 + $0x4] sm:$0xf]
        %v3561 = vld [vmem:[%s3558 + $0x8] sm:$0xf]
        %v3562 = vld [vmem:[%s3558 + $0xc] sm:$0xf]
        %v3563 = vld [vmem:[%s3558 + $0x10] sm:$0xf]
        %v3564 = vld [vmem:[%s3558 + $0x14] sm:$0xf]
        %v3565 = vld [vmem:[%s3558 + $0x18] sm:$0xf]
        %v3566 = vld [vmem:[%s3558 + $0x1c] sm:$0xf]
        %v3567 = vld [vmem:[%s3558 + $0x20] sm:$0xf]
        %v3568 = vld [vmem:[%s3558 + $0x24] sm:$0xf]
        %v3569 = vld [vmem:[%s3558 + $0x28] sm:$0xf]
        %v3570 = vld [vmem:[%s3558 + $0x2c] sm:$0xf]
        %v3571 = vld [vmem:[%s3558 + $0x30] sm:$0xf]
        %v3572 = vld [vmem:[%s3558 + $0x34] sm:$0xf]
        %v3573 = vld [vmem:[%s3558 + $0x38] sm:$0xf]
        %v3574 = vld [vmem:[%s3558 + $0x3c] sm:$0xf]
        %v3575 = vunpack.c.l.b16 %v3505
        %v3576 = vunpack.c.l.b16 %v3508
        %v3577 = vunpack.c.l.b16 %v3512
        %v3578 = vunpack.c.l.b16 %v3515
        %v3579 = vunpack.c.l.b16 %v3519
        %v3580 = vunpack.c.l.b16 %v3522
        %v3581 = vunpack.c.l.b16 %v3526
        %v3582 = vunpack.c.l.b16 %v3529
        %v3583 = vunpack.c.l.b16 %v3533
        %v3584 = vunpack.c.l.b16 %v3536
        %v3585 = vunpack.c.l.b16 %v3540
        %v3586 = vunpack.c.l.b16 %v3543
        %v3587 = vunpack.c.l.b16 %v3547
        %v3588 = vunpack.c.l.b16 %v3550
        %v3589 = vunpack.c.l.b16 %v3554
        %v3590 = vunpack.c.l.b16 %v3557
        %v3591 = vpack.c.b16 %v3576, %v3575
        %v3592 = vpack.c.b16 %v3578, %v3577
        %v3593 = vpack.c.b16 %v3580, %v3579
        %v3594 = vpack.c.b16 %v3582, %v3581
        %v3595 = vpack.c.b16 %v3584, %v3583
        %v3596 = vpack.c.b16 %v3586, %v3585
        %v3597 = vpack.c.b16 %v3588, %v3587
        %v3598 = vpack.c.b16 %v3590, %v3589
        %v3623 = vunpack.c.l.b16 %v3559
        %v3624 = vunpack.c.l.b16 %v3560
        %v3625 = vunpack.c.l.b16 %v3561
        %v3626 = vunpack.c.l.b16 %v3562
        %v3627 = vunpack.c.l.b16 %v3563
        %v3628 = vunpack.c.l.b16 %v3564
        %v3629 = vunpack.c.l.b16 %v3565
        %v3630 = vunpack.c.l.b16 %v3566
        %v3631 = vunpack.c.l.b16 %v3567
        %v3632 = vunpack.c.l.b16 %v3568
        %v3633 = vunpack.c.l.b16 %v3569
        %v3634 = vunpack.c.l.b16 %v3570
        %v3635 = vunpack.c.l.b16 %v3571
        %v3636 = vunpack.c.l.b16 %v3572
        %v3637 = vunpack.c.l.b16 %v3573
        %v3638 = vunpack.c.l.b16 %v3574
        %v3639 = vpack.c.b16 %v3624, %v3623
        %v3640 = vpack.c.b16 %v3626, %v3625
        %v3641 = vpack.c.b16 %v3628, %v3627
        %v3642 = vpack.c.b16 %v3630, %v3629
        %v3643 = vpack.c.b16 %v3632, %v3631
        %v3644 = vpack.c.b16 %v3634, %v3633
        %v3645 = vpack.c.b16 %v3636, %v3635
        %v3646 = vpack.c.b16 %v3638, %v3637
        %3655 = vmatprep.subr.bf16.mxu0 0
        %3656 = vmatpush1.bf16.msra.mxu0 %v3639
        %3657 = vmatprep.subr.bf16.mxu0 0
        %3658 = vmatpush1.bf16.msra.mxu0 %v3640
        %3659 = vmatprep.subr.bf16.mxu0 0
        %3660 = vmatpush1.bf16.msra.mxu0 %v3641
        %3661 = vmatprep.subr.bf16.mxu0 0
        %3662 = vmatpush1.bf16.msra.mxu0 %v3642
        %3663 = vmatprep.subr.bf16.mxu0 0
        %3664 = vmatpush1.bf16.msra.mxu0 %v3643
        %3665 = vmatprep.subr.bf16.mxu0 0
        %3666 = vmatpush1.bf16.msra.mxu0 %v3644
        %3667 = vmatprep.subr.bf16.mxu0 0
        %3668 = vmatpush1.bf16.msra.mxu0 %v3645
        %3669 = vmatprep.subr.bf16.mxu0 0
        %3670 = vmatpush1.bf16.msra.mxu0 %v3646
        %3671 = vmatprep.subr.bf16.mxu0 0
        %3672 = vmatpush1.bf16.msra.mxu0 0
        %3673 = vmatprep.subr.bf16.mxu0 0
        %3674 = vmatpush1.bf16.msra.mxu0 0
        %3675 = vmatprep.subr.bf16.mxu0 0
        %3676 = vmatpush1.bf16.msra.mxu0 0
        %3677 = vmatprep.subr.bf16.mxu0 0
        %3678 = vmatpush1.bf16.msra.mxu0 0
        %3679 = vmatprep.subr.bf16.mxu0 0
        %3680 = vmatpush1.bf16.msra.mxu0 0
        %3681 = vmatprep.subr.bf16.mxu0 0
        %3682 = vmatpush1.bf16.msra.mxu0 0
        %3683 = vmatprep.subr.bf16.mxu0 0
        %3684 = vmatpush1.bf16.msra.mxu0 0
        %3685 = vmatprep.subr.bf16.mxu0 0
        %3686 = vmatpush1.bf16.msra.mxu0 0
        %3687 = vmatprep.mubr.bf16.mxu0 0
        %3688 = vmatmul.mubr.bf16.gmra.mrb[0].mxu0 %v3591
        %v3689 = vpop.f32.mrb[0].mxu0
        %v3690 = vadd.f32 0.0, %v3689
        %v3691 = vpop.f32.mrb[0].mxu0
        %v3692 = vpop.f32.mrb[0].mxu0
        %v3693 = vadd.f32 0.0, %v3692
        %v3694 = vpop.f32.mrb[0].mxu0
        %3695 = vmatprep.mubr.bf16.mxu0 0
        %3696 = vmatmul.mubr.bf16.gmra.mrb[0].mxu0 %v3592
        %v3697 = vpop.f32.mrb[0].mxu0
        %v3698 = vadd.f32 0.0, %v3697
        %v3699 = vpop.f32.mrb[0].mxu0
        %v3700 = vpop.f32.mrb[0].mxu0
        %v3701 = vadd.f32 0.0, %v3700
        %v3702 = vpop.f32.mrb[0].mxu0
        %3703 = vmatprep.mubr.bf16.mxu0 0
        %3704 = vmatmul.mubr.bf16.gmra.mrb[0].mxu0 %v3593
        %v3705 = vpop.f32.mrb[0].mxu0
        %v3706 = vadd.f32 0.0, %v3705
        %v3707 = vpop.f32.mrb[0].mxu0
        %v3708 = vpop.f32.mrb[0].mxu0
        %v3709 = vadd.f32 0.0, %v3708
        %v3710 = vpop.f32.mrb[0].mxu0
        %3711 = vmatprep.mubr.bf16.mxu0 0
        %3712 = vmatmul.mubr.bf16.gmra.mrb[0].mxu0 %v3594
        %v3713 = vpop.f32.mrb[0].mxu0
        %v3714 = vadd.f32 0.0, %v3713
        %v3715 = vpop.f32.mrb[0].mxu0
        %v3716 = vpop.f32.mrb[0].mxu0
        %v3717 = vadd.f32 0.0, %v3716
        %v3718 = vpop.f32.mrb[0].mxu0
        %3719 = vmatprep.mubr.bf16.mxu0 0
        %3720 = vmatmul.mubr.bf16.gmra.mrb[0].mxu0 %v3595
        %v3721 = vpop.f32.mrb[0].mxu0
        %v3722 = vadd.f32 0.0, %v3721
        %v3723 = vpop.f32.mrb[0].mxu0
        %v3724 = vpop.f32.mrb[0].mxu0
        %v3725 = vadd.f32 0.0, %v3724
        %v3726 = vpop.f32.mrb[0].mxu0
        %3727 = vmatprep.mubr.bf16.mxu0 0
        %3728 = vmatmul.mubr.bf16.gmra.mrb[0].mxu0 %v3596
        %v3729 = vpop.f32.mrb[0].mxu0
        %v3730 = vadd.f32 0.0, %v3729
        %v3731 = vpop.f32.mrb[0].mxu0
        %v3732 = vpop.f32.mrb[0].mxu0
        %v3733 = vadd.f32 0.0, %v3732
        %v3734 = vpop.f32.mrb[0].mxu0
        %3735 = vmatprep.mubr.bf16.mxu0 0
        %3736 = vmatmul.mubr.bf16.gmra.mrb[0].mxu0 %v3597
        %v3737 = vpop.f32.mrb[0].mxu0
        %v3738 = vadd.f32 0.0, %v3737
        %v3739 = vpop.f32.mrb[0].mxu0
        %v3740 = vpop.f32.mrb[0].mxu0
        %v3741 = vadd.f32 0.0, %v3740
        %v3742 = vpop.f32.mrb[0].mxu0
        %3743 = vmatprep.mubr.bf16.mxu0 0
        %3744 = vmatmul.mubr.bf16.gmra.mrb[0].mxu0 %v3598
        %v3745 = vpop.f32.mrb[0].mxu0
        %v3746 = vadd.f32 0.0, %v3745
        %v3747 = vpop.f32.mrb[0].mxu0
        %v3748 = vpop.f32.mrb[0].mxu0
        %v3749 = vadd.f32 0.0, %v3748
        %v3750 = vpop.f32.mrb[0].mxu0
        %3751 = vdwg.mxu0
        %v3752 = vadd.f32 %v3454, %v3690
        %v3753 = vadd.f32 %v3455, %v3693
        %v3754 = vadd.f32 %v3456, %v3698
        %v3755 = vadd.f32 %v3457, %v3701
        %v3756 = vadd.f32 %v3458, %v3706
        %v3757 = vadd.f32 %v3459, %v3709
        %v3758 = vadd.f32 %v3460, %v3714
        %v3759 = vadd.f32 %v3461, %v3717
        %v3760 = vadd.f32 %v3462, %v3722
        %v3761 = vadd.f32 %v3463, %v3725
        %v3762 = vadd.f32 %v3464, %v3730
        %v3763 = vadd.f32 %v3465, %v3733
        %v3764 = vadd.f32 %v3466, %v3738
        %v3765 = vadd.f32 %v3467, %v3741
        %v3766 = vadd.f32 %v3468, %v3746
        %v3767 = vadd.f32 %v3469, %v3749
        %v3768 = vadd.f32 %v3752, %v3753
        %v3769 = vadd.f32 %v3768, %v3754
        %v3770 = vadd.f32 %v3769, %v3755
        %v3771 = vadd.f32 %v3770, %v3756
        %v3772 = vadd.f32 %v3771, %v3757
        %v3773 = vadd.f32 %v3772, %v3758
        %v3774 = vadd.f32 %v3773, %v3759
        %v3775 = vadd.f32 %v3774, %v3760
        %v3776 = vadd.f32 %v3775, %v3761
        %v3777 = vadd.f32 %v3776, %v3762
        %v3778 = vadd.f32 %v3777, %v3763
        %v3779 = vadd.f32 %v3778, %v3764
        %v3780 = vadd.f32 %v3779, %v3765
        %v3781 = vadd.f32 %v3780, %v3766
        %v3782 = vadd.f32 %v3781, %v3767
        %v3783 = vrot.slane %v3782, 4
        %v3784 = vadd.f32 %v3782, %v3783
        %v3785 = vrot.slane %v3784, 2
        %v3786 = vadd.f32 %v3784, %v3785
        %v3787 = vrot.slane %v3786, 1
        %v3788 = vadd.f32 %v3786, %v3787
        %v3789 = vmul.f32 %v3752, %v3752
        %v3790 = vmul.f32 %v3753, %v3753
        %v3791 = vmul.f32 %v3754, %v3754
        %v3792 = vmul.f32 %v3755, %v3755
        %v3793 = vmul.f32 %v3756, %v3756
        %v3794 = vmul.f32 %v3757, %v3757
        %v3795 = vmul.f32 %v3758, %v3758
        %v3796 = vmul.f32 %v3759, %v3759
        %v3797 = vmul.f32 %v3760, %v3760
        %v3798 = vmul.f32 %v3761, %v3761
        %v3799 = vmul.f32 %v3762, %v3762
        %v3800 = vmul.f32 %v3763, %v3763
        %v3801 = vmul.f32 %v3764, %v3764
        %v3802 = vmul.f32 %v3765, %v3765
        %v3803 = vmul.f32 %v3766, %v3766
        %v3804 = vmul.f32 %v3767, %v3767
        %v3805 = vadd.f32 %v3789, %v3790
        %v3806 = vadd.f32 %v3805, %v3791
        %v3807 = vadd.f32 %v3806, %v3792
        %v3808 = vadd.f32 %v3807, %v3793
        %v3809 = vadd.f32 %v3808, %v3794
        %v3810 = vadd.f32 %v3809, %v3795
        %v3811 = vadd.f32 %v3810, %v3796
        %v3812 = vadd.f32 %v3811, %v3797
        %v3813 = vadd.f32 %v3812, %v3798
        %v3814 = vadd.f32 %v3813, %v3799
        %v3815 = vadd.f32 %v3814, %v3800
        %v3816 = vadd.f32 %v3815, %v3801
        %v3817 = vadd.f32 %v3816, %v3802
        %v3818 = vadd.f32 %v3817, %v3803
        %v3819 = vadd.f32 %v3818, %v3804
        %v3820 = vrot.slane %v3819, 4
        %v3821 = vadd.f32 %v3819, %v3820
        %v3822 = vrot.slane %v3821, 2
        %v3823 = vadd.f32 %v3821, %v3822
        %v3824 = vrot.slane %v3823, 1
        %v3825 = vadd.f32 %v3823, %v3824
        %vm3826 = vcmask 1040384
        %v3827 = vsel %vm3826, %v3788, %v3825
        %3828 = vst [vmem:[%s477] sm:$0x3] %v3827
        %v3829 = vpack.c.bf16 %v3753, %v3752
        %v3830 = vpack.c.bf16 %v3755, %v3754
        %v3831 = vpack.c.bf16 %v3757, %v3756
        %v3832 = vpack.c.bf16 %v3759, %v3758
        %v3833 = vpack.c.bf16 %v3761, %v3760
        %v3834 = vpack.c.bf16 %v3763, %v3762
        %v3835 = vpack.c.bf16 %v3765, %v3764
        %v3836 = vpack.c.bf16 %v3767, %v3766
        %v3845 = vunpack.c.l.b16 %v3829
        %v3846 = vunpack.c.h.b16 %v3829
        %v3847 = vunpack.c.l.b16 %v3830
        %v3848 = vunpack.c.h.b16 %v3830
        %v3849 = vunpack.c.l.b16 %v3831
        %v3850 = vunpack.c.h.b16 %v3831
        %v3851 = vunpack.c.l.b16 %v3832
        %v3852 = vunpack.c.h.b16 %v3832
        %v3853 = vunpack.c.l.b16 %v3833
        %v3854 = vunpack.c.h.b16 %v3833
        %v3855 = vunpack.c.l.b16 %v3834
        %v3856 = vunpack.c.h.b16 %v3834
        %v3857 = vunpack.c.l.b16 %v3835
        %v3858 = vunpack.c.h.b16 %v3835
        %v3859 = vunpack.c.l.b16 %v3836
        %v3860 = vunpack.c.h.b16 %v3836
        %v3861 = vpack.c.b16 %v3845, %v3845
        %v3862 = vpack.c.b16 %v3846, %v3846
        %v3863 = vpack.c.b16 %v3847, %v3847
        %v3864 = vpack.c.b16 %v3848, %v3848
        %v3865 = vpack.c.b16 %v3849, %v3849
        %v3866 = vpack.c.b16 %v3850, %v3850
        %v3867 = vpack.c.b16 %v3851, %v3851
        %v3868 = vpack.c.b16 %v3852, %v3852
        %v3869 = vpack.c.b16 %v3853, %v3853
        %v3870 = vpack.c.b16 %v3854, %v3854
        %v3871 = vpack.c.b16 %v3855, %v3855
        %v3872 = vpack.c.b16 %v3856, %v3856
        %v3873 = vpack.c.b16 %v3857, %v3857
        %v3874 = vpack.c.b16 %v3858, %v3858
        %v3875 = vpack.c.b16 %v3859, %v3859
        %v3876 = vpack.c.b16 %v3860, %v3860
        %3893 = vst [vmem:[%s470] sm:$0xf] %v3861
        %3894 = vst [vmem:[%s470 + $0x4] sm:$0xf] %v3862
        %3895 = vst [vmem:[%s470 + $0x8] sm:$0xf] %v3863
        %3896 = vst [vmem:[%s470 + $0xc] sm:$0xf] %v3864
        %3897 = vst [vmem:[%s470 + $0x10] sm:$0xf] %v3865
        %3898 = vst [vmem:[%s470 + $0x14] sm:$0xf] %v3866
        %3899 = vst [vmem:[%s470 + $0x18] sm:$0xf] %v3867
        %3900 = vst [vmem:[%s470 + $0x1c] sm:$0xf] %v3868
        %3901 = vst [vmem:[%s470 + $0x20] sm:$0xf] %v3869
        %3902 = vst [vmem:[%s470 + $0x24] sm:$0xf] %v3870
        %3903 = vst [vmem:[%s470 + $0x28] sm:$0xf] %v3871
        %3904 = vst [vmem:[%s470 + $0x2c] sm:$0xf] %v3872
        %3905 = vst [vmem:[%s470 + $0x30] sm:$0xf] %v3873
        %3906 = vst [vmem:[%s470 + $0x34] sm:$0xf] %v3874
        %3907 = vst [vmem:[%s470 + $0x38] sm:$0xf] %v3875
        %3908 = vst [vmem:[%s470 + $0x3c] sm:$0xf] %v3876
        %s3909 = sand.u32 %s218, 1
        %s3910 = scalar_lea.sflag [#allocation5], %s3909
        %s3911 = sand.u32 %s218, 1
        %s3912 = smul.addr %s3911, 64
        %s3913 = scalar_lea.vmem [#allocation14], %s3912
        %s3914 = sand.u32 %s246, 1
        %s3915 = scalar_lea.sflag [#allocation16], %s3914
        %s3916 = sand.u32 %s246, 1
        %s3917 = smul.addr %s3916, 2
        %s3918 = scalar_lea.vmem [#allocation15], %s3917
        // Predicated region
        $region69: #{double_conv.3} parent=43 // pred_check
          %p3919 = pneg %p228
        $region70: #{double_conv.3} parent=43 // pred_check_branch
          %3921 = sbr.rel (%p3919) target = $region72
        $region71: #{double_conv.3} parent=43 // pred_region
          %s3922 = smul.u32 8, %s38
          %s3924 = ssub.s32 1024, 1024
          %3925 = vsyncadd %s3910, %s3924
          %s3926 = smul.addr %s3922, 2
          %s3927 = smul.addr %s37, 32
          %s3928 = sadd.s32 %s3926, %s3927
          %s3929 = smul.addr %s3928, 64
          %s3930 = scalar_lea.hbm %s6, %s3929
          %s3931 = sshll.u32 %s3913, 4
          %s3932 = int_to_ptr.vmem [resolvable:$true] %s3931
          %3937 = dma.vmem_to_hbm [thread:$0]  %s3932, 1024, %s3930, %s3910, 64, 64, 4
        $region72: #{double_conv.3} parent=43 // pred_fallthru
          _
        // Predicated region
        $region73: #{double_conv.3} parent=43 // pred_check
          %p3938 = pneg %p256
        $region74: #{double_conv.3} parent=43 // pred_check_branch
          %3940 = sbr.rel (%p3938) target = $region76
        $region75: #{double_conv.3} parent=43 // pred_region
          %s3942 = ssub.s32 32, 32
          %3943 = vsyncadd %s3915, %s3942
          %s3944 = smul.addr %s37, 2
          %s3945 = sadd.s32 %s38, %s3944
          %s3946 = smul.addr %s3945, 32
          %s3947 = scalar_lea.hbm %s7, %s3946
          %s3949 = sshll.u32 %s3918, 4
          %s3950 = int_to_ptr.vmem [resolvable:$true] %s3949
          %3952 = dma.vmem_to_hbm [thread:$0]  %s3950, 32, %s3947, %s3915
        $region76: #{double_conv.3} parent=43 // pred_fallthru
          _
      $region44: #{double_conv.3} parent=5 // pred_fallthru
        _
      %p3953 = scmp.le.s32.totalorder 2, %s28
      // Predicated region
      $region77: #{double_conv.3} parent=5 // pred_check
        %p3954 = pneg %p3953
      $region78: #{double_conv.3} parent=5 // pred_check_branch
        %3956 = sbr.rel (%p3954) target = $region80
      $region79: #{double_conv.3} parent=5 // pred_region
        %s3957 = ssub.s32 %s28, 2
        // Predicated region
        $region81: #{double_conv.3} parent=79 // pred_check
          %p3958 = pneg %p234
        $region82: #{double_conv.3} parent=79 // pred_check_branch
          %3960 = sbr.rel (%p3958) target = $region84
        $region83: #{double_conv.3} parent=79 // pred_region
          %s3961 = sand.u32 %s219, 1
          %s3962 = scalar_lea.sflag [#allocation5], %s3961
          %s3963 = sand.u32 %s219, 1
          %s3964 = smul.addr %s3963, 64
          %s3965 = scalar_lea.vmem [#allocation14], %s3964
          %3966 = dma.done %s3962, 1024
        $region84: #{double_conv.3} parent=79 // pred_fallthru
          _
        // Predicated region
        $region85: #{double_conv.3} parent=79 // pred_check
          %p3967 = pneg %p262
        $region86: #{double_conv.3} parent=79 // pred_check_branch
          %3969 = sbr.rel (%p3967) target = $region88
        $region87: #{double_conv.3} parent=79 // pred_region
          %s3970 = sand.u32 %s247, 1
          %s3971 = scalar_lea.sflag [#allocation16], %s3970
          %s3972 = sand.u32 %s247, 1
          %s3973 = smul.addr %s3972, 2
          %s3974 = scalar_lea.vmem [#allocation15], %s3973
          %3975 = dma.done %s3971, 32
        $region88: #{double_conv.3} parent=79 // pred_fallthru
          _
      $region80: #{double_conv.3} parent=5 // pred_fallthru
        _
    $region6: #{double_conv.3} parent=1 // loop_footer
      %s32 = sadd.s32 1, %s28
    $region7: #{double_conv.3} parent=1 // loop_footer_branch
      %27 = sbr.rel target = $region3
    $region8: #{double_conv.3} parent=1 // loop_exit
      _
    %3976 = vsyncpa [#allocation4], 1
    %s3977 = scalar_lea.sflag [#allocation4], 1
    %3978 = vsyncpa %s3977, 1
    %3979 = vsyncpa [#allocation7], 1
    %s3980 = scalar_lea.sflag [#allocation7], 1
    %3981 = vsyncpa %s3980, 1
    %3982 = vsyncpa [#allocation10], 1
    %3983 = vsyncpa [#allocation13], 1
    %3984 = vsyncpa [#allocation5], 1
    %s3985 = scalar_lea.sflag [#allocation5], 1
    %3986 = vsyncpa %s3985, 1
    %3987 = vsyncpa [#allocation16], 1
    %s3988 = scalar_lea.sflag [#allocation16], 1
    %3989 = vsyncpa %s3988, 1

// kernel: double_conv.4
$region0: #{double_conv.4}
  #allocation0 [shape = 'u32[]', space=smem, size = 0x4, offset = 0x4, fixed_abs, tag = 'smem constant byte address 0x4 - core index']
  #allocation1 [shape = 'u32[144,128]{1,0:T(1,128)}', space=vmem, size = 0x12000, scoped, tag = 'internal scratch']
  #allocation2 [shape = 'bf16[10,18,128]{2,1,0:T(8,128)(2,1)}', space=vmem, size = 0xf000, scoped, tag = 'scratch operand']
  %s0 = inlined_call_operand.hbm [shape: bf16[2,16,16,128], index: 0, kind: input, shape index: {}, may-alias: {0,1,2}]
  %s1 = inlined_call_operand.hbm [shape: bf16[2,16,16,128], index: 1, kind: input, shape index: {}, may-alias: {0,1,2}]
  %s2 = inlined_call_operand.hbm [shape: bf16[2,16,16,128], index: 2, kind: input, shape index: {}, may-alias: {0,1,2}]
  %s3 = inlined_call_operand.hbm [shape: bf16[9,128,128], index: 3, kind: input, shape index: {}]
  %s4 = inlined_call_operand.hbm [shape: f32[1,128], index: 4, kind: input, shape index: {}]
  %s5 = inlined_call_operand.hbm [shape: f32[1,128], index: 5, kind: input, shape index: {}]
  %s6 = inlined_call_operand.hbm [shape: bf16[2,16,16,128], index: 6, kind: output, shape index: {0}]
  %s7 = inlined_call_operand.hbm [shape: f32[2,2,2,128], index: 7, kind: output, shape index: {1}]
  %8 = xla_tuple %s6, %s7
  %s9 = sld [smem:[#allocation0]]
  $region89: #{double_conv.4} parent=0
    _
  %s11 = ssub.s32 1, %s9
  %s12 = scalar_select 0, %s11, %s9
  $region1: #{double_conv.4} parent=0
    #allocation3 [shape = 'u8[65536]{0}', space=vmem, size = 0x10000, scoped, tag = 'input window, operand 0']
    #allocation4 [shape = 's32[2]{0}', space=sflag, size = 0x8, scoped, tag = 'scoped memory for double_conv.4']
    #allocation5 [shape = 's32[2]{0}', space=sflag, size = 0x8, scoped, tag = 'scoped memory for double_conv.4']
    #allocation6 [shape = 'u8[8192]{0}', space=vmem, size = 0x2000, scoped, tag = 'input window, operand 1']
    #allocation7 [shape = 's32[2]{0}', space=sflag, size = 0x8, scoped, tag = 'scoped memory for double_conv.4']
    #allocation8 [shape = 'u8[8192]{0}', space=vmem, size = 0x2000, scoped, tag = 'input window, operand 2']
    #allocation9 [shape = 'u8[294912]{0}', space=vmem, size = 0x48000, scoped, tag = 'input window, operand 3, single buffered']
    #allocation10 [shape = 's32[1]{0}', space=sflag, size = 0x4, scoped, tag = 'scoped memory for double_conv.4']
    #allocation11 [shape = 'u8[512]{0}', space=vmem, size = 0x400, scoped, tag = 'input window, operand 4, single buffered']
    #allocation12 [shape = 'u8[512]{0}', space=vmem, size = 0x400, scoped, tag = 'input window, operand 5, single buffered']
    #allocation13 [shape = 's32[1]{0}', space=sflag, size = 0x4, scoped, tag = 'scoped memory for double_conv.4']
    #allocation14 [shape = 'u8[65536]{0}', space=vmem, size = 0x10000, scoped, tag = 'output window, operand 0']
    #allocation15 [shape = 'u8[2048]{0}', space=vmem, size = 0x800, scoped, tag = 'output window, operand 1']
    #allocation16 [shape = 's32[2]{0}', space=sflag, size = 0x8, scoped, tag = 'scoped memory for double_conv.4']
    %13 = vsyncpa [#allocation4], 0
    %s14 = scalar_lea.sflag [#allocation4], 1
    %15 = vsyncpa %s14, 0
    %16 = vsyncpa [#allocation7], 0
    %s17 = scalar_lea.sflag [#allocation7], 1
    %18 = vsyncpa %s17, 0
    %19 = vsyncpa [#allocation10], 0
    %20 = vsyncpa [#allocation13], 0
    %21 = vsyncpa [#allocation5], 0
    %s22 = scalar_lea.sflag [#allocation5], 1
    %23 = vsyncpa %s22, 0
    %24 = vsyncpa [#allocation16], 0
    %s25 = scalar_lea.sflag [#allocation16], 1
    %26 = vsyncpa %s25, 0
    loop: start=0, step=1, limit=6
    $region2: #{double_conv.4} parent=1 // loop_pre_header
      _
    $region3: #{double_conv.4} parent=1 // loop_header
      %s28 = sphi 0, %s32
      %p29 = scmp.ge.s32.totalorder %s28, 6
      %s35 = sphi 0, %s47
      %s36 = sphi 0, %s43
      %s37 = sphi 0, %s35
      %s38 = sphi 0, %s36
      %s39 = sphi 0, %s37
      %s40 = sphi 0, %s38
      %s52 = sphi 0, %s54
      %s55 = sphi 0, %s52
      %s56 = sphi 0, %s55
      %s72 = sphi 0, %s56
      %s88 = sphi 0, %s90
      %s91 = sphi 0, %s88
      %s92 = sphi 0, %s91
      %s108 = sphi 0, %s92
      %s124 = sphi 0, %s126
      %s127 = sphi 0, %s124
      %s128 = sphi 0, %s127
      %s144 = sphi 0, %s128
      %s148 = sphi 0, %s148
      %s150 = sphi 0, %s148
      %s151 = sphi 0, %s150
      %s165 = sphi 0, %s151
      %s169 = sphi 0, %s169
      %s171 = sphi 0, %s169
      %s172 = sphi 0, %s171
      %s186 = sphi 0, %s172
      %s190 = sphi 0, %s190
      %s192 = sphi 0, %s190
      %s193 = sphi 0, %s192
      %s207 = sphi 0, %s193
      %s215 = sphi 0, %s217
      %s218 = sphi 0, %s215
      %s219 = sphi 0, %s218
      %s235 = sphi 0, %s219
      %s243 = sphi 0, %s245
      %s246 = sphi 0, %s243
      %s247 = sphi 0, %s246
      %s263 = sphi 0, %s247
    $region4: #{double_conv.4} parent=1 // loop_header_branch
      %31 = sbr.rel (%p29) target = $region8
    $region5: #{double_conv.4} parent=1 // loop_body
      %s33 = ssub.s32 %s28, 1
      %s34 = ssub.s32 %s28, 2
      %s41 = sadd.s32 1, %s36
      %p42 = scmp.ge.s32.totalorder %s41, 2
      %s43 = scalar_select %p42, 0, %s41
      %s44 = sadd.s32 1, %s35
      %s45 = scalar_select %p42, %s44, %s35
      %p46 = scmp.ge.s32.totalorder %s45, 2
      %s47 = scalar_select %p46, 0, %s45
      %s48 = ssub.s32 %s35, %s47
      %s49 = ssub.s32 %s36, %s43
      %s50 = sor.u32 %s48, %s49
      %p51 = scmp.eq.s32.totalorder %s50, 0
      %s53 = sadd.s32 %s52, 1
      %s54 = scalar_select %p51, %s52, %s53
      %p57 = pneg %p51
      %p58 = scmp.eq.s32.totalorder %s28, 3
      %p59 = por %p57, %p58
      %p60 = scmp.ne.s32.totalorder %s52, %s55
      %p61 = scmp.eq.s32.totalorder %s28, 0
      %p62 = por %p60, %p61
      %p63 = scmp.ne.s32.totalorder %s52, %s55
      %p64 = scmp.eq.s32.totalorder %s33, 3
      %p65 = por %p63, %p64
      %p66 = scmp.ne.s32.totalorder %s55, %s56
      %p67 = scmp.eq.s32.totalorder %s33, 0
      %p68 = por %p66, %p67
      %p69 = scmp.ne.s32.totalorder %s55, %s56
      %p70 = scmp.eq.s32.totalorder %s34, 3
      %p71 = por %p69, %p70
      %p73 = scmp.ne.s32.totalorder %s56, %s72
      %p74 = scmp.eq.s32.totalorder %s34, 0
      %p75 = por %p73, %p74
      %s76 = smul.u32 %s36, 8
      %s77 = ssub.s32 %s76, 1
      %p78 = scmp.gt.s32.totalorder %s77, 0
      %s79 = scalar_select %p78, %s77, 0
      %s80 = smul.u32 %s43, 8
      %s81 = ssub.s32 %s80, 1
      %p82 = scmp.gt.s32.totalorder %s81, 0
      %s83 = scalar_select %p82, %s81, 0
      %s84 = ssub.s32 %s35, %s47
      %s85 = ssub.s32 %s79, %s83
      %s86 = sor.u32 %s84, %s85
      %p87 = scmp.eq.s32.totalorder %s86, 0
      %s89 = sadd.s32 %s88, 1
      %s90 = scalar_select %p87, %s88, %s89
      %p93 = pneg %p87
      %p94 = scmp.eq.s32.totalorder %s28, 3
      %p95 = por %p93, %p94
      %p96 = scmp.ne.s32.totalorder %s88, %s91
      %p97 = scmp.eq.s32.totalorder %s28, 0
      %p98 = por %p96, %p97
      %p99 = scmp.ne.s32.totalorder %s88, %s91
      %p100 = scmp.eq.s32.totalorder %s33, 3
      %p101 = por %p99, %p100
      %p102 = scmp.ne.s32.totalorder %s91, %s92
      %p103 = scmp.eq.s32.totalorder %s33, 0
      %p104 = por %p102, %p103
      %p105 = scmp.ne.s32.totalorder %s91, %s92
      %p106 = scmp.eq.s32.totalorder %s34, 3
      %p107 = por %p105, %p106
      %p109 = scmp.ne.s32.totalorder %s92, %s108
      %p110 = scmp.eq.s32.totalorder %s34, 0
      %p111 = por %p109, %p110
      %s112 = sadd.s32 %s36, 1
      %s113 = smul.u32 %s112, 8
      %p114 = scmp.lt.s32.totalorder %s113, 15
      %s115 = scalar_select %p114, %s113, 15
      %s116 = sadd.s32 %s43, 1
      %s117 = smul.u32 %s116, 8
      %p118 = scmp.lt.s32.totalorder %s117, 15
      %s119 = scalar_select %p118, %s117, 15
      %s120 = ssub.s32 %s35, %s47
      %s121 = ssub.s32 %s115, %s119
      %s122 = sor.u32 %s120, %s121
      %p123 = scmp.eq.s32.totalorder %s122, 0
      %s125 = sadd.s32 %s124, 1
      %s126 = scalar_select %p123, %s124, %s125
      %p129 = pneg %p123
      %p130 = scmp.eq.s32.totalorder %s28, 3
      %p131 = por %p129, %p130
      %p132 = scmp.ne.s32.totalorder %s124, %s127
      %p133 = scmp.eq.s32.totalorder %s28, 0
      %p134 = por %p132, %p133
      %p135 = scmp.ne.s32.totalorder %s124, %s127
      %p136 = scmp.eq.s32.totalorder %s33, 3
      %p137 = por %p135, %p136
      %p138 = scmp.ne.s32.totalorder %s127, %s128
      %p139 = scmp.eq.s32.totalorder %s33, 0
      %p140 = por %p138, %p139
      %p141 = scmp.ne.s32.totalorder %s127, %s128
      %p142 = scmp.eq.s32.totalorder %s34, 3
      %p143 = por %p141, %p142
      %p145 = scmp.ne.s32.totalorder %s128, %s144
      %p146 = scmp.eq.s32.totalorder %s34, 0
      %p147 = por %p145, %p146
      %s149 = sadd.s32 %s148, 1
      %p152 = scmp.eq.s32.totalorder %s28, 3
      %p153 = scmp.ne.s32.totalorder %s148, %s150
      %p154 = scmp.eq.s32.totalorder %s28, 0
      %p155 = por %p153, %p154
      %p156 = scmp.ne.s32.totalorder %s148, %s150
      %p157 = scmp.eq.s32.totalorder %s33, 3
      %p158 = por %p156, %p157
      %p159 = scmp.ne.s32.totalorder %s150, %s151
      %p160 = scmp.eq.s32.totalorder %s33, 0
      %p161 = por %p159, %p160
      %p162 = scmp.ne.s32.totalorder %s150, %s151
      %p163 = scmp.eq.s32.totalorder %s34, 3
      %p164 = por %p162, %p163
      %p166 = scmp.ne.s32.totalorder %s151, %s165
      %p167 = scmp.eq.s32.totalorder %s34, 0
      %p168 = por %p166, %p167
      %s170 = sadd.s32 %s169, 1
      %p173 = scmp.eq.s32.totalorder %s28, 3
      %p174 = scmp.ne.s32.totalorder %s169, %s171
      %p175 = scmp.eq.s32.totalorder %s28, 0
      %p176 = por %p174, %p175
      %p177 = scmp.ne.s32.totalorder %s169, %s171
      %p178 = scmp.eq.s32.totalorder %s33, 3
      %p179 = por %p177, %p178
      %p180 = scmp.ne.s32.totalorder %s171, %s172
      %p181 = scmp.eq.s32.totalorder %s33, 0
      %p182 = por %p180, %p181
      %p183 = scmp.ne.s32.totalorder %s171, %s172
      %p184 = scmp.eq.s32.totalorder %s34, 3
      %p185 = por %p183, %p184
      %p187 = scmp.ne.s32.totalorder %s172, %s186
      %p188 = scmp.eq.s32.totalorder %s34, 0
      %p189 = por %p187, %p188
      %s191 = sadd.s32 %s190, 1
      %p194 = scmp.eq.s32.totalorder %s28, 3
      %p195 = scmp.ne.s32.totalorder %s190, %s192
      %p196 = scmp.eq.s32.totalorder %s28, 0
      %p197 = por %p195, %p196
      %p198 = scmp.ne.s32.totalorder %s190, %s192
      %p199 = scmp.eq.s32.totalorder %s33, 3
      %p200 = por %p198, %p199
      %p201 = scmp.ne.s32.totalorder %s192, %s193
      %p202 = scmp.eq.s32.totalorder %s33, 0
      %p203 = por %p201, %p202
      %p204 = scmp.ne.s32.totalorder %s192, %s193
      %p205 = scmp.eq.s32.totalorder %s34, 3
      %p206 = por %p204, %p205
      %p208 = scmp.ne.s32.totalorder %s193, %s207
      %p209 = scmp.eq.s32.totalorder %s34, 0
      %p210 = por %p208, %p209
      %s211 = ssub.s32 %s35, %s47
      %s212 = ssub.s32 %s36, %s43
      %s213 = sor.u32 %s211, %s212
      %p214 = scmp.eq.s32.totalorder %s213, 0
      %s216 = sadd.s32 %s215, 1
      %s217 = scalar_select %p214, %s215, %s216
      %p220 = pneg %p214
      %p221 = scmp.eq.s32.totalorder %s28, 3
      %p222 = por %p220, %p221
      %p223 = scmp.ne.s32.totalorder %s215, %s218
      %p224 = scmp.eq.s32.totalorder %s28, 0
      %p225 = por %p223, %p224
      %p226 = scmp.ne.s32.totalorder %s215, %s218
      %p227 = scmp.eq.s32.totalorder %s33, 3
      %p228 = por %p226, %p227
      %p229 = scmp.ne.s32.totalorder %s218, %s219
      %p230 = scmp.eq.s32.totalorder %s33, 0
      %p231 = por %p229, %p230
      %p232 = scmp.ne.s32.totalorder %s218, %s219
      %p233 = scmp.eq.s32.totalorder %s34, 3
      %p234 = por %p232, %p233
      %p236 = scmp.ne.s32.totalorder %s219, %s235
      %p237 = scmp.eq.s32.totalorder %s34, 0
      %p238 = por %p236, %p237
      %s239 = ssub.s32 %s35, %s47
      %s240 = ssub.s32 %s36, %s43
      %s241 = sor.u32 %s239, %s240
      %p242 = scmp.eq.s32.totalorder %s241, 0
      %s244 = sadd.s32 %s243, 1
      %s245 = scalar_select %p242, %s243, %s244
      %p248 = pneg %p242
      %p249 = scmp.eq.s32.totalorder %s28, 3
      %p250 = por %p248, %p249
      %p251 = scmp.ne.s32.totalorder %s243, %s246
      %p252 = scmp.eq.s32.totalorder %s28, 0
      %p253 = por %p251, %p252
      %p254 = scmp.ne.s32.totalorder %s243, %s246
      %p255 = scmp.eq.s32.totalorder %s33, 3
      %p256 = por %p254, %p255
      %p257 = scmp.ne.s32.totalorder %s246, %s247
      %p258 = scmp.eq.s32.totalorder %s33, 0
      %p259 = por %p257, %p258
      %p260 = scmp.ne.s32.totalorder %s246, %s247
      %p261 = scmp.eq.s32.totalorder %s34, 3
      %p262 = por %p260, %p261
      %p264 = scmp.ne.s32.totalorder %s247, %s263
      %p265 = scmp.eq.s32.totalorder %s34, 0
      %p266 = por %p264, %p265
      %p267 = scmp.le.s32.totalorder 1, %s28
      %p268 = scmp.lt.s32.totalorder %s28, 5
      %p269 = pnand %p267, %p268
      %p270 = pneg %p269
      // Predicated region
      $region9: #{double_conv.4} parent=5 // pred_check
        _
      $region10: #{double_conv.4} parent=5 // pred_check_branch
        %272 = sbr.rel (%p269) target = $region12
      $region11: #{double_conv.4} parent=5 // pred_region
        %s273 = ssub.s32 %s28, 1
        // Predicated region
        $region13: #{double_conv.4} parent=11 // pred_check
          %p274 = pneg %p161
        $region14: #{double_conv.4} parent=11 // pred_check_branch
          %276 = sbr.rel (%p274) target = $region16
        $region15: #{double_conv.4} parent=11 // pred_region
          %s278 = ssub.s32 9216, 9216
          %279 = vsyncadd [#allocation10], %s278
          %s280 = sshll.u32 [#allocation9], 4
          %s281 = int_to_ptr.vmem [resolvable:$true] %s280
          %286 = dma.hbm_to_vmem [thread:$0]  %s3, 9216, %s281, [#allocation10], 64, 64, 4
        $region16: #{double_conv.4} parent=11 // pred_fallthru
          _
        // Predicated region
        $region17: #{double_conv.4} parent=11 // pred_check
          %p287 = pneg %p182
        $region18: #{double_conv.4} parent=11 // pred_check_branch
          %289 = sbr.rel (%p287) target = $region20
        $region19: #{double_conv.4} parent=11 // pred_region
          %s291 = ssub.s32 16, 16
          %292 = vsyncadd [#allocation10], %s291
          %s294 = sshll.u32 [#allocation11], 4
          %s295 = int_to_ptr.vmem [resolvable:$true] %s294
          %297 = dma.hbm_to_vmem [thread:$0]  %s4, 16, %s295, [#allocation10]
        $region20: #{double_conv.4} parent=11 // pred_fallthru
          _
        // Predicated region
        $region21: #{double_conv.4} parent=11 // pred_check
          %p298 = pneg %p203
        $region22: #{double_conv.4} parent=11 // pred_check_branch
          %300 = sbr.rel (%p298) target = $region24
        $region23: #{double_conv.4} parent=11 // pred_region
          %s302 = ssub.s32 16, 16
          %303 = vsyncadd [#allocation13], %s302
          %s305 = sshll.u32 [#allocation12], 4
          %s306 = int_to_ptr.vmem [resolvable:$true] %s305
          %308 = dma.hbm_to_vmem [thread:$0]  %s5, 16, %s306, [#allocation13]
        $region24: #{double_conv.4} parent=11 // pred_fallthru
          _
      $region12: #{double_conv.4} parent=5 // pred_fallthru
        _
      %p309 = scmp.lt.s32.totalorder %s28, 4
      // Predicated region
      $region25: #{double_conv.4} parent=5 // pred_check
        %p310 = pneg %p309
      $region26: #{double_conv.4} parent=5 // pred_check_branch
        %312 = sbr.rel (%p310) target = $region28
      $region27: #{double_conv.4} parent=5 // pred_region
        // Predicated region
        $region29: #{double_conv.4} parent=27 // pred_check
          %p313 = pneg %p62
        $region30: #{double_conv.4} parent=27 // pred_check_branch
          %315 = sbr.rel (%p313) target = $region32
        $region31: #{double_conv.4} parent=27 // pred_region
          %s316 = sand.u32 %s52, 1
          %s317 = scalar_lea.sflag [#allocation4], %s316
          %s318 = sand.u32 %s52, 1
          %s319 = smul.addr %s318, 64
          %s320 = scalar_lea.vmem [#allocation3], %s319
          %s321 = smul.u32 8, %s36
          %s323 = ssub.s32 1024, 1024
          %324 = vsyncadd %s317, %s323
          %s325 = smul.addr %s321, 2
          %s326 = smul.addr %s35, 32
          %s327 = sadd.s32 %s325, %s326
          %s328 = smul.addr %s327, 64
          %s329 = scalar_lea.hbm %s0, %s328
          %s330 = sshll.u32 %s320, 4
          %s331 = int_to_ptr.vmem [resolvable:$true] %s330
          %336 = dma.hbm_to_vmem [thread:$0]  %s329, 1024, %s331, %s317, 64, 64, 4
        $region32: #{double_conv.4} parent=27 // pred_fallthru
          _
        // Predicated region
        $region33: #{double_conv.4} parent=27 // pred_check
          %p337 = pneg %p98
        $region34: #{double_conv.4} parent=27 // pred_check_branch
          %339 = sbr.rel (%p337) target = $region36
        $region35: #{double_conv.4} parent=27 // pred_region
          %s340 = sand.u32 %s28, 1
          %s341 = scalar_lea.sflag [#allocation7], %s340
          %s342 = sand.u32 %s88, 1
          %s343 = smul.addr %s342, 8
          %s344 = scalar_lea.vmem [#allocation6], %s343
          %s345 = smul.u32 %s36, 8
          %s346 = ssub.s32 %s345, 1
          %p347 = scmp.gt.s32.totalorder %s346, 0
          %s348 = scalar_select %p347, %s346, 0
          %s350 = ssub.s32 128, 128
          %351 = vsyncadd %s341, %s350
          %s352 = smul.addr %s348, 2
          %s353 = smul.addr %s35, 32
          %s354 = sadd.s32 %s352, %s353
          %s355 = smul.addr %s354, 64
          %s356 = scalar_lea.hbm %s1, %s355
          %s357 = sshll.u32 %s344, 4
          %s358 = int_to_ptr.vmem [resolvable:$true] %s357
          %363 = dma.hbm_to_vmem [thread:$0]  %s356, 128, %s358, %s341, 64, 64, 4
        $region36: #{double_conv.4} parent=27 // pred_fallthru
          _
        // Predicated region
        $region37: #{double_conv.4} parent=27 // pred_check
          %p364 = pneg %p134
        $region38: #{double_conv.4} parent=27 // pred_check_branch
          %366 = sbr.rel (%p364) target = $region40
        $region39: #{double_conv.4} parent=27 // pred_region
          %s367 = sand.u32 %s28, 1
          %s368 = scalar_lea.sflag [#allocation7], %s367
          %s369 = sand.u32 %s124, 1
          %s370 = smul.addr %s369, 8
          %s371 = scalar_lea.vmem [#allocation8], %s370
          %s372 = sadd.s32 %s36, 1
          %s373 = smul.u32 %s372, 8
          %p374 = scmp.lt.s32.totalorder %s373, 15
          %s375 = scalar_select %p374, %s373, 15
          %s377 = ssub.s32 128, 128
          %378 = vsyncadd %s368, %s377
          %s379 = smul.addr %s375, 2
          %s380 = smul.addr %s35, 32
          %s381 = sadd.s32 %s379, %s380
          %s382 = smul.addr %s381, 64
          %s383 = scalar_lea.hbm %s2, %s382
          %s384 = sshll.u32 %s371, 4
          %s385 = int_to_ptr.vmem [resolvable:$true] %s384
          %390 = dma.hbm_to_vmem [thread:$0]  %s383, 128, %s385, %s368, 64, 64, 4
        $region40: #{double_conv.4} parent=27 // pred_fallthru
          _
      $region28: #{double_conv.4} parent=5 // pred_fallthru
        _
      %p391 = scmp.le.s32.totalorder 1, %s28
      %p392 = scmp.lt.s32.totalorder %s28, 5
      %p393 = pnand %p391, %p392
      %p394 = pneg %p393
      // Predicated region
      $region41: #{double_conv.4} parent=5 // pred_check
        _
      $region42: #{double_conv.4} parent=5 // pred_check_branch
        %396 = sbr.rel (%p393) target = $region44
      $region43: #{double_conv.4} parent=5 // pred_region
        %s397 = ssub.s32 %s28, 1
        %s398 = sand.u32 %s55, 1
        %s399 = scalar_lea.sflag [#allocation4], %s398
        %s400 = sand.u32 %s55, 1
        %s401 = smul.addr %s400, 64
        %s402 = scalar_lea.vmem [#allocation3], %s401
        // Predicated region
        $region45: #{double_conv.4} parent=43 // pred_check
          %p403 = pneg %p68
        $region46: #{double_conv.4} parent=43 // pred_check_branch
          %405 = sbr.rel (%p403) target = $region48
        $region47: #{double_conv.4} parent=43 // pred_region
          %406 = dma.done %s399, 1024
        $region48: #{double_conv.4} parent=43 // pred_fallthru
          _
        %s407 = sand.u32 %s33, 1
        %s408 = scalar_lea.sflag [#allocation7], %s407
        %s409 = sand.u32 %s91, 1
        %s410 = smul.addr %s409, 8
        %s411 = scalar_lea.vmem [#allocation6], %s410
        // Predicated region
        $region49: #{double_conv.4} parent=43 // pred_check
          %p412 = pneg %p104
        $region50: #{double_conv.4} parent=43 // pred_check_branch
          %414 = sbr.rel (%p412) target = $region52
        $region51: #{double_conv.4} parent=43 // pred_region
          %415 = dma.done %s408, 128
        $region52: #{double_conv.4} parent=43 // pred_fallthru
          _
        %s416 = sand.u32 %s33, 1
        %s417 = scalar_lea.sflag [#allocation7], %s416
        %s418 = sand.u32 %s127, 1
        %s419 = smul.addr %s418, 8
        %s420 = scalar_lea.vmem [#allocation8], %s419
        // Predicated region
        $region53: #{double_conv.4} parent=43 // pred_check
          %p421 = pneg %p140
        $region54: #{double_conv.4} parent=43 // pred_check_branch
          %423 = sbr.rel (%p421) target = $region56
        $region55: #{double_conv.4} parent=43 // pred_region
          %424 = dma.done %s417, 128
        $region56: #{double_conv.4} parent=43 // pred_fallthru
          _
        // Predicated region
        $region57: #{double_conv.4} parent=43 // pred_check
          %p425 = pneg %p161
        $region58: #{double_conv.4} parent=43 // pred_check_branch
          %427 = sbr.rel (%p425) target = $region60
        $region59: #{double_conv.4} parent=43 // pred_region
          %428 = dma.done [#allocation10], 9216
        $region60: #{double_conv.4} parent=43 // pred_fallthru
          _
        // Predicated region
        $region61: #{double_conv.4} parent=43 // pred_check
          %p429 = pneg %p182
        $region62: #{double_conv.4} parent=43 // pred_check_branch
          %431 = sbr.rel (%p429) target = $region64
        $region63: #{double_conv.4} parent=43 // pred_region
          %432 = dma.done [#allocation10], 16
        $region64: #{double_conv.4} parent=43 // pred_fallthru
          _
        // Predicated region
        $region65: #{double_conv.4} parent=43 // pred_check
          %p433 = pneg %p203
        $region66: #{double_conv.4} parent=43 // pred_check_branch
          %435 = sbr.rel (%p433) target = $region68
        $region67: #{double_conv.4} parent=43 // pred_region
          %436 = dma.done [#allocation13], 16
        $region68: #{double_conv.4} parent=43 // pred_fallthru
          _
        %s437 = sand.u32 %s55, 1
        %s438 = scalar_lea.sflag [#allocation4], %s437
        %s439 = sand.u32 %s55, 1
        %s440 = smul.addr %s439, 64
        %s441 = scalar_lea.vmem [#allocation3], %s440
        %p442 = pneg %p68
        %p443 = pneg %p65
        %s444 = sand.u32 %s33, 1
        %s445 = scalar_lea.sflag [#allocation7], %s444
        %s446 = sand.u32 %s91, 1
        %s447 = smul.addr %s446, 8
        %s448 = scalar_lea.vmem [#allocation6], %s447
        %p449 = pneg %p104
        %p450 = pneg %p101
        %s451 = sand.u32 %s33, 1
        %s452 = scalar_lea.sflag [#allocation7], %s451
        %s453 = sand.u32 %s127, 1
        %s454 = smul.addr %s453, 8
        %s455 = scalar_lea.vmem [#allocation8], %s454
        %p456 = pneg %p140
        %p457 = pneg %p137
        %p458 = pneg %p161
        %p459 = pneg %p158
        %p460 = pneg %p182
        %p461 = pneg %p179
        %p462 = pneg %p203
        %p463 = pneg %p200
        %p464 = pneg %p231
        %p465 = pneg %p228
        %s466 = sand.u32 %s218, 1
        %s467 = scalar_lea.sflag [#allocation5], %s466
        %s468 = sand.u32 %s218, 1
        %s469 = smul.addr %s468, 64
        %s470 = scalar_lea.vmem [#allocation14], %s469
        %p471 = pneg %p259
        %p472 = pneg %p256
        %s473 = sand.u32 %s246, 1
        %s474 = scalar_lea.sflag [#allocation16], %s473
        %s475 = sand.u32 %s246, 1
        %s476 = smul.addr %s475, 2
        %s477 = scalar_lea.vmem [#allocation15], %s476
        %s478 = smul.u32 8, %s38
        %s479 = smul.u32 %s38, 8
        %s480 = ssub.s32 %s479, 1
        %p481 = scmp.gt.s32.totalorder %s480, 0
        %s482 = scalar_select %p481, %s480, 0
        %s483 = sadd.s32 %s38, 1
        %s484 = smul.u32 %s483, 8
        %p485 = scmp.lt.s32.totalorder %s484, 15
        %s486 = scalar_select %p485, %s484, 15
        %s487 = smul.u32 8, %s38
        %v489 = vld [vmem:[#allocation11] sm:$0x1]
        %v490 = vld [vmem:[#allocation12] sm:$0x1]
        %v491 = vld [vmem:[%s411] sm:$0xf]
        %v492 = vld [vmem:[%s411 + $0x4] sm:$0xf]
        %v493 = vunpack.c.l.bf16 %v491
        %v494 = vunpack.c.l.bf16 %v492
        %v496 = vlaneseq
        %v497 = vshrl.u32 %v496, 7
        %v498 = vsub.s32 0, %v497
        %v499 = vrot.slane %v489, %v498
        %v501 = vmul.f32 %v493, %v499
        %v502 = vmul.f32 %v494, %v499
        %v504 = vlaneseq
        %v505 = vshrl.u32 %v504, 7
        %v506 = vsub.s32 0, %v505
        %v507 = vrot.slane %v490, %v506
        %v509 = vadd.f32 %v501, %v507
        %v510 = vadd.f32 %v502, %v507
        %v511 = vmax.f32 %v509, 0.0
        %v512 = vmax.f32 %v510, 0.0
        %v513 = vpack.c.bf16 %v512, %v511
        %v514 = vld [vmem:[%s420] sm:$0xf]
        %v515 = vld [vmem:[%s420 + $0x4] sm:$0xf]
        %v516 = vunpack.c.l.bf16 %v514
        %v517 = vunpack.c.l.bf16 %v515
        %v518 = vmul.f32 %v516, %v499
        %v519 = vmul.f32 %v517, %v499
        %v520 = vadd.f32 %v518, %v507
        %v521 = vadd.f32 %v519, %v507
        %v522 = vmax.f32 %v520, 0.0
        %v523 = vmax.f32 %v521, 0.0
        %v524 = vpack.c.bf16 %v523, %v522
        %p525 = scmp.eq.s32.totalorder %s38, 0
        %s526 = scalar_select %p525, 1, 0
        %v527 = vstv %s526
        %vm528 = vcmp.eq.s32.totalorder %v527, 1
        %v529 = vsel %vm528, 0, %v513
        %p530 = scmp.eq.s32.totalorder %s38, 1
        %s531 = scalar_select %p530, 1, 0
        %v532 = vstv %s531
        %vm533 = vcmp.eq.s32.totalorder %v532, 1
        %v534 = vsel %vm533, 0, %v524
        %vm535 = vcmask 1040384
        %vm536 = vsmask.f32 256
        %vm537 = vmand %vm535, %vm536
        %v538 = vld [vmem:[#allocation2] sm:$0x1]
        %v539 = vsel %vm537, 0, %v538
        %540 = vst [vmem:[#allocation2] sm:$0x1] %v539
        %v541 = vld [vmem:[#allocation2 + $0xc] sm:$0x1]
        %v542 = vsel %vm537, 0, %v541
        %543 = vst [vmem:[#allocation2 + $0xc] sm:$0x1] %v542
        %v544 = vld [vmem:[#allocation2 + $0x18] sm:$0x1]
        %v545 = vsel %vm537, 0, %v544
        %546 = vst [vmem:[#allocation2 + $0x18] sm:$0x1] %v545
        %v547 = vld [vmem:[#allocation2 + $0x24] sm:$0x1]
        %v548 = vsel %vm537, 0, %v547
        %549 = vst [vmem:[#allocation2 + $0x24] sm:$0x1] %v548
        %v550 = vld [vmem:[#allocation2 + $0x30] sm:$0x1]
        %v551 = vsel %vm537, 0, %v550
        %552 = vst [vmem:[#allocation2 + $0x30] sm:$0x1] %v551
        %v553 = vld [vmem:[#allocation2 + $0x3c] sm:$0x1]
        %v554 = vsel %vm537, 0, %v553
        %555 = vst [vmem:[#allocation2 + $0x3c] sm:$0x1] %v554
        %v556 = vld [vmem:[#allocation2 + $0x48] sm:$0x1]
        %v557 = vsel %vm537, 0, %v556
        %558 = vst [vmem:[#allocation2 + $0x48] sm:$0x1] %v557
        %v559 = vld [vmem:[#allocation2 + $0x54] sm:$0x1]
        %v560 = vsel %vm537, 0, %v559
        %561 = vst [vmem:[#allocation2 + $0x54] sm:$0x1] %v560
        %v562 = vld [vmem:[#allocation2 + $0x60] sm:$0x1]
        %v563 = vsel %vm537, 0, %v562
        %564 = vst [vmem:[#allocation2 + $0x60] sm:$0x1] %v563
        %v565 = vld [vmem:[#allocation2 + $0x6c] sm:$0x1]
        %v566 = vsel %vm537, 0, %v565
        %567 = vst [vmem:[#allocation2 + $0x6c] sm:$0x1] %v566
        %vm568 = vsmask.f32 7938
        %vm569 = vmand %vm535, %vm568
        %v570 = vld [vmem:[#allocation2 + $0x8] sm:$0x1]
        %v571 = vsel %vm569, 0, %v570
        %572 = vst [vmem:[#allocation2 + $0x8] sm:$0x1] %v571
        %v573 = vld [vmem:[#allocation2 + $0x14] sm:$0x1]
        %v574 = vsel %vm569, 0, %v573
        %575 = vst [vmem:[#allocation2 + $0x14] sm:$0x1] %v574
        %v576 = vld [vmem:[#allocation2 + $0x20] sm:$0x1]
        %v577 = vsel %vm569, 0, %v576
        %578 = vst [vmem:[#allocation2 + $0x20] sm:$0x1] %v577
        %v579 = vld [vmem:[#allocation2 + $0x2c] sm:$0x1]
        %v580 = vsel %vm569, 0, %v579
        %581 = vst [vmem:[#allocation2 + $0x2c] sm:$0x1] %v580
        %v582 = vld [vmem:[#allocation2 + $0x38] sm:$0x1]
        %v583 = vsel %vm569, 0, %v582
        %584 = vst [vmem:[#allocation2 + $0x38] sm:$0x1] %v583
        %v585 = vld [vmem:[#allocation2 + $0x44] sm:$0x1]
        %v586 = vsel %vm569, 0, %v585
        %587 = vst [vmem:[#allocation2 + $0x44] sm:$0x1] %v586
        %v588 = vld [vmem:[#allocation2 + $0x50] sm:$0x1]
        %v589 = vsel %vm569, 0, %v588
        %590 = vst [vmem:[#allocation2 + $0x50] sm:$0x1] %v589
        %v591 = vld [vmem:[#allocation2 + $0x5c] sm:$0x1]
        %v592 = vsel %vm569, 0, %v591
        %593 = vst [vmem:[#allocation2 + $0x5c] sm:$0x1] %v592
        %v594 = vld [vmem:[#allocation2 + $0x68] sm:$0x1]
        %v595 = vsel %vm569, 0, %v594
        %596 = vst [vmem:[#allocation2 + $0x68] sm:$0x1] %v595
        %v597 = vld [vmem:[#allocation2 + $0x74] sm:$0x1]
        %v598 = vsel %vm569, 0, %v597
        %599 = vst [vmem:[#allocation2 + $0x74] sm:$0x1] %v598
        %v601 = vunpack.c.l.b16 %v529
        %v602 = vunpack.c.h.b16 %v529
        %v603 = vpack.c.b16 %v601, %v601
        %v604 = vpack.c.b16 %v602, %v602
        %vm605 = vsmask.f32 4368
        %vm606 = vmor %vm536, %vm605
        %v608 = vshrl.u32 %v603, 16
        %v610 = vrot.slane %v608, 7
        %v611 = vshll.u32 %v603, 16
        %v613 = vor.u32 %v610, %v611
        %v614 = vrot.slane %v610, 4
        %v616 = vshrl.u32 %v604, 16
        %v618 = vrot.slane %v616, 7
        %v619 = vshll.u32 %v604, 16
        %v621 = vor.u32 %v618, %v619
        %v622 = vsel %vm606, %v614, %v621
        %v623 = vrot.slane %v618, 4
        %vm627 = vcmask 1043456
        %vm628 = vmand %vm627, %vm568
        %v629 = vld [vmem:[#allocation2] sm:$0xf]
        %v630 = vsel %vm628, %v613, %v629
        %631 = vst [vmem:[#allocation2] sm:$0xf] %v630
        %632 = vst [vmem:[#allocation2 + $0x4] sm:$0xf] %v622
        %v633 = vld [vmem:[#allocation2 + $0x8] sm:$0x1]
        %v634 = vsel %vm537, %v623, %v633
        %635 = vst [vmem:[#allocation2 + $0x8] sm:$0x1] %v634
        %v637 = vunpack.c.l.b16 %v534
        %v638 = vunpack.c.h.b16 %v534
        %v639 = vpack.c.b16 %v637, %v637
        %v640 = vpack.c.b16 %v638, %v638
        %v642 = vshrl.u32 %v639, 16
        %v644 = vrot.slane %v642, 7
        %v645 = vshll.u32 %v639, 16
        %v647 = vor.u32 %v644, %v645
        %v648 = vrot.slane %v644, 4
        %v650 = vshrl.u32 %v640, 16
        %v652 = vrot.slane %v650, 7
        %v653 = vshll.u32 %v640, 16
        %v655 = vor.u32 %v652, %v653
        %v656 = vsel %vm606, %v648, %v655
        %v657 = vrot.slane %v652, 4
        %s661 = scalar_lea.vmem [#allocation2], 108
        %v662 = vld [vmem:[%s661] sm:$0xf]
        %v663 = vsel %vm628, %v647, %v662
        %664 = vst [vmem:[%s661] sm:$0xf] %v663
        %665 = vst [vmem:[%s661 + $0x4] sm:$0xf] %v656
        %v666 = vld [vmem:[%s661 + $0x8] sm:$0x1]
        %v667 = vsel %vm537, %v657, %v666
        %668 = vst [vmem:[%s661 + $0x8] sm:$0x1] %v667
        %v669 = vld [vmem:[%s402] sm:$0xf]
        %v670 = vld [vmem:[%s402 + $0x4] sm:$0xf]
        %v671 = vld [vmem:[%s402 + $0x8] sm:$0xf]
        %v672 = vld [vmem:[%s402 + $0xc] sm:$0xf]
        %v673 = vld [vmem:[%s402 + $0x10] sm:$0xf]
        %v674 = vld [vmem:[%s402 + $0x14] sm:$0xf]
        %v675 = vld [vmem:[%s402 + $0x18] sm:$0xf]
        %v676 = vld [vmem:[%s402 + $0x1c] sm:$0xf]
        %v677 = vld [vmem:[%s402 + $0x20] sm:$0xf]
        %v678 = vld [vmem:[%s402 + $0x24] sm:$0xf]
        %v679 = vld [vmem:[%s402 + $0x28] sm:$0xf]
        %v680 = vld [vmem:[%s402 + $0x2c] sm:$0xf]
        %v681 = vld [vmem:[%s402 + $0x30] sm:$0xf]
        %v682 = vld [vmem:[%s402 + $0x34] sm:$0xf]
        %v683 = vld [vmem:[%s402 + $0x38] sm:$0xf]
        %v684 = vld [vmem:[%s402 + $0x3c] sm:$0xf]
        %v685 = vunpack.c.l.bf16 %v669
        %v686 = vunpack.c.l.bf16 %v670
        %v687 = vunpack.c.l.bf16 %v671
        %v688 = vunpack.c.l.bf16 %v672
        %v689 = vunpack.c.l.bf16 %v673
        %v690 = vunpack.c.l.bf16 %v674
        %v691 = vunpack.c.l.bf16 %v675
        %v692 = vunpack.c.l.bf16 %v676
        %v693 = vunpack.c.l.bf16 %v677
        %v694 = vunpack.c.l.bf16 %v678
        %v695 = vunpack.c.l.bf16 %v679
        %v696 = vunpack.c.l.bf16 %v680
        %v697 = vunpack.c.l.bf16 %v681
        %v698 = vunpack.c.l.bf16 %v682
        %v699 = vunpack.c.l.bf16 %v683
        %v700 = vunpack.c.l.bf16 %v684
        %v701 = vmul.f32 %v685, %v499
        %v702 = vmul.f32 %v686, %v499
        %v703 = vmul.f32 %v687, %v499
        %v704 = vmul.f32 %v688, %v499
        %v705 = vmul.f32 %v689, %v499
        %v706 = vmul.f32 %v690, %v499
        %v707 = vmul.f32 %v691, %v499
        %v708 = vmul.f32 %v692, %v499
        %v709 = vmul.f32 %v693, %v499
        %v710 = vmul.f32 %v694, %v499
        %v711 = vmul.f32 %v695, %v499
        %v712 = vmul.f32 %v696, %v499
        %v713 = vmul.f32 %v697, %v499
        %v714 = vmul.f32 %v698, %v499
        %v715 = vmul.f32 %v699, %v499
        %v716 = vmul.f32 %v700, %v499
        %v717 = vadd.f32 %v701, %v507
        %v718 = vadd.f32 %v702, %v507
        %v719 = vadd.f32 %v703, %v507
        %v720 = vadd.f32 %v704, %v507
        %v721 = vadd.f32 %v705, %v507
        %v722 = vadd.f32 %v706, %v507
        %v723 = vadd.f32 %v707, %v507
        %v724 = vadd.f32 %v708, %v507
        %v725 = vadd.f32 %v709, %v507
        %v726 = vadd.f32 %v710, %v507
        %v727 = vadd.f32 %v711, %v507
        %v728 = vadd.f32 %v712, %v507
        %v729 = vadd.f32 %v713, %v507
        %v730 = vadd.f32 %v714, %v507
        %v731 = vadd.f32 %v715, %v507
        %v732 = vadd.f32 %v716, %v507
        %v733 = vmax.f32 %v717, 0.0
        %v734 = vmax.f32 %v718, 0.0
        %v735 = vmax.f32 %v719, 0.0
        %v736 = vmax.f32 %v720, 0.0
        %v737 = vmax.f32 %v721, 0.0
        %v738 = vmax.f32 %v722, 0.0
        %v739 = vmax.f32 %v723, 0.0
        %v740 = vmax.f32 %v724, 0.0
        %v741 = vmax.f32 %v725, 0.0
        %v742 = vmax.f32 %v726, 0.0
        %v743 = vmax.f32 %v727, 0.0
        %v744 = vmax.f32 %v728, 0.0
        %v745 = vmax.f32 %v729, 0.0
        %v746 = vmax.f32 %v730, 0.0
        %v747 = vmax.f32 %v731, 0.0
        %v748 = vmax.f32 %v732, 0.0
        %v749 = vpack.c.bf16 %v734, %v733
        %v750 = vpack.c.bf16 %v736, %v735
        %v751 = vpack.c.bf16 %v738, %v737
        %v752 = vpack.c.bf16 %v740, %v739
        %v753 = vpack.c.bf16 %v742, %v741
        %v754 = vpack.c.bf16 %v744, %v743
        %v755 = vpack.c.bf16 %v746, %v745
        %v756 = vpack.c.bf16 %v748, %v747
        %v765 = vunpack.c.l.b16 %v749
        %v766 = vunpack.c.h.b16 %v749
        %v767 = vunpack.c.l.b16 %v750
        %v768 = vunpack.c.h.b16 %v750
        %v769 = vunpack.c.l.b16 %v751
        %v770 = vunpack.c.h.b16 %v751
        %v771 = vunpack.c.l.b16 %v752
        %v772 = vunpack.c.h.b16 %v752
        %v773 = vunpack.c.l.b16 %v753
        %v774 = vunpack.c.h.b16 %v753
        %v775 = vunpack.c.l.b16 %v754
        %v776 = vunpack.c.h.b16 %v754
        %v777 = vunpack.c.l.b16 %v755
        %v778 = vunpack.c.h.b16 %v755
        %v779 = vunpack.c.l.b16 %v756
        %v780 = vunpack.c.h.b16 %v756
        %v781 = vpack.c.b16 %v765, %v765
        %v782 = vpack.c.b16 %v766, %v766
        %v783 = vpack.c.b16 %v767, %v767
        %v784 = vpack.c.b16 %v768, %v768
        %v785 = vpack.c.b16 %v769, %v769
        %v786 = vpack.c.b16 %v770, %v770
        %v787 = vpack.c.b16 %v771, %v771
        %v788 = vpack.c.b16 %v772, %v772
        %v789 = vpack.c.b16 %v773, %v773
        %v790 = vpack.c.b16 %v774, %v774
        %v791 = vpack.c.b16 %v775, %v775
        %v792 = vpack.c.b16 %v776, %v776
        %v793 = vpack.c.b16 %v777, %v777
        %v794 = vpack.c.b16 %v778, %v778
        %v795 = vpack.c.b16 %v779, %v779
        %v796 = vpack.c.b16 %v780, %v780
        %v798 = vshrl.u32 %v781, 16
        %v800 = vrot.slane %v798, 7
        %v801 = vshll.u32 %v781, 16
        %v803 = vor.u32 %v800, %v801
        %v804 = vrot.slane %v800, 4
        %v806 = vshrl.u32 %v782, 16
        %v808 = vrot.slane %v806, 7
        %v809 = vshll.u32 %v782, 16
        %v811 = vor.u32 %v808, %v809
        %v812 = vsel %vm606, %v804, %v811
        %v813 = vrot.slane %v808, 4
        %v815 = vshrl.u32 %v783, 16
        %v817 = vrot.slane %v815, 7
        %v818 = vshll.u32 %v783, 16
        %v820 = vor.u32 %v817, %v818
        %v821 = vrot.slane %v817, 4
        %v823 = vshrl.u32 %v784, 16
        %v825 = vrot.slane %v823, 7
        %v826 = vshll.u32 %v784, 16
        %v828 = vor.u32 %v825, %v826
        %v829 = vsel %vm606, %v821, %v828
        %v830 = vrot.slane %v825, 4
        %v832 = vshrl.u32 %v785, 16
        %v834 = vrot.slane %v832, 7
        %v835 = vshll.u32 %v785, 16
        %v837 = vor.u32 %v834, %v835
        %v838 = vrot.slane %v834, 4
        %v840 = vshrl.u32 %v786, 16
        %v842 = vrot.slane %v840, 7
        %v843 = vshll.u32 %v786, 16
        %v845 = vor.u32 %v842, %v843
        %v846 = vsel %vm606, %v838, %v845
        %v847 = vrot.slane %v842, 4
        %v849 = vshrl.u32 %v787, 16
        %v851 = vrot.slane %v849, 7
        %v852 = vshll.u32 %v787, 16
        %v854 = vor.u32 %v851, %v852
        %v855 = vrot.slane %v851, 4
        %v857 = vshrl.u32 %v788, 16
        %v859 = vrot.slane %v857, 7
        %v860 = vshll.u32 %v788, 16
        %v862 = vor.u32 %v859, %v860
        %v863 = vsel %vm606, %v855, %v862
        %v864 = vrot.slane %v859, 4
        %v866 = vshrl.u32 %v789, 16
        %v868 = vrot.slane %v866, 7
        %v869 = vshll.u32 %v789, 16
        %v871 = vor.u32 %v868, %v869
        %v872 = vrot.slane %v868, 4
        %v874 = vshrl.u32 %v790, 16
        %v876 = vrot.slane %v874, 7
        %v877 = vshll.u32 %v790, 16
        %v879 = vor.u32 %v876, %v877
        %v880 = vsel %vm606, %v872, %v879
        %v881 = vrot.slane %v876, 4
        %v883 = vshrl.u32 %v791, 16
        %v885 = vrot.slane %v883, 7
        %v886 = vshll.u32 %v791, 16
        %v888 = vor.u32 %v885, %v886
        %v889 = vrot.slane %v885, 4
        %v891 = vshrl.u32 %v792, 16
        %v893 = vrot.slane %v891, 7
        %v894 = vshll.u32 %v792, 16
        %v896 = vor.u32 %v893, %v894
        %v897 = vsel %vm606, %v889, %v896
        %v898 = vrot.slane %v893, 4
        %v900 = vshrl.u32 %v793, 16
        %v902 = vrot.slane %v900, 7
        %v903 = vshll.u32 %v793, 16
        %v905 = vor.u32 %v902, %v903
        %v906 = vrot.slane %v902, 4
        %v908 = vshrl.u32 %v794, 16
        %v910 = vrot.slane %v908, 7
        %v911 = vshll.u32 %v794, 16
        %v913 = vor.u32 %v910, %v911
        %v914 = vsel %vm606, %v906, %v913
        %v915 = vrot.slane %v910, 4
        %v917 = vshrl.u32 %v795, 16
        %v919 = vrot.slane %v917, 7
        %v920 = vshll.u32 %v795, 16
        %v922 = vor.u32 %v919, %v920
        %v923 = vrot.slane %v919, 4
        %v925 = vshrl.u32 %v796, 16
        %v927 = vrot.slane %v925, 7
        %v928 = vshll.u32 %v796, 16
        %v930 = vor.u32 %v927, %v928
        %v931 = vsel %vm606, %v923, %v930
        %v932 = vrot.slane %v927, 4
        %s957 = scalar_lea.vmem [#allocation2], 12
        %v958 = vld [vmem:[%s957] sm:$0xf]
        %v959 = vsel %vm628, %v803, %v958
        %960 = vst [vmem:[%s957] sm:$0xf] %v959
        %961 = vst [vmem:[%s957 + $0x4] sm:$0xf] %v812
        %v962 = vld [vmem:[%s957 + $0x8] sm:$0x1]
        %v963 = vsel %vm537, %v813, %v962
        %964 = vst [vmem:[%s957 + $0x8] sm:$0x1] %v963
        %v965 = vld [vmem:[%s957 + $0xc] sm:$0xf]
        %v966 = vsel %vm628, %v820, %v965
        %967 = vst [vmem:[%s957 + $0xc] sm:$0xf] %v966
        %968 = vst [vmem:[%s957 + $0x10] sm:$0xf] %v829
        %v969 = vld [vmem:[%s957 + $0x14] sm:$0x1]
        %v970 = vsel %vm537, %v830, %v969
        %971 = vst [vmem:[%s957 + $0x14] sm:$0x1] %v970
        %v972 = vld [vmem:[%s957 + $0x18] sm:$0xf]
        %v973 = vsel %vm628, %v837, %v972
        %974 = vst [vmem:[%s957 + $0x18] sm:$0xf] %v973
        %975 = vst [vmem:[%s957 + $0x1c] sm:$0xf] %v846
        %v976 = vld [vmem:[%s957 + $0x20] sm:$0x1]
        %v977 = vsel %vm537, %v847, %v976
        %978 = vst [vmem:[%s957 + $0x20] sm:$0x1] %v977
        %v979 = vld [vmem:[%s957 + $0x24] sm:$0xf]
        %v980 = vsel %vm628, %v854, %v979
        %981 = vst [vmem:[%s957 + $0x24] sm:$0xf] %v980
        %982 = vst [vmem:[%s957 + $0x28] sm:$0xf] %v863
        %v983 = vld [vmem:[%s957 + $0x2c] sm:$0x1]
        %v984 = vsel %vm537, %v864, %v983
        %985 = vst [vmem:[%s957 + $0x2c] sm:$0x1] %v984
        %v986 = vld [vmem:[%s957 + $0x30] sm:$0xf]
        %v987 = vsel %vm628, %v871, %v986
        %988 = vst [vmem:[%s957 + $0x30] sm:$0xf] %v987
        %989 = vst [vmem:[%s957 + $0x34] sm:$0xf] %v880
        %v990 = vld [vmem:[%s957 + $0x38] sm:$0x1]
        %v991 = vsel %vm537, %v881, %v990
        %992 = vst [vmem:[%s957 + $0x38] sm:$0x1] %v991
        %v993 = vld [vmem:[%s957 + $0x3c] sm:$0xf]
        %v994 = vsel %vm628, %v888, %v993
        %995 = vst [vmem:[%s957 + $0x3c] sm:$0xf] %v994
        %996 = vst [vmem:[%s957 + $0x40] sm:$0xf] %v897
        %v997 = vld [vmem:[%s957 + $0x44] sm:$0x1]
        %v998 = vsel %vm537, %v898, %v997
        %999 = vst [vmem:[%s957 + $0x44] sm:$0x1] %v998
        %v1000 = vld [vmem:[%s957 + $0x48] sm:$0xf]
        %v1001 = vsel %vm628, %v905, %v1000
        %1002 = vst [vmem:[%s957 + $0x48] sm:$0xf] %v1001
        %1003 = vst [vmem:[%s957 + $0x4c] sm:$0xf] %v914
        %v1004 = vld [vmem:[%s957 + $0x50] sm:$0x1]
        %v1005 = vsel %vm537, %v915, %v1004
        %1006 = vst [vmem:[%s957 + $0x50] sm:$0x1] %v1005
        %v1007 = vld [vmem:[%s957 + $0x54] sm:$0xf]
        %v1008 = vsel %vm628, %v922, %v1007
        %1009 = vst [vmem:[%s957 + $0x54] sm:$0xf] %v1008
        %1010 = vst [vmem:[%s957 + $0x58] sm:$0xf] %v931
        %v1011 = vld [vmem:[%s957 + $0x5c] sm:$0x1]
        %v1012 = vsel %vm537, %v932, %v1011
        %1013 = vst [vmem:[%s957 + $0x5c] sm:$0x1] %v1012
        %v1014 = vld [vmem:[#allocation2] sm:$0xf]
        %v1015 = vld [vmem:[#allocation2 + $0x4] sm:$0xf]
        %v1016 = vld [vmem:[#allocation2 + $0xc] sm:$0xf]
        %v1017 = vld [vmem:[#allocation2 + $0x10] sm:$0xf]
        %v1018 = vld [vmem:[#allocation2 + $0x18] sm:$0xf]
        %v1019 = vld [vmem:[#allocation2 + $0x1c] sm:$0xf]
        %v1020 = vld [vmem:[#allocation2 + $0x24] sm:$0xf]
        %v1021 = vld [vmem:[#allocation2 + $0x28] sm:$0xf]
        %v1022 = vld [vmem:[#allocation2 + $0x30] sm:$0xf]
        %v1023 = vld [vmem:[#allocation2 + $0x34] sm:$0xf]
        %v1024 = vld [vmem:[#allocation2 + $0x3c] sm:$0xf]
        %v1025 = vld [vmem:[#allocation2 + $0x40] sm:$0xf]
        %v1026 = vld [vmem:[#allocation2 + $0x48] sm:$0xf]
        %v1027 = vld [vmem:[#allocation2 + $0x4c] sm:$0xf]
        %v1028 = vld [vmem:[#allocation2 + $0x54] sm:$0xf]
        %v1029 = vld [vmem:[#allocation2 + $0x58] sm:$0xf]
        %v1030 = vld [vmem:[#allocation9] sm:$0xf]
        %v1031 = vld [vmem:[#allocation9 + $0x4] sm:$0xf]
        %v1032 = vld [vmem:[#allocation9 + $0x8] sm:$0xf]
        %v1033 = vld [vmem:[#allocation9 + $0xc] sm:$0xf]
        %v1034 = vld [vmem:[#allocation9 + $0x10] sm:$0xf]
        %v1035 = vld [vmem:[#allocation9 + $0x14] sm:$0xf]
        %v1036 = vld [vmem:[#allocation9 + $0x18] sm:$0xf]
        %v1037 = vld [vmem:[#allocation9 + $0x1c] sm:$0xf]
        %v1038 = vld [vmem:[#allocation9 + $0x20] sm:$0xf]
        %v1039 = vld [vmem:[#allocation9 + $0x24] sm:$0xf]
        %v1040 = vld [vmem:[#allocation9 + $0x28] sm:$0xf]
        %v1041 = vld [vmem:[#allocation9 + $0x2c] sm:$0xf]
        %v1042 = vld [vmem:[#allocation9 + $0x30] sm:$0xf]
        %v1043 = vld [vmem:[#allocation9 + $0x34] sm:$0xf]
        %v1044 = vld [vmem:[#allocation9 + $0x38] sm:$0xf]
        %v1045 = vld [vmem:[#allocation9 + $0x3c] sm:$0xf]
        %v1046 = vld [vmem:[#allocation2 + $0x8] sm:$0x1]
        %v1047 = vld [vmem:[#allocation2 + $0x14] sm:$0x1]
        %v1048 = vld [vmem:[#allocation2 + $0x20] sm:$0x1]
        %v1049 = vld [vmem:[#allocation2 + $0x2c] sm:$0x1]
        %v1050 = vld [vmem:[#allocation2 + $0x38] sm:$0x1]
        %v1051 = vld [vmem:[#allocation2 + $0x44] sm:$0x1]
        %v1052 = vld [vmem:[#allocation2 + $0x50] sm:$0x1]
        %v1053 = vld [vmem:[#allocation2 + $0x5c] sm:$0x1]
        %vm1054 = vsmask.f32 3328
        %vm1055 = vsmask.f32 7440
        %vm1056 = vmor %vm1054, %vm1055
        %v1058 = vshrl.u32 %v1014, 16
        %v1060 = vrot.slane %v1058, 4
        %v1061 = vshll.u32 %v1014, 16
        %v1063 = vrot.slane %v1061, 5
        %v1064 = vor.u32 %v1060, %v1063
        %v1065 = vrot.slane %v1064, 4
        %v1067 = vshll.u32 %v1015, 16
        %v1069 = vrot.slane %v1067, 5
        %v1070 = vsel %vm1056, %v1065, %v1069
        %v1071 = vshrl.u32 %v1015, 16
        %v1073 = vrot.slane %v1071, 4
        %v1074 = vor.u32 %v1073, %v1069
        %v1075 = vrot.slane %v1074, 4
        %v1077 = vshll.u32 %v1046, 16
        %v1079 = vrot.slane %v1077, 5
        %v1080 = vsel %vm1056, %v1075, %v1079
        %v1082 = vshrl.u32 %v1016, 16
        %v1084 = vrot.slane %v1082, 4
        %v1085 = vshll.u32 %v1016, 16
        %v1087 = vrot.slane %v1085, 5
        %v1088 = vor.u32 %v1084, %v1087
        %v1089 = vrot.slane %v1088, 4
        %v1091 = vshll.u32 %v1017, 16
        %v1093 = vrot.slane %v1091, 5
        %v1094 = vsel %vm1056, %v1089, %v1093
        %v1095 = vshrl.u32 %v1017, 16
        %v1097 = vrot.slane %v1095, 4
        %v1098 = vor.u32 %v1097, %v1093
        %v1099 = vrot.slane %v1098, 4
        %v1101 = vshll.u32 %v1047, 16
        %v1103 = vrot.slane %v1101, 5
        %v1104 = vsel %vm1056, %v1099, %v1103
        %v1106 = vshrl.u32 %v1018, 16
        %v1108 = vrot.slane %v1106, 4
        %v1109 = vshll.u32 %v1018, 16
        %v1111 = vrot.slane %v1109, 5
        %v1112 = vor.u32 %v1108, %v1111
        %v1113 = vrot.slane %v1112, 4
        %v1115 = vshll.u32 %v1019, 16
        %v1117 = vrot.slane %v1115, 5
        %v1118 = vsel %vm1056, %v1113, %v1117
        %v1119 = vshrl.u32 %v1019, 16
        %v1121 = vrot.slane %v1119, 4
        %v1122 = vor.u32 %v1121, %v1117
        %v1123 = vrot.slane %v1122, 4
        %v1125 = vshll.u32 %v1048, 16
        %v1127 = vrot.slane %v1125, 5
        %v1128 = vsel %vm1056, %v1123, %v1127
        %v1130 = vshrl.u32 %v1020, 16
        %v1132 = vrot.slane %v1130, 4
        %v1133 = vshll.u32 %v1020, 16
        %v1135 = vrot.slane %v1133, 5
        %v1136 = vor.u32 %v1132, %v1135
        %v1137 = vrot.slane %v1136, 4
        %v1139 = vshll.u32 %v1021, 16
        %v1141 = vrot.slane %v1139, 5
        %v1142 = vsel %vm1056, %v1137, %v1141
        %v1143 = vshrl.u32 %v1021, 16
        %v1145 = vrot.slane %v1143, 4
        %v1146 = vor.u32 %v1145, %v1141
        %v1147 = vrot.slane %v1146, 4
        %v1149 = vshll.u32 %v1049, 16
        %v1151 = vrot.slane %v1149, 5
        %v1152 = vsel %vm1056, %v1147, %v1151
        %v1154 = vshrl.u32 %v1022, 16
        %v1156 = vrot.slane %v1154, 4
        %v1157 = vshll.u32 %v1022, 16
        %v1159 = vrot.slane %v1157, 5
        %v1160 = vor.u32 %v1156, %v1159
        %v1161 = vrot.slane %v1160, 4
        %v1163 = vshll.u32 %v1023, 16
        %v1165 = vrot.slane %v1163, 5
        %v1166 = vsel %vm1056, %v1161, %v1165
        %v1167 = vshrl.u32 %v1023, 16
        %v1169 = vrot.slane %v1167, 4
        %v1170 = vor.u32 %v1169, %v1165
        %v1171 = vrot.slane %v1170, 4
        %v1173 = vshll.u32 %v1050, 16
        %v1175 = vrot.slane %v1173, 5
        %v1176 = vsel %vm1056, %v1171, %v1175
        %v1178 = vshrl.u32 %v1024, 16
        %v1180 = vrot.slane %v1178, 4
        %v1181 = vshll.u32 %v1024, 16
        %v1183 = vrot.slane %v1181, 5
        %v1184 = vor.u32 %v1180, %v1183
        %v1185 = vrot.slane %v1184, 4
        %v1187 = vshll.u32 %v1025, 16
        %v1189 = vrot.slane %v1187, 5
        %v1190 = vsel %vm1056, %v1185, %v1189
        %v1191 = vshrl.u32 %v1025, 16
        %v1193 = vrot.slane %v1191, 4
        %v1194 = vor.u32 %v1193, %v1189
        %v1195 = vrot.slane %v1194, 4
        %v1197 = vshll.u32 %v1051, 16
        %v1199 = vrot.slane %v1197, 5
        %v1200 = vsel %vm1056, %v1195, %v1199
        %v1202 = vshrl.u32 %v1026, 16
        %v1204 = vrot.slane %v1202, 4
        %v1205 = vshll.u32 %v1026, 16
        %v1207 = vrot.slane %v1205, 5
        %v1208 = vor.u32 %v1204, %v1207
        %v1209 = vrot.slane %v1208, 4
        %v1211 = vshll.u32 %v1027, 16
        %v1213 = vrot.slane %v1211, 5
        %v1214 = vsel %vm1056, %v1209, %v1213
        %v1215 = vshrl.u32 %v1027, 16
        %v1217 = vrot.slane %v1215, 4
        %v1218 = vor.u32 %v1217, %v1213
        %v1219 = vrot.slane %v1218, 4
        %v1221 = vshll.u32 %v1052, 16
        %v1223 = vrot.slane %v1221, 5
        %v1224 = vsel %vm1056, %v1219, %v1223
        %v1226 = vshrl.u32 %v1028, 16
        %v1228 = vrot.slane %v1226, 4
        %v1229 = vshll.u32 %v1028, 16
        %v1231 = vrot.slane %v1229, 5
        %v1232 = vor.u32 %v1228, %v1231
        %v1233 = vrot.slane %v1232, 4
        %v1235 = vshll.u32 %v1029, 16
        %v1237 = vrot.slane %v1235, 5
        %v1238 = vsel %vm1056, %v1233, %v1237
        %v1239 = vshrl.u32 %v1029, 16
        %v1241 = vrot.slane %v1239, 4
        %v1242 = vor.u32 %v1241, %v1237
        %v1243 = vrot.slane %v1242, 4
        %v1245 = vshll.u32 %v1053, 16
        %v1247 = vrot.slane %v1245, 5
        %v1248 = vsel %vm1056, %v1243, %v1247
        %s1249 = scalar_lea.vmem [#allocation9], 64
        %v1250 = vld [vmem:[%s1249] sm:$0xf]
        %v1251 = vld [vmem:[%s1249 + $0x4] sm:$0xf]
        %v1252 = vld [vmem:[%s1249 + $0x8] sm:$0xf]
        %v1253 = vld [vmem:[%s1249 + $0xc] sm:$0xf]
        %v1254 = vld [vmem:[%s1249 + $0x10] sm:$0xf]
        %v1255 = vld [vmem:[%s1249 + $0x14] sm:$0xf]
        %v1256 = vld [vmem:[%s1249 + $0x18] sm:$0xf]
        %v1257 = vld [vmem:[%s1249 + $0x1c] sm:$0xf]
        %v1258 = vld [vmem:[%s1249 + $0x20] sm:$0xf]
        %v1259 = vld [vmem:[%s1249 + $0x24] sm:$0xf]
        %v1260 = vld [vmem:[%s1249 + $0x28] sm:$0xf]
        %v1261 = vld [vmem:[%s1249 + $0x2c] sm:$0xf]
        %v1262 = vld [vmem:[%s1249 + $0x30] sm:$0xf]
        %v1263 = vld [vmem:[%s1249 + $0x34] sm:$0xf]
        %v1264 = vld [vmem:[%s1249 + $0x38] sm:$0xf]
        %v1265 = vld [vmem:[%s1249 + $0x3c] sm:$0xf]
        %v1266 = vunpack.c.l.b16 %v1070
        %v1267 = vunpack.c.l.b16 %v1080
        %v1268 = vunpack.c.l.b16 %v1094
        %v1269 = vunpack.c.l.b16 %v1104
        %v1270 = vunpack.c.l.b16 %v1118
        %v1271 = vunpack.c.l.b16 %v1128
        %v1272 = vunpack.c.l.b16 %v1142
        %v1273 = vunpack.c.l.b16 %v1152
        %v1274 = vunpack.c.l.b16 %v1166
        %v1275 = vunpack.c.l.b16 %v1176
        %v1276 = vunpack.c.l.b16 %v1190
        %v1277 = vunpack.c.l.b16 %v1200
        %v1278 = vunpack.c.l.b16 %v1214
        %v1279 = vunpack.c.l.b16 %v1224
        %v1280 = vunpack.c.l.b16 %v1238
        %v1281 = vunpack.c.l.b16 %v1248
        %v1282 = vpack.c.b16 %v1267, %v1266
        %v1283 = vpack.c.b16 %v1269, %v1268
        %v1284 = vpack.c.b16 %v1271, %v1270
        %v1285 = vpack.c.b16 %v1273, %v1272
        %v1286 = vpack.c.b16 %v1275, %v1274
        %v1287 = vpack.c.b16 %v1277, %v1276
        %v1288 = vpack.c.b16 %v1279, %v1278
        %v1289 = vpack.c.b16 %v1281, %v1280
        %v1314 = vunpack.c.l.b16 %v1250
        %v1315 = vunpack.c.l.b16 %v1251
        %v1316 = vunpack.c.l.b16 %v1252
        %v1317 = vunpack.c.l.b16 %v1253
        %v1318 = vunpack.c.l.b16 %v1254
        %v1319 = vunpack.c.l.b16 %v1255
        %v1320 = vunpack.c.l.b16 %v1256
        %v1321 = vunpack.c.l.b16 %v1257
        %v1322 = vunpack.c.l.b16 %v1258
        %v1323 = vunpack.c.l.b16 %v1259
        %v1324 = vunpack.c.l.b16 %v1260
        %v1325 = vunpack.c.l.b16 %v1261
        %v1326 = vunpack.c.l.b16 %v1262
        %v1327 = vunpack.c.l.b16 %v1263
        %v1328 = vunpack.c.l.b16 %v1264
        %v1329 = vunpack.c.l.b16 %v1265
        %v1330 = vpack.c.b16 %v1315, %v1314
        %v1331 = vpack.c.b16 %v1317, %v1316
        %v1332 = vpack.c.b16 %v1319, %v1318
        %v1333 = vpack.c.b16 %v1321, %v1320
        %v1334 = vpack.c.b16 %v1323, %v1322
        %v1335 = vpack.c.b16 %v1325, %v1324
        %v1336 = vpack.c.b16 %v1327, %v1326
        %v1337 = vpack.c.b16 %v1329, %v1328
        %1346 = vmatprep.subr.bf16.mxu0 0
        %1347 = vmatpush1.bf16.msra.mxu0 %v1330
        %1348 = vmatprep.subr.bf16.mxu0 0
        %1349 = vmatpush1.bf16.msra.mxu0 %v1331
        %1350 = vmatprep.subr.bf16.mxu0 0
        %1351 = vmatpush1.bf16.msra.mxu0 %v1332
        %1352 = vmatprep.subr.bf16.mxu0 0
        %1353 = vmatpush1.bf16.msra.mxu0 %v1333
        %1354 = vmatprep.subr.bf16.mxu0 0
        %1355 = vmatpush1.bf16.msra.mxu0 %v1334
        %1356 = vmatprep.subr.bf16.mxu0 0
        %1357 = vmatpush1.bf16.msra.mxu0 %v1335
        %1358 = vmatprep.subr.bf16.mxu0 0
        %1359 = vmatpush1.bf16.msra.mxu0 %v1336
        %1360 = vmatprep.subr.bf16.mxu0 0
        %1361 = vmatpush1.bf16.msra.mxu0 %v1337
        %1362 = vmatprep.subr.bf16.mxu0 0
        %1363 = vmatpush1.bf16.msra.mxu0 0
        %1364 = vmatprep.subr.bf16.mxu0 0
        %1365 = vmatpush1.bf16.msra.mxu0 0
        %1366 = vmatprep.subr.bf16.mxu0 0
        %1367 = vmatpush1.bf16.msra.mxu0 0
        %1368 = vmatprep.subr.bf16.mxu0 0
        %1369 = vmatpush1.bf16.msra.mxu0 0
        %1370 = vmatprep.subr.bf16.mxu0 0
        %1371 = vmatpush1.bf16.msra.mxu0 0
        %1372 = vmatprep.subr.bf16.mxu0 0
        %1373 = vmatpush1.bf16.msra.mxu0 0
        %1374 = vmatprep.subr.bf16.mxu0 0
        %1375 = vmatpush1.bf16.msra.mxu0 0
        %1376 = vmatprep.subr.bf16.mxu0 0
        %1377 = vmatpush1.bf16.msra.mxu0 0
        %1378 = vmatprep.mubr.bf16.mxu0 0
        %1379 = vmatmul.mubr.bf16.gmra.mrb[0].mxu0 %v1282
        %v1380 = vpop.f32.mrb[0].mxu0
        %v1381 = vadd.f32 0.0, %v1380
        %v1382 = vpop.f32.mrb[0].mxu0
        %v1383 = vpop.f32.mrb[0].mxu0
        %v1384 = vadd.f32 0.0, %v1383
        %v1385 = vpop.f32.mrb[0].mxu0
        %1386 = vmatprep.mubr.bf16.mxu0 0
        %1387 = vmatmul.mubr.bf16.gmra.mrb[0].mxu0 %v1283
        %v1388 = vpop.f32.mrb[0].mxu0
        %v1389 = vadd.f32 0.0, %v1388
        %v1390 = vpop.f32.mrb[0].mxu0
        %v1391 = vpop.f32.mrb[0].mxu0
        %v1392 = vadd.f32 0.0, %v1391
        %v1393 = vpop.f32.mrb[0].mxu0
        %1394 = vmatprep.mubr.bf16.mxu0 0
        %1395 = vmatmul.mubr.bf16.gmra.mrb[0].mxu0 %v1284
        %v1396 = vpop.f32.mrb[0].mxu0
        %v1397 = vadd.f32 0.0, %v1396
        %v1398 = vpop.f32.mrb[0].mxu0
        %v1399 = vpop.f32.mrb[0].mxu0
        %v1400 = vadd.f32 0.0, %v1399
        %v1401 = vpop.f32.mrb[0].mxu0
        %1402 = vmatprep.mubr.bf16.mxu0 0
        %1403 = vmatmul.mubr.bf16.gmra.mrb[0].mxu0 %v1285
        %v1404 = vpop.f32.mrb[0].mxu0
        %v1405 = vadd.f32 0.0, %v1404
        %v1406 = vpop.f32.mrb[0].mxu0
        %v1407 = vpop.f32.mrb[0].mxu0
        %v1408 = vadd.f32 0.0, %v1407
        %v1409 = vpop.f32.mrb[0].mxu0
        %1410 = vmatprep.mubr.bf16.mxu0 0
        %1411 = vmatmul.mubr.bf16.gmra.mrb[0].mxu0 %v1286
        %v1412 = vpop.f32.mrb[0].mxu0
        %v1413 = vadd.f32 0.0, %v1412
        %v1414 = vpop.f32.mrb[0].mxu0
        %v1415 = vpop.f32.mrb[0].mxu0
        %v1416 = vadd.f32 0.0, %v1415
        %v1417 = vpop.f32.mrb[0].mxu0
        %1418 = vmatprep.mubr.bf16.mxu0 0
        %1419 = vmatmul.mubr.bf16.gmra.mrb[0].mxu0 %v1287
        %v1420 = vpop.f32.mrb[0].mxu0
        %v1421 = vadd.f32 0.0, %v1420
        %v1422 = vpop.f32.mrb[0].mxu0
        %v1423 = vpop.f32.mrb[0].mxu0
        %v1424 = vadd.f32 0.0, %v1423
        %v1425 = vpop.f32.mrb[0].mxu0
        %1426 = vmatprep.mubr.bf16.mxu0 0
        %1427 = vmatmul.mubr.bf16.gmra.mrb[0].mxu0 %v1288
        %v1428 = vpop.f32.mrb[0].mxu0
        %v1429 = vadd.f32 0.0, %v1428
        %v1430 = vpop.f32.mrb[0].mxu0
        %v1431 = vpop.f32.mrb[0].mxu0
        %v1432 = vadd.f32 0.0, %v1431
        %v1433 = vpop.f32.mrb[0].mxu0
        %1434 = vmatprep.mubr.bf16.mxu0 0
        %1435 = vmatmul.mubr.bf16.gmra.mrb[0].mxu0 %v1289
        %v1436 = vpop.f32.mrb[0].mxu0
        %v1437 = vadd.f32 0.0, %v1436
        %v1438 = vpop.f32.mrb[0].mxu0
        %v1439 = vpop.f32.mrb[0].mxu0
        %v1440 = vadd.f32 0.0, %v1439
        %v1441 = vpop.f32.mrb[0].mxu0
        %1442 = vdwg.mxu0
        %v1459 = vunpack.c.l.b16 %v1014
        %v1460 = vunpack.c.l.b16 %v1015
        %v1461 = vunpack.c.l.b16 %v1016
        %v1462 = vunpack.c.l.b16 %v1017
        %v1463 = vunpack.c.l.b16 %v1018
        %v1464 = vunpack.c.l.b16 %v1019
        %v1465 = vunpack.c.l.b16 %v1020
        %v1466 = vunpack.c.l.b16 %v1021
        %v1467 = vunpack.c.l.b16 %v1022
        %v1468 = vunpack.c.l.b16 %v1023
        %v1469 = vunpack.c.l.b16 %v1024
        %v1470 = vunpack.c.l.b16 %v1025
        %v1471 = vunpack.c.l.b16 %v1026
        %v1472 = vunpack.c.l.b16 %v1027
        %v1473 = vunpack.c.l.b16 %v1028
        %v1474 = vunpack.c.l.b16 %v1029
        %v1475 = vpack.c.b16 %v1460, %v1459
        %v1476 = vpack.c.b16 %v1462, %v1461
        %v1477 = vpack.c.b16 %v1464, %v1463
        %v1478 = vpack.c.b16 %v1466, %v1465
        %v1479 = vpack.c.b16 %v1468, %v1467
        %v1480 = vpack.c.b16 %v1470, %v1469
        %v1481 = vpack.c.b16 %v1472, %v1471
        %v1482 = vpack.c.b16 %v1474, %v1473
        %v1507 = vunpack.c.l.b16 %v1030
        %v1508 = vunpack.c.l.b16 %v1031
        %v1509 = vunpack.c.l.b16 %v1032
        %v1510 = vunpack.c.l.b16 %v1033
        %v1511 = vunpack.c.l.b16 %v1034
        %v1512 = vunpack.c.l.b16 %v1035
        %v1513 = vunpack.c.l.b16 %v1036
        %v1514 = vunpack.c.l.b16 %v1037
        %v1515 = vunpack.c.l.b16 %v1038
        %v1516 = vunpack.c.l.b16 %v1039
        %v1517 = vunpack.c.l.b16 %v1040
        %v1518 = vunpack.c.l.b16 %v1041
        %v1519 = vunpack.c.l.b16 %v1042
        %v1520 = vunpack.c.l.b16 %v1043
        %v1521 = vunpack.c.l.b16 %v1044
        %v1522 = vunpack.c.l.b16 %v1045
        %v1523 = vpack.c.b16 %v1508, %v1507
        %v1524 = vpack.c.b16 %v1510, %v1509
        %v1525 = vpack.c.b16 %v1512, %v1511
        %v1526 = vpack.c.b16 %v1514, %v1513
        %v1527 = vpack.c.b16 %v1516, %v1515
        %v1528 = vpack.c.b16 %v1518, %v1517
        %v1529 = vpack.c.b16 %v1520, %v1519
        %v1530 = vpack.c.b16 %v1522, %v1521
        %1539 = vmatprep.subr.bf16.mxu0 0
        %1540 = vmatpush1.bf16.msra.mxu0 %v1523
        %1541 = vmatprep.subr.bf16.mxu0 0
        %1542 = vmatpush1.bf16.msra.mxu0 %v1524
        %1543 = vmatprep.subr.bf16.mxu0 0
        %1544 = vmatpush1.bf16.msra.mxu0 %v1525
        %1545 = vmatprep.subr.bf16.mxu0 0
        %1546 = vmatpush1.bf16.msra.mxu0 %v1526
        %1547 = vmatprep.subr.bf16.mxu0 0
        %1548 = vmatpush1.bf16.msra.mxu0 %v1527
        %1549 = vmatprep.subr.bf16.mxu0 0
        %1550 = vmatpush1.bf16.msra.mxu0 %v1528
        %1551 = vmatprep.subr.bf16.mxu0 0
        %1552 = vmatpush1.bf16.msra.mxu0 %v1529
        %1553 = vmatprep.subr.bf16.mxu0 0
        %1554 = vmatpush1.bf16.msra.mxu0 %v1530
        %1555 = vmatprep.subr.bf16.mxu0 0
        %1556 = vmatpush1.bf16.msra.mxu0 0
        %1557 = vmatprep.subr.bf16.mxu0 0
        %1558 = vmatpush1.bf16.msra.mxu0 0
        %1559 = vmatprep.subr.bf16.mxu0 0
        %1560 = vmatpush1.bf16.msra.mxu0 0
        %1561 = vmatprep.subr.bf16.mxu0 0
        %1562 = vmatpush1.bf16.msra.mxu0 0
        %1563 = vmatprep.subr.bf16.mxu0 0
        %1564 = vmatpush1.bf16.msra.mxu0 0
        %1565 = vmatprep.subr.bf16.mxu0 0
        %1566 = vmatpush1.bf16.msra.mxu0 0
        %1567 = vmatprep.subr.bf16.mxu0 0
        %1568 = vmatpush1.bf16.msra.mxu0 0
        %1569 = vmatprep.subr.bf16.mxu0 0
        %1570 = vmatpush1.bf16.msra.mxu0 0
        %1571 = vmatprep.mubr.bf16.mxu0 0
        %1572 = vmatmul.mubr.bf16.gmra.mrb[0].mxu0 %v1475
        %v1573 = vpop.f32.mrb[0].mxu0
        %v1574 = vadd.f32 %v1381, %v1573
        %v1575 = vpop.f32.mrb[0].mxu0
        %v1576 = vpop.f32.mrb[0].mxu0
        %v1577 = vadd.f32 %v1384, %v1576
        %v1578 = vpop.f32.mrb[0].mxu0
        %1579 = vmatprep.mubr.bf16.mxu0 0
        %1580 = vmatmul.mubr.bf16.gmra.mrb[0].mxu0 %v1476
        %v1581 = vpop.f32.mrb[0].mxu0
        %v1582 = vadd.f32 %v1389, %v1581
        %v1583 = vpop.f32.mrb[0].mxu0
        %v1584 = vpop.f32.mrb[0].mxu0
        %v1585 = vadd.f32 %v1392, %v1584
        %v1586 = vpop.f32.mrb[0].mxu0
        %1587 = vmatprep.mubr.bf16.mxu0 0
        %1588 = vmatmul.mubr.bf16.gmra.mrb[0].mxu0 %v1477
        %v1589 = vpop.f32.mrb[0].mxu0
        %v1590 = vadd.f32 %v1397, %v1589
        %v1591 = vpop.f32.mrb[0].mxu0
        %v1592 = vpop.f32.mrb[0].mxu0
        %v1593 = vadd.f32 %v1400, %v1592
        %v1594 = vpop.f32.mrb[0].mxu0
        %1595 = vmatprep.mubr.bf16.mxu0 0
        %1596 = vmatmul.mubr.bf16.gmra.mrb[0].mxu0 %v1478
        %v1597 = vpop.f32.mrb[0].mxu0
        %v1598 = vadd.f32 %v1405, %v1597
        %v1599 = vpop.f32.mrb[0].mxu0
        %v1600 = vpop.f32.mrb[0].mxu0
        %v1601 = vadd.f32 %v1408, %v1600
        %v1602 = vpop.f32.mrb[0].mxu0
        %1603 = vmatprep.mubr.bf16.mxu0 0
        %1604 = vmatmul.mubr.bf16.gmra.mrb[0].mxu0 %v1479
        %v1605 = vpop.f32.mrb[0].mxu0
        %v1606 = vadd.f32 %v1413, %v1605
        %v1607 = vpop.f32.mrb[0].mxu0
        %v1608 = vpop.f32.mrb[0].mxu0
        %v1609 = vadd.f32 %v1416, %v1608
        %v1610 = vpop.f32.mrb[0].mxu0
        %1611 = vmatprep.mubr.bf16.mxu0 0
        %1612 = vmatmul.mubr.bf16.gmra.mrb[0].mxu0 %v1480
        %v1613 = vpop.f32.mrb[0].mxu0
        %v1614 = vadd.f32 %v1421, %v1613
        %v1615 = vpop.f32.mrb[0].mxu0
        %v1616 = vpop.f32.mrb[0].mxu0
        %v1617 = vadd.f32 %v1424, %v1616
        %v1618 = vpop.f32.mrb[0].mxu0
        %1619 = vmatprep.mubr.bf16.mxu0 0
        %1620 = vmatmul.mubr.bf16.gmra.mrb[0].mxu0 %v1481
        %v1621 = vpop.f32.mrb[0].mxu0
        %v1622 = vadd.f32 %v1429, %v1621
        %v1623 = vpop.f32.mrb[0].mxu0
        %v1624 = vpop.f32.mrb[0].mxu0
        %v1625 = vadd.f32 %v1432, %v1624
        %v1626 = vpop.f32.mrb[0].mxu0
        %1627 = vmatprep.mubr.bf16.mxu0 0
        %1628 = vmatmul.mubr.bf16.gmra.mrb[0].mxu0 %v1482
        %v1629 = vpop.f32.mrb[0].mxu0
        %v1630 = vadd.f32 %v1437, %v1629
        %v1631 = vpop.f32.mrb[0].mxu0
        %v1632 = vpop.f32.mrb[0].mxu0
        %v1633 = vadd.f32 %v1440, %v1632
        %v1634 = vpop.f32.mrb[0].mxu0
        %1635 = vdwg.mxu0
        %v1636 = vld [vmem:[#allocation2] sm:$0xe]
        %v1637 = vld [vmem:[#allocation2 + $0xc] sm:$0xe]
        %v1638 = vld [vmem:[#allocation2 + $0x18] sm:$0xe]
        %v1639 = vld [vmem:[#allocation2 + $0x24] sm:$0xe]
        %v1640 = vld [vmem:[#allocation2 + $0x30] sm:$0xe]
        %v1641 = vld [vmem:[#allocation2 + $0x3c] sm:$0xe]
        %v1642 = vld [vmem:[#allocation2 + $0x48] sm:$0xe]
        %v1643 = vld [vmem:[#allocation2 + $0x54] sm:$0xe]
        %vm1660 = vcmask 1042432
        %vm1661 = vcmask 1046532
        %vm1662 = vmor %vm1660, %vm1661
        %v1663 = vrot.slane %v1636, 5
        %v1664 = vrot.slane %v1663, 4
        %v1665 = vrot.slane %v1015, 5
        %v1666 = vsel %vm1662, %v1664, %v1665
        %v1667 = vrot.slane %v1665, 4
        %v1668 = vrot.slane %v1046, 5
        %v1669 = vsel %vm1662, %v1667, %v1668
        %v1670 = vrot.slane %v1637, 5
        %v1671 = vrot.slane %v1670, 4
        %v1672 = vrot.slane %v1017, 5
        %v1673 = vsel %vm1662, %v1671, %v1672
        %v1674 = vrot.slane %v1672, 4
        %v1675 = vrot.slane %v1047, 5
        %v1676 = vsel %vm1662, %v1674, %v1675
        %v1677 = vrot.slane %v1638, 5
        %v1678 = vrot.slane %v1677, 4
        %v1679 = vrot.slane %v1019, 5
        %v1680 = vsel %vm1662, %v1678, %v1679
        %v1681 = vrot.slane %v1679, 4
        %v1682 = vrot.slane %v1048, 5
        %v1683 = vsel %vm1662, %v1681, %v1682
        %v1684 = vrot.slane %v1639, 5
        %v1685 = vrot.slane %v1684, 4
        %v1686 = vrot.slane %v1021, 5
        %v1687 = vsel %vm1662, %v1685, %v1686
        %v1688 = vrot.slane %v1686, 4
        %v1689 = vrot.slane %v1049, 5
        %v1690 = vsel %vm1662, %v1688, %v1689
        %v1691 = vrot.slane %v1640, 5
        %v1692 = vrot.slane %v1691, 4
        %v1693 = vrot.slane %v1023, 5
        %v1694 = vsel %vm1662, %v1692, %v1693
        %v1695 = vrot.slane %v1693, 4
        %v1696 = vrot.slane %v1050, 5
        %v1697 = vsel %vm1662, %v1695, %v1696
        %v1698 = vrot.slane %v1641, 5
        %v1699 = vrot.slane %v1698, 4
        %v1700 = vrot.slane %v1025, 5
        %v1701 = vsel %vm1662, %v1699, %v1700
        %v1702 = vrot.slane %v1700, 4
        %v1703 = vrot.slane %v1051, 5
        %v1704 = vsel %vm1662, %v1702, %v1703
        %v1705 = vrot.slane %v1642, 5
        %v1706 = vrot.slane %v1705, 4
        %v1707 = vrot.slane %v1027, 5
        %v1708 = vsel %vm1662, %v1706, %v1707
        %v1709 = vrot.slane %v1707, 4
        %v1710 = vrot.slane %v1052, 5
        %v1711 = vsel %vm1662, %v1709, %v1710
        %v1712 = vrot.slane %v1643, 5
        %v1713 = vrot.slane %v1712, 4
        %v1714 = vrot.slane %v1029, 5
        %v1715 = vsel %vm1662, %v1713, %v1714
        %v1716 = vrot.slane %v1714, 4
        %v1717 = vrot.slane %v1053, 5
        %v1718 = vsel %vm1662, %v1716, %v1717
        %s1719 = scalar_lea.vmem [#allocation9], 128
        %v1720 = vld [vmem:[%s1719] sm:$0xf]
        %v1721 = vld [vmem:[%s1719 + $0x4] sm:$0xf]
        %v1722 = vld [vmem:[%s1719 + $0x8] sm:$0xf]
        %v1723 = vld [vmem:[%s1719 + $0xc] sm:$0xf]
        %v1724 = vld [vmem:[%s1719 + $0x10] sm:$0xf]
        %v1725 = vld [vmem:[%s1719 + $0x14] sm:$0xf]
        %v1726 = vld [vmem:[%s1719 + $0x18] sm:$0xf]
        %v1727 = vld [vmem:[%s1719 + $0x1c] sm:$0xf]
        %v1728 = vld [vmem:[%s1719 + $0x20] sm:$0xf]
        %v1729 = vld [vmem:[%s1719 + $0x24] sm:$0xf]
        %v1730 = vld [vmem:[%s1719 + $0x28] sm:$0xf]
        %v1731 = vld [vmem:[%s1719 + $0x2c] sm:$0xf]
        %v1732 = vld [vmem:[%s1719 + $0x30] sm:$0xf]
        %v1733 = vld [vmem:[%s1719 + $0x34] sm:$0xf]
        %v1734 = vld [vmem:[%s1719 + $0x38] sm:$0xf]
        %v1735 = vld [vmem:[%s1719 + $0x3c] sm:$0xf]
        %v1736 = vunpack.c.l.b16 %v1666
        %v1737 = vunpack.c.l.b16 %v1669
        %v1738 = vunpack.c.l.b16 %v1673
        %v1739 = vunpack.c.l.b16 %v1676
        %v1740 = vunpack.c.l.b16 %v1680
        %v1741 = vunpack.c.l.b16 %v1683
        %v1742 = vunpack.c.l.b16 %v1687
        %v1743 = vunpack.c.l.b16 %v1690
        %v1744 = vunpack.c.l.b16 %v1694
        %v1745 = vunpack.c.l.b16 %v1697
        %v1746 = vunpack.c.l.b16 %v1701
        %v1747 = vunpack.c.l.b16 %v1704
        %v1748 = vunpack.c.l.b16 %v1708
        %v1749 = vunpack.c.l.b16 %v1711
        %v1750 = vunpack.c.l.b16 %v1715
        %v1751 = vunpack.c.l.b16 %v1718
        %v1752 = vpack.c.b16 %v1737, %v1736
        %v1753 = vpack.c.b16 %v1739, %v1738
        %v1754 = vpack.c.b16 %v1741, %v1740
        %v1755 = vpack.c.b16 %v1743, %v1742
        %v1756 = vpack.c.b16 %v1745, %v1744
        %v1757 = vpack.c.b16 %v1747, %v1746
        %v1758 = vpack.c.b16 %v1749, %v1748
        %v1759 = vpack.c.b16 %v1751, %v1750
        %v1784 = vunpack.c.l.b16 %v1720
        %v1785 = vunpack.c.l.b16 %v1721
        %v1786 = vunpack.c.l.b16 %v1722
        %v1787 = vunpack.c.l.b16 %v1723
        %v1788 = vunpack.c.l.b16 %v1724
        %v1789 = vunpack.c.l.b16 %v1725
        %v1790 = vunpack.c.l.b16 %v1726
        %v1791 = vunpack.c.l.b16 %v1727
        %v1792 = vunpack.c.l.b16 %v1728
        %v1793 = vunpack.c.l.b16 %v1729
        %v1794 = vunpack.c.l.b16 %v1730
        %v1795 = vunpack.c.l.b16 %v1731
        %v1796 = vunpack.c.l.b16 %v1732
        %v1797 = vunpack.c.l.b16 %v1733
        %v1798 = vunpack.c.l.b16 %v1734
        %v1799 = vunpack.c.l.b16 %v1735
        %v1800 = vpack.c.b16 %v1785, %v1784
        %v1801 = vpack.c.b16 %v1787, %v1786
        %v1802 = vpack.c.b16 %v1789, %v1788
        %v1803 = vpack.c.b16 %v1791, %v1790
        %v1804 = vpack.c.b16 %v1793, %v1792
        %v1805 = vpack.c.b16 %v1795, %v1794
        %v1806 = vpack.c.b16 %v1797, %v1796
        %v1807 = vpack.c.b16 %v1799, %v1798
        %1816 = vmatprep.subr.bf16.mxu0 0
        %1817 = vmatpush1.bf16.msra.mxu0 %v1800
        %1818 = vmatprep.subr.bf16.mxu0 0
        %1819 = vmatpush1.bf16.msra.mxu0 %v1801
        %1820 = vmatprep.subr.bf16.mxu0 0
        %1821 = vmatpush1.bf16.msra.mxu0 %v1802
        %1822 = vmatprep.subr.bf16.mxu0 0
        %1823 = vmatpush1.bf16.msra.mxu0 %v1803
        %1824 = vmatprep.subr.bf16.mxu0 0
        %1825 = vmatpush1.bf16.msra.mxu0 %v1804
        %1826 = vmatprep.subr.bf16.mxu0 0
        %1827 = vmatpush1.bf16.msra.mxu0 %v1805
        %1828 = vmatprep.subr.bf16.mxu0 0
        %1829 = vmatpush1.bf16.msra.mxu0 %v1806
        %1830 = vmatprep.subr.bf16.mxu0 0
        %1831 = vmatpush1.bf16.msra.mxu0 %v1807
        %1832 = vmatprep.subr.bf16.mxu0 0
        %1833 = vmatpush1.bf16.msra.mxu0 0
        %1834 = vmatprep.subr.bf16.mxu0 0
        %1835 = vmatpush1.bf16.msra.mxu0 0
        %1836 = vmatprep.subr.bf16.mxu0 0
        %1837 = vmatpush1.bf16.msra.mxu0 0
        %1838 = vmatprep.subr.bf16.mxu0 0
        %1839 = vmatpush1.bf16.msra.mxu0 0
        %1840 = vmatprep.subr.bf16.mxu0 0
        %1841 = vmatpush1.bf16.msra.mxu0 0
        %1842 = vmatprep.subr.bf16.mxu0 0
        %1843 = vmatpush1.bf16.msra.mxu0 0
        %1844 = vmatprep.subr.bf16.mxu0 0
        %1845 = vmatpush1.bf16.msra.mxu0 0
        %1846 = vmatprep.subr.bf16.mxu0 0
        %1847 = vmatpush1.bf16.msra.mxu0 0
        %1848 = vmatprep.mubr.bf16.mxu0 0
        %1849 = vmatmul.mubr.bf16.gmra.mrb[0].mxu0 %v1752
        %v1850 = vpop.f32.mrb[0].mxu0
        %v1851 = vadd.f32 0.0, %v1850
        %v1852 = vpop.f32.mrb[0].mxu0
        %v1853 = vpop.f32.mrb[0].mxu0
        %v1854 = vadd.f32 0.0, %v1853
        %v1855 = vpop.f32.mrb[0].mxu0
        %1856 = vmatprep.mubr.bf16.mxu0 0
        %1857 = vmatmul.mubr.bf16.gmra.mrb[0].mxu0 %v1753
        %v1858 = vpop.f32.mrb[0].mxu0
        %v1859 = vadd.f32 0.0, %v1858
        %v1860 = vpop.f32.mrb[0].mxu0
        %v1861 = vpop.f32.mrb[0].mxu0
        %v1862 = vadd.f32 0.0, %v1861
        %v1863 = vpop.f32.mrb[0].mxu0
        %1864 = vmatprep.mubr.bf16.mxu0 0
        %1865 = vmatmul.mubr.bf16.gmra.mrb[0].mxu0 %v1754
        %v1866 = vpop.f32.mrb[0].mxu0
        %v1867 = vadd.f32 0.0, %v1866
        %v1868 = vpop.f32.mrb[0].mxu0
        %v1869 = vpop.f32.mrb[0].mxu0
        %v1870 = vadd.f32 0.0, %v1869
        %v1871 = vpop.f32.mrb[0].mxu0
        %1872 = vmatprep.mubr.bf16.mxu0 0
        %1873 = vmatmul.mubr.bf16.gmra.mrb[0].mxu0 %v1755
        %v1874 = vpop.f32.mrb[0].mxu0
        %v1875 = vadd.f32 0.0, %v1874
        %v1876 = vpop.f32.mrb[0].mxu0
        %v1877 = vpop.f32.mrb[0].mxu0
        %v1878 = vadd.f32 0.0, %v1877
        %v1879 = vpop.f32.mrb[0].mxu0
        %1880 = vmatprep.mubr.bf16.mxu0 0
        %1881 = vmatmul.mubr.bf16.gmra.mrb[0].mxu0 %v1756
        %v1882 = vpop.f32.mrb[0].mxu0
        %v1883 = vadd.f32 0.0, %v1882
        %v1884 = vpop.f32.mrb[0].mxu0
        %v1885 = vpop.f32.mrb[0].mxu0
        %v1886 = vadd.f32 0.0, %v1885
        %v1887 = vpop.f32.mrb[0].mxu0
        %1888 = vmatprep.mubr.bf16.mxu0 0
        %1889 = vmatmul.mubr.bf16.gmra.mrb[0].mxu0 %v1757
        %v1890 = vpop.f32.mrb[0].mxu0
        %v1891 = vadd.f32 0.0, %v1890
        %v1892 = vpop.f32.mrb[0].mxu0
        %v1893 = vpop.f32.mrb[0].mxu0
        %v1894 = vadd.f32 0.0, %v1893
        %v1895 = vpop.f32.mrb[0].mxu0
        %1896 = vmatprep.mubr.bf16.mxu0 0
        %1897 = vmatmul.mubr.bf16.gmra.mrb[0].mxu0 %v1758
        %v1898 = vpop.f32.mrb[0].mxu0
        %v1899 = vadd.f32 0.0, %v1898
        %v1900 = vpop.f32.mrb[0].mxu0
        %v1901 = vpop.f32.mrb[0].mxu0
        %v1902 = vadd.f32 0.0, %v1901
        %v1903 = vpop.f32.mrb[0].mxu0
        %1904 = vmatprep.mubr.bf16.mxu0 0
        %1905 = vmatmul.mubr.bf16.gmra.mrb[0].mxu0 %v1759
        %v1906 = vpop.f32.mrb[0].mxu0
        %v1907 = vadd.f32 0.0, %v1906
        %v1908 = vpop.f32.mrb[0].mxu0
        %v1909 = vpop.f32.mrb[0].mxu0
        %v1910 = vadd.f32 0.0, %v1909
        %v1911 = vpop.f32.mrb[0].mxu0
        %1912 = vdwg.mxu0
        %v1913 = vadd.f32 %v1574, %v1851
        %v1914 = vadd.f32 %v1577, %v1854
        %v1915 = vadd.f32 %v1582, %v1859
        %v1916 = vadd.f32 %v1585, %v1862
        %v1917 = vadd.f32 %v1590, %v1867
        %v1918 = vadd.f32 %v1593, %v1870
        %v1919 = vadd.f32 %v1598, %v1875
        %v1920 = vadd.f32 %v1601, %v1878
        %v1921 = vadd.f32 %v1606, %v1883
        %v1922 = vadd.f32 %v1609, %v1886
        %v1923 = vadd.f32 %v1614, %v1891
        %v1924 = vadd.f32 %v1617, %v1894
        %v1925 = vadd.f32 %v1622, %v1899
        %v1926 = vadd.f32 %v1625, %v1902
        %v1927 = vadd.f32 %v1630, %v1907
        %v1928 = vadd.f32 %v1633, %v1910
        %v1929 = vld [vmem:[%s957] sm:$0xf]
        %v1930 = vld [vmem:[%s957 + $0x4] sm:$0xf]
        %v1931 = vld [vmem:[%s957 + $0xc] sm:$0xf]
        %v1932 = vld [vmem:[%s957 + $0x10] sm:$0xf]
        %v1933 = vld [vmem:[%s957 + $0x18] sm:$0xf]
        %v1934 = vld [vmem:[%s957 + $0x1c] sm:$0xf]
        %v1935 = vld [vmem:[%s957 + $0x24] sm:$0xf]
        %v1936 = vld [vmem:[%s957 + $0x28] sm:$0xf]
        %v1937 = vld [vmem:[%s957 + $0x30] sm:$0xf]
        %v1938 = vld [vmem:[%s957 + $0x34] sm:$0xf]
        %v1939 = vld [vmem:[%s957 + $0x3c] sm:$0xf]
        %v1940 = vld [vmem:[%s957 + $0x40] sm:$0xf]
        %v1941 = vld [vmem:[%s957 + $0x48] sm:$0xf]
        %v1942 = vld [vmem:[%s957 + $0x4c] sm:$0xf]
        %v1943 = vld [vmem:[%s957 + $0x54] sm:$0xf]
        %v1944 = vld [vmem:[%s957 + $0x58] sm:$0xf]
        %s1945 = scalar_lea.vmem [#allocation9], 192
        %v1946 = vld [vmem:[%s1945] sm:$0xf]
        %v1947 = vld [vmem:[%s1945 + $0x4] sm:$0xf]
        %v1948 = vld [vmem:[%s1945 + $0x8] sm:$0xf]
        %v1949 = vld [vmem:[%s1945 + $0xc] sm:$0xf]
        %v1950 = vld [vmem:[%s1945 + $0x10] sm:$0xf]
        %v1951 = vld [vmem:[%s1945 + $0x14] sm:$0xf]
        %v1952 = vld [vmem:[%s1945 + $0x18] sm:$0xf]
        %v1953 = vld [vmem:[%s1945 + $0x1c] sm:$0xf]
        %v1954 = vld [vmem:[%s1945 + $0x20] sm:$0xf]
        %v1955 = vld [vmem:[%s1945 + $0x24] sm:$0xf]
        %v1956 = vld [vmem:[%s1945 + $0x28] sm:$0xf]
        %v1957 = vld [vmem:[%s1945 + $0x2c] sm:$0xf]
        %v1958 = vld [vmem:[%s1945 + $0x30] sm:$0xf]
        %v1959 = vld [vmem:[%s1945 + $0x34] sm:$0xf]
        %v1960 = vld [vmem:[%s1945 + $0x38] sm:$0xf]
        %v1961 = vld [vmem:[%s1945 + $0x3c] sm:$0xf]
        %v1978 = vunpack.c.l.b16 %v1929
        %v1979 = vunpack.c.l.b16 %v1930
        %v1980 = vunpack.c.l.b16 %v1931
        %v1981 = vunpack.c.l.b16 %v1932
        %v1982 = vunpack.c.l.b16 %v1933
        %v1983 = vunpack.c.l.b16 %v1934
        %v1984 = vunpack.c.l.b16 %v1935
        %v1985 = vunpack.c.l.b16 %v1936
        %v1986 = vunpack.c.l.b16 %v1937
        %v1987 = vunpack.c.l.b16 %v1938
        %v1988 = vunpack.c.l.b16 %v1939
        %v1989 = vunpack.c.l.b16 %v1940
        %v1990 = vunpack.c.l.b16 %v1941
        %v1991 = vunpack.c.l.b16 %v1942
        %v1992 = vunpack.c.l.b16 %v1943
        %v1993 = vunpack.c.l.b16 %v1944
        %v1994 = vpack.c.b16 %v1979, %v1978
        %v1995 = vpack.c.b16 %v1981, %v1980
        %v1996 = vpack.c.b16 %v1983, %v1982
        %v1997 = vpack.c.b16 %v1985, %v1984
        %v1998 = vpack.c.b16 %v1987, %v1986
        %v1999 = vpack.c.b16 %v1989, %v1988
        %v2000 = vpack.c.b16 %v1991, %v1990
        %v2001 = vpack.c.b16 %v1993, %v1992
        %v2026 = vunpack.c.l.b16 %v1946
        %v2027 = vunpack.c.l.b16 %v1947
        %v2028 = vunpack.c.l.b16 %v1948
        %v2029 = vunpack.c.l.b16 %v1949
        %v2030 = vunpack.c.l.b16 %v1950
        %v2031 = vunpack.c.l.b16 %v1951
        %v2032 = vunpack.c.l.b16 %v1952
        %v2033 = vunpack.c.l.b16 %v1953
        %v2034 = vunpack.c.l.b16 %v1954
        %v2035 = vunpack.c.l.b16 %v1955
        %v2036 = vunpack.c.l.b16 %v1956
        %v2037 = vunpack.c.l.b16 %v1957
        %v2038 = vunpack.c.l.b16 %v1958
        %v2039 = vunpack.c.l.b16 %v1959
        %v2040 = vunpack.c.l.b16 %v1960
        %v2041 = vunpack.c.l.b16 %v1961
        %v2042 = vpack.c.b16 %v2027, %v2026
        %v2043 = vpack.c.b16 %v2029, %v2028
        %v2044 = vpack.c.b16 %v2031, %v2030
        %v2045 = vpack.c.b16 %v2033, %v2032
        %v2046 = vpack.c.b16 %v2035, %v2034
        %v2047 = vpack.c.b16 %v2037, %v2036
        %v2048 = vpack.c.b16 %v2039, %v2038
        %v2049 = vpack.c.b16 %v2041, %v2040
        %2058 = vmatprep.subr.bf16.mxu0 0
        %2059 = vmatpush1.bf16.msra.mxu0 %v2042
        %2060 = vmatprep.subr.bf16.mxu0 0
        %2061 = vmatpush1.bf16.msra.mxu0 %v2043
        %2062 = vmatprep.subr.bf16.mxu0 0
        %2063 = vmatpush1.bf16.msra.mxu0 %v2044
        %2064 = vmatprep.subr.bf16.mxu0 0
        %2065 = vmatpush1.bf16.msra.mxu0 %v2045
        %2066 = vmatprep.subr.bf16.mxu0 0
        %2067 = vmatpush1.bf16.msra.mxu0 %v2046
        %2068 = vmatprep.subr.bf16.mxu0 0
        %2069 = vmatpush1.bf16.msra.mxu0 %v2047
        %2070 = vmatprep.subr.bf16.mxu0 0
        %2071 = vmatpush1.bf16.msra.mxu0 %v2048
        %2072 = vmatprep.subr.bf16.mxu0 0
        %2073 = vmatpush1.bf16.msra.mxu0 %v2049
        %2074 = vmatprep.subr.bf16.mxu0 0
        %2075 = vmatpush1.bf16.msra.mxu0 0
        %2076 = vmatprep.subr.bf16.mxu0 0
        %2077 = vmatpush1.bf16.msra.mxu0 0
        %2078 = vmatprep.subr.bf16.mxu0 0
        %2079 = vmatpush1.bf16.msra.mxu0 0
        %2080 = vmatprep.subr.bf16.mxu0 0
        %2081 = vmatpush1.bf16.msra.mxu0 0
        %2082 = vmatprep.subr.bf16.mxu0 0
        %2083 = vmatpush1.bf16.msra.mxu0 0
        %2084 = vmatprep.subr.bf16.mxu0 0
        %2085 = vmatpush1.bf16.msra.mxu0 0
        %2086 = vmatprep.subr.bf16.mxu0 0
        %2087 = vmatpush1.bf16.msra.mxu0 0
        %2088 = vmatprep.subr.bf16.mxu0 0
        %2089 = vmatpush1.bf16.msra.mxu0 0
        %2090 = vmatprep.mubr.bf16.mxu0 0
        %2091 = vmatmul.mubr.bf16.gmra.mrb[0].mxu0 %v1994
        %v2092 = vpop.f32.mrb[0].mxu0
        %v2093 = vadd.f32 0.0, %v2092
        %v2094 = vpop.f32.mrb[0].mxu0
        %v2095 = vpop.f32.mrb[0].mxu0
        %v2096 = vadd.f32 0.0, %v2095
        %v2097 = vpop.f32.mrb[0].mxu0
        %2098 = vmatprep.mubr.bf16.mxu0 0
        %2099 = vmatmul.mubr.bf16.gmra.mrb[0].mxu0 %v1995
        %v2100 = vpop.f32.mrb[0].mxu0
        %v2101 = vadd.f32 0.0, %v2100
        %v2102 = vpop.f32.mrb[0].mxu0
        %v2103 = vpop.f32.mrb[0].mxu0
        %v2104 = vadd.f32 0.0, %v2103
        %v2105 = vpop.f32.mrb[0].mxu0
        %2106 = vmatprep.mubr.bf16.mxu0 0
        %2107 = vmatmul.mubr.bf16.gmra.mrb[0].mxu0 %v1996
        %v2108 = vpop.f32.mrb[0].mxu0
        %v2109 = vadd.f32 0.0, %v2108
        %v2110 = vpop.f32.mrb[0].mxu0
        %v2111 = vpop.f32.mrb[0].mxu0
        %v2112 = vadd.f32 0.0, %v2111
        %v2113 = vpop.f32.mrb[0].mxu0
        %2114 = vmatprep.mubr.bf16.mxu0 0
        %2115 = vmatmul.mubr.bf16.gmra.mrb[0].mxu0 %v1997
        %v2116 = vpop.f32.mrb[0].mxu0
        %v2117 = vadd.f32 0.0, %v2116
        %v2118 = vpop.f32.mrb[0].mxu0
        %v2119 = vpop.f32.mrb[0].mxu0
        %v2120 = vadd.f32 0.0, %v2119
        %v2121 = vpop.f32.mrb[0].mxu0
        %2122 = vmatprep.mubr.bf16.mxu0 0
        %2123 = vmatmul.mubr.bf16.gmra.mrb[0].mxu0 %v1998
        %v2124 = vpop.f32.mrb[0].mxu0
        %v2125 = vadd.f32 0.0, %v2124
        %v2126 = vpop.f32.mrb[0].mxu0
        %v2127 = vpop.f32.mrb[0].mxu0
        %v2128 = vadd.f32 0.0, %v2127
        %v2129 = vpop.f32.mrb[0].mxu0
        %2130 = vmatprep.mubr.bf16.mxu0 0
        %2131 = vmatmul.mubr.bf16.gmra.mrb[0].mxu0 %v1999
        %v2132 = vpop.f32.mrb[0].mxu0
        %v2133 = vadd.f32 0.0, %v2132
        %v2134 = vpop.f32.mrb[0].mxu0
        %v2135 = vpop.f32.mrb[0].mxu0
        %v2136 = vadd.f32 0.0, %v2135
        %v2137 = vpop.f32.mrb[0].mxu0
        %2138 = vmatprep.mubr.bf16.mxu0 0
        %2139 = vmatmul.mubr.bf16.gmra.mrb[0].mxu0 %v2000
        %v2140 = vpop.f32.mrb[0].mxu0
        %v2141 = vadd.f32 0.0, %v2140
        %v2142 = vpop.f32.mrb[0].mxu0
        %v2143 = vpop.f32.mrb[0].mxu0
        %v2144 = vadd.f32 0.0, %v2143
        %v2145 = vpop.f32.mrb[0].mxu0
        %2146 = vmatprep.mubr.bf16.mxu0 0
        %2147 = vmatmul.mubr.bf16.gmra.mrb[0].mxu0 %v2001
        %v2148 = vpop.f32.mrb[0].mxu0
        %v2149 = vadd.f32 0.0, %v2148
        %v2150 = vpop.f32.mrb[0].mxu0
        %v2151 = vpop.f32.mrb[0].mxu0
        %v2152 = vadd.f32 0.0, %v2151
        %v2153 = vpop.f32.mrb[0].mxu0
        %2154 = vdwg.mxu0
        %v2155 = vadd.f32 %v1913, %v2093
        %v2156 = vadd.f32 %v1914, %v2096
        %v2157 = vadd.f32 %v1915, %v2101
        %v2158 = vadd.f32 %v1916, %v2104
        %v2159 = vadd.f32 %v1917, %v2109
        %v2160 = vadd.f32 %v1918, %v2112
        %v2161 = vadd.f32 %v1919, %v2117
        %v2162 = vadd.f32 %v1920, %v2120
        %v2163 = vadd.f32 %v1921, %v2125
        %v2164 = vadd.f32 %v1922, %v2128
        %v2165 = vadd.f32 %v1923, %v2133
        %v2166 = vadd.f32 %v1924, %v2136
        %v2167 = vadd.f32 %v1925, %v2141
        %v2168 = vadd.f32 %v1926, %v2144
        %v2169 = vadd.f32 %v1927, %v2149
        %v2170 = vadd.f32 %v1928, %v2152
        %v2171 = vld [vmem:[%s957] sm:$0xf]
        %v2172 = vld [vmem:[%s957 + $0x4] sm:$0xf]
        %v2173 = vld [vmem:[%s957 + $0x8] sm:$0x1]
        %v2174 = vld [vmem:[%s957 + $0xc] sm:$0xf]
        %v2175 = vld [vmem:[%s957 + $0x10] sm:$0xf]
        %v2176 = vld [vmem:[%s957 + $0x14] sm:$0x1]
        %v2177 = vld [vmem:[%s957 + $0x18] sm:$0xf]
        %v2178 = vld [vmem:[%s957 + $0x1c] sm:$0xf]
        %v2179 = vld [vmem:[%s957 + $0x20] sm:$0x1]
        %v2180 = vld [vmem:[%s957 + $0x24] sm:$0xf]
        %v2181 = vld [vmem:[%s957 + $0x28] sm:$0xf]
        %v2182 = vld [vmem:[%s957 + $0x2c] sm:$0x1]
        %v2183 = vld [vmem:[%s957 + $0x30] sm:$0xf]
        %v2184 = vld [vmem:[%s957 + $0x34] sm:$0xf]
        %v2185 = vld [vmem:[%s957 + $0x38] sm:$0x1]
        %v2186 = vld [vmem:[%s957 + $0x3c] sm:$0xf]
        %v2187 = vld [vmem:[%s957 + $0x40] sm:$0xf]
        %v2188 = vld [vmem:[%s957 + $0x44] sm:$0x1]
        %v2189 = vld [vmem:[%s957 + $0x48] sm:$0xf]
        %v2190 = vld [vmem:[%s957 + $0x4c] sm:$0xf]
        %v2191 = vld [vmem:[%s957 + $0x50] sm:$0x1]
        %v2192 = vld [vmem:[%s957 + $0x54] sm:$0xf]
        %v2193 = vld [vmem:[%s957 + $0x58] sm:$0xf]
        %v2194 = vld [vmem:[%s957 + $0x5c] sm:$0x1]
        %v2196 = vshrl.u32 %v2171, 16
        %v2198 = vrot.slane %v2196, 4
        %v2199 = vshll.u32 %v2171, 16
        %v2201 = vrot.slane %v2199, 5
        %v2202 = vor.u32 %v2198, %v2201
        %v2203 = vrot.slane %v2202, 4
        %v2205 = vshll.u32 %v2172, 16
        %v2207 = vrot.slane %v2205, 5
        %v2208 = vsel %vm1056, %v2203, %v2207
        %v2209 = vshrl.u32 %v2172, 16
        %v2211 = vrot.slane %v2209, 4
        %v2212 = vor.u32 %v2211, %v2207
        %v2213 = vrot.slane %v2212, 4
        %v2215 = vshll.u32 %v2173, 16
        %v2217 = vrot.slane %v2215, 5
        %v2218 = vsel %vm1056, %v2213, %v2217
        %v2220 = vshrl.u32 %v2174, 16
        %v2222 = vrot.slane %v2220, 4
        %v2223 = vshll.u32 %v2174, 16
        %v2225 = vrot.slane %v2223, 5
        %v2226 = vor.u32 %v2222, %v2225
        %v2227 = vrot.slane %v2226, 4
        %v2229 = vshll.u32 %v2175, 16
        %v2231 = vrot.slane %v2229, 5
        %v2232 = vsel %vm1056, %v2227, %v2231
        %v2233 = vshrl.u32 %v2175, 16
        %v2235 = vrot.slane %v2233, 4
        %v2236 = vor.u32 %v2235, %v2231
        %v2237 = vrot.slane %v2236, 4
        %v2239 = vshll.u32 %v2176, 16
        %v2241 = vrot.slane %v2239, 5
        %v2242 = vsel %vm1056, %v2237, %v2241
        %v2244 = vshrl.u32 %v2177, 16
        %v2246 = vrot.slane %v2244, 4
        %v2247 = vshll.u32 %v2177, 16
        %v2249 = vrot.slane %v2247, 5
        %v2250 = vor.u32 %v2246, %v2249
        %v2251 = vrot.slane %v2250, 4
        %v2253 = vshll.u32 %v2178, 16
        %v2255 = vrot.slane %v2253, 5
        %v2256 = vsel %vm1056, %v2251, %v2255
        %v2257 = vshrl.u32 %v2178, 16
        %v2259 = vrot.slane %v2257, 4
        %v2260 = vor.u32 %v2259, %v2255
        %v2261 = vrot.slane %v2260, 4
        %v2263 = vshll.u32 %v2179, 16
        %v2265 = vrot.slane %v2263, 5
        %v2266 = vsel %vm1056, %v2261, %v2265
        %v2268 = vshrl.u32 %v2180, 16
        %v2270 = vrot.slane %v2268, 4
        %v2271 = vshll.u32 %v2180, 16
        %v2273 = vrot.slane %v2271, 5
        %v2274 = vor.u32 %v2270, %v2273
        %v2275 = vrot.slane %v2274, 4
        %v2277 = vshll.u32 %v2181, 16
        %v2279 = vrot.slane %v2277, 5
        %v2280 = vsel %vm1056, %v2275, %v2279
        %v2281 = vshrl.u32 %v2181, 16
        %v2283 = vrot.slane %v2281, 4
        %v2284 = vor.u32 %v2283, %v2279
        %v2285 = vrot.slane %v2284, 4
        %v2287 = vshll.u32 %v2182, 16
        %v2289 = vrot.slane %v2287, 5
        %v2290 = vsel %vm1056, %v2285, %v2289
        %v2292 = vshrl.u32 %v2183, 16
        %v2294 = vrot.slane %v2292, 4
        %v2295 = vshll.u32 %v2183, 16
        %v2297 = vrot.slane %v2295, 5
        %v2298 = vor.u32 %v2294, %v2297
        %v2299 = vrot.slane %v2298, 4
        %v2301 = vshll.u32 %v2184, 16
        %v2303 = vrot.slane %v2301, 5
        %v2304 = vsel %vm1056, %v2299, %v2303
        %v2305 = vshrl.u32 %v2184, 16
        %v2307 = vrot.slane %v2305, 4
        %v2308 = vor.u32 %v2307, %v2303
        %v2309 = vrot.slane %v2308, 4
        %v2311 = vshll.u32 %v2185, 16
        %v2313 = vrot.slane %v2311, 5
        %v2314 = vsel %vm1056, %v2309, %v2313
        %v2316 = vshrl.u32 %v2186, 16
        %v2318 = vrot.slane %v2316, 4
        %v2319 = vshll.u32 %v2186, 16
        %v2321 = vrot.slane %v2319, 5
        %v2322 = vor.u32 %v2318, %v2321
        %v2323 = vrot.slane %v2322, 4
        %v2325 = vshll.u32 %v2187, 16
        %v2327 = vrot.slane %v2325, 5
        %v2328 = vsel %vm1056, %v2323, %v2327
        %v2329 = vshrl.u32 %v2187, 16
        %v2331 = vrot.slane %v2329, 4
        %v2332 = vor.u32 %v2331, %v2327
        %v2333 = vrot.slane %v2332, 4
        %v2335 = vshll.u32 %v2188, 16
        %v2337 = vrot.slane %v2335, 5
        %v2338 = vsel %vm1056, %v2333, %v2337
        %v2340 = vshrl.u32 %v2189, 16
        %v2342 = vrot.slane %v2340, 4
        %v2343 = vshll.u32 %v2189, 16
        %v2345 = vrot.slane %v2343, 5
        %v2346 = vor.u32 %v2342, %v2345
        %v2347 = vrot.slane %v2346, 4
        %v2349 = vshll.u32 %v2190, 16
        %v2351 = vrot.slane %v2349, 5
        %v2352 = vsel %vm1056, %v2347, %v2351
        %v2353 = vshrl.u32 %v2190, 16
        %v2355 = vrot.slane %v2353, 4
        %v2356 = vor.u32 %v2355, %v2351
        %v2357 = vrot.slane %v2356, 4
        %v2359 = vshll.u32 %v2191, 16
        %v2361 = vrot.slane %v2359, 5
        %v2362 = vsel %vm1056, %v2357, %v2361
        %v2364 = vshrl.u32 %v2192, 16
        %v2366 = vrot.slane %v2364, 4
        %v2367 = vshll.u32 %v2192, 16
        %v2369 = vrot.slane %v2367, 5
        %v2370 = vor.u32 %v2366, %v2369
        %v2371 = vrot.slane %v2370, 4
        %v2373 = vshll.u32 %v2193, 16
        %v2375 = vrot.slane %v2373, 5
        %v2376 = vsel %vm1056, %v2371, %v2375
        %v2377 = vshrl.u32 %v2193, 16
        %v2379 = vrot.slane %v2377, 4
        %v2380 = vor.u32 %v2379, %v2375
        %v2381 = vrot.slane %v2380, 4
        %v2383 = vshll.u32 %v2194, 16
        %v2385 = vrot.slane %v2383, 5
        %v2386 = vsel %vm1056, %v2381, %v2385
        %s2387 = scalar_lea.vmem [#allocation9], 256
        %v2388 = vld [vmem:[%s2387] sm:$0xf]
        %v2389 = vld [vmem:[%s2387 + $0x4] sm:$0xf]
        %v2390 = vld [vmem:[%s2387 + $0x8] sm:$0xf]
        %v2391 = vld [vmem:[%s2387 + $0xc] sm:$0xf]
        %v2392 = vld [vmem:[%s2387 + $0x10] sm:$0xf]
        %v2393 = vld [vmem:[%s2387 + $0x14] sm:$0xf]
        %v2394 = vld [vmem:[%s2387 + $0x18] sm:$0xf]
        %v2395 = vld [vmem:[%s2387 + $0x1c] sm:$0xf]
        %v2396 = vld [vmem:[%s2387 + $0x20] sm:$0xf]
        %v2397 = vld [vmem:[%s2387 + $0x24] sm:$0xf]
        %v2398 = vld [vmem:[%s2387 + $0x28] sm:$0xf]
        %v2399 = vld [vmem:[%s2387 + $0x2c] sm:$0xf]
        %v2400 = vld [vmem:[%s2387 + $0x30] sm:$0xf]
        %v2401 = vld [vmem:[%s2387 + $0x34] sm:$0xf]
        %v2402 = vld [vmem:[%s2387 + $0x38] sm:$0xf]
        %v2403 = vld [vmem:[%s2387 + $0x3c] sm:$0xf]
        %v2404 = vunpack.c.l.b16 %v2208
        %v2405 = vunpack.c.l.b16 %v2218
        %v2406 = vunpack.c.l.b16 %v2232
        %v2407 = vunpack.c.l.b16 %v2242
        %v2408 = vunpack.c.l.b16 %v2256
        %v2409 = vunpack.c.l.b16 %v2266
        %v2410 = vunpack.c.l.b16 %v2280
        %v2411 = vunpack.c.l.b16 %v2290
        %v2412 = vunpack.c.l.b16 %v2304
        %v2413 = vunpack.c.l.b16 %v2314
        %v2414 = vunpack.c.l.b16 %v2328
        %v2415 = vunpack.c.l.b16 %v2338
        %v2416 = vunpack.c.l.b16 %v2352
        %v2417 = vunpack.c.l.b16 %v2362
        %v2418 = vunpack.c.l.b16 %v2376
        %v2419 = vunpack.c.l.b16 %v2386
        %v2420 = vpack.c.b16 %v2405, %v2404
        %v2421 = vpack.c.b16 %v2407, %v2406
        %v2422 = vpack.c.b16 %v2409, %v2408
        %v2423 = vpack.c.b16 %v2411, %v2410
        %v2424 = vpack.c.b16 %v2413, %v2412
        %v2425 = vpack.c.b16 %v2415, %v2414
        %v2426 = vpack.c.b16 %v2417, %v2416
        %v2427 = vpack.c.b16 %v2419, %v2418
        %v2452 = vunpack.c.l.b16 %v2388
        %v2453 = vunpack.c.l.b16 %v2389
        %v2454 = vunpack.c.l.b16 %v2390
        %v2455 = vunpack.c.l.b16 %v2391
        %v2456 = vunpack.c.l.b16 %v2392
        %v2457 = vunpack.c.l.b16 %v2393
        %v2458 = vunpack.c.l.b16 %v2394
        %v2459 = vunpack.c.l.b16 %v2395
        %v2460 = vunpack.c.l.b16 %v2396
        %v2461 = vunpack.c.l.b16 %v2397
        %v2462 = vunpack.c.l.b16 %v2398
        %v2463 = vunpack.c.l.b16 %v2399
        %v2464 = vunpack.c.l.b16 %v2400
        %v2465 = vunpack.c.l.b16 %v2401
        %v2466 = vunpack.c.l.b16 %v2402
        %v2467 = vunpack.c.l.b16 %v2403
        %v2468 = vpack.c.b16 %v2453, %v2452
        %v2469 = vpack.c.b16 %v2455, %v2454
        %v2470 = vpack.c.b16 %v2457, %v2456
        %v2471 = vpack.c.b16 %v2459, %v2458
        %v2472 = vpack.c.b16 %v2461, %v2460
        %v2473 = vpack.c.b16 %v2463, %v2462
        %v2474 = vpack.c.b16 %v2465, %v2464
        %v2475 = vpack.c.b16 %v2467, %v2466
        %2484 = vmatprep.subr.bf16.mxu0 0
        %2485 = vmatpush1.bf16.msra.mxu0 %v2468
        %2486 = vmatprep.subr.bf16.mxu0 0
        %2487 = vmatpush1.bf16.msra.mxu0 %v2469
        %2488 = vmatprep.subr.bf16.mxu0 0
        %2489 = vmatpush1.bf16.msra.mxu0 %v2470
        %2490 = vmatprep.subr.bf16.mxu0 0
        %2491 = vmatpush1.bf16.msra.mxu0 %v2471
        %2492 = vmatprep.subr.bf16.mxu0 0
        %2493 = vmatpush1.bf16.msra.mxu0 %v2472
        %2494 = vmatprep.subr.bf16.mxu0 0
        %2495 = vmatpush1.bf16.msra.mxu0 %v2473
        %2496 = vmatprep.subr.bf16.mxu0 0
        %2497 = vmatpush1.bf16.msra.mxu0 %v2474
        %2498 = vmatprep.subr.bf16.mxu0 0
        %2499 = vmatpush1.bf16.msra.mxu0 %v2475
        %2500 = vmatprep.subr.bf16.mxu0 0
        %2501 = vmatpush1.bf16.msra.mxu0 0
        %2502 = vmatprep.subr.bf16.mxu0 0
        %2503 = vmatpush1.bf16.msra.mxu0 0
        %2504 = vmatprep.subr.bf16.mxu0 0
        %2505 = vmatpush1.bf16.msra.mxu0 0
        %2506 = vmatprep.subr.bf16.mxu0 0
        %2507 = vmatpush1.bf16.msra.mxu0 0
        %2508 = vmatprep.subr.bf16.mxu0 0
        %2509 = vmatpush1.bf16.msra.mxu0 0
        %2510 = vmatprep.subr.bf16.mxu0 0
        %2511 = vmatpush1.bf16.msra.mxu0 0
        %2512 = vmatprep.subr.bf16.mxu0 0
        %2513 = vmatpush1.bf16.msra.mxu0 0
        %2514 = vmatprep.subr.bf16.mxu0 0
        %2515 = vmatpush1.bf16.msra.mxu0 0
        %2516 = vmatprep.mubr.bf16.mxu0 0
        %2517 = vmatmul.mubr.bf16.gmra.mrb[0].mxu0 %v2420
        %v2518 = vpop.f32.mrb[0].mxu0
        %v2519 = vadd.f32 0.0, %v2518
        %v2520 = vpop.f32.mrb[0].mxu0
        %v2521 = vpop.f32.mrb[0].mxu0
        %v2522 = vadd.f32 0.0, %v2521
        %v2523 = vpop.f32.mrb[0].mxu0
        %2524 = vmatprep.mubr.bf16.mxu0 0
        %2525 = vmatmul.mubr.bf16.gmra.mrb[0].mxu0 %v2421
        %v2526 = vpop.f32.mrb[0].mxu0
        %v2527 = vadd.f32 0.0, %v2526
        %v2528 = vpop.f32.mrb[0].mxu0
        %v2529 = vpop.f32.mrb[0].mxu0
        %v2530 = vadd.f32 0.0, %v2529
        %v2531 = vpop.f32.mrb[0].mxu0
        %2532 = vmatprep.mubr.bf16.mxu0 0
        %2533 = vmatmul.mubr.bf16.gmra.mrb[0].mxu0 %v2422
        %v2534 = vpop.f32.mrb[0].mxu0
        %v2535 = vadd.f32 0.0, %v2534
        %v2536 = vpop.f32.mrb[0].mxu0
        %v2537 = vpop.f32.mrb[0].mxu0
        %v2538 = vadd.f32 0.0, %v2537
        %v2539 = vpop.f32.mrb[0].mxu0
        %2540 = vmatprep.mubr.bf16.mxu0 0
        %2541 = vmatmul.mubr.bf16.gmra.mrb[0].mxu0 %v2423
        %v2542 = vpop.f32.mrb[0].mxu0
        %v2543 = vadd.f32 0.0, %v2542
        %v2544 = vpop.f32.mrb[0].mxu0
        %v2545 = vpop.f32.mrb[0].mxu0
        %v2546 = vadd.f32 0.0, %v2545
        %v2547 = vpop.f32.mrb[0].mxu0
        %2548 = vmatprep.mubr.bf16.mxu0 0
        %2549 = vmatmul.mubr.bf16.gmra.mrb[0].mxu0 %v2424
        %v2550 = vpop.f32.mrb[0].mxu0
        %v2551 = vadd.f32 0.0, %v2550
        %v2552 = vpop.f32.mrb[0].mxu0
        %v2553 = vpop.f32.mrb[0].mxu0
        %v2554 = vadd.f32 0.0, %v2553
        %v2555 = vpop.f32.mrb[0].mxu0
        %2556 = vmatprep.mubr.bf16.mxu0 0
        %2557 = vmatmul.mubr.bf16.gmra.mrb[0].mxu0 %v2425
        %v2558 = vpop.f32.mrb[0].mxu0
        %v2559 = vadd.f32 0.0, %v2558
        %v2560 = vpop.f32.mrb[0].mxu0
        %v2561 = vpop.f32.mrb[0].mxu0
        %v2562 = vadd.f32 0.0, %v2561
        %v2563 = vpop.f32.mrb[0].mxu0
        %2564 = vmatprep.mubr.bf16.mxu0 0
        %2565 = vmatmul.mubr.bf16.gmra.mrb[0].mxu0 %v2426
        %v2566 = vpop.f32.mrb[0].mxu0
        %v2567 = vadd.f32 0.0, %v2566
        %v2568 = vpop.f32.mrb[0].mxu0
        %v2569 = vpop.f32.mrb[0].mxu0
        %v2570 = vadd.f32 0.0, %v2569
        %v2571 = vpop.f32.mrb[0].mxu0
        %2572 = vmatprep.mubr.bf16.mxu0 0
        %2573 = vmatmul.mubr.bf16.gmra.mrb[0].mxu0 %v2427
        %v2574 = vpop.f32.mrb[0].mxu0
        %v2575 = vadd.f32 0.0, %v2574
        %v2576 = vpop.f32.mrb[0].mxu0
        %v2577 = vpop.f32.mrb[0].mxu0
        %v2578 = vadd.f32 0.0, %v2577
        %v2579 = vpop.f32.mrb[0].mxu0
        %2580 = vdwg.mxu0
        %v2581 = vadd.f32 %v2155, %v2519
        %v2582 = vadd.f32 %v2156, %v2522
        %v2583 = vadd.f32 %v2157, %v2527
        %v2584 = vadd.f32 %v2158, %v2530
        %v2585 = vadd.f32 %v2159, %v2535
        %v2586 = vadd.f32 %v2160, %v2538
        %v2587 = vadd.f32 %v2161, %v2543
        %v2588 = vadd.f32 %v2162, %v2546
        %v2589 = vadd.f32 %v2163, %v2551
        %v2590 = vadd.f32 %v2164, %v2554
        %v2591 = vadd.f32 %v2165, %v2559
        %v2592 = vadd.f32 %v2166, %v2562
        %v2593 = vadd.f32 %v2167, %v2567
        %v2594 = vadd.f32 %v2168, %v2570
        %v2595 = vadd.f32 %v2169, %v2575
        %v2596 = vadd.f32 %v2170, %v2578
        %v2597 = vld [vmem:[%s957] sm:$0xe]
        %v2598 = vld [vmem:[%s957 + $0xc] sm:$0xe]
        %v2599 = vld [vmem:[%s957 + $0x18] sm:$0xe]
        %v2600 = vld [vmem:[%s957 + $0x24] sm:$0xe]
        %v2601 = vld [vmem:[%s957 + $0x30] sm:$0xe]
        %v2602 = vld [vmem:[%s957 + $0x3c] sm:$0xe]
        %v2603 = vld [vmem:[%s957 + $0x48] sm:$0xe]
        %v2604 = vld [vmem:[%s957 + $0x54] sm:$0xe]
        %v2629 = vrot.slane %v2597, 5
        %v2630 = vrot.slane %v2629, 4
        %v2631 = vrot.slane %v2172, 5
        %v2632 = vsel %vm1662, %v2630, %v2631
        %v2633 = vrot.slane %v2631, 4
        %v2634 = vrot.slane %v2173, 5
        %v2635 = vsel %vm1662, %v2633, %v2634
        %v2636 = vrot.slane %v2598, 5
        %v2637 = vrot.slane %v2636, 4
        %v2638 = vrot.slane %v2175, 5
        %v2639 = vsel %vm1662, %v2637, %v2638
        %v2640 = vrot.slane %v2638, 4
        %v2641 = vrot.slane %v2176, 5
        %v2642 = vsel %vm1662, %v2640, %v2641
        %v2643 = vrot.slane %v2599, 5
        %v2644 = vrot.slane %v2643, 4
        %v2645 = vrot.slane %v2178, 5
        %v2646 = vsel %vm1662, %v2644, %v2645
        %v2647 = vrot.slane %v2645, 4
        %v2648 = vrot.slane %v2179, 5
        %v2649 = vsel %vm1662, %v2647, %v2648
        %v2650 = vrot.slane %v2600, 5
        %v2651 = vrot.slane %v2650, 4
        %v2652 = vrot.slane %v2181, 5
        %v2653 = vsel %vm1662, %v2651, %v2652
        %v2654 = vrot.slane %v2652, 4
        %v2655 = vrot.slane %v2182, 5
        %v2656 = vsel %vm1662, %v2654, %v2655
        %v2657 = vrot.slane %v2601, 5
        %v2658 = vrot.slane %v2657, 4
        %v2659 = vrot.slane %v2184, 5
        %v2660 = vsel %vm1662, %v2658, %v2659
        %v2661 = vrot.slane %v2659, 4
        %v2662 = vrot.slane %v2185, 5
        %v2663 = vsel %vm1662, %v2661, %v2662
        %v2664 = vrot.slane %v2602, 5
        %v2665 = vrot.slane %v2664, 4
        %v2666 = vrot.slane %v2187, 5
        %v2667 = vsel %vm1662, %v2665, %v2666
        %v2668 = vrot.slane %v2666, 4
        %v2669 = vrot.slane %v2188, 5
        %v2670 = vsel %vm1662, %v2668, %v2669
        %v2671 = vrot.slane %v2603, 5
        %v2672 = vrot.slane %v2671, 4
        %v2673 = vrot.slane %v2190, 5
        %v2674 = vsel %vm1662, %v2672, %v2673
        %v2675 = vrot.slane %v2673, 4
        %v2676 = vrot.slane %v2191, 5
        %v2677 = vsel %vm1662, %v2675, %v2676
        %v2678 = vrot.slane %v2604, 5
        %v2679 = vrot.slane %v2678, 4
        %v2680 = vrot.slane %v2193, 5
        %v2681 = vsel %vm1662, %v2679, %v2680
        %v2682 = vrot.slane %v2680, 4
        %v2683 = vrot.slane %v2194, 5
        %v2684 = vsel %vm1662, %v2682, %v2683
        %s2685 = scalar_lea.vmem [#allocation9], 320
        %v2686 = vld [vmem:[%s2685] sm:$0xf]
        %v2687 = vld [vmem:[%s2685 + $0x4] sm:$0xf]
        %v2688 = vld [vmem:[%s2685 + $0x8] sm:$0xf]
        %v2689 = vld [vmem:[%s2685 + $0xc] sm:$0xf]
        %v2690 = vld [vmem:[%s2685 + $0x10] sm:$0xf]
        %v2691 = vld [vmem:[%s2685 + $0x14] sm:$0xf]
        %v2692 = vld [vmem:[%s2685 + $0x18] sm:$0xf]
        %v2693 = vld [vmem:[%s2685 + $0x1c] sm:$0xf]
        %v2694 = vld [vmem:[%s2685 + $0x20] sm:$0xf]
        %v2695 = vld [vmem:[%s2685 + $0x24] sm:$0xf]
        %v2696 = vld [vmem:[%s2685 + $0x28] sm:$0xf]
        %v2697 = vld [vmem:[%s2685 + $0x2c] sm:$0xf]
        %v2698 = vld [vmem:[%s2685 + $0x30] sm:$0xf]
        %v2699 = vld [vmem:[%s2685 + $0x34] sm:$0xf]
        %v2700 = vld [vmem:[%s2685 + $0x38] sm:$0xf]
        %v2701 = vld [vmem:[%s2685 + $0x3c] sm:$0xf]
        %v2702 = vunpack.c.l.b16 %v2632
        %v2703 = vunpack.c.l.b16 %v2635
        %v2704 = vunpack.c.l.b16 %v2639
        %v2705 = vunpack.c.l.b16 %v2642
        %v2706 = vunpack.c.l.b16 %v2646
        %v2707 = vunpack.c.l.b16 %v2649
        %v2708 = vunpack.c.l.b16 %v2653
        %v2709 = vunpack.c.l.b16 %v2656
        %v2710 = vunpack.c.l.b16 %v2660
        %v2711 = vunpack.c.l.b16 %v2663
        %v2712 = vunpack.c.l.b16 %v2667
        %v2713 = vunpack.c.l.b16 %v2670
        %v2714 = vunpack.c.l.b16 %v2674
        %v2715 = vunpack.c.l.b16 %v2677
        %v2716 = vunpack.c.l.b16 %v2681
        %v2717 = vunpack.c.l.b16 %v2684
        %v2718 = vpack.c.b16 %v2703, %v2702
        %v2719 = vpack.c.b16 %v2705, %v2704
        %v2720 = vpack.c.b16 %v2707, %v2706
        %v2721 = vpack.c.b16 %v2709, %v2708
        %v2722 = vpack.c.b16 %v2711, %v2710
        %v2723 = vpack.c.b16 %v2713, %v2712
        %v2724 = vpack.c.b16 %v2715, %v2714
        %v2725 = vpack.c.b16 %v2717, %v2716
        %v2750 = vunpack.c.l.b16 %v2686
        %v2751 = vunpack.c.l.b16 %v2687
        %v2752 = vunpack.c.l.b16 %v2688
        %v2753 = vunpack.c.l.b16 %v2689
        %v2754 = vunpack.c.l.b16 %v2690
        %v2755 = vunpack.c.l.b16 %v2691
        %v2756 = vunpack.c.l.b16 %v2692
        %v2757 = vunpack.c.l.b16 %v2693
        %v2758 = vunpack.c.l.b16 %v2694
        %v2759 = vunpack.c.l.b16 %v2695
        %v2760 = vunpack.c.l.b16 %v2696
        %v2761 = vunpack.c.l.b16 %v2697
        %v2762 = vunpack.c.l.b16 %v2698
        %v2763 = vunpack.c.l.b16 %v2699
        %v2764 = vunpack.c.l.b16 %v2700
        %v2765 = vunpack.c.l.b16 %v2701
        %v2766 = vpack.c.b16 %v2751, %v2750
        %v2767 = vpack.c.b16 %v2753, %v2752
        %v2768 = vpack.c.b16 %v2755, %v2754
        %v2769 = vpack.c.b16 %v2757, %v2756
        %v2770 = vpack.c.b16 %v2759, %v2758
        %v2771 = vpack.c.b16 %v2761, %v2760
        %v2772 = vpack.c.b16 %v2763, %v2762
        %v2773 = vpack.c.b16 %v2765, %v2764
        %2782 = vmatprep.subr.bf16.mxu0 0
        %2783 = vmatpush1.bf16.msra.mxu0 %v2766
        %2784 = vmatprep.subr.bf16.mxu0 0
        %2785 = vmatpush1.bf16.msra.mxu0 %v2767
        %2786 = vmatprep.subr.bf16.mxu0 0
        %2787 = vmatpush1.bf16.msra.mxu0 %v2768
        %2788 = vmatprep.subr.bf16.mxu0 0
        %2789 = vmatpush1.bf16.msra.mxu0 %v2769
        %2790 = vmatprep.subr.bf16.mxu0 0
        %2791 = vmatpush1.bf16.msra.mxu0 %v2770
        %2792 = vmatprep.subr.bf16.mxu0 0
        %2793 = vmatpush1.bf16.msra.mxu0 %v2771
        %2794 = vmatprep.subr.bf16.mxu0 0
        %2795 = vmatpush1.bf16.msra.mxu0 %v2772
        %2796 = vmatprep.subr.bf16.mxu0 0
        %2797 = vmatpush1.bf16.msra.mxu0 %v2773
        %2798 = vmatprep.subr.bf16.mxu0 0
        %2799 = vmatpush1.bf16.msra.mxu0 0
        %2800 = vmatprep.subr.bf16.mxu0 0
        %2801 = vmatpush1.bf16.msra.mxu0 0
        %2802 = vmatprep.subr.bf16.mxu0 0
        %2803 = vmatpush1.bf16.msra.mxu0 0
        %2804 = vmatprep.subr.bf16.mxu0 0
        %2805 = vmatpush1.bf16.msra.mxu0 0
        %2806 = vmatprep.subr.bf16.mxu0 0
        %2807 = vmatpush1.bf16.msra.mxu0 0
        %2808 = vmatprep.subr.bf16.mxu0 0
        %2809 = vmatpush1.bf16.msra.mxu0 0
        %2810 = vmatprep.subr.bf16.mxu0 0
        %2811 = vmatpush1.bf16.msra.mxu0 0
        %2812 = vmatprep.subr.bf16.mxu0 0
        %2813 = vmatpush1.bf16.msra.mxu0 0
        %2814 = vmatprep.mubr.bf16.mxu0 0
        %2815 = vmatmul.mubr.bf16.gmra.mrb[0].mxu0 %v2718
        %v2816 = vpop.f32.mrb[0].mxu0
        %v2817 = vadd.f32 0.0, %v2816
        %v2818 = vpop.f32.mrb[0].mxu0
        %v2819 = vpop.f32.mrb[0].mxu0
        %v2820 = vadd.f32 0.0, %v2819
        %v2821 = vpop.f32.mrb[0].mxu0
        %2822 = vmatprep.mubr.bf16.mxu0 0
        %2823 = vmatmul.mubr.bf16.gmra.mrb[0].mxu0 %v2719
        %v2824 = vpop.f32.mrb[0].mxu0
        %v2825 = vadd.f32 0.0, %v2824
        %v2826 = vpop.f32.mrb[0].mxu0
        %v2827 = vpop.f32.mrb[0].mxu0
        %v2828 = vadd.f32 0.0, %v2827
        %v2829 = vpop.f32.mrb[0].mxu0
        %2830 = vmatprep.mubr.bf16.mxu0 0
        %2831 = vmatmul.mubr.bf16.gmra.mrb[0].mxu0 %v2720
        %v2832 = vpop.f32.mrb[0].mxu0
        %v2833 = vadd.f32 0.0, %v2832
        %v2834 = vpop.f32.mrb[0].mxu0
        %v2835 = vpop.f32.mrb[0].mxu0
        %v2836 = vadd.f32 0.0, %v2835
        %v2837 = vpop.f32.mrb[0].mxu0
        %2838 = vmatprep.mubr.bf16.mxu0 0
        %2839 = vmatmul.mubr.bf16.gmra.mrb[0].mxu0 %v2721
        %v2840 = vpop.f32.mrb[0].mxu0
        %v2841 = vadd.f32 0.0, %v2840
        %v2842 = vpop.f32.mrb[0].mxu0
        %v2843 = vpop.f32.mrb[0].mxu0
        %v2844 = vadd.f32 0.0, %v2843
        %v2845 = vpop.f32.mrb[0].mxu0
        %2846 = vmatprep.mubr.bf16.mxu0 0
        %2847 = vmatmul.mubr.bf16.gmra.mrb[0].mxu0 %v2722
        %v2848 = vpop.f32.mrb[0].mxu0
        %v2849 = vadd.f32 0.0, %v2848
        %v2850 = vpop.f32.mrb[0].mxu0
        %v2851 = vpop.f32.mrb[0].mxu0
        %v2852 = vadd.f32 0.0, %v2851
        %v2853 = vpop.f32.mrb[0].mxu0
        %2854 = vmatprep.mubr.bf16.mxu0 0
        %2855 = vmatmul.mubr.bf16.gmra.mrb[0].mxu0 %v2723
        %v2856 = vpop.f32.mrb[0].mxu0
        %v2857 = vadd.f32 0.0, %v2856
        %v2858 = vpop.f32.mrb[0].mxu0
        %v2859 = vpop.f32.mrb[0].mxu0
        %v2860 = vadd.f32 0.0, %v2859
        %v2861 = vpop.f32.mrb[0].mxu0
        %2862 = vmatprep.mubr.bf16.mxu0 0
        %2863 = vmatmul.mubr.bf16.gmra.mrb[0].mxu0 %v2724
        %v2864 = vpop.f32.mrb[0].mxu0
        %v2865 = vadd.f32 0.0, %v2864
        %v2866 = vpop.f32.mrb[0].mxu0
        %v2867 = vpop.f32.mrb[0].mxu0
        %v2868 = vadd.f32 0.0, %v2867
        %v2869 = vpop.f32.mrb[0].mxu0
        %2870 = vmatprep.mubr.bf16.mxu0 0
        %2871 = vmatmul.mubr.bf16.gmra.mrb[0].mxu0 %v2725
        %v2872 = vpop.f32.mrb[0].mxu0
        %v2873 = vadd.f32 0.0, %v2872
        %v2874 = vpop.f32.mrb[0].mxu0
        %v2875 = vpop.f32.mrb[0].mxu0
        %v2876 = vadd.f32 0.0, %v2875
        %v2877 = vpop.f32.mrb[0].mxu0
        %2878 = vdwg.mxu0
        %v2879 = vadd.f32 %v2581, %v2817
        %v2880 = vadd.f32 %v2582, %v2820
        %v2881 = vadd.f32 %v2583, %v2825
        %v2882 = vadd.f32 %v2584, %v2828
        %v2883 = vadd.f32 %v2585, %v2833
        %v2884 = vadd.f32 %v2586, %v2836
        %v2885 = vadd.f32 %v2587, %v2841
        %v2886 = vadd.f32 %v2588, %v2844
        %v2887 = vadd.f32 %v2589, %v2849
        %v2888 = vadd.f32 %v2590, %v2852
        %v2889 = vadd.f32 %v2591, %v2857
        %v2890 = vadd.f32 %v2592, %v2860
        %v2891 = vadd.f32 %v2593, %v2865
        %v2892 = vadd.f32 %v2594, %v2868
        %v2893 = vadd.f32 %v2595, %v2873
        %v2894 = vadd.f32 %v2596, %v2876
        %s2895 = scalar_lea.vmem [#allocation2], 24
        %v2896 = vld [vmem:[%s2895] sm:$0xf]
        %v2897 = vld [vmem:[%s2895 + $0x4] sm:$0xf]
        %v2898 = vld [vmem:[%s2895 + $0xc] sm:$0xf]
        %v2899 = vld [vmem:[%s2895 + $0x10] sm:$0xf]
        %v2900 = vld [vmem:[%s2895 + $0x18] sm:$0xf]
        %v2901 = vld [vmem:[%s2895 + $0x1c] sm:$0xf]
        %v2902 = vld [vmem:[%s2895 + $0x24] sm:$0xf]
        %v2903 = vld [vmem:[%s2895 + $0x28] sm:$0xf]
        %v2904 = vld [vmem:[%s2895 + $0x30] sm:$0xf]
        %v2905 = vld [vmem:[%s2895 + $0x34] sm:$0xf]
        %v2906 = vld [vmem:[%s2895 + $0x3c] sm:$0xf]
        %v2907 = vld [vmem:[%s2895 + $0x40] sm:$0xf]
        %v2908 = vld [vmem:[%s2895 + $0x48] sm:$0xf]
        %v2909 = vld [vmem:[%s2895 + $0x4c] sm:$0xf]
        %v2910 = vld [vmem:[%s2895 + $0x54] sm:$0xf]
        %v2911 = vld [vmem:[%s2895 + $0x58] sm:$0xf]
        %s2912 = scalar_lea.vmem [#allocation9], 384
        %v2913 = vld [vmem:[%s2912] sm:$0xf]
        %v2914 = vld [vmem:[%s2912 + $0x4] sm:$0xf]
        %v2915 = vld [vmem:[%s2912 + $0x8] sm:$0xf]
        %v2916 = vld [vmem:[%s2912 + $0xc] sm:$0xf]
        %v2917 = vld [vmem:[%s2912 + $0x10] sm:$0xf]
        %v2918 = vld [vmem:[%s2912 + $0x14] sm:$0xf]
        %v2919 = vld [vmem:[%s2912 + $0x18] sm:$0xf]
        %v2920 = vld [vmem:[%s2912 + $0x1c] sm:$0xf]
        %v2921 = vld [vmem:[%s2912 + $0x20] sm:$0xf]
        %v2922 = vld [vmem:[%s2912 + $0x24] sm:$0xf]
        %v2923 = vld [vmem:[%s2912 + $0x28] sm:$0xf]
        %v2924 = vld [vmem:[%s2912 + $0x2c] sm:$0xf]
        %v2925 = vld [vmem:[%s2912 + $0x30] sm:$0xf]
        %v2926 = vld [vmem:[%s2912 + $0x34] sm:$0xf]
        %v2927 = vld [vmem:[%s2912 + $0x38] sm:$0xf]
        %v2928 = vld [vmem:[%s2912 + $0x3c] sm:$0xf]
        %v2945 = vunpack.c.l.b16 %v2896
        %v2946 = vunpack.c.l.b16 %v2897
        %v2947 = vunpack.c.l.b16 %v2898
        %v2948 = vunpack.c.l.b16 %v2899
        %v2949 = vunpack.c.l.b16 %v2900
        %v2950 = vunpack.c.l.b16 %v2901
        %v2951 = vunpack.c.l.b16 %v2902
        %v2952 = vunpack.c.l.b16 %v2903
        %v2953 = vunpack.c.l.b16 %v2904
        %v2954 = vunpack.c.l.b16 %v2905
        %v2955 = vunpack.c.l.b16 %v2906
        %v2956 = vunpack.c.l.b16 %v2907
        %v2957 = vunpack.c.l.b16 %v2908
        %v2958 = vunpack.c.l.b16 %v2909
        %v2959 = vunpack.c.l.b16 %v2910
        %v2960 = vunpack.c.l.b16 %v2911
        %v2961 = vpack.c.b16 %v2946, %v2945
        %v2962 = vpack.c.b16 %v2948, %v2947
        %v2963 = vpack.c.b16 %v2950, %v2949
        %v2964 = vpack.c.b16 %v2952, %v2951
        %v2965 = vpack.c.b16 %v2954, %v2953
        %v2966 = vpack.c.b16 %v2956, %v2955
        %v2967 = vpack.c.b16 %v2958, %v2957
        %v2968 = vpack.c.b16 %v2960, %v2959
        %v2993 = vunpack.c.l.b16 %v2913
        %v2994 = vunpack.c.l.b16 %v2914
        %v2995 = vunpack.c.l.b16 %v2915
        %v2996 = vunpack.c.l.b16 %v2916
        %v2997 = vunpack.c.l.b16 %v2917
        %v2998 = vunpack.c.l.b16 %v2918
        %v2999 = vunpack.c.l.b16 %v2919
        %v3000 = vunpack.c.l.b16 %v2920
        %v3001 = vunpack.c.l.b16 %v2921
        %v3002 = vunpack.c.l.b16 %v2922
        %v3003 = vunpack.c.l.b16 %v2923
        %v3004 = vunpack.c.l.b16 %v2924
        %v3005 = vunpack.c.l.b16 %v2925
        %v3006 = vunpack.c.l.b16 %v2926
        %v3007 = vunpack.c.l.b16 %v2927
        %v3008 = vunpack.c.l.b16 %v2928
        %v3009 = vpack.c.b16 %v2994, %v2993
        %v3010 = vpack.c.b16 %v2996, %v2995
        %v3011 = vpack.c.b16 %v2998, %v2997
        %v3012 = vpack.c.b16 %v3000, %v2999
        %v3013 = vpack.c.b16 %v3002, %v3001
        %v3014 = vpack.c.b16 %v3004, %v3003
        %v3015 = vpack.c.b16 %v3006, %v3005
        %v3016 = vpack.c.b16 %v3008, %v3007
        %3025 = vmatprep.subr.bf16.mxu0 0
        %3026 = vmatpush1.bf16.msra.mxu0 %v3009
        %3027 = vmatprep.subr.bf16.mxu0 0
        %3028 = vmatpush1.bf16.msra.mxu0 %v3010
        %3029 = vmatprep.subr.bf16.mxu0 0
        %3030 = vmatpush1.bf16.msra.mxu0 %v3011
        %3031 = vmatprep.subr.bf16.mxu0 0
        %3032 = vmatpush1.bf16.msra.mxu0 %v3012
        %3033 = vmatprep.subr.bf16.mxu0 0
        %3034 = vmatpush1.bf16.msra.mxu0 %v3013
        %3035 = vmatprep.subr.bf16.mxu0 0
        %3036 = vmatpush1.bf16.msra.mxu0 %v3014
        %3037 = vmatprep.subr.bf16.mxu0 0
        %3038 = vmatpush1.bf16.msra.mxu0 %v3015
        %3039 = vmatprep.subr.bf16.mxu0 0
        %3040 = vmatpush1.bf16.msra.mxu0 %v3016
        %3041 = vmatprep.subr.bf16.mxu0 0
        %3042 = vmatpush1.bf16.msra.mxu0 0
        %3043 = vmatprep.subr.bf16.mxu0 0
        %3044 = vmatpush1.bf16.msra.mxu0 0
        %3045 = vmatprep.subr.bf16.mxu0 0
        %3046 = vmatpush1.bf16.msra.mxu0 0
        %3047 = vmatprep.subr.bf16.mxu0 0
        %3048 = vmatpush1.bf16.msra.mxu0 0
        %3049 = vmatprep.subr.bf16.mxu0 0
        %3050 = vmatpush1.bf16.msra.mxu0 0
        %3051 = vmatprep.subr.bf16.mxu0 0
        %3052 = vmatpush1.bf16.msra.mxu0 0
        %3053 = vmatprep.subr.bf16.mxu0 0
        %3054 = vmatpush1.bf16.msra.mxu0 0
        %3055 = vmatprep.subr.bf16.mxu0 0
        %3056 = vmatpush1.bf16.msra.mxu0 0
        %3057 = vmatprep.mubr.bf16.mxu0 0
        %3058 = vmatmul.mubr.bf16.gmra.mrb[0].mxu0 %v2961
        %v3059 = vpop.f32.mrb[0].mxu0
        %v3060 = vadd.f32 0.0, %v3059
        %v3061 = vpop.f32.mrb[0].mxu0
        %v3062 = vpop.f32.mrb[0].mxu0
        %v3063 = vadd.f32 0.0, %v3062
        %v3064 = vpop.f32.mrb[0].mxu0
        %3065 = vmatprep.mubr.bf16.mxu0 0
        %3066 = vmatmul.mubr.bf16.gmra.mrb[0].mxu0 %v2962
        %v3067 = vpop.f32.mrb[0].mxu0
        %v3068 = vadd.f32 0.0, %v3067
        %v3069 = vpop.f32.mrb[0].mxu0
        %v3070 = vpop.f32.mrb[0].mxu0
        %v3071 = vadd.f32 0.0, %v3070
        %v3072 = vpop.f32.mrb[0].mxu0
        %3073 = vmatprep.mubr.bf16.mxu0 0
        %3074 = vmatmul.mubr.bf16.gmra.mrb[0].mxu0 %v2963
        %v3075 = vpop.f32.mrb[0].mxu0
        %v3076 = vadd.f32 0.0, %v3075
        %v3077 = vpop.f32.mrb[0].mxu0
        %v3078 = vpop.f32.mrb[0].mxu0
        %v3079 = vadd.f32 0.0, %v3078
        %v3080 = vpop.f32.mrb[0].mxu0
        %3081 = vmatprep.mubr.bf16.mxu0 0
        %3082 = vmatmul.mubr.bf16.gmra.mrb[0].mxu0 %v2964
        %v3083 = vpop.f32.mrb[0].mxu0
        %v3084 = vadd.f32 0.0, %v3083
        %v3085 = vpop.f32.mrb[0].mxu0
        %v3086 = vpop.f32.mrb[0].mxu0
        %v3087 = vadd.f32 0.0, %v3086
        %v3088 = vpop.f32.mrb[0].mxu0
        %3089 = vmatprep.mubr.bf16.mxu0 0
        %3090 = vmatmul.mubr.bf16.gmra.mrb[0].mxu0 %v2965
        %v3091 = vpop.f32.mrb[0].mxu0
        %v3092 = vadd.f32 0.0, %v3091
        %v3093 = vpop.f32.mrb[0].mxu0
        %v3094 = vpop.f32.mrb[0].mxu0
        %v3095 = vadd.f32 0.0, %v3094
        %v3096 = vpop.f32.mrb[0].mxu0
        %3097 = vmatprep.mubr.bf16.mxu0 0
        %3098 = vmatmul.mubr.bf16.gmra.mrb[0].mxu0 %v2966
        %v3099 = vpop.f32.mrb[0].mxu0
        %v3100 = vadd.f32 0.0, %v3099
        %v3101 = vpop.f32.mrb[0].mxu0
        %v3102 = vpop.f32.mrb[0].mxu0
        %v3103 = vadd.f32 0.0, %v3102
        %v3104 = vpop.f32.mrb[0].mxu0
        %3105 = vmatprep.mubr.bf16.mxu0 0
        %3106 = vmatmul.mubr.bf16.gmra.mrb[0].mxu0 %v2967
        %v3107 = vpop.f32.mrb[0].mxu0
        %v3108 = vadd.f32 0.0, %v3107
        %v3109 = vpop.f32.mrb[0].mxu0
        %v3110 = vpop.f32.mrb[0].mxu0
        %v3111 = vadd.f32 0.0, %v3110
        %v3112 = vpop.f32.mrb[0].mxu0
        %3113 = vmatprep.mubr.bf16.mxu0 0
        %3114 = vmatmul.mubr.bf16.gmra.mrb[0].mxu0 %v2968
        %v3115 = vpop.f32.mrb[0].mxu0
        %v3116 = vadd.f32 0.0, %v3115
        %v3117 = vpop.f32.mrb[0].mxu0
        %v3118 = vpop.f32.mrb[0].mxu0
        %v3119 = vadd.f32 0.0, %v3118
        %v3120 = vpop.f32.mrb[0].mxu0
        %3121 = vdwg.mxu0
        %v3122 = vadd.f32 %v2879, %v3060
        %v3123 = vadd.f32 %v2880, %v3063
        %v3124 = vadd.f32 %v2881, %v3068
        %v3125 = vadd.f32 %v2882, %v3071
        %v3126 = vadd.f32 %v2883, %v3076
        %v3127 = vadd.f32 %v2884, %v3079
        %v3128 = vadd.f32 %v2885, %v3084
        %v3129 = vadd.f32 %v2886, %v3087
        %v3130 = vadd.f32 %v2887, %v3092
        %v3131 = vadd.f32 %v2888, %v3095
        %v3132 = vadd.f32 %v2889, %v3100
        %v3133 = vadd.f32 %v2890, %v3103
        %v3134 = vadd.f32 %v2891, %v3108
        %v3135 = vadd.f32 %v2892, %v3111
        %v3136 = vadd.f32 %v2893, %v3116
        %v3137 = vadd.f32 %v2894, %v3119
        %v3138 = vld [vmem:[%s2895] sm:$0xf]
        %v3139 = vld [vmem:[%s2895 + $0x4] sm:$0xf]
        %v3140 = vld [vmem:[%s2895 + $0x8] sm:$0x1]
        %v3141 = vld [vmem:[%s2895 + $0xc] sm:$0xf]
        %v3142 = vld [vmem:[%s2895 + $0x10] sm:$0xf]
        %v3143 = vld [vmem:[%s2895 + $0x14] sm:$0x1]
        %v3144 = vld [vmem:[%s2895 + $0x18] sm:$0xf]
        %v3145 = vld [vmem:[%s2895 + $0x1c] sm:$0xf]
        %v3146 = vld [vmem:[%s2895 + $0x20] sm:$0x1]
        %v3147 = vld [vmem:[%s2895 + $0x24] sm:$0xf]
        %v3148 = vld [vmem:[%s2895 + $0x28] sm:$0xf]
        %v3149 = vld [vmem:[%s2895 + $0x2c] sm:$0x1]
        %v3150 = vld [vmem:[%s2895 + $0x30] sm:$0xf]
        %v3151 = vld [vmem:[%s2895 + $0x34] sm:$0xf]
        %v3152 = vld [vmem:[%s2895 + $0x38] sm:$0x1]
        %v3153 = vld [vmem:[%s2895 + $0x3c] sm:$0xf]
        %v3154 = vld [vmem:[%s2895 + $0x40] sm:$0xf]
        %v3155 = vld [vmem:[%s2895 + $0x44] sm:$0x1]
        %v3156 = vld [vmem:[%s2895 + $0x48] sm:$0xf]
        %v3157 = vld [vmem:[%s2895 + $0x4c] sm:$0xf]
        %v3158 = vld [vmem:[%s2895 + $0x50] sm:$0x1]
        %v3159 = vld [vmem:[%s2895 + $0x54] sm:$0xf]
        %v3160 = vld [vmem:[%s2895 + $0x58] sm:$0xf]
        %v3161 = vld [vmem:[%s2895 + $0x5c] sm:$0x1]
        %v3163 = vshrl.u32 %v3138, 16
        %v3165 = vrot.slane %v3163, 4
        %v3166 = vshll.u32 %v3138, 16
        %v3168 = vrot.slane %v3166, 5
        %v3169 = vor.u32 %v3165, %v3168
        %v3170 = vrot.slane %v3169, 4
        %v3172 = vshll.u32 %v3139, 16
        %v3174 = vrot.slane %v3172, 5
        %v3175 = vsel %vm1056, %v3170, %v3174
        %v3176 = vshrl.u32 %v3139, 16
        %v3178 = vrot.slane %v3176, 4
        %v3179 = vor.u32 %v3178, %v3174
        %v3180 = vrot.slane %v3179, 4
        %v3182 = vshll.u32 %v3140, 16
        %v3184 = vrot.slane %v3182, 5
        %v3185 = vsel %vm1056, %v3180, %v3184
        %v3187 = vshrl.u32 %v3141, 16
        %v3189 = vrot.slane %v3187, 4
        %v3190 = vshll.u32 %v3141, 16
        %v3192 = vrot.slane %v3190, 5
        %v3193 = vor.u32 %v3189, %v3192
        %v3194 = vrot.slane %v3193, 4
        %v3196 = vshll.u32 %v3142, 16
        %v3198 = vrot.slane %v3196, 5
        %v3199 = vsel %vm1056, %v3194, %v3198
        %v3200 = vshrl.u32 %v3142, 16
        %v3202 = vrot.slane %v3200, 4
        %v3203 = vor.u32 %v3202, %v3198
        %v3204 = vrot.slane %v3203, 4
        %v3206 = vshll.u32 %v3143, 16
        %v3208 = vrot.slane %v3206, 5
        %v3209 = vsel %vm1056, %v3204, %v3208
        %v3211 = vshrl.u32 %v3144, 16
        %v3213 = vrot.slane %v3211, 4
        %v3214 = vshll.u32 %v3144, 16
        %v3216 = vrot.slane %v3214, 5
        %v3217 = vor.u32 %v3213, %v3216
        %v3218 = vrot.slane %v3217, 4
        %v3220 = vshll.u32 %v3145, 16
        %v3222 = vrot.slane %v3220, 5
        %v3223 = vsel %vm1056, %v3218, %v3222
        %v3224 = vshrl.u32 %v3145, 16
        %v3226 = vrot.slane %v3224, 4
        %v3227 = vor.u32 %v3226, %v3222
        %v3228 = vrot.slane %v3227, 4
        %v3230 = vshll.u32 %v3146, 16
        %v3232 = vrot.slane %v3230, 5
        %v3233 = vsel %vm1056, %v3228, %v3232
        %v3235 = vshrl.u32 %v3147, 16
        %v3237 = vrot.slane %v3235, 4
        %v3238 = vshll.u32 %v3147, 16
        %v3240 = vrot.slane %v3238, 5
        %v3241 = vor.u32 %v3237, %v3240
        %v3242 = vrot.slane %v3241, 4
        %v3244 = vshll.u32 %v3148, 16
        %v3246 = vrot.slane %v3244, 5
        %v3247 = vsel %vm1056, %v3242, %v3246
        %v3248 = vshrl.u32 %v3148, 16
        %v3250 = vrot.slane %v3248, 4
        %v3251 = vor.u32 %v3250, %v3246
        %v3252 = vrot.slane %v3251, 4
        %v3254 = vshll.u32 %v3149, 16
        %v3256 = vrot.slane %v3254, 5
        %v3257 = vsel %vm1056, %v3252, %v3256
        %v3259 = vshrl.u32 %v3150, 16
        %v3261 = vrot.slane %v3259, 4
        %v3262 = vshll.u32 %v3150, 16
        %v3264 = vrot.slane %v3262, 5
        %v3265 = vor.u32 %v3261, %v3264
        %v3266 = vrot.slane %v3265, 4
        %v3268 = vshll.u32 %v3151, 16
        %v3270 = vrot.slane %v3268, 5
        %v3271 = vsel %vm1056, %v3266, %v3270
        %v3272 = vshrl.u32 %v3151, 16
        %v3274 = vrot.slane %v3272, 4
        %v3275 = vor.u32 %v3274, %v3270
        %v3276 = vrot.slane %v3275, 4
        %v3278 = vshll.u32 %v3152, 16
        %v3280 = vrot.slane %v3278, 5
        %v3281 = vsel %vm1056, %v3276, %v3280
        %v3283 = vshrl.u32 %v3153, 16
        %v3285 = vrot.slane %v3283, 4
        %v3286 = vshll.u32 %v3153, 16
        %v3288 = vrot.slane %v3286, 5
        %v3289 = vor.u32 %v3285, %v3288
        %v3290 = vrot.slane %v3289, 4
        %v3292 = vshll.u32 %v3154, 16
        %v3294 = vrot.slane %v3292, 5
        %v3295 = vsel %vm1056, %v3290, %v3294
        %v3296 = vshrl.u32 %v3154, 16
        %v3298 = vrot.slane %v3296, 4
        %v3299 = vor.u32 %v3298, %v3294
        %v3300 = vrot.slane %v3299, 4
        %v3302 = vshll.u32 %v3155, 16
        %v3304 = vrot.slane %v3302, 5
        %v3305 = vsel %vm1056, %v3300, %v3304
        %v3307 = vshrl.u32 %v3156, 16
        %v3309 = vrot.slane %v3307, 4
        %v3310 = vshll.u32 %v3156, 16
        %v3312 = vrot.slane %v3310, 5
        %v3313 = vor.u32 %v3309, %v3312
        %v3314 = vrot.slane %v3313, 4
        %v3316 = vshll.u32 %v3157, 16
        %v3318 = vrot.slane %v3316, 5
        %v3319 = vsel %vm1056, %v3314, %v3318
        %v3320 = vshrl.u32 %v3157, 16
        %v3322 = vrot.slane %v3320, 4
        %v3323 = vor.u32 %v3322, %v3318
        %v3324 = vrot.slane %v3323, 4
        %v3326 = vshll.u32 %v3158, 16
        %v3328 = vrot.slane %v3326, 5
        %v3329 = vsel %vm1056, %v3324, %v3328
        %v3331 = vshrl.u32 %v3159, 16
        %v3333 = vrot.slane %v3331, 4
        %v3334 = vshll.u32 %v3159, 16
        %v3336 = vrot.slane %v3334, 5
        %v3337 = vor.u32 %v3333, %v3336
        %v3338 = vrot.slane %v3337, 4
        %v3340 = vshll.u32 %v3160, 16
        %v3342 = vrot.slane %v3340, 5
        %v3343 = vsel %vm1056, %v3338, %v3342
        %v3344 = vshrl.u32 %v3160, 16
        %v3346 = vrot.slane %v3344, 4
        %v3347 = vor.u32 %v3346, %v3342
        %v3348 = vrot.slane %v3347, 4
        %v3350 = vshll.u32 %v3161, 16
        %v3352 = vrot.slane %v3350, 5
        %v3353 = vsel %vm1056, %v3348, %v3352
        %s3354 = scalar_lea.vmem [#allocation9], 448
        %v3355 = vld [vmem:[%s3354] sm:$0xf]
        %v3356 = vld [vmem:[%s3354 + $0x4] sm:$0xf]
        %v3357 = vld [vmem:[%s3354 + $0x8] sm:$0xf]
        %v3358 = vld [vmem:[%s3354 + $0xc] sm:$0xf]
        %v3359 = vld [vmem:[%s3354 + $0x10] sm:$0xf]
        %v3360 = vld [vmem:[%s3354 + $0x14] sm:$0xf]
        %v3361 = vld [vmem:[%s3354 + $0x18] sm:$0xf]
        %v3362 = vld [vmem:[%s3354 + $0x1c] sm:$0xf]
        %v3363 = vld [vmem:[%s3354 + $0x20] sm:$0xf]
        %v3364 = vld [vmem:[%s3354 + $0x24] sm:$0xf]
        %v3365 = vld [vmem:[%s3354 + $0x28] sm:$0xf]
        %v3366 = vld [vmem:[%s3354 + $0x2c] sm:$0xf]
        %v3367 = vld [vmem:[%s3354 + $0x30] sm:$0xf]
        %v3368 = vld [vmem:[%s3354 + $0x34] sm:$0xf]
        %v3369 = vld [vmem:[%s3354 + $0x38] sm:$0xf]
        %v3370 = vld [vmem:[%s3354 + $0x3c] sm:$0xf]
        %v3371 = vunpack.c.l.b16 %v3175
        %v3372 = vunpack.c.l.b16 %v3185
        %v3373 = vunpack.c.l.b16 %v3199
        %v3374 = vunpack.c.l.b16 %v3209
        %v3375 = vunpack.c.l.b16 %v3223
        %v3376 = vunpack.c.l.b16 %v3233
        %v3377 = vunpack.c.l.b16 %v3247
        %v3378 = vunpack.c.l.b16 %v3257
        %v3379 = vunpack.c.l.b16 %v3271
        %v3380 = vunpack.c.l.b16 %v3281
        %v3381 = vunpack.c.l.b16 %v3295
        %v3382 = vunpack.c.l.b16 %v3305
        %v3383 = vunpack.c.l.b16 %v3319
        %v3384 = vunpack.c.l.b16 %v3329
        %v3385 = vunpack.c.l.b16 %v3343
        %v3386 = vunpack.c.l.b16 %v3353
        %v3387 = vpack.c.b16 %v3372, %v3371
        %v3388 = vpack.c.b16 %v3374, %v3373
        %v3389 = vpack.c.b16 %v3376, %v3375
        %v3390 = vpack.c.b16 %v3378, %v3377
        %v3391 = vpack.c.b16 %v3380, %v3379
        %v3392 = vpack.c.b16 %v3382, %v3381
        %v3393 = vpack.c.b16 %v3384, %v3383
        %v3394 = vpack.c.b16 %v3386, %v3385
        %v3419 = vunpack.c.l.b16 %v3355
        %v3420 = vunpack.c.l.b16 %v3356
        %v3421 = vunpack.c.l.b16 %v3357
        %v3422 = vunpack.c.l.b16 %v3358
        %v3423 = vunpack.c.l.b16 %v3359
        %v3424 = vunpack.c.l.b16 %v3360
        %v3425 = vunpack.c.l.b16 %v3361
        %v3426 = vunpack.c.l.b16 %v3362
        %v3427 = vunpack.c.l.b16 %v3363
        %v3428 = vunpack.c.l.b16 %v3364
        %v3429 = vunpack.c.l.b16 %v3365
        %v3430 = vunpack.c.l.b16 %v3366
        %v3431 = vunpack.c.l.b16 %v3367
        %v3432 = vunpack.c.l.b16 %v3368
        %v3433 = vunpack.c.l.b16 %v3369
        %v3434 = vunpack.c.l.b16 %v3370
        %v3435 = vpack.c.b16 %v3420, %v3419
        %v3436 = vpack.c.b16 %v3422, %v3421
        %v3437 = vpack.c.b16 %v3424, %v3423
        %v3438 = vpack.c.b16 %v3426, %v3425
        %v3439 = vpack.c.b16 %v3428, %v3427
        %v3440 = vpack.c.b16 %v3430, %v3429
        %v3441 = vpack.c.b16 %v3432, %v3431
        %v3442 = vpack.c.b16 %v3434, %v3433
        %3451 = vmatprep.subr.bf16.mxu0 0
        %3452 = vmatpush1.bf16.msra.mxu0 %v3435
        %3453 = vmatprep.subr.bf16.mxu0 0
        %3454 = vmatpush1.bf16.msra.mxu0 %v3436
        %3455 = vmatprep.subr.bf16.mxu0 0
        %3456 = vmatpush1.bf16.msra.mxu0 %v3437
        %3457 = vmatprep.subr.bf16.mxu0 0
        %3458 = vmatpush1.bf16.msra.mxu0 %v3438
        %3459 = vmatprep.subr.bf16.mxu0 0
        %3460 = vmatpush1.bf16.msra.mxu0 %v3439
        %3461 = vmatprep.subr.bf16.mxu0 0
        %3462 = vmatpush1.bf16.msra.mxu0 %v3440
        %3463 = vmatprep.subr.bf16.mxu0 0
        %3464 = vmatpush1.bf16.msra.mxu0 %v3441
        %3465 = vmatprep.subr.bf16.mxu0 0
        %3466 = vmatpush1.bf16.msra.mxu0 %v3442
        %3467 = vmatprep.subr.bf16.mxu0 0
        %3468 = vmatpush1.bf16.msra.mxu0 0
        %3469 = vmatprep.subr.bf16.mxu0 0
        %3470 = vmatpush1.bf16.msra.mxu0 0
        %3471 = vmatprep.subr.bf16.mxu0 0
        %3472 = vmatpush1.bf16.msra.mxu0 0
        %3473 = vmatprep.subr.bf16.mxu0 0
        %3474 = vmatpush1.bf16.msra.mxu0 0
        %3475 = vmatprep.subr.bf16.mxu0 0
        %3476 = vmatpush1.bf16.msra.mxu0 0
        %3477 = vmatprep.subr.bf16.mxu0 0
        %3478 = vmatpush1.bf16.msra.mxu0 0
        %3479 = vmatprep.subr.bf16.mxu0 0
        %3480 = vmatpush1.bf16.msra.mxu0 0
        %3481 = vmatprep.subr.bf16.mxu0 0
        %3482 = vmatpush1.bf16.msra.mxu0 0
        %3483 = vmatprep.mubr.bf16.mxu0 0
        %3484 = vmatmul.mubr.bf16.gmra.mrb[0].mxu0 %v3387
        %v3485 = vpop.f32.mrb[0].mxu0
        %v3486 = vadd.f32 0.0, %v3485
        %v3487 = vpop.f32.mrb[0].mxu0
        %v3488 = vpop.f32.mrb[0].mxu0
        %v3489 = vadd.f32 0.0, %v3488
        %v3490 = vpop.f32.mrb[0].mxu0
        %3491 = vmatprep.mubr.bf16.mxu0 0
        %3492 = vmatmul.mubr.bf16.gmra.mrb[0].mxu0 %v3388
        %v3493 = vpop.f32.mrb[0].mxu0
        %v3494 = vadd.f32 0.0, %v3493
        %v3495 = vpop.f32.mrb[0].mxu0
        %v3496 = vpop.f32.mrb[0].mxu0
        %v3497 = vadd.f32 0.0, %v3496
        %v3498 = vpop.f32.mrb[0].mxu0
        %3499 = vmatprep.mubr.bf16.mxu0 0
        %3500 = vmatmul.mubr.bf16.gmra.mrb[0].mxu0 %v3389
        %v3501 = vpop.f32.mrb[0].mxu0
        %v3502 = vadd.f32 0.0, %v3501
        %v3503 = vpop.f32.mrb[0].mxu0
        %v3504 = vpop.f32.mrb[0].mxu0
        %v3505 = vadd.f32 0.0, %v3504
        %v3506 = vpop.f32.mrb[0].mxu0
        %3507 = vmatprep.mubr.bf16.mxu0 0
        %3508 = vmatmul.mubr.bf16.gmra.mrb[0].mxu0 %v3390
        %v3509 = vpop.f32.mrb[0].mxu0
        %v3510 = vadd.f32 0.0, %v3509
        %v3511 = vpop.f32.mrb[0].mxu0
        %v3512 = vpop.f32.mrb[0].mxu0
        %v3513 = vadd.f32 0.0, %v3512
        %v3514 = vpop.f32.mrb[0].mxu0
        %3515 = vmatprep.mubr.bf16.mxu0 0
        %3516 = vmatmul.mubr.bf16.gmra.mrb[0].mxu0 %v3391
        %v3517 = vpop.f32.mrb[0].mxu0
        %v3518 = vadd.f32 0.0, %v3517
        %v3519 = vpop.f32.mrb[0].mxu0
        %v3520 = vpop.f32.mrb[0].mxu0
        %v3521 = vadd.f32 0.0, %v3520
        %v3522 = vpop.f32.mrb[0].mxu0
        %3523 = vmatprep.mubr.bf16.mxu0 0
        %3524 = vmatmul.mubr.bf16.gmra.mrb[0].mxu0 %v3392
        %v3525 = vpop.f32.mrb[0].mxu0
        %v3526 = vadd.f32 0.0, %v3525
        %v3527 = vpop.f32.mrb[0].mxu0
        %v3528 = vpop.f32.mrb[0].mxu0
        %v3529 = vadd.f32 0.0, %v3528
        %v3530 = vpop.f32.mrb[0].mxu0
        %3531 = vmatprep.mubr.bf16.mxu0 0
        %3532 = vmatmul.mubr.bf16.gmra.mrb[0].mxu0 %v3393
        %v3533 = vpop.f32.mrb[0].mxu0
        %v3534 = vadd.f32 0.0, %v3533
        %v3535 = vpop.f32.mrb[0].mxu0
        %v3536 = vpop.f32.mrb[0].mxu0
        %v3537 = vadd.f32 0.0, %v3536
        %v3538 = vpop.f32.mrb[0].mxu0
        %3539 = vmatprep.mubr.bf16.mxu0 0
        %3540 = vmatmul.mubr.bf16.gmra.mrb[0].mxu0 %v3394
        %v3541 = vpop.f32.mrb[0].mxu0
        %v3542 = vadd.f32 0.0, %v3541
        %v3543 = vpop.f32.mrb[0].mxu0
        %v3544 = vpop.f32.mrb[0].mxu0
        %v3545 = vadd.f32 0.0, %v3544
        %v3546 = vpop.f32.mrb[0].mxu0
        %3547 = vdwg.mxu0
        %v3548 = vadd.f32 %v3122, %v3486
        %v3549 = vadd.f32 %v3123, %v3489
        %v3550 = vadd.f32 %v3124, %v3494
        %v3551 = vadd.f32 %v3125, %v3497
        %v3552 = vadd.f32 %v3126, %v3502
        %v3553 = vadd.f32 %v3127, %v3505
        %v3554 = vadd.f32 %v3128, %v3510
        %v3555 = vadd.f32 %v3129, %v3513
        %v3556 = vadd.f32 %v3130, %v3518
        %v3557 = vadd.f32 %v3131, %v3521
        %v3558 = vadd.f32 %v3132, %v3526
        %v3559 = vadd.f32 %v3133, %v3529
        %v3560 = vadd.f32 %v3134, %v3534
        %v3561 = vadd.f32 %v3135, %v3537
        %v3562 = vadd.f32 %v3136, %v3542
        %v3563 = vadd.f32 %v3137, %v3545
        %v3564 = vld [vmem:[%s2895] sm:$0xe]
        %v3565 = vld [vmem:[%s2895 + $0xc] sm:$0xe]
        %v3566 = vld [vmem:[%s2895 + $0x18] sm:$0xe]
        %v3567 = vld [vmem:[%s2895 + $0x24] sm:$0xe]
        %v3568 = vld [vmem:[%s2895 + $0x30] sm:$0xe]
        %v3569 = vld [vmem:[%s2895 + $0x3c] sm:$0xe]
        %v3570 = vld [vmem:[%s2895 + $0x48] sm:$0xe]
        %v3571 = vld [vmem:[%s2895 + $0x54] sm:$0xe]
        %v3596 = vrot.slane %v3564, 5
        %v3597 = vrot.slane %v3596, 4
        %v3598 = vrot.slane %v3139, 5
        %v3599 = vsel %vm1662, %v3597, %v3598
        %v3600 = vrot.slane %v3598, 4
        %v3601 = vrot.slane %v3140, 5
        %v3602 = vsel %vm1662, %v3600, %v3601
        %v3603 = vrot.slane %v3565, 5
        %v3604 = vrot.slane %v3603, 4
        %v3605 = vrot.slane %v3142, 5
        %v3606 = vsel %vm1662, %v3604, %v3605
        %v3607 = vrot.slane %v3605, 4
        %v3608 = vrot.slane %v3143, 5
        %v3609 = vsel %vm1662, %v3607, %v3608
        %v3610 = vrot.slane %v3566, 5
        %v3611 = vrot.slane %v3610, 4
        %v3612 = vrot.slane %v3145, 5
        %v3613 = vsel %vm1662, %v3611, %v3612
        %v3614 = vrot.slane %v3612, 4
        %v3615 = vrot.slane %v3146, 5
        %v3616 = vsel %vm1662, %v3614, %v3615
        %v3617 = vrot.slane %v3567, 5
        %v3618 = vrot.slane %v3617, 4
        %v3619 = vrot.slane %v3148, 5
        %v3620 = vsel %vm1662, %v3618, %v3619
        %v3621 = vrot.slane %v3619, 4
        %v3622 = vrot.slane %v3149, 5
        %v3623 = vsel %vm1662, %v3621, %v3622
        %v3624 = vrot.slane %v3568, 5
        %v3625 = vrot.slane %v3624, 4
        %v3626 = vrot.slane %v3151, 5
        %v3627 = vsel %vm1662, %v3625, %v3626
        %v3628 = vrot.slane %v3626, 4
        %v3629 = vrot.slane %v3152, 5
        %v3630 = vsel %vm1662, %v3628, %v3629
        %v3631 = vrot.slane %v3569, 5
        %v3632 = vrot.slane %v3631, 4
        %v3633 = vrot.slane %v3154, 5
        %v3634 = vsel %vm1662, %v3632, %v3633
        %v3635 = vrot.slane %v3633, 4
        %v3636 = vrot.slane %v3155, 5
        %v3637 = vsel %vm1662, %v3635, %v3636
        %v3638 = vrot.slane %v3570, 5
        %v3639 = vrot.slane %v3638, 4
        %v3640 = vrot.slane %v3157, 5
        %v3641 = vsel %vm1662, %v3639, %v3640
        %v3642 = vrot.slane %v3640, 4
        %v3643 = vrot.slane %v3158, 5
        %v3644 = vsel %vm1662, %v3642, %v3643
        %v3645 = vrot.slane %v3571, 5
        %v3646 = vrot.slane %v3645, 4
        %v3647 = vrot.slane %v3160, 5
        %v3648 = vsel %vm1662, %v3646, %v3647
        %v3649 = vrot.slane %v3647, 4
        %v3650 = vrot.slane %v3161, 5
        %v3651 = vsel %vm1662, %v3649, %v3650
        %s3652 = scalar_lea.vmem [#allocation9], 512
        %v3653 = vld [vmem:[%s3652] sm:$0xf]
        %v3654 = vld [vmem:[%s3652 + $0x4] sm:$0xf]
        %v3655 = vld [vmem:[%s3652 + $0x8] sm:$0xf]
        %v3656 = vld [vmem:[%s3652 + $0xc] sm:$0xf]
        %v3657 = vld [vmem:[%s3652 + $0x10] sm:$0xf]
        %v3658 = vld [vmem:[%s3652 + $0x14] sm:$0xf]
        %v3659 = vld [vmem:[%s3652 + $0x18] sm:$0xf]
        %v3660 = vld [vmem:[%s3652 + $0x1c] sm:$0xf]
        %v3661 = vld [vmem:[%s3652 + $0x20] sm:$0xf]
        %v3662 = vld [vmem:[%s3652 + $0x24] sm:$0xf]
        %v3663 = vld [vmem:[%s3652 + $0x28] sm:$0xf]
        %v3664 = vld [vmem:[%s3652 + $0x2c] sm:$0xf]
        %v3665 = vld [vmem:[%s3652 + $0x30] sm:$0xf]
        %v3666 = vld [vmem:[%s3652 + $0x34] sm:$0xf]
        %v3667 = vld [vmem:[%s3652 + $0x38] sm:$0xf]
        %v3668 = vld [vmem:[%s3652 + $0x3c] sm:$0xf]
        %v3669 = vunpack.c.l.b16 %v3599
        %v3670 = vunpack.c.l.b16 %v3602
        %v3671 = vunpack.c.l.b16 %v3606
        %v3672 = vunpack.c.l.b16 %v3609
        %v3673 = vunpack.c.l.b16 %v3613
        %v3674 = vunpack.c.l.b16 %v3616
        %v3675 = vunpack.c.l.b16 %v3620
        %v3676 = vunpack.c.l.b16 %v3623
        %v3677 = vunpack.c.l.b16 %v3627
        %v3678 = vunpack.c.l.b16 %v3630
        %v3679 = vunpack.c.l.b16 %v3634
        %v3680 = vunpack.c.l.b16 %v3637
        %v3681 = vunpack.c.l.b16 %v3641
        %v3682 = vunpack.c.l.b16 %v3644
        %v3683 = vunpack.c.l.b16 %v3648
        %v3684 = vunpack.c.l.b16 %v3651
        %v3685 = vpack.c.b16 %v3670, %v3669
        %v3686 = vpack.c.b16 %v3672, %v3671
        %v3687 = vpack.c.b16 %v3674, %v3673
        %v3688 = vpack.c.b16 %v3676, %v3675
        %v3689 = vpack.c.b16 %v3678, %v3677
        %v3690 = vpack.c.b16 %v3680, %v3679
        %v3691 = vpack.c.b16 %v3682, %v3681
        %v3692 = vpack.c.b16 %v3684, %v3683
        %v3717 = vunpack.c.l.b16 %v3653
        %v3718 = vunpack.c.l.b16 %v3654
        %v3719 = vunpack.c.l.b16 %v3655
        %v3720 = vunpack.c.l.b16 %v3656
        %v3721 = vunpack.c.l.b16 %v3657
        %v3722 = vunpack.c.l.b16 %v3658
        %v3723 = vunpack.c.l.b16 %v3659
        %v3724 = vunpack.c.l.b16 %v3660
        %v3725 = vunpack.c.l.b16 %v3661
        %v3726 = vunpack.c.l.b16 %v3662
        %v3727 = vunpack.c.l.b16 %v3663
        %v3728 = vunpack.c.l.b16 %v3664
        %v3729 = vunpack.c.l.b16 %v3665
        %v3730 = vunpack.c.l.b16 %v3666
        %v3731 = vunpack.c.l.b16 %v3667
        %v3732 = vunpack.c.l.b16 %v3668
        %v3733 = vpack.c.b16 %v3718, %v3717
        %v3734 = vpack.c.b16 %v3720, %v3719
        %v3735 = vpack.c.b16 %v3722, %v3721
        %v3736 = vpack.c.b16 %v3724, %v3723
        %v3737 = vpack.c.b16 %v3726, %v3725
        %v3738 = vpack.c.b16 %v3728, %v3727
        %v3739 = vpack.c.b16 %v3730, %v3729
        %v3740 = vpack.c.b16 %v3732, %v3731
        %3749 = vmatprep.subr.bf16.mxu0 0
        %3750 = vmatpush1.bf16.msra.mxu0 %v3733
        %3751 = vmatprep.subr.bf16.mxu0 0
        %3752 = vmatpush1.bf16.msra.mxu0 %v3734
        %3753 = vmatprep.subr.bf16.mxu0 0
        %3754 = vmatpush1.bf16.msra.mxu0 %v3735
        %3755 = vmatprep.subr.bf16.mxu0 0
        %3756 = vmatpush1.bf16.msra.mxu0 %v3736
        %3757 = vmatprep.subr.bf16.mxu0 0
        %3758 = vmatpush1.bf16.msra.mxu0 %v3737
        %3759 = vmatprep.subr.bf16.mxu0 0
        %3760 = vmatpush1.bf16.msra.mxu0 %v3738
        %3761 = vmatprep.subr.bf16.mxu0 0
        %3762 = vmatpush1.bf16.msra.mxu0 %v3739
        %3763 = vmatprep.subr.bf16.mxu0 0
        %3764 = vmatpush1.bf16.msra.mxu0 %v3740
        %3765 = vmatprep.subr.bf16.mxu0 0
        %3766 = vmatpush1.bf16.msra.mxu0 0
        %3767 = vmatprep.subr.bf16.mxu0 0
        %3768 = vmatpush1.bf16.msra.mxu0 0
        %3769 = vmatprep.subr.bf16.mxu0 0
        %3770 = vmatpush1.bf16.msra.mxu0 0
        %3771 = vmatprep.subr.bf16.mxu0 0
        %3772 = vmatpush1.bf16.msra.mxu0 0
        %3773 = vmatprep.subr.bf16.mxu0 0
        %3774 = vmatpush1.bf16.msra.mxu0 0
        %3775 = vmatprep.subr.bf16.mxu0 0
        %3776 = vmatpush1.bf16.msra.mxu0 0
        %3777 = vmatprep.subr.bf16.mxu0 0
        %3778 = vmatpush1.bf16.msra.mxu0 0
        %3779 = vmatprep.subr.bf16.mxu0 0
        %3780 = vmatpush1.bf16.msra.mxu0 0
        %3781 = vmatprep.mubr.bf16.mxu0 0
        %3782 = vmatmul.mubr.bf16.gmra.mrb[0].mxu0 %v3685
        %v3783 = vpop.f32.mrb[0].mxu0
        %v3784 = vadd.f32 0.0, %v3783
        %v3785 = vpop.f32.mrb[0].mxu0
        %v3786 = vpop.f32.mrb[0].mxu0
        %v3787 = vadd.f32 0.0, %v3786
        %v3788 = vpop.f32.mrb[0].mxu0
        %3789 = vmatprep.mubr.bf16.mxu0 0
        %3790 = vmatmul.mubr.bf16.gmra.mrb[0].mxu0 %v3686
        %v3791 = vpop.f32.mrb[0].mxu0
        %v3792 = vadd.f32 0.0, %v3791
        %v3793 = vpop.f32.mrb[0].mxu0
        %v3794 = vpop.f32.mrb[0].mxu0
        %v3795 = vadd.f32 0.0, %v3794
        %v3796 = vpop.f32.mrb[0].mxu0
        %3797 = vmatprep.mubr.bf16.mxu0 0
        %3798 = vmatmul.mubr.bf16.gmra.mrb[0].mxu0 %v3687
        %v3799 = vpop.f32.mrb[0].mxu0
        %v3800 = vadd.f32 0.0, %v3799
        %v3801 = vpop.f32.mrb[0].mxu0
        %v3802 = vpop.f32.mrb[0].mxu0
        %v3803 = vadd.f32 0.0, %v3802
        %v3804 = vpop.f32.mrb[0].mxu0
        %3805 = vmatprep.mubr.bf16.mxu0 0
        %3806 = vmatmul.mubr.bf16.gmra.mrb[0].mxu0 %v3688
        %v3807 = vpop.f32.mrb[0].mxu0
        %v3808 = vadd.f32 0.0, %v3807
        %v3809 = vpop.f32.mrb[0].mxu0
        %v3810 = vpop.f32.mrb[0].mxu0
        %v3811 = vadd.f32 0.0, %v3810
        %v3812 = vpop.f32.mrb[0].mxu0
        %3813 = vmatprep.mubr.bf16.mxu0 0
        %3814 = vmatmul.mubr.bf16.gmra.mrb[0].mxu0 %v3689
        %v3815 = vpop.f32.mrb[0].mxu0
        %v3816 = vadd.f32 0.0, %v3815
        %v3817 = vpop.f32.mrb[0].mxu0
        %v3818 = vpop.f32.mrb[0].mxu0
        %v3819 = vadd.f32 0.0, %v3818
        %v3820 = vpop.f32.mrb[0].mxu0
        %3821 = vmatprep.mubr.bf16.mxu0 0
        %3822 = vmatmul.mubr.bf16.gmra.mrb[0].mxu0 %v3690
        %v3823 = vpop.f32.mrb[0].mxu0
        %v3824 = vadd.f32 0.0, %v3823
        %v3825 = vpop.f32.mrb[0].mxu0
        %v3826 = vpop.f32.mrb[0].mxu0
        %v3827 = vadd.f32 0.0, %v3826
        %v3828 = vpop.f32.mrb[0].mxu0
        %3829 = vmatprep.mubr.bf16.mxu0 0
        %3830 = vmatmul.mubr.bf16.gmra.mrb[0].mxu0 %v3691
        %v3831 = vpop.f32.mrb[0].mxu0
        %v3832 = vadd.f32 0.0, %v3831
        %v3833 = vpop.f32.mrb[0].mxu0
        %v3834 = vpop.f32.mrb[0].mxu0
        %v3835 = vadd.f32 0.0, %v3834
        %v3836 = vpop.f32.mrb[0].mxu0
        %3837 = vmatprep.mubr.bf16.mxu0 0
        %3838 = vmatmul.mubr.bf16.gmra.mrb[0].mxu0 %v3692
        %v3839 = vpop.f32.mrb[0].mxu0
        %v3840 = vadd.f32 0.0, %v3839
        %v3841 = vpop.f32.mrb[0].mxu0
        %v3842 = vpop.f32.mrb[0].mxu0
        %v3843 = vadd.f32 0.0, %v3842
        %v3844 = vpop.f32.mrb[0].mxu0
        %3845 = vdwg.mxu0
        %v3846 = vadd.f32 %v3548, %v3784
        %v3847 = vadd.f32 %v3549, %v3787
        %v3848 = vadd.f32 %v3550, %v3792
        %v3849 = vadd.f32 %v3551, %v3795
        %v3850 = vadd.f32 %v3552, %v3800
        %v3851 = vadd.f32 %v3553, %v3803
        %v3852 = vadd.f32 %v3554, %v3808
        %v3853 = vadd.f32 %v3555, %v3811
        %v3854 = vadd.f32 %v3556, %v3816
        %v3855 = vadd.f32 %v3557, %v3819
        %v3856 = vadd.f32 %v3558, %v3824
        %v3857 = vadd.f32 %v3559, %v3827
        %v3858 = vadd.f32 %v3560, %v3832
        %v3859 = vadd.f32 %v3561, %v3835
        %v3860 = vadd.f32 %v3562, %v3840
        %v3861 = vadd.f32 %v3563, %v3843
        %v3862 = vadd.f32 %v3846, %v3847
        %v3863 = vadd.f32 %v3862, %v3848
        %v3864 = vadd.f32 %v3863, %v3849
        %v3865 = vadd.f32 %v3864, %v3850
        %v3866 = vadd.f32 %v3865, %v3851
        %v3867 = vadd.f32 %v3866, %v3852
        %v3868 = vadd.f32 %v3867, %v3853
        %v3869 = vadd.f32 %v3868, %v3854
        %v3870 = vadd.f32 %v3869, %v3855
        %v3871 = vadd.f32 %v3870, %v3856
        %v3872 = vadd.f32 %v3871, %v3857
        %v3873 = vadd.f32 %v3872, %v3858
        %v3874 = vadd.f32 %v3873, %v3859
        %v3875 = vadd.f32 %v3874, %v3860
        %v3876 = vadd.f32 %v3875, %v3861
        %v3877 = vrot.slane %v3876, 4
        %v3878 = vadd.f32 %v3876, %v3877
        %v3879 = vrot.slane %v3878, 2
        %v3880 = vadd.f32 %v3878, %v3879
        %v3881 = vrot.slane %v3880, 1
        %v3882 = vadd.f32 %v3880, %v3881
        %v3883 = vmul.f32 %v3846, %v3846
        %v3884 = vmul.f32 %v3847, %v3847
        %v3885 = vmul.f32 %v3848, %v3848
        %v3886 = vmul.f32 %v3849, %v3849
        %v3887 = vmul.f32 %v3850, %v3850
        %v3888 = vmul.f32 %v3851, %v3851
        %v3889 = vmul.f32 %v3852, %v3852
        %v3890 = vmul.f32 %v3853, %v3853
        %v3891 = vmul.f32 %v3854, %v3854
        %v3892 = vmul.f32 %v3855, %v3855
        %v3893 = vmul.f32 %v3856, %v3856
        %v3894 = vmul.f32 %v3857, %v3857
        %v3895 = vmul.f32 %v3858, %v3858
        %v3896 = vmul.f32 %v3859, %v3859
        %v3897 = vmul.f32 %v3860, %v3860
        %v3898 = vmul.f32 %v3861, %v3861
        %v3899 = vadd.f32 %v3883, %v3884
        %v3900 = vadd.f32 %v3899, %v3885
        %v3901 = vadd.f32 %v3900, %v3886
        %v3902 = vadd.f32 %v3901, %v3887
        %v3903 = vadd.f32 %v3902, %v3888
        %v3904 = vadd.f32 %v3903, %v3889
        %v3905 = vadd.f32 %v3904, %v3890
        %v3906 = vadd.f32 %v3905, %v3891
        %v3907 = vadd.f32 %v3906, %v3892
        %v3908 = vadd.f32 %v3907, %v3893
        %v3909 = vadd.f32 %v3908, %v3894
        %v3910 = vadd.f32 %v3909, %v3895
        %v3911 = vadd.f32 %v3910, %v3896
        %v3912 = vadd.f32 %v3911, %v3897
        %v3913 = vadd.f32 %v3912, %v3898
        %v3914 = vrot.slane %v3913, 4
        %v3915 = vadd.f32 %v3913, %v3914
        %v3916 = vrot.slane %v3915, 2
        %v3917 = vadd.f32 %v3915, %v3916
        %v3918 = vrot.slane %v3917, 1
        %v3919 = vadd.f32 %v3917, %v3918
        %vm3920 = vcmask 1040384
        %v3921 = vsel %vm3920, %v3882, %v3919
        %3922 = vst [vmem:[%s477] sm:$0x3] %v3921
        %v3923 = vpack.c.bf16 %v3847, %v3846
        %v3924 = vpack.c.bf16 %v3849, %v3848
        %v3925 = vpack.c.bf16 %v3851, %v3850
        %v3926 = vpack.c.bf16 %v3853, %v3852
        %v3927 = vpack.c.bf16 %v3855, %v3854
        %v3928 = vpack.c.bf16 %v3857, %v3856
        %v3929 = vpack.c.bf16 %v3859, %v3858
        %v3930 = vpack.c.bf16 %v3861, %v3860
        %v3939 = vunpack.c.l.b16 %v3923
        %v3940 = vunpack.c.h.b16 %v3923
        %v3941 = vunpack.c.l.b16 %v3924
        %v3942 = vunpack.c.h.b16 %v3924
        %v3943 = vunpack.c.l.b16 %v3925
        %v3944 = vunpack.c.h.b16 %v3925
        %v3945 = vunpack.c.l.b16 %v3926
        %v3946 = vunpack.c.h.b16 %v3926
        %v3947 = vunpack.c.l.b16 %v3927
        %v3948 = vunpack.c.h.b16 %v3927
        %v3949 = vunpack.c.l.b16 %v3928
        %v3950 = vunpack.c.h.b16 %v3928
        %v3951 = vunpack.c.l.b16 %v3929
        %v3952 = vunpack.c.h.b16 %v3929
        %v3953 = vunpack.c.l.b16 %v3930
        %v3954 = vunpack.c.h.b16 %v3930
        %v3955 = vpack.c.b16 %v3939, %v3939
        %v3956 = vpack.c.b16 %v3940, %v3940
        %v3957 = vpack.c.b16 %v3941, %v3941
        %v3958 = vpack.c.b16 %v3942, %v3942
        %v3959 = vpack.c.b16 %v3943, %v3943
        %v3960 = vpack.c.b16 %v3944, %v3944
        %v3961 = vpack.c.b16 %v3945, %v3945
        %v3962 = vpack.c.b16 %v3946, %v3946
        %v3963 = vpack.c.b16 %v3947, %v3947
        %v3964 = vpack.c.b16 %v3948, %v3948
        %v3965 = vpack.c.b16 %v3949, %v3949
        %v3966 = vpack.c.b16 %v3950, %v3950
        %v3967 = vpack.c.b16 %v3951, %v3951
        %v3968 = vpack.c.b16 %v3952, %v3952
        %v3969 = vpack.c.b16 %v3953, %v3953
        %v3970 = vpack.c.b16 %v3954, %v3954
        %3987 = vst [vmem:[%s470] sm:$0xf] %v3955
        %3988 = vst [vmem:[%s470 + $0x4] sm:$0xf] %v3956
        %3989 = vst [vmem:[%s470 + $0x8] sm:$0xf] %v3957
        %3990 = vst [vmem:[%s470 + $0xc] sm:$0xf] %v3958
        %3991 = vst [vmem:[%s470 + $0x10] sm:$0xf] %v3959
        %3992 = vst [vmem:[%s470 + $0x14] sm:$0xf] %v3960
        %3993 = vst [vmem:[%s470 + $0x18] sm:$0xf] %v3961
        %3994 = vst [vmem:[%s470 + $0x1c] sm:$0xf] %v3962
        %3995 = vst [vmem:[%s470 + $0x20] sm:$0xf] %v3963
        %3996 = vst [vmem:[%s470 + $0x24] sm:$0xf] %v3964
        %3997 = vst [vmem:[%s470 + $0x28] sm:$0xf] %v3965
        %3998 = vst [vmem:[%s470 + $0x2c] sm:$0xf] %v3966
        %3999 = vst [vmem:[%s470 + $0x30] sm:$0xf] %v3967
        %4000 = vst [vmem:[%s470 + $0x34] sm:$0xf] %v3968
        %4001 = vst [vmem:[%s470 + $0x38] sm:$0xf] %v3969
        %4002 = vst [vmem:[%s470 + $0x3c] sm:$0xf] %v3970
        %s4003 = sand.u32 %s218, 1
        %s4004 = scalar_lea.sflag [#allocation5], %s4003
        %s4005 = sand.u32 %s218, 1
        %s4006 = smul.addr %s4005, 64
        %s4007 = scalar_lea.vmem [#allocation14], %s4006
        %s4008 = sand.u32 %s246, 1
        %s4009 = scalar_lea.sflag [#allocation16], %s4008
        %s4010 = sand.u32 %s246, 1
        %s4011 = smul.addr %s4010, 2
        %s4012 = scalar_lea.vmem [#allocation15], %s4011
        // Predicated region
        $region69: #{double_conv.4} parent=43 // pred_check
          %p4013 = pneg %p228
        $region70: #{double_conv.4} parent=43 // pred_check_branch
          %4015 = sbr.rel (%p4013) target = $region72
        $region71: #{double_conv.4} parent=43 // pred_region
          %s4016 = smul.u32 8, %s38
          %s4018 = ssub.s32 1024, 1024
          %4019 = vsyncadd %s4004, %s4018
          %s4020 = smul.addr %s4016, 2
          %s4021 = smul.addr %s37, 32
          %s4022 = sadd.s32 %s4020, %s4021
          %s4023 = smul.addr %s4022, 64
          %s4024 = scalar_lea.hbm %s6, %s4023
          %s4025 = sshll.u32 %s4007, 4
          %s4026 = int_to_ptr.vmem [resolvable:$true] %s4025
          %4031 = dma.vmem_to_hbm [thread:$0]  %s4026, 1024, %s4024, %s4004, 64, 64, 4
        $region72: #{double_conv.4} parent=43 // pred_fallthru
          _
        // Predicated region
        $region73: #{double_conv.4} parent=43 // pred_check
          %p4032 = pneg %p256
        $region74: #{double_conv.4} parent=43 // pred_check_branch
          %4034 = sbr.rel (%p4032) target = $region76
        $region75: #{double_conv.4} parent=43 // pred_region
          %s4036 = ssub.s32 32, 32
          %4037 = vsyncadd %s4009, %s4036
          %s4038 = smul.addr %s37, 2
          %s4039 = sadd.s32 %s38, %s4038
          %s4040 = smul.addr %s4039, 32
          %s4041 = scalar_lea.hbm %s7, %s4040
          %s4043 = sshll.u32 %s4012, 4
          %s4044 = int_to_ptr.vmem [resolvable:$true] %s4043
          %4046 = dma.vmem_to_hbm [thread:$0]  %s4044, 32, %s4041, %s4009
        $region76: #{double_conv.4} parent=43 // pred_fallthru
          _
      $region44: #{double_conv.4} parent=5 // pred_fallthru
        _
      %p4047 = scmp.le.s32.totalorder 2, %s28
      // Predicated region
      $region77: #{double_conv.4} parent=5 // pred_check
        %p4048 = pneg %p4047
      $region78: #{double_conv.4} parent=5 // pred_check_branch
        %4050 = sbr.rel (%p4048) target = $region80
      $region79: #{double_conv.4} parent=5 // pred_region
        %s4051 = ssub.s32 %s28, 2
        // Predicated region
        $region81: #{double_conv.4} parent=79 // pred_check
          %p4052 = pneg %p234
        $region82: #{double_conv.4} parent=79 // pred_check_branch
          %4054 = sbr.rel (%p4052) target = $region84
        $region83: #{double_conv.4} parent=79 // pred_region
          %s4055 = sand.u32 %s219, 1
          %s4056 = scalar_lea.sflag [#allocation5], %s4055
          %s4057 = sand.u32 %s219, 1
          %s4058 = smul.addr %s4057, 64
          %s4059 = scalar_lea.vmem [#allocation14], %s4058
          %4060 = dma.done %s4056, 1024
        $region84: #{double_conv.4} parent=79 // pred_fallthru
          _
        // Predicated region
        $region85: #{double_conv.4} parent=79 // pred_check
          %p4061 = pneg %p262
        $region86: #{double_conv.4} parent=79 // pred_check_branch
          %4063 = sbr.rel (%p4061) target = $region88
        $region87: #{double_conv.4} parent=79 // pred_region
          %s4064 = sand.u32 %s247, 1
          %s4065 = scalar_lea.sflag [#allocation16], %s4064
          %s4066 = sand.u32 %s247, 1
          %s4067 = smul.addr %s4066, 2
          %s4068 = scalar_lea.vmem [#allocation15], %s4067
          %4069 = dma.done %s4065, 32
        $region88: #{double_conv.4} parent=79 // pred_fallthru
          _
      $region80: #{double_conv.4} parent=5 // pred_fallthru
        _
    $region6: #{double_conv.4} parent=1 // loop_footer
      %s32 = sadd.s32 1, %s28
    $region7: #{double_conv.4} parent=1 // loop_footer_branch
      %27 = sbr.rel target = $region3
    $region8: #{double_conv.4} parent=1 // loop_exit
      _
    %4070 = vsyncpa [#allocation4], 1
    %s4071 = scalar_lea.sflag [#allocation4], 1
    %4072 = vsyncpa %s4071, 1
    %4073 = vsyncpa [#allocation7], 1
    %s4074 = scalar_lea.sflag [#allocation7], 1
    %4075 = vsyncpa %s4074, 1
    %4076 = vsyncpa [#allocation10], 1
    %4077 = vsyncpa [#allocation13], 1
    %4078 = vsyncpa [#allocation5], 1
    %s4079 = scalar_lea.sflag [#allocation5], 1
    %4080 = vsyncpa %s4079, 1
    %4081 = vsyncpa [#allocation16], 1
    %s4082 = scalar_lea.sflag [#allocation16], 1
    %4083 = vsyncpa %s4082, 1

</llo_original>
